<compile_context>
chip_gen: v5e
topology: v5e:2x2
jax: 0.10.0
libtpu: 0.0.40
codegen_flags: <defaults>
</compile_context>

<pallas_src>
import functools

import numpy as np

import jax
import jax.numpy as jnp
from jax import lax
from jax.experimental import pallas as pl
from jax.experimental.pallas import tpu as pltpu


# ---------------------------------------------------------------------------
# Pallas kernel 1: fused  W @ (tile of X) + bias + LeakyReLU(0.2)
# Lane-dense: output tile is (Cout, tile_m); big M = B*OH*OW on the lane axis.
# Used for conv0 / conv1 -- the only layers with non-trivial bytes / FLOPs.
# ---------------------------------------------------------------------------
def _gemm_bias_act_kernel(w_ref, x_ref, b_ref, o_ref, *, neg_slope):
    acc = jnp.dot(w_ref[...], x_ref[...], preferred_element_type=jnp.float32)
    acc = acc + b_ref[...]                       # (N, 1) broadcasts over lanes
    acc = jnp.where(acc >= 0, acc, neg_slope * acc)
    o_ref[...] = acc.astype(o_ref.dtype)


def pallas_gemm_t(w, x, b, *, neg_slope=0.2, tile_m=2048,
                  out_dtype=jnp.bfloat16):
    """out = leaky_relu(w @ x + b[:, None]).  w:(N,K) x:(K,M) b:(N,) -> (N,M)."""
    N, K = w.shape
    Kx, M = x.shape
    assert K == Kx
    bm = M if M <= tile_m else tile_m
    grid = (pl.cdiv(M, bm),)                     # partial last block is masked
    b2 = b.reshape(N, 1).astype(jnp.float32)

    kernel = functools.partial(_gemm_bias_act_kernel, neg_slope=neg_slope)
    return pl.pallas_call(
        kernel,
        out_shape=jax.ShapeDtypeStruct((N, M), out_dtype),
        grid=grid,
        in_specs=[
            pl.BlockSpec((N, K), lambda i: (0, 0)),    # weights, VMEM-resident
            pl.BlockSpec((K, bm), lambda i: (0, i)),   # patch columns
            pl.BlockSpec((N, 1), lambda i: (0, 0)),    # bias
        ],
        out_specs=pl.BlockSpec((N, bm), lambda i: (0, i)),
        compiler_params=pltpu.CompilerParams(
            dimension_semantics=("parallel",)),        # >=2 steps -> v7x megacore
    )(w, x, b2)


# ---------------------------------------------------------------------------
# Pallas kernel 2: fused tail  (conv2 -> conv3 -> conv4 -> combined FC)
# conv3/conv4 im2col is done in-kernel with precomputed 0/1 gather matrices:
#   column block t of (y @ G) == conv patch rows for kernel tap t.
# ---------------------------------------------------------------------------
def _tail_kernel(p2_ref, w2_ref, b2_ref, g3_ref, w3_ref, b3_ref,
                 g4_ref, w4_ref, b4_ref, wc_ref, out_ref, *,
                 neg_slope, bw3, bw4):
    def lrelu(v):
        return jnp.where(v >= 0, v, neg_slope * v)

    # ---- conv2: (16, 400) @ (400, M2) + bias, LeakyReLU ----------------------
    y2 = jnp.dot(w2_ref[...], p2_ref[...], preferred_element_type=jnp.float32)
    y2 = lrelu(y2 + b2_ref[...])                               # (16, M2) f32

    # ---- conv3: in-kernel im2col via gather matmul, 9 tap accumulations ------
    gathered3 = jnp.dot(y2.astype(jnp.bfloat16), g3_ref[...],
                        preferred_element_type=jnp.float32)    # (16, 9*bw3)
    acc3 = jnp.zeros((16, bw3), jnp.float32)
    for t in range(9):
        blk = gathered3[:, t * bw3:(t + 1) * bw3]              # static slices
        wt = w3_ref[:, t * 16:(t + 1) * 16]
        acc3 = acc3 + jnp.dot(wt, blk, preferred_element_type=jnp.float32)
    y3 = lrelu(acc3 + b3_ref[...])                             # (16, bw3) f32

    # ---- conv4 ---------------------------------------------------------------
    gathered4 = jnp.dot(y3.astype(jnp.bfloat16), g4_ref[...],
                        preferred_element_type=jnp.float32)    # (16, 9*bw4)
    acc4 = jnp.zeros((16, bw4), jnp.float32)
    for t in range(9):
        blk = gathered4[:, t * bw4:(t + 1) * bw4]
        wt = w4_ref[:, t * 16:(t + 1) * 16]
        acc4 = acc4 + jnp.dot(wt, blk, preferred_element_type=jnp.float32)
    y4 = lrelu(acc4 + b4_ref[...])                             # (16, B*16) f32

    # ---- fused FC pair: theta = feat @ (W_fc2 @ W_fc1).T ---------------------
    # wc_ref[k*16 + c, b*16 + hw] = (W_fc2 @ W_fc1)[k, c*16 + hw].
    # Contract the channel axis (rows) here; the wrapper finishes the tiny
    # per-batch hw reduction (keeps the kernel free of cross-lane reductions).
    wc = wc_ref[...]
    for k in range(2):
        prod = wc[k * 16:(k + 1) * 16, :] * y4                  # (16, B*16)
        out_ref[k:k + 1, :] = jnp.sum(prod, axis=0, keepdims=True)


def fused_tail_call(p2, w2m, b2, g3, w3r, b3, g4, w4r, b4, wc_big):
    bw3 = g3.shape[1] // 9
    bw4 = g4.shape[1] // 9
    n_out = wc_big.shape[1]

    def full(a):
        nd = a.ndim
        return pl.BlockSpec(a.shape, lambda i, nd=nd: (0,) * nd)

    kernel = functools.partial(_tail_kernel, neg_slope=0.2, bw3=bw3, bw4=bw4)
    return pl.pallas_call(
        kernel,
        out_shape=jax.ShapeDtypeStruct((2, n_out), jnp.float32),
        grid=(1,),
        in_specs=[full(p2), full(w2m), full(b2), full(g3), full(w3r), full(b3),
                  full(g4), full(w4r), full(b4), full(wc_big)],
        out_specs=pl.BlockSpec((2, n_out), lambda i: (0, 0)),
        compiler_params=pltpu.CompilerParams(
            dimension_semantics=("arbitrary",)),
    )(p2, w2m, b2, g3, w3r, b3, g4, w4r, b4, wc_big)


# ---------------------------------------------------------------------------
# Wrapper-side helpers
# ---------------------------------------------------------------------------
def _im2col_kxm(x_cbhw, *, k, stride, padding, pad_k_to=None):
    """im2col in transposed (K, M) orientation (bf16).
    K order = (kh, kw, cin); M order = (b, oh, ow)."""
    x = x_cbhw.astype(jnp.bfloat16)              # cast+pad fuse into one pass
    Cin, B, H, W = x.shape
    OH = (H + 2 * padding - k) // stride + 1
    OW = (W + 2 * padding - k) // stride + 1
    xp = jnp.pad(x, ((0, 0), (0, 0), (padding, padding), (padding, padding)))
    slices = []
    for kh in range(k):
        for kw in range(k):
            slices.append(xp[:, :, kh:kh + stride * (OH - 1) + 1:stride,
                                    kw:kw + stride * (OW - 1) + 1:stride])
    if pad_k_to is not None:
        extra_rows = (-k * k * Cin) % pad_k_to
        assert extra_rows % Cin == 0
        for _ in range(extra_rows // Cin):       # zero taps -> K % pad_k_to == 0
            slices.append(jnp.zeros_like(slices[0]))
    patches = jnp.stack(slices, axis=0)          # (T, Cin, B, OH, OW)
    pm = patches.reshape(patches.shape[0] * Cin, B * OH * OW)
    return pm, OH, OW


def _conv_weight_matrix(w_oihw, *, pad_k_to=None):
    Cout, Cin, KH, KW = w_oihw.shape
    wm = jnp.transpose(w_oihw, (0, 2, 3, 1)).reshape(Cout, KH * KW * Cin)
    if pad_k_to is not None:
        extra = (-wm.shape[1]) % pad_k_to
        if extra:
            wm = jnp.pad(wm, ((0, 0), (0, extra)))
    return wm.astype(jnp.bfloat16)


def conv2d_lrelu(x_cbhw, w_oihw, b, *, stride, padding, tile_m):
    """Conv2d + LeakyReLU(0.2) as a lane-dense Pallas GEMM.  Activations flow
    in (C, B, H, W) layout so the (Cout, M) output reshapes straight into the
    next layer's im2col source."""
    Cout = w_oihw.shape[0]
    B = x_cbhw.shape[1]
    pm, OH, OW = _im2col_kxm(x_cbhw, k=w_oihw.shape[2], stride=stride,
                             padding=padding, pad_k_to=16)
    wm = _conv_weight_matrix(w_oihw, pad_k_to=16)
    out = pallas_gemm_t(wm, pm, b, tile_m=tile_m)        # (Cout, B*OH*OW)
    return out.reshape(Cout, B, OH, OW)


def _gather_matrix(B, H, W, k, stride, pad, OH, OW):
    """0/1 matrix G so that column block t (width B*OH*OW) of  y @ G  equals
    the conv patch rows for kernel tap t = kh*k + kw (zeros where the tap
    reads zero padding).  y columns are ordered (b, h, w)."""
    block_w = B * OH * OW
    G = np.zeros((B * H * W, k * k * block_w), np.float32)
    for kh in range(k):
        for kw in range(k):
            t = kh * k + kw
            for b in range(B):
                for oh in range(OH):
                    for ow in range(OW):
                        h = oh * stride + kh - pad
                        w = ow * stride + kw - pad
                        if 0 <= h < H and 0 <= w < W:
                            G[b * H * W + h * W + w,
                              t * block_w + b * OH * OW + oh * OW + ow] = 1.0
    return G


def make_tail_constants(B):
    # Spatial sizes fixed by the architecture (256 -> 86 -> 43 -> 15 -> 8 -> 4).
    return {
        "g3": jnp.asarray(_gather_matrix(B, 15, 15, 3, 2, 1, 8, 8), jnp.bfloat16),
        "g4": jnp.asarray(_gather_matrix(B, 8, 8, 3, 2, 1, 4, 4), jnp.bfloat16),
    }


# ---------------------------------------------------------------------------
# fSTN parameters (deterministic, synthetic) and forward
# ---------------------------------------------------------------------------
_CONV_CFGS = [
    # (cin, cout, k, stride, pad)
    (2, 16, 7, 3, 3),
    (16, 16, 3, 2, 1),
    (16, 16, 5, 3, 2),
    (16, 16, 3, 2, 1),
    (16, 16, 3, 2, 1),
]


def init_params(key):
    params = {}
    for i, (cin, cout, k, _, _) in enumerate(_CONV_CFGS):
        key, kw, kb = jax.random.split(key, 3)
        fan_in = cin * k * k
        params[f"conv{i}_w"] = (
            jax.random.normal(kw, (cout, cin, k, k), jnp.float32)
            / jnp.sqrt(fan_in))
        params[f"conv{i}_b"] = jax.random.normal(kb, (cout,), jnp.float32) * 0.01
    key, k1, k2 = jax.random.split(key, 3)
    params["fc1_w"] = jax.random.normal(k1, (64, 16 * 4 * 4), jnp.float32) / 16.0
    params["fc2_w"] = jax.random.normal(k2, (2, 64), jnp.float32) / 8.0
    return params


def fstn_forward(x_nchw, params, consts):
    B = x_nchw.shape[0]
    # NCHW -> (C, B, H, W): lane-dense GEMM outputs reshape directly into the
    # next layer's im2col source (no inter-layer activation transposes).
    x = jnp.transpose(x_nchw, (1, 0, 2, 3))

    # conv0 / conv1: the only layers with real data volume -> Pallas GEMMs,
    # each with a parallel M axis of 2 grid steps.
    y0 = conv2d_lrelu(x, params["conv0_w"], params["conv0_b"],
                      stride=3, padding=3, tile_m=7424)      # (16, B, 86, 86)
    y1 = conv2d_lrelu(y0, params["conv1_w"], params["conv1_b"],
                      stride=2, padding=1, tile_m=2048)      # (16, B, 43, 43)

    # conv2 im2col in the wrapper (its input comes from HBM anyway): (400, M2)
    p2, _, _ = _im2col_kxm(y1, k=5, stride=3, padding=2)

    # Reordered / combined small weights for the fused tail kernel.
    w2m = jnp.transpose(params["conv2_w"], (0, 2, 3, 1)).reshape(16, 400)
    w3r = jnp.transpose(params["conv3_w"], (0, 2, 3, 1)).reshape(16, 144)
    w4r = jnp.transpose(params["conv4_w"], (0, 2, 3, 1)).reshape(16, 144)
    wc = jnp.dot(params["fc2_w"], params["fc1_w"],
                 precision=lax.Precision.HIGHEST)            # (2, 256)
    wc_big = jnp.broadcast_to(wc.reshape(2, 16, 1, 16),
                              (2, 16, B, 16)).reshape(32, B * 16)

    partial = fused_tail_call(
        p2,
        w2m.astype(jnp.bfloat16),
        params["conv2_b"].reshape(16, 1).astype(jnp.float32),
        consts["g3"],
        w3r.astype(jnp.float32),
        params["conv3_b"].reshape(16, 1).astype(jnp.float32),
        consts["g4"],
        w4r.astype(jnp.float32),
        params["conv4_b"].reshape(16, 1).astype(jnp.float32),
        wc_big.astype(jnp.float32))                          # (2, B*16)

    # Finish the tiny per-batch reduction and assemble the affine matrix
    # (12 floats -- pure XLA, a pallas launch would cost more than the math).
    theta = partial.reshape(2, B, 16).sum(axis=-1).T.reshape(B, 2, 1)
    eye = jnp.broadcast_to(jnp.array([[1.0, 0.0], [0.0, 1.0]], jnp.float32),
                           (B, 2, 2))
    return jnp.concatenate([eye, theta], axis=2)             # (B, 2, 3)


# ---------------------------------------------------------------------------
# Pure-JAX f32 reference (for tolerance validation)
# ---------------------------------------------------------------------------
def fstn_reference(x_nchw, params):
    y = x_nchw
    for i, (_, _, k, s, p) in enumerate(_CONV_CFGS):
        y = lax.conv_general_dilated(
            y, params[f"conv{i}_w"], window_strides=(s, s),
            padding=[(p, p), (p, p)],
            dimension_numbers=("NCHW", "OIHW", "NCHW"),
            precision=lax.Precision.HIGHEST)
        y = y + params[f"conv{i}_b"].reshape(1, -1, 1, 1)
        y = jnp.where(y >= 0, y, 0.2 * y)
    B = y.shape[0]
    feat = y.reshape(B, 16 * 4 * 4)
    h = jnp.dot(feat, params["fc1_w"].T, precision=lax.Precision.HIGHEST)
    theta = jnp.dot(h, params["fc2_w"].T, precision=lax.Precision.HIGHEST)
    theta = theta.reshape(B, 2, 1)
    eye = jnp.broadcast_to(jnp.array([[1.0, 0.0], [0.0, 1.0]], jnp.float32),
                           (B, 2, 2))
    return jnp.concatenate([eye, theta], axis=2)


# ---------------------------------------------------------------------------
if __name__ == "__main__":
    # Smallest "natural" spatial size for this localization net:
    # 256 -> 86 -> 43 -> 15 -> 8 -> 4, so the flatten to 16*4*4 is exact.
    B, C, H, W = 2, 2, 256, 256
    key = jax.random.PRNGKey(0)
    kx, kp = jax.random.split(key)
    x = jax.random.normal(kx, (B, C, H, W), jnp.float32)
    params = init_params(kp)
    consts = make_tail_constants(B)

    fwd = jax.jit(fstn_forward)
    affine = jax.block_until_ready(fwd(x, params, consts))

    assert affine.shape == (B, 2, 3), affine.shape
    assert affine.dtype == jnp.float32
    assert bool(jnp.all(jnp.isfinite(affine)))

    # Validate against the f32 reference (review correctness concern): only the
    # bf16 quantization of GEMM operands separates the two paths (drift ~1e-2).
    ref = fstn_reference(x, params)
    err = float(jnp.max(jnp.abs(affine - ref)))
    scale = float(jnp.max(jnp.abs(ref)))
    assert err <= 0.1 * (1.0 + scale), ("numerics mismatch", err, scale)

    print("KERNEL_OK")
</pallas_src>

<mosaic_0001>
module attributes {stable_mosaic.version = 11 : i64} {
  func.func @_gemm_bias_act_kernel(%arg0: i32, %arg1: memref<16x112xbf16, #tpu.memory_space<vmem>>, %arg2: memref<112x7424xbf16, #tpu.memory_space<vmem>>, %arg3: memref<16x1xf32, #tpu.memory_space<vmem>>, %arg4: memref<16x7424xbf16, #tpu.memory_space<vmem>>) attributes {dimension_semantics = [#tpu.dimension_semantics<parallel>], iteration_bounds = array<i64: 2>, scalar_prefetch = 0 : i64, scratch_operands = 0 : i64, tpu.core_type = #tpu.core_type<tc>, window_params = [{pipeline_mode = #tpu.pipeline_mode<synchronous>, transform_indices = @transform_0, window_bounds = array<i64: 16, 112>}, {transform_indices = @transform_1, window_bounds = array<i64: 112, 7424>}, {pipeline_mode = #tpu.pipeline_mode<synchronous>, transform_indices = @transform_2, window_bounds = array<i64: 16, 1>}, {transform_indices = @transform_3, window_bounds = array<i64: 16, 7424>}]} {
    %c0 = arith.constant 0 : index
    %c0_0 = arith.constant 0 : index
    %0 = vector.load %arg1[%c0, %c0_0] : memref<16x112xbf16, #tpu.memory_space<vmem>>, vector<16x112xbf16>
    %c0_1 = arith.constant 0 : index
    %c0_2 = arith.constant 0 : index
    %1 = vector.load %arg2[%c0_1, %c0_2] : memref<112x7424xbf16, #tpu.memory_space<vmem>>, vector<112x7424xbf16>
    %cst = arith.constant dense<0.000000e+00> : vector<16x7424xf32>
    %2 = tpu.matmul %0, %1, %cst {dimension_numbers = #tpu.dot_dimension_numbers<[1], [0], [0], [1], [0, 0, 1, 1], [], []>} : vector<16x112xbf16>, vector<112x7424xbf16>, vector<16x7424xf32> -> vector<16x7424xf32>
    %c0_3 = arith.constant 0 : index
    %c0_4 = arith.constant 0 : index
    %3 = vector.load %arg3[%c0_3, %c0_4] : memref<16x1xf32, #tpu.memory_space<vmem>>, vector<16x1xf32>
    %4 = vector.broadcast %3 : vector<16x1xf32> to vector<16x7424xf32>
    %5 = arith.addf %2, %4 : vector<16x7424xf32>
    %cst_5 = arith.constant 0.000000e+00 : f32
    %6 = vector.broadcast %cst_5 : f32 to vector<16x7424xf32>
    %7 = arith.cmpf oge, %5, %6 : vector<16x7424xf32>
    %cst_6 = arith.constant 2.000000e-01 : f32
    %8 = vector.broadcast %cst_6 : f32 to vector<16x7424xf32>
    %9 = arith.mulf %8, %5 : vector<16x7424xf32>
    %10 = arith.select %7, %5, %9 : vector<16x7424xi1>, vector<16x7424xf32>
    %11 = arith.truncf %10 : vector<16x7424xf32> to vector<16x7424xbf16>
    %c0_7 = arith.constant 0 : index
    %c0_8 = arith.constant 0 : index
    %12 = vector.load %arg4[%c0_7, %c0_8] : memref<16x7424xbf16, #tpu.memory_space<vmem>>, vector<16x7424xbf16>
    tpu.vector_store %arg4[%c0_7, %c0_8], %11 {strides = array<i32>} : memref<16x7424xbf16, #tpu.memory_space<vmem>>, vector<16x7424xbf16>,
    return
  }
  func.func @transform_0(%arg0: i32) -> (i32, i32) {
    %c0_i32 = arith.constant 0 : i32
    %c0_i32_0 = arith.constant 0 : i32
    %c0_i32_1 = arith.constant 0 : i32
    return %c0_i32, %c0_i32_0 : i32, i32
  }
  func.func @transform_1(%arg0: i32) -> (i32, i32) {
    %c0_i32 = arith.constant 0 : i32
    %c0_i32_0 = arith.constant 0 : i32
    return %c0_i32, %arg0 : i32, i32
  }
  func.func @transform_2(%arg0: i32) -> (i32, i32) {
    %c0_i32 = arith.constant 0 : i32
    %c0_i32_0 = arith.constant 0 : i32
    %c0_i32_1 = arith.constant 0 : i32
    return %c0_i32, %c0_i32_0 : i32, i32
  }
  func.func @transform_3(%arg0: i32) -> (i32, i32) {
    %c0_i32 = arith.constant 0 : i32
    %c0_i32_0 = arith.constant 0 : i32
    return %c0_i32, %arg0 : i32, i32
  }
}

module attributes {stable_mosaic.version = 11 : i64} {
  func.func @_gemm_bias_act_kernel(%arg0: i32, %arg1: memref<16x144xbf16, #tpu.memory_space<vmem>>, %arg2: memref<144x2048xbf16, #tpu.memory_space<vmem>>, %arg3: memref<16x1xf32, #tpu.memory_space<vmem>>, %arg4: memref<16x2048xbf16, #tpu.memory_space<vmem>>) attributes {dimension_semantics = [#tpu.dimension_semantics<parallel>], iteration_bounds = array<i64: 2>, scalar_prefetch = 0 : i64, scratch_operands = 0 : i64, tpu.core_type = #tpu.core_type<tc>, window_params = [{pipeline_mode = #tpu.pipeline_mode<synchronous>, transform_indices = @transform_0, window_bounds = array<i64: 16, 144>}, {transform_indices = @transform_1, window_bounds = array<i64: 144, 2048>}, {pipeline_mode = #tpu.pipeline_mode<synchronous>, transform_indices = @transform_2, window_bounds = array<i64: 16, 1>}, {transform_indices = @transform_3, window_bounds = array<i64: 16, 2048>}]} {
    %c0 = arith.constant 0 : index
    %c0_0 = arith.constant 0 : index
    %0 = vector.load %arg1[%c0, %c0_0] : memref<16x144xbf16, #tpu.memory_space<vmem>>, vector<16x144xbf16>
    %c0_1 = arith.constant 0 : index
    %c0_2 = arith.constant 0 : index
    %1 = vector.load %arg2[%c0_1, %c0_2] : memref<144x2048xbf16, #tpu.memory_space<vmem>>, vector<144x2048xbf16>
    %cst = arith.constant dense<0.000000e+00> : vector<16x2048xf32>
    %2 = tpu.matmul %0, %1, %cst {dimension_numbers = #tpu.dot_dimension_numbers<[1], [0], [0], [1], [0, 0, 1, 1], [], []>} : vector<16x144xbf16>, vector<144x2048xbf16>, vector<16x2048xf32> -> vector<16x2048xf32>
    %c0_3 = arith.constant 0 : index
    %c0_4 = arith.constant 0 : index
    %3 = vector.load %arg3[%c0_3, %c0_4] : memref<16x1xf32, #tpu.memory_space<vmem>>, vector<16x1xf32>
    %4 = vector.broadcast %3 : vector<16x1xf32> to vector<16x2048xf32>
    %5 = arith.addf %2, %4 : vector<16x2048xf32>
    %cst_5 = arith.constant 0.000000e+00 : f32
    %6 = vector.broadcast %cst_5 : f32 to vector<16x2048xf32>
    %7 = arith.cmpf oge, %5, %6 : vector<16x2048xf32>
    %cst_6 = arith.constant 2.000000e-01 : f32
    %8 = vector.broadcast %cst_6 : f32 to vector<16x2048xf32>
    %9 = arith.mulf %8, %5 : vector<16x2048xf32>
    %10 = arith.select %7, %5, %9 : vector<16x2048xi1>, vector<16x2048xf32>
    %11 = arith.truncf %10 : vector<16x2048xf32> to vector<16x2048xbf16>
    %c0_7 = arith.constant 0 : index
    %c0_8 = arith.constant 0 : index
    %12 = vector.load %arg4[%c0_7, %c0_8] : memref<16x2048xbf16, #tpu.memory_space<vmem>>, vector<16x2048xbf16>
    tpu.vector_store %arg4[%c0_7, %c0_8], %11 {strides = array<i32>} : memref<16x2048xbf16, #tpu.memory_space<vmem>>, vector<16x2048xbf16>,
    return
  }
  func.func @transform_0(%arg0: i32) -> (i32, i32) {
    %c0_i32 = arith.constant 0 : i32
    %c0_i32_0 = arith.constant 0 : i32
    %c0_i32_1 = arith.constant 0 : i32
    return %c0_i32, %c0_i32_0 : i32, i32
  }
  func.func @transform_1(%arg0: i32) -> (i32, i32) {
    %c0_i32 = arith.constant 0 : i32
    %c0_i32_0 = arith.constant 0 : i32
    return %c0_i32, %arg0 : i32, i32
  }
  func.func @transform_2(%arg0: i32) -> (i32, i32) {
    %c0_i32 = arith.constant 0 : i32
    %c0_i32_0 = arith.constant 0 : i32
    %c0_i32_1 = arith.constant 0 : i32
    return %c0_i32, %c0_i32_0 : i32, i32
  }
  func.func @transform_3(%arg0: i32) -> (i32, i32) {
    %c0_i32 = arith.constant 0 : i32
    %c0_i32_0 = arith.constant 0 : i32
    return %c0_i32, %arg0 : i32, i32
  }
}

module attributes {stable_mosaic.version = 11 : i64} {
  func.func @_tail_kernel(%arg0: i32, %arg1: memref<400x450xbf16, #tpu.memory_space<vmem>>, %arg2: memref<16x400xbf16, #tpu.memory_space<vmem>>, %arg3: memref<16x1xf32, #tpu.memory_space<vmem>>, %arg4: memref<450x1152xbf16, #tpu.memory_space<vmem>>, %arg5: memref<16x144xf32, #tpu.memory_space<vmem>>, %arg6: memref<16x1xf32, #tpu.memory_space<vmem>>, %arg7: memref<128x288xbf16, #tpu.memory_space<vmem>>, %arg8: memref<16x144xf32, #tpu.memory_space<vmem>>, %arg9: memref<16x1xf32, #tpu.memory_space<vmem>>, %arg10: memref<32x32xf32, #tpu.memory_space<vmem>>, %arg11: memref<2x32xf32, #tpu.memory_space<vmem>>) attributes {dimension_semantics = [#tpu.dimension_semantics<arbitrary>], iteration_bounds = array<i64: 1>, scalar_prefetch = 0 : i64, scratch_operands = 0 : i64, tpu.core_type = #tpu.core_type<tc>, window_params = [{pipeline_mode = #tpu.pipeline_mode<synchronous>, transform_indices = @transform_0, window_bounds = array<i64: 400, 450>}, {pipeline_mode = #tpu.pipeline_mode<synchronous>, transform_indices = @transform_1, window_bounds = array<i64: 16, 400>}, {pipeline_mode = #tpu.pipeline_mode<synchronous>, transform_indices = @transform_2, window_bounds = array<i64: 16, 1>}, {pipeline_mode = #tpu.pipeline_mode<synchronous>, transform_indices = @transform_3, window_bounds = array<i64: 450, 1152>}, {pipeline_mode = #tpu.pipeline_mode<synchronous>, transform_indices = @transform_4, window_bounds = array<i64: 16, 144>}, {pipeline_mode = #tpu.pipeline_mode<synchronous>, transform_indices = @transform_5, window_bounds = array<i64: 16, 1>}, {pipeline_mode = #tpu.pipeline_mode<synchronous>, transform_indices = @transform_6, window_bounds = array<i64: 128, 288>}, {pipeline_mode = #tpu.pipeline_mode<synchronous>, transform_indices = @transform_7, window_bounds = array<i64: 16, 144>}, {pipeline_mode = #tpu.pipeline_mode<synchronous>, transform_indices = @transform_8, window_bounds = array<i64: 16, 1>}, {pipeline_mode = #tpu.pipeline_mode<synchronous>, transform_indices = @transform_9, window_bounds = array<i64: 32, 32>}, {pipeline_mode = #tpu.pipeline_mode<synchronous>, transform_indices = @transform_10, window_bounds = array<i64: 2, 32>}]} {
    %c0 = arith.constant 0 : index
    %c0_0 = arith.constant 0 : index
    %0 = vector.load %arg2[%c0, %c0_0] : memref<16x400xbf16, #tpu.memory_space<vmem>>, vector<16x400xbf16>
    %c0_1 = arith.constant 0 : index
    %c0_2 = arith.constant 0 : index
    %1 = vector.load %arg1[%c0_1, %c0_2] : memref<400x450xbf16, #tpu.memory_space<vmem>>, vector<400x450xbf16>
    %cst = arith.constant dense<0.000000e+00> : vector<16x450xf32>
    %2 = tpu.matmul %0, %1, %cst {dimension_numbers = #tpu.dot_dimension_numbers<[1], [0], [0], [1], [0, 0, 1, 1], [], []>} : vector<16x400xbf16>, vector<400x450xbf16>, vector<16x450xf32> -> vector<16x450xf32>
    %c0_3 = arith.constant 0 : index
    %c0_4 = arith.constant 0 : index
    %3 = vector.load %arg3[%c0_3, %c0_4] : memref<16x1xf32, #tpu.memory_space<vmem>>, vector<16x1xf32>
    %4 = vector.broadcast %3 : vector<16x1xf32> to vector<16x450xf32>
    %5 = arith.addf %2, %4 : vector<16x450xf32>
    %cst_5 = arith.constant 0.000000e+00 : f32
    %6 = vector.broadcast %cst_5 : f32 to vector<16x450xf32>
    %7 = arith.cmpf oge, %5, %6 : vector<16x450xf32>
    %cst_6 = arith.constant 2.000000e-01 : f32
    %8 = vector.broadcast %cst_6 : f32 to vector<16x450xf32>
    %9 = arith.mulf %8, %5 : vector<16x450xf32>
    %10 = arith.select %7, %5, %9 : vector<16x450xi1>, vector<16x450xf32>
    %11 = arith.truncf %10 : vector<16x450xf32> to vector<16x450xbf16>
    %c0_7 = arith.constant 0 : index
    %c0_8 = arith.constant 0 : index
    %12 = vector.load %arg4[%c0_7, %c0_8] : memref<450x1152xbf16, #tpu.memory_space<vmem>>, vector<450x1152xbf16>
    %cst_9 = arith.constant dense<0.000000e+00> : vector<16x1152xf32>
    %13 = tpu.matmul %11, %12, %cst_9 {dimension_numbers = #tpu.dot_dimension_numbers<[1], [0], [0], [1], [0, 0, 1, 1], [], []>} : vector<16x450xbf16>, vector<450x1152xbf16>, vector<16x1152xf32> -> vector<16x1152xf32>
    %cst_10 = arith.constant 0.000000e+00 : f32
    %14 = vector.broadcast %cst_10 : f32 to vector<16x128xf32>
    %15 = vector.extract_strided_slice %13 {offsets = [0, 0], sizes = [16, 128], strides = [1, 1]} : vector<16x1152xf32> to vector<16x128xf32>
    %c0_11 = arith.constant 0 : index
    %c0_12 = arith.constant 0 : index
    %16 = vector.load %arg5[%c0_11, %c0_12] : memref<16x144xf32, #tpu.memory_space<vmem>>, vector<16x16xf32>
    %cst_13 = arith.constant dense<0.000000e+00> : vector<16x128xf32>
    %17 = tpu.matmul %16, %15, %cst_13 {dimension_numbers = #tpu.dot_dimension_numbers<[1], [0], [0], [1], [0, 0, 1, 1], [], []>} : vector<16x16xf32>, vector<16x128xf32>, vector<16x128xf32> -> vector<16x128xf32>
    %18 = arith.addf %14, %17 : vector<16x128xf32>
    %19 = vector.extract_strided_slice %13 {offsets = [0, 128], sizes = [16, 128], strides = [1, 1]} : vector<16x1152xf32> to vector<16x128xf32>
    %c0_14 = arith.constant 0 : index
    %c16 = arith.constant 16 : index
    %20 = vector.load %arg5[%c0_14, %c16] : memref<16x144xf32, #tpu.memory_space<vmem>>, vector<16x16xf32>
    %cst_15 = arith.constant dense<0.000000e+00> : vector<16x128xf32>
    %21 = tpu.matmul %20, %19, %cst_15 {dimension_numbers = #tpu.dot_dimension_numbers<[1], [0], [0], [1], [0, 0, 1, 1], [], []>} : vector<16x16xf32>, vector<16x128xf32>, vector<16x128xf32> -> vector<16x128xf32>
    %22 = arith.addf %18, %21 : vector<16x128xf32>
    %23 = vector.extract_strided_slice %13 {offsets = [0, 256], sizes = [16, 128], strides = [1, 1]} : vector<16x1152xf32> to vector<16x128xf32>
    %c0_16 = arith.constant 0 : index
    %c32 = arith.constant 32 : index
    %24 = vector.load %arg5[%c0_16, %c32] : memref<16x144xf32, #tpu.memory_space<vmem>>, vector<16x16xf32>
    %cst_17 = arith.constant dense<0.000000e+00> : vector<16x128xf32>
    %25 = tpu.matmul %24, %23, %cst_17 {dimension_numbers = #tpu.dot_dimension_numbers<[1], [0], [0], [1], [0, 0, 1, 1], [], []>} : vector<16x16xf32>, vector<16x128xf32>, vector<16x128xf32> -> vector<16x128xf32>
    %26 = arith.addf %22, %25 : vector<16x128xf32>
    %27 = vector.extract_strided_slice %13 {offsets = [0, 384], sizes = [16, 128], strides = [1, 1]} : vector<16x1152xf32> to vector<16x128xf32>
    %c0_18 = arith.constant 0 : index
    %c48 = arith.constant 48 : index
    %28 = vector.load %arg5[%c0_18, %c48] : memref<16x144xf32, #tpu.memory_space<vmem>>, vector<16x16xf32>
    %cst_19 = arith.constant dense<0.000000e+00> : vector<16x128xf32>
    %29 = tpu.matmul %28, %27, %cst_19 {dimension_numbers = #tpu.dot_dimension_numbers<[1], [0], [0], [1], [0, 0, 1, 1], [], []>} : vector<16x16xf32>, vector<16x128xf32>, vector<16x128xf32> -> vector<16x128xf32>
    %30 = arith.addf %26, %29 : vector<16x128xf32>
    %31 = vector.extract_strided_slice %13 {offsets = [0, 512], sizes = [16, 128], strides = [1, 1]} : vector<16x1152xf32> to vector<16x128xf32>
    %c0_20 = arith.constant 0 : index
    %c64 = arith.constant 64 : index
    %32 = vector.load %arg5[%c0_20, %c64] : memref<16x144xf32, #tpu.memory_space<vmem>>, vector<16x16xf32>
    %cst_21 = arith.constant dense<0.000000e+00> : vector<16x128xf32>
    %33 = tpu.matmul %32, %31, %cst_21 {dimension_numbers = #tpu.dot_dimension_numbers<[1], [0], [0], [1], [0, 0, 1, 1], [], []>} : vector<16x16xf32>, vector<16x128xf32>, vector<16x128xf32> -> vector<16x128xf32>
    %34 = arith.addf %30, %33 : vector<16x128xf32>
    %35 = vector.extract_strided_slice %13 {offsets = [0, 640], sizes = [16, 128], strides = [1, 1]} : vector<16x1152xf32> to vector<16x128xf32>
    %c0_22 = arith.constant 0 : index
    %c80 = arith.constant 80 : index
    %36 = vector.load %arg5[%c0_22, %c80] : memref<16x144xf32, #tpu.memory_space<vmem>>, vector<16x16xf32>
    %cst_23 = arith.constant dense<0.000000e+00> : vector<16x128xf32>
    %37 = tpu.matmul %36, %35, %cst_23 {dimension_numbers = #tpu.dot_dimension_numbers<[1], [0], [0], [1], [0, 0, 1, 1], [], []>} : vector<16x16xf32>, vector<16x128xf32>, vector<16x128xf32> -> vector<16x128xf32>
    %38 = arith.addf %34, %37 : vector<16x128xf32>
    %39 = vector.extract_strided_slice %13 {offsets = [0, 768], sizes = [16, 128], strides = [1, 1]} : vector<16x1152xf32> to vector<16x128xf32>
    %c0_24 = arith.constant 0 : index
    %c96 = arith.constant 96 : index
    %40 = vector.load %arg5[%c0_24, %c96] : memref<16x144xf32, #tpu.memory_space<vmem>>, vector<16x16xf32>
    %cst_25 = arith.constant dense<0.000000e+00> : vector<16x128xf32>
    %41 = tpu.matmul %40, %39, %cst_25 {dimension_numbers = #tpu.dot_dimension_numbers<[1], [0], [0], [1], [0, 0, 1, 1], [], []>} : vector<16x16xf32>, vector<16x128xf32>, vector<16x128xf32> -> vector<16x128xf32>
    %42 = arith.addf %38, %41 : vector<16x128xf32>
    %43 = vector.extract_strided_slice %13 {offsets = [0, 896], sizes = [16, 128], strides = [1, 1]} : vector<16x1152xf32> to vector<16x128xf32>
    %c0_26 = arith.constant 0 : index
    %c112 = arith.constant 112 : index
    %44 = vector.load %arg5[%c0_26, %c112] : memref<16x144xf32, #tpu.memory_space<vmem>>, vector<16x16xf32>
    %cst_27 = arith.constant dense<0.000000e+00> : vector<16x128xf32>
    %45 = tpu.matmul %44, %43, %cst_27 {dimension_numbers = #tpu.dot_dimension_numbers<[1], [0], [0], [1], [0, 0, 1, 1], [], []>} : vector<16x16xf32>, vector<16x128xf32>, vector<16x128xf32> -> vector<16x128xf32>
    %46 = arith.addf %42, %45 : vector<16x128xf32>
    %47 = vector.extract_strided_slice %13 {offsets = [0, 1024], sizes = [16, 128], strides = [1, 1]} : vector<16x1152xf32> to vector<16x128xf32>
    %c0_28 = arith.constant 0 : index
    %c128 = arith.constant 128 : index
    %48 = vector.load %arg5[%c0_28, %c128] : memref<16x144xf32, #tpu.memory_space<vmem>>, vector<16x16xf32>
    %cst_29 = arith.constant dense<0.000000e+00> : vector<16x128xf32>
    %49 = tpu.matmul %48, %47, %cst_29 {dimension_numbers = #tpu.dot_dimension_numbers<[1], [0], [0], [1], [0, 0, 1, 1], [], []>} : vector<16x16xf32>, vector<16x128xf32>, vector<16x128xf32> -> vector<16x128xf32>
    %50 = arith.addf %46, %49 : vector<16x128xf32>
    %c0_30 = arith.constant 0 : index
    %c0_31 = arith.constant 0 : index
    %51 = vector.load %arg6[%c0_30, %c0_31] : memref<16x1xf32, #tpu.memory_space<vmem>>, vector<16x1xf32>
    %52 = vector.broadcast %51 : vector<16x1xf32> to vector<16x128xf32>
    %53 = arith.addf %50, %52 : vector<16x128xf32>
    %cst_32 = arith.constant 0.000000e+00 : f32
    %54 = vector.broadcast %cst_32 : f32 to vector<16x128xf32>
    %55 = arith.cmpf oge, %53, %54 : vector<16x128xf32>
    %cst_33 = arith.constant 2.000000e-01 : f32
    %56 = vector.broadcast %cst_33 : f32 to vector<16x128xf32>
    %57 = arith.mulf %56, %53 : vector<16x128xf32>
    %58 = arith.select %55, %53, %57 : vector<16x128xi1>, vector<16x128xf32>
    %59 = arith.truncf %58 : vector<16x128xf32> to vector<16x128xbf16>
    %c0_34 = arith.constant 0 : index
    %c0_35 = arith.constant 0 : index
    %60 = vector.load %arg7[%c0_34, %c0_35] : memref<128x288xbf16, #tpu.memory_space<vmem>>, vector<128x288xbf16>
    %cst_36 = arith.constant dense<0.000000e+00> : vector<16x288xf32>
    %61 = tpu.matmul %59, %60, %cst_36 {dimension_numbers = #tpu.dot_dimension_numbers<[1], [0], [0], [1], [0, 0, 1, 1], [], []>} : vector<16x128xbf16>, vector<128x288xbf16>, vector<16x288xf32> -> vector<16x288xf32>
    %cst_37 = arith.constant 0.000000e+00 : f32
    %62 = vector.broadcast %cst_37 : f32 to vector<16x32xf32>
    %63 = vector.extract_strided_slice %61 {offsets = [0, 0], sizes = [16, 32], strides = [1, 1]} : vector<16x288xf32> to vector<16x32xf32>
    %c0_38 = arith.constant 0 : index
    %c0_39 = arith.constant 0 : index
    %64 = vector.load %arg8[%c0_38, %c0_39] : memref<16x144xf32, #tpu.memory_space<vmem>>, vector<16x16xf32>
    %cst_40 = arith.constant dense<0.000000e+00> : vector<16x32xf32>
    %65 = tpu.matmul %64, %63, %cst_40 {dimension_numbers = #tpu.dot_dimension_numbers<[1], [0], [0], [1], [0, 0, 1, 1], [], []>} : vector<16x16xf32>, vector<16x32xf32>, vector<16x32xf32> -> vector<16x32xf32>
    %66 = arith.addf %62, %65 : vector<16x32xf32>
    %67 = vector.extract_strided_slice %61 {offsets = [0, 32], sizes = [16, 32], strides = [1, 1]} : vector<16x288xf32> to vector<16x32xf32>
    %c0_41 = arith.constant 0 : index
    %c16_42 = arith.constant 16 : index
    %68 = vector.load %arg8[%c0_41, %c16_42] : memref<16x144xf32, #tpu.memory_space<vmem>>, vector<16x16xf32>
    %cst_43 = arith.constant dense<0.000000e+00> : vector<16x32xf32>
    %69 = tpu.matmul %68, %67, %cst_43 {dimension_numbers = #tpu.dot_dimension_numbers<[1], [0], [0], [1], [0, 0, 1, 1], [], []>} : vector<16x16xf32>, vector<16x32xf32>, vector<16x32xf32> -> vector<16x32xf32>
    %70 = arith.addf %66, %69 : vector<16x32xf32>
    %71 = vector.extract_strided_slice %61 {offsets = [0, 64], sizes = [16, 32], strides = [1, 1]} : vector<16x288xf32> to vector<16x32xf32>
    %c0_44 = arith.constant 0 : index
    %c32_45 = arith.constant 32 : index
    %72 = vector.load %arg8[%c0_44, %c32_45] : memref<16x144xf32, #tpu.memory_space<vmem>>, vector<16x16xf32>
    %cst_46 = arith.constant dense<0.000000e+00> : vector<16x32xf32>
    %73 = tpu.matmul %72, %71, %cst_46 {dimension_numbers = #tpu.dot_dimension_numbers<[1], [0], [0], [1], [0, 0, 1, 1], [], []>} : vector<16x16xf32>, vector<16x32xf32>, vector<16x32xf32> -> vector<16x32xf32>
    %74 = arith.addf %70, %73 : vector<16x32xf32>
    %75 = vector.extract_strided_slice %61 {offsets = [0, 96], sizes = [16, 32], strides = [1, 1]} : vector<16x288xf32> to vector<16x32xf32>
    %c0_47 = arith.constant 0 : index
    %c48_48 = arith.constant 48 : index
    %76 = vector.load %arg8[%c0_47, %c48_48] : memref<16x144xf32, #tpu.memory_space<vmem>>, vector<16x16xf32>
    %cst_49 = arith.constant dense<0.000000e+00> : vector<16x32xf32>
    %77 = tpu.matmul %76, %75, %cst_49 {dimension_numbers = #tpu.dot_dimension_numbers<[1], [0], [0], [1], [0, 0, 1, 1], [], []>} : vector<16x16xf32>, vector<16x32xf32>, vector<16x32xf32> -> vector<16x32xf32>
    %78 = arith.addf %74, %77 : vector<16x32xf32>
    %79 = vector.extract_strided_slice %61 {offsets = [0, 128], sizes = [16, 32], strides = [1, 1]} : vector<16x288xf32> to vector<16x32xf32>
    %c0_50 = arith.constant 0 : index
    %c64_51 = arith.constant 64 : index
    %80 = vector.load %arg8[%c0_50, %c64_51] : memref<16x144xf32, #tpu.memory_space<vmem>>, vector<16x16xf32>
    %cst_52 = arith.constant dense<0.000000e+00> : vector<16x32xf32>
    %81 = tpu.matmul %80, %79, %cst_52 {dimension_numbers = #tpu.dot_dimension_numbers<[1], [0], [0], [1], [0, 0, 1, 1], [], []>} : vector<16x16xf32>, vector<16x32xf32>, vector<16x32xf32> -> vector<16x32xf32>
    %82 = arith.addf %78, %81 : vector<16x32xf32>
    %83 = vector.extract_strided_slice %61 {offsets = [0, 160], sizes = [16, 32], strides = [1, 1]} : vector<16x288xf32> to vector<16x32xf32>
    %c0_53 = arith.constant 0 : index
    %c80_54 = arith.constant 80 : index
    %84 = vector.load %arg8[%c0_53, %c80_54] : memref<16x144xf32, #tpu.memory_space<vmem>>, vector<16x16xf32>
    %cst_55 = arith.constant dense<0.000000e+00> : vector<16x32xf32>
    %85 = tpu.matmul %84, %83, %cst_55 {dimension_numbers = #tpu.dot_dimension_numbers<[1], [0], [0], [1], [0, 0, 1, 1], [], []>} : vector<16x16xf32>, vector<16x32xf32>, vector<16x32xf32> -> vector<16x32xf32>
    %86 = arith.addf %82, %85 : vector<16x32xf32>
    %87 = vector.extract_strided_slice %61 {offsets = [0, 192], sizes = [16, 32], strides = [1, 1]} : vector<16x288xf32> to vector<16x32xf32>
    %c0_56 = arith.constant 0 : index
    %c96_57 = arith.constant 96 : index
    %88 = vector.load %arg8[%c0_56, %c96_57] : memref<16x144xf32, #tpu.memory_space<vmem>>, vector<16x16xf32>
    %cst_58 = arith.constant dense<0.000000e+00> : vector<16x32xf32>
    %89 = tpu.matmul %88, %87, %cst_58 {dimension_numbers = #tpu.dot_dimension_numbers<[1], [0], [0], [1], [0, 0, 1, 1], [], []>} : vector<16x16xf32>, vector<16x32xf32>, vector<16x32xf32> -> vector<16x32xf32>
    %90 = arith.addf %86, %89 : vector<16x32xf32>
    %91 = vector.extract_strided_slice %61 {offsets = [0, 224], sizes = [16, 32], strides = [1, 1]} : vector<16x288xf32> to vector<16x32xf32>
    %c0_59 = arith.constant 0 : index
    %c112_60 = arith.constant 112 : index
    %92 = vector.load %arg8[%c0_59, %c112_60] : memref<16x144xf32, #tpu.memory_space<vmem>>, vector<16x16xf32>
    %cst_61 = arith.constant dense<0.000000e+00> : vector<16x32xf32>
    %93 = tpu.matmul %92, %91, %cst_61 {dimension_numbers = #tpu.dot_dimension_numbers<[1], [0], [0], [1], [0, 0, 1, 1], [], []>} : vector<16x16xf32>, vector<16x32xf32>, vector<16x32xf32> -> vector<16x32xf32>
    %94 = arith.addf %90, %93 : vector<16x32xf32>
    %95 = vector.extract_strided_slice %61 {offsets = [0, 256], sizes = [16, 32], strides = [1, 1]} : vector<16x288xf32> to vector<16x32xf32>
    %c0_62 = arith.constant 0 : index
    %c128_63 = arith.constant 128 : index
    %96 = vector.load %arg8[%c0_62, %c128_63] : memref<16x144xf32, #tpu.memory_space<vmem>>, vector<16x16xf32>
    %cst_64 = arith.constant dense<0.000000e+00> : vector<16x32xf32>
    %97 = tpu.matmul %96, %95, %cst_64 {dimension_numbers = #tpu.dot_dimension_numbers<[1], [0], [0], [1], [0, 0, 1, 1], [], []>} : vector<16x16xf32>, vector<16x32xf32>, vector<16x32xf32> -> vector<16x32xf32>
    %98 = arith.addf %94, %97 : vector<16x32xf32>
    %c0_65 = arith.constant 0 : index
    %c0_66 = arith.constant 0 : index
    %99 = vector.load %arg9[%c0_65, %c0_66] : memref<16x1xf32, #tpu.memory_space<vmem>>, vector<16x1xf32>
    %100 = vector.broadcast %99 : vector<16x1xf32> to vector<16x32xf32>
    %101 = arith.addf %98, %100 : vector<16x32xf32>
    %cst_67 = arith.constant 0.000000e+00 : f32
    %102 = vector.broadcast %cst_67 : f32 to vector<16x32xf32>
    %103 = arith.cmpf oge, %101, %102 : vector<16x32xf32>
    %cst_68 = arith.constant 2.000000e-01 : f32
    %104 = vector.broadcast %cst_68 : f32 to vector<16x32xf32>
    %105 = arith.mulf %104, %101 : vector<16x32xf32>
    %106 = arith.select %103, %101, %105 : vector<16x32xi1>, vector<16x32xf32>
    %c0_69 = arith.constant 0 : index
    %c0_70 = arith.constant 0 : index
    %107 = vector.load %arg10[%c0_69, %c0_70] : memref<32x32xf32, #tpu.memory_space<vmem>>, vector<32x32xf32>
    %108 = vector.extract_strided_slice %107 {offsets = [0, 0], sizes = [16, 32], strides = [1, 1]} : vector<32x32xf32> to vector<16x32xf32>
    %109 = arith.mulf %108, %106 : vector<16x32xf32>
    %cst_71 = arith.constant dense<0.000000e+00> : vector<32xf32>
    %110 = vector.multi_reduction <add>, %109, %cst_71 [0] : vector<16x32xf32> to vector<32xf32>
    %111 = vector.shape_cast %110 : vector<32xf32> to vector<1x32xf32>
    %c0_72 = arith.constant 0 : index
    %c0_73 = arith.constant 0 : index
    %112 = vector.load %arg11[%c0_72, %c0_73] : memref<2x32xf32, #tpu.memory_space<vmem>>, vector<1x32xf32>
    tpu.vector_store %arg11[%c0_72, %c0_73], %111 {strides = array<i32>} : memref<2x32xf32, #tpu.memory_space<vmem>>, vector<1x32xf32>,
    %113 = vector.extract_strided_slice %107 {offsets = [16, 0], sizes = [16, 32], strides = [1, 1]} : vector<32x32xf32> to vector<16x32xf32>
    %114 = arith.mulf %113, %106 : vector<16x32xf32>
    %cst_74 = arith.constant dense<0.000000e+00> : vector<32xf32>
    %115 = vector.multi_reduction <add>, %114, %cst_74 [0] : vector<16x32xf32> to vector<32xf32>
    %116 = vector.shape_cast %115 : vector<32xf32> to vector<1x32xf32>
    %c1 = arith.constant 1 : index
    %c0_75 = arith.constant 0 : index
    %117 = vector.load %arg11[%c1, %c0_75] : memref<2x32xf32, #tpu.memory_space<vmem>>, vector<1x32xf32>
    tpu.vector_store %arg11[%c1, %c0_75], %116 {strides = array<i32>} : memref<2x32xf32, #tpu.memory_space<vmem>>, vector<1x32xf32>,
    return
  }
  func.func @transform_0(%arg0: i32) -> (i32, i32) {
    %c0_i32 = arith.constant 0 : i32
    %c0_i32_0 = arith.constant 0 : i32
    %c0_i32_1 = arith.constant 0 : i32
    return %c0_i32, %c0_i32_0 : i32, i32
  }
  func.func @transform_1(%arg0: i32) -> (i32, i32) {
    %c0_i32 = arith.constant 0 : i32
    %c0_i32_0 = arith.constant 0 : i32
    %c0_i32_1 = arith.constant 0 : i32
    return %c0_i32, %c0_i32_0 : i32, i32
  }
  func.func @transform_2(%arg0: i32) -> (i32, i32) {
    %c0_i32 = arith.constant 0 : i32
    %c0_i32_0 = arith.constant 0 : i32
    %c0_i32_1 = arith.constant 0 : i32
    return %c0_i32, %c0_i32_0 : i32, i32
  }
  func.func @transform_3(%arg0: i32) -> (i32, i32) {
    %c0_i32 = arith.constant 0 : i32
    %c0_i32_0 = arith.constant 0 : i32
    %c0_i32_1 = arith.constant 0 : i32
    return %c0_i32, %c0_i32_0 : i32, i32
  }
  func.func @transform_4(%arg0: i32) -> (i32, i32) {
    %c0_i32 = arith.constant 0 : i32
    %c0_i32_0 = arith.constant 0 : i32
    %c0_i32_1 = arith.constant 0 : i32
    return %c0_i32, %c0_i32_0 : i32, i32
  }
  func.func @transform_5(%arg0: i32) -> (i32, i32) {
    %c0_i32 = arith.constant 0 : i32
    %c0_i32_0 = arith.constant 0 : i32
    %c0_i32_1 = arith.constant 0 : i32
    return %c0_i32, %c0_i32_0 : i32, i32
  }
  func.func @transform_6(%arg0: i32) -> (i32, i32) {
    %c0_i32 = arith.constant 0 : i32
    %c0_i32_0 = arith.constant 0 : i32
    %c0_i32_1 = arith.constant 0 : i32
    return %c0_i32, %c0_i32_0 : i32, i32
  }
  func.func @transform_7(%arg0: i32) -> (i32, i32) {
    %c0_i32 = arith.constant 0 : i32
    %c0_i32_0 = arith.constant 0 : i32
    %c0_i32_1 = arith.constant 0 : i32
    return %c0_i32, %c0_i32_0 : i32, i32
  }
  func.func @transform_8(%arg0: i32) -> (i32, i32) {
    %c0_i32 = arith.constant 0 : i32
    %c0_i32_0 = arith.constant 0 : i32
    %c0_i32_1 = arith.constant 0 : i32
    return %c0_i32, %c0_i32_0 : i32, i32
  }
  func.func @transform_9(%arg0: i32) -> (i32, i32) {
    %c0_i32 = arith.constant 0 : i32
    %c0_i32_0 = arith.constant 0 : i32
    %c0_i32_1 = arith.constant 0 : i32
    return %c0_i32, %c0_i32_0 : i32, i32
  }
  func.func @transform_10(%arg0: i32) -> (i32, i32) {
    %c0_i32 = arith.constant 0 : i32
    %c0_i32_0 = arith.constant 0 : i32
    %c0_i32_1 = arith.constant 0 : i32
    return %c0_i32, %c0_i32_0 : i32, i32
  }
}

</mosaic_0001>

<llo_original>
// kernel: fstn_forward.3
$region0: #{fstn_forward.3}
  #allocation0 [shape = 'u32[]', space=smem, size = 0x4, offset = 0x4, fixed_abs, tag = 'smem constant byte address 0x4 - core index']
  #allocation1 [shape = 'u32[72,128]{1,0:T(1,128)}', space=vmem, size = 0x9000, scoped, tag = 'internal scratch']
  %s0 = inlined_call_operand.vmem [shape: bf16[16,112], index: 0, kind: input, shape index: {}]
  %s1 = inlined_call_operand.vmem [shape: bf16[112,14792], index: 1, kind: input, shape index: {}]
  %s2 = inlined_call_operand.vmem [shape: f32[16,1], index: 2, kind: input, shape index: {}]
  %s3 = inlined_call_operand.vmem [shape: bf16[16,14792], index: 3, kind: output, shape index: {}]
  %s4 = sld [smem:[#allocation0]]
  $region87: #{fstn_forward.3} parent=0
    _
  %s6 = ssub.s32 1, %s4
  %s7 = scalar_select 0, %s6, %s4
  $region1: #{fstn_forward.3} parent=0
    #allocation2 [shape = 'u8[3325952]{0}', space=vmem, size = 0x32c000, scoped, tag = 'input window, operand 1']
    #allocation3 [shape = 'u8[475136]{0}', space=vmem, size = 0x74000, scoped, tag = 'output window, operand 0']
    loop: start=0, step=1, limit=4
    $region2: #{fstn_forward.3} parent=1 // loop_pre_header
      _
    $region3: #{fstn_forward.3} parent=1 // loop_header
      %s9 = sphi 0, %s13
      %p10 = scmp.ge.s32.totalorder %s9, 4
      %s17 = sphi 0, %s17
      %s19 = sphi 0, %s17
      %s20 = sphi 0, %s19
      %s34 = sphi 0, %s20
      %s40 = sphi 0, %s42
      %s43 = sphi 0, %s40
      %s44 = sphi 0, %s43
      %s60 = sphi 0, %s44
      %s64 = sphi 0, %s64
      %s66 = sphi 0, %s64
      %s67 = sphi 0, %s66
      %s81 = sphi 0, %s67
      %s87 = sphi 0, %s89
      %s90 = sphi 0, %s87
      %s91 = sphi 0, %s90
      %s107 = sphi 0, %s91
    $region4: #{fstn_forward.3} parent=1 // loop_header_branch
      %12 = sbr.rel (%p10) target = $region8
    $region5: #{fstn_forward.3} parent=1 // loop_body
      %s14 = ssub.s32 %s9, 1
      %s15 = ssub.s32 %s9, 2
      %s16 = sadd.s32 %s9, 1
      %s18 = sadd.s32 %s17, 1
      %p21 = scmp.eq.s32.totalorder %s9, 1
      %p22 = scmp.ne.s32.totalorder %s17, %s19
      %p23 = scmp.eq.s32.totalorder %s9, 0
      %p24 = por %p22, %p23
      %p25 = scmp.ne.s32.totalorder %s17, %s19
      %p26 = scmp.eq.s32.totalorder %s14, 1
      %p27 = por %p25, %p26
      %p28 = scmp.ne.s32.totalorder %s19, %s20
      %p29 = scmp.eq.s32.totalorder %s14, 0
      %p30 = por %p28, %p29
      %p31 = scmp.ne.s32.totalorder %s19, %s20
      %p32 = scmp.eq.s32.totalorder %s15, 1
      %p33 = por %p31, %p32
      %p35 = scmp.ne.s32.totalorder %s20, %s34
      %p36 = scmp.eq.s32.totalorder %s15, 0
      %p37 = por %p35, %p36
      %s38 = ssub.s32 %s9, %s16
      %p39 = scmp.eq.s32.totalorder %s38, 0
      %s41 = sadd.s32 %s40, 1
      %s42 = scalar_select %p39, %s40, %s41
      %p45 = pneg %p39
      %p46 = scmp.eq.s32.totalorder %s9, 1
      %p47 = por %p45, %p46
      %p48 = scmp.ne.s32.totalorder %s40, %s43
      %p49 = scmp.eq.s32.totalorder %s9, 0
      %p50 = por %p48, %p49
      %p51 = scmp.ne.s32.totalorder %s40, %s43
      %p52 = scmp.eq.s32.totalorder %s14, 1
      %p53 = por %p51, %p52
      %p54 = scmp.ne.s32.totalorder %s43, %s44
      %p55 = scmp.eq.s32.totalorder %s14, 0
      %p56 = por %p54, %p55
      %p57 = scmp.ne.s32.totalorder %s43, %s44
      %p58 = scmp.eq.s32.totalorder %s15, 1
      %p59 = por %p57, %p58
      %p61 = scmp.ne.s32.totalorder %s44, %s60
      %p62 = scmp.eq.s32.totalorder %s15, 0
      %p63 = por %p61, %p62
      %s65 = sadd.s32 %s64, 1
      %p68 = scmp.eq.s32.totalorder %s9, 1
      %p69 = scmp.ne.s32.totalorder %s64, %s66
      %p70 = scmp.eq.s32.totalorder %s9, 0
      %p71 = por %p69, %p70
      %p72 = scmp.ne.s32.totalorder %s64, %s66
      %p73 = scmp.eq.s32.totalorder %s14, 1
      %p74 = por %p72, %p73
      %p75 = scmp.ne.s32.totalorder %s66, %s67
      %p76 = scmp.eq.s32.totalorder %s14, 0
      %p77 = por %p75, %p76
      %p78 = scmp.ne.s32.totalorder %s66, %s67
      %p79 = scmp.eq.s32.totalorder %s15, 1
      %p80 = por %p78, %p79
      %p82 = scmp.ne.s32.totalorder %s67, %s81
      %p83 = scmp.eq.s32.totalorder %s15, 0
      %p84 = por %p82, %p83
      %s85 = ssub.s32 %s9, %s16
      %p86 = scmp.eq.s32.totalorder %s85, 0
      %s88 = sadd.s32 %s87, 1
      %s89 = scalar_select %p86, %s87, %s88
      %p92 = pneg %p86
      %p93 = scmp.eq.s32.totalorder %s9, 1
      %p94 = por %p92, %p93
      %p95 = scmp.ne.s32.totalorder %s87, %s90
      %p96 = scmp.eq.s32.totalorder %s9, 0
      %p97 = por %p95, %p96
      %p98 = scmp.ne.s32.totalorder %s87, %s90
      %p99 = scmp.eq.s32.totalorder %s14, 1
      %p100 = por %p98, %p99
      %p101 = scmp.ne.s32.totalorder %s90, %s91
      %p102 = scmp.eq.s32.totalorder %s14, 0
      %p103 = por %p101, %p102
      %p104 = scmp.ne.s32.totalorder %s90, %s91
      %p105 = scmp.eq.s32.totalorder %s15, 1
      %p106 = por %p104, %p105
      %p108 = scmp.ne.s32.totalorder %s91, %s107
      %p109 = scmp.eq.s32.totalorder %s15, 0
      %p110 = por %p108, %p109
      %p111 = scmp.le.s32.totalorder 1, %s9
      %p112 = scmp.lt.s32.totalorder %s9, 3
      %p113 = pnand %p111, %p112
      %p114 = pneg %p113
      // Predicated region
      $region9: #{fstn_forward.3} parent=5 // pred_check
        _
      $region10: #{fstn_forward.3} parent=5 // pred_check_branch
        %116 = sbr.rel (%p113) target = $region12
      $region11: #{fstn_forward.3} parent=5 // pred_region
        %s117 = ssub.s32 %s9, 1
        // Predicated region
        $region13: #{fstn_forward.3} parent=11 // pred_check
          %p118 = pneg %p30
        $region14: #{fstn_forward.3} parent=11 // pred_check_branch
          %120 = sbr.rel (%p118) target = $region16
        $region15: #{fstn_forward.3} parent=11 // pred_region
          _
        $region16: #{fstn_forward.3} parent=11 // pred_fallthru
          _
        // Predicated region
        $region17: #{fstn_forward.3} parent=11 // pred_check
          %p121 = pneg %p77
        $region18: #{fstn_forward.3} parent=11 // pred_check_branch
          %123 = sbr.rel (%p121) target = $region20
        $region19: #{fstn_forward.3} parent=11 // pred_region
          _
        $region20: #{fstn_forward.3} parent=11 // pred_fallthru
          _
      $region12: #{fstn_forward.3} parent=5 // pred_fallthru
        _
      %p124 = scmp.lt.s32.totalorder %s9, 2
      // Predicated region
      $region21: #{fstn_forward.3} parent=5 // pred_check
        %p125 = pneg %p124
      $region22: #{fstn_forward.3} parent=5 // pred_check_branch
        %127 = sbr.rel (%p125) target = $region24
      $region23: #{fstn_forward.3} parent=5 // pred_region
        // Predicated region
        $region25: #{fstn_forward.3} parent=23 // pred_check
          %p128 = pneg %p50
        $region26: #{fstn_forward.3} parent=23 // pred_check_branch
          %130 = sbr.rel (%p128) target = $region28
        $region27: #{fstn_forward.3} parent=23 // pred_region
          %s131 = sand.u32 %s40, 1
          %s132 = sand.u32 %s40, 1
          %s133 = smul.addr %s132, 3248
          %s134 = scalar_lea.vmem [#allocation2], %s133
          %s135 = smul.u32 58, %s9
          %s136 = smul.addr %s135, 4
          %s137 = scalar_lea.vmem %s1, %s136
          // Predicated region
          $region29: #{fstn_forward.3} parent=27 // pred_check
            _
          $region30: #{fstn_forward.3} parent=27 // pred_check_branch
            %139 = sbr.rel (0) target = $region32
          $region31: #{fstn_forward.3} parent=27 // pred_region
            // Predicated region
            $region33: #{fstn_forward.3} parent=31 // pred_check
              _
            $region34: #{fstn_forward.3} parent=31 // pred_check_branch
              %141 = sbr.rel (0) target = $region36
            $region35: #{fstn_forward.3} parent=31 // pred_region
              loop: start=0, step=1, limit=1
              $region37: #{fstn_forward.3} parent=35 // loop_pre_header
                _
              $region38: #{fstn_forward.3} parent=35 // loop_header
                %s143 = sphi 0, %s147
                %p144 = scmp.ge.s32.totalorder %s143, 1
                %s148 = sphi %s137, %s137
                %s149 = sphi %s134, %s134
              $region39: #{fstn_forward.3} parent=35 // loop_header_branch
                %146 = sbr.rel (%p144) target = $region43
              $region40: #{fstn_forward.3} parent=35 // loop_body
                %v150 = vld [vmem:[%s148] sm:$0xff]
                %151 = vst [vmem:[%s149] sm:$0xff] %v150
                %v152 = vld [vmem:[%s148 + $0x8] sm:$0xff]
                %153 = vst [vmem:[%s149 + $0x8] sm:$0xff] %v152
                %v154 = vld [vmem:[%s148 + $0x10] sm:$0xff]
                %155 = vst [vmem:[%s149 + $0x10] sm:$0xff] %v154
                %v156 = vld [vmem:[%s148 + $0x18] sm:$0xff]
                %157 = vst [vmem:[%s149 + $0x18] sm:$0xff] %v156
                %v158 = vld [vmem:[%s148 + $0x20] sm:$0xff]
                %159 = vst [vmem:[%s149 + $0x20] sm:$0xff] %v158
                %v160 = vld [vmem:[%s148 + $0x28] sm:$0xff]
                %161 = vst [vmem:[%s149 + $0x28] sm:$0xff] %v160
                %v162 = vld [vmem:[%s148 + $0x30] sm:$0xff]
                %163 = vst [vmem:[%s149 + $0x30] sm:$0xff] %v162
                %v164 = vld [vmem:[%s148 + $0x38] sm:$0xff]
                %165 = vst [vmem:[%s149 + $0x38] sm:$0xff] %v164
                %v166 = vld [vmem:[%s148 + $0x40] sm:$0xff]
                %167 = vst [vmem:[%s149 + $0x40] sm:$0xff] %v166
                %v168 = vld [vmem:[%s148 + $0x48] sm:$0xff]
                %169 = vst [vmem:[%s149 + $0x48] sm:$0xff] %v168
                %v170 = vld [vmem:[%s148 + $0x50] sm:$0xff]
                %171 = vst [vmem:[%s149 + $0x50] sm:$0xff] %v170
                %v172 = vld [vmem:[%s148 + $0x58] sm:$0xff]
                %173 = vst [vmem:[%s149 + $0x58] sm:$0xff] %v172
                %v174 = vld [vmem:[%s148 + $0x60] sm:$0xff]
                %175 = vst [vmem:[%s149 + $0x60] sm:$0xff] %v174
                %v176 = vld [vmem:[%s148 + $0x68] sm:$0xff]
                %177 = vst [vmem:[%s149 + $0x68] sm:$0xff] %v176
                %v178 = vld [vmem:[%s148 + $0x70] sm:$0xff]
                %179 = vst [vmem:[%s149 + $0x70] sm:$0xff] %v178
                %v180 = vld [vmem:[%s148 + $0x78] sm:$0xff]
                %181 = vst [vmem:[%s149 + $0x78] sm:$0xff] %v180
                %v182 = vld [vmem:[%s148 + $0x80] sm:$0xff]
                %183 = vst [vmem:[%s149 + $0x80] sm:$0xff] %v182
                %v184 = vld [vmem:[%s148 + $0x88] sm:$0xff]
                %185 = vst [vmem:[%s149 + $0x88] sm:$0xff] %v184
                %v186 = vld [vmem:[%s148 + $0x90] sm:$0xff]
                %187 = vst [vmem:[%s149 + $0x90] sm:$0xff] %v186
                %v188 = vld [vmem:[%s148 + $0x98] sm:$0xff]
                %189 = vst [vmem:[%s149 + $0x98] sm:$0xff] %v188
                %v190 = vld [vmem:[%s148 + $0xa0] sm:$0xff]
                %191 = vst [vmem:[%s149 + $0xa0] sm:$0xff] %v190
                %v192 = vld [vmem:[%s148 + $0xa8] sm:$0xff]
                %193 = vst [vmem:[%s149 + $0xa8] sm:$0xff] %v192
                %v194 = vld [vmem:[%s148 + $0xb0] sm:$0xff]
                %195 = vst [vmem:[%s149 + $0xb0] sm:$0xff] %v194
                %v196 = vld [vmem:[%s148 + $0xb8] sm:$0xff]
                %197 = vst [vmem:[%s149 + $0xb8] sm:$0xff] %v196
                %v198 = vld [vmem:[%s148 + $0xc0] sm:$0xff]
                %199 = vst [vmem:[%s149 + $0xc0] sm:$0xff] %v198
                %v200 = vld [vmem:[%s148 + $0xc8] sm:$0xff]
                %201 = vst [vmem:[%s149 + $0xc8] sm:$0xff] %v200
                %v202 = vld [vmem:[%s148 + $0xd0] sm:$0xff]
                %203 = vst [vmem:[%s149 + $0xd0] sm:$0xff] %v202
                %v204 = vld [vmem:[%s148 + $0xd8] sm:$0xff]
                %205 = vst [vmem:[%s149 + $0xd8] sm:$0xff] %v204
                %v206 = vld [vmem:[%s148 + $0xe0] sm:$0xff]
                %207 = vst [vmem:[%s149 + $0xe0] sm:$0xff] %v206
                %v208 = vld [vmem:[%s148 + $0x1d0] sm:$0xff]
                %209 = vst [vmem:[%s149 + $0xe8] sm:$0xff] %v208
                %v210 = vld [vmem:[%s148 + $0x1d8] sm:$0xff]
                %211 = vst [vmem:[%s149 + $0xf0] sm:$0xff] %v210
                %v212 = vld [vmem:[%s148 + $0x1e0] sm:$0xff]
                %213 = vst [vmem:[%s149 + $0xf8] sm:$0xff] %v212
                %v214 = vld [vmem:[%s148 + $0x1e8] sm:$0xff]
                %215 = vst [vmem:[%s149 + $0x100] sm:$0xff] %v214
                %v216 = vld [vmem:[%s148 + $0x1f0] sm:$0xff]
                %217 = vst [vmem:[%s149 + $0x108] sm:$0xff] %v216
                %v218 = vld [vmem:[%s148 + $0x1f8] sm:$0xff]
                %219 = vst [vmem:[%s149 + $0x110] sm:$0xff] %v218
                %v220 = vld [vmem:[%s148 + $0x200] sm:$0xff]
                %221 = vst [vmem:[%s149 + $0x118] sm:$0xff] %v220
                %v222 = vld [vmem:[%s148 + $0x208] sm:$0xff]
                %223 = vst [vmem:[%s149 + $0x120] sm:$0xff] %v222
                %v224 = vld [vmem:[%s148 + $0x210] sm:$0xff]
                %225 = vst [vmem:[%s149 + $0x128] sm:$0xff] %v224
                %v226 = vld [vmem:[%s148 + $0x218] sm:$0xff]
                %227 = vst [vmem:[%s149 + $0x130] sm:$0xff] %v226
                %v228 = vld [vmem:[%s148 + $0x220] sm:$0xff]
                %229 = vst [vmem:[%s149 + $0x138] sm:$0xff] %v228
                %v230 = vld [vmem:[%s148 + $0x228] sm:$0xff]
                %231 = vst [vmem:[%s149 + $0x140] sm:$0xff] %v230
                %v232 = vld [vmem:[%s148 + $0x230] sm:$0xff]
                %233 = vst [vmem:[%s149 + $0x148] sm:$0xff] %v232
                %v234 = vld [vmem:[%s148 + $0x238] sm:$0xff]
                %235 = vst [vmem:[%s149 + $0x150] sm:$0xff] %v234
                %v236 = vld [vmem:[%s148 + $0x240] sm:$0xff]
                %237 = vst [vmem:[%s149 + $0x158] sm:$0xff] %v236
                %v238 = vld [vmem:[%s148 + $0x248] sm:$0xff]
                %239 = vst [vmem:[%s149 + $0x160] sm:$0xff] %v238
                %v240 = vld [vmem:[%s148 + $0x250] sm:$0xff]
                %241 = vst [vmem:[%s149 + $0x168] sm:$0xff] %v240
                %v242 = vld [vmem:[%s148 + $0x258] sm:$0xff]
                %243 = vst [vmem:[%s149 + $0x170] sm:$0xff] %v242
                %v244 = vld [vmem:[%s148 + $0x260] sm:$0xff]
                %245 = vst [vmem:[%s149 + $0x178] sm:$0xff] %v244
                %v246 = vld [vmem:[%s148 + $0x268] sm:$0xff]
                %247 = vst [vmem:[%s149 + $0x180] sm:$0xff] %v246
                %v248 = vld [vmem:[%s148 + $0x270] sm:$0xff]
                %249 = vst [vmem:[%s149 + $0x188] sm:$0xff] %v248
                %v250 = vld [vmem:[%s148 + $0x278] sm:$0xff]
                %251 = vst [vmem:[%s149 + $0x190] sm:$0xff] %v250
                %v252 = vld [vmem:[%s148 + $0x280] sm:$0xff]
                %253 = vst [vmem:[%s149 + $0x198] sm:$0xff] %v252
                %v254 = vld [vmem:[%s148 + $0x288] sm:$0xff]
                %255 = vst [vmem:[%s149 + $0x1a0] sm:$0xff] %v254
                %v256 = vld [vmem:[%s148 + $0x290] sm:$0xff]
                %257 = vst [vmem:[%s149 + $0x1a8] sm:$0xff] %v256
                %v258 = vld [vmem:[%s148 + $0x298] sm:$0xff]
                %259 = vst [vmem:[%s149 + $0x1b0] sm:$0xff] %v258
                %v260 = vld [vmem:[%s148 + $0x2a0] sm:$0xff]
                %261 = vst [vmem:[%s149 + $0x1b8] sm:$0xff] %v260
                %v262 = vld [vmem:[%s148 + $0x2a8] sm:$0xff]
                %263 = vst [vmem:[%s149 + $0x1c0] sm:$0xff] %v262
                %v264 = vld [vmem:[%s148 + $0x2b0] sm:$0xff]
                %265 = vst [vmem:[%s149 + $0x1c8] sm:$0xff] %v264
                %v266 = vld [vmem:[%s148 + $0x3a0] sm:$0xff]
                %267 = vst [vmem:[%s149 + $0x1d0] sm:$0xff] %v266
                %v268 = vld [vmem:[%s148 + $0x3a8] sm:$0xff]
                %269 = vst [vmem:[%s149 + $0x1d8] sm:$0xff] %v268
                %v270 = vld [vmem:[%s148 + $0x3b0] sm:$0xff]
                %271 = vst [vmem:[%s149 + $0x1e0] sm:$0xff] %v270
                %v272 = vld [vmem:[%s148 + $0x3b8] sm:$0xff]
                %273 = vst [vmem:[%s149 + $0x1e8] sm:$0xff] %v272
                %v274 = vld [vmem:[%s148 + $0x3c0] sm:$0xff]
                %275 = vst [vmem:[%s149 + $0x1f0] sm:$0xff] %v274
                %v276 = vld [vmem:[%s148 + $0x3c8] sm:$0xff]
                %277 = vst [vmem:[%s149 + $0x1f8] sm:$0xff] %v276
                %v278 = vld [vmem:[%s148 + $0x3d0] sm:$0xff]
                %279 = vst [vmem:[%s149 + $0x200] sm:$0xff] %v278
                %v280 = vld [vmem:[%s148 + $0x3d8] sm:$0xff]
                %281 = vst [vmem:[%s149 + $0x208] sm:$0xff] %v280
                %v282 = vld [vmem:[%s148 + $0x3e0] sm:$0xff]
                %283 = vst [vmem:[%s149 + $0x210] sm:$0xff] %v282
                %v284 = vld [vmem:[%s148 + $0x3e8] sm:$0xff]
                %285 = vst [vmem:[%s149 + $0x218] sm:$0xff] %v284
                %v286 = vld [vmem:[%s148 + $0x3f0] sm:$0xff]
                %287 = vst [vmem:[%s149 + $0x220] sm:$0xff] %v286
                %v288 = vld [vmem:[%s148 + $0x3f8] sm:$0xff]
                %289 = vst [vmem:[%s149 + $0x228] sm:$0xff] %v288
                %v290 = vld [vmem:[%s148 + $0x400] sm:$0xff]
                %291 = vst [vmem:[%s149 + $0x230] sm:$0xff] %v290
                %v292 = vld [vmem:[%s148 + $0x408] sm:$0xff]
                %293 = vst [vmem:[%s149 + $0x238] sm:$0xff] %v292
                %v294 = vld [vmem:[%s148 + $0x410] sm:$0xff]
                %295 = vst [vmem:[%s149 + $0x240] sm:$0xff] %v294
                %v296 = vld [vmem:[%s148 + $0x418] sm:$0xff]
                %297 = vst [vmem:[%s149 + $0x248] sm:$0xff] %v296
                %v298 = vld [vmem:[%s148 + $0x420] sm:$0xff]
                %299 = vst [vmem:[%s149 + $0x250] sm:$0xff] %v298
                %v300 = vld [vmem:[%s148 + $0x428] sm:$0xff]
                %301 = vst [vmem:[%s149 + $0x258] sm:$0xff] %v300
                %v302 = vld [vmem:[%s148 + $0x430] sm:$0xff]
                %303 = vst [vmem:[%s149 + $0x260] sm:$0xff] %v302
                %v304 = vld [vmem:[%s148 + $0x438] sm:$0xff]
                %305 = vst [vmem:[%s149 + $0x268] sm:$0xff] %v304
                %v306 = vld [vmem:[%s148 + $0x440] sm:$0xff]
                %307 = vst [vmem:[%s149 + $0x270] sm:$0xff] %v306
                %v308 = vld [vmem:[%s148 + $0x448] sm:$0xff]
                %309 = vst [vmem:[%s149 + $0x278] sm:$0xff] %v308
                %v310 = vld [vmem:[%s148 + $0x450] sm:$0xff]
                %311 = vst [vmem:[%s149 + $0x280] sm:$0xff] %v310
                %v312 = vld [vmem:[%s148 + $0x458] sm:$0xff]
                %313 = vst [vmem:[%s149 + $0x288] sm:$0xff] %v312
                %v314 = vld [vmem:[%s148 + $0x460] sm:$0xff]
                %315 = vst [vmem:[%s149 + $0x290] sm:$0xff] %v314
                %v316 = vld [vmem:[%s148 + $0x468] sm:$0xff]
                %317 = vst [vmem:[%s149 + $0x298] sm:$0xff] %v316
                %v318 = vld [vmem:[%s148 + $0x470] sm:$0xff]
                %319 = vst [vmem:[%s149 + $0x2a0] sm:$0xff] %v318
                %v320 = vld [vmem:[%s148 + $0x478] sm:$0xff]
                %321 = vst [vmem:[%s149 + $0x2a8] sm:$0xff] %v320
                %v322 = vld [vmem:[%s148 + $0x480] sm:$0xff]
                %323 = vst [vmem:[%s149 + $0x2b0] sm:$0xff] %v322
                %v324 = vld [vmem:[%s148 + $0x570] sm:$0xff]
                %325 = vst [vmem:[%s149 + $0x2b8] sm:$0xff] %v324
                %v326 = vld [vmem:[%s148 + $0x578] sm:$0xff]
                %327 = vst [vmem:[%s149 + $0x2c0] sm:$0xff] %v326
                %v328 = vld [vmem:[%s148 + $0x580] sm:$0xff]
                %329 = vst [vmem:[%s149 + $0x2c8] sm:$0xff] %v328
                %v330 = vld [vmem:[%s148 + $0x588] sm:$0xff]
                %331 = vst [vmem:[%s149 + $0x2d0] sm:$0xff] %v330
                %v332 = vld [vmem:[%s148 + $0x590] sm:$0xff]
                %333 = vst [vmem:[%s149 + $0x2d8] sm:$0xff] %v332
                %v334 = vld [vmem:[%s148 + $0x598] sm:$0xff]
                %335 = vst [vmem:[%s149 + $0x2e0] sm:$0xff] %v334
                %v336 = vld [vmem:[%s148 + $0x5a0] sm:$0xff]
                %337 = vst [vmem:[%s149 + $0x2e8] sm:$0xff] %v336
                %v338 = vld [vmem:[%s148 + $0x5a8] sm:$0xff]
                %339 = vst [vmem:[%s149 + $0x2f0] sm:$0xff] %v338
                %v340 = vld [vmem:[%s148 + $0x5b0] sm:$0xff]
                %341 = vst [vmem:[%s149 + $0x2f8] sm:$0xff] %v340
                %v342 = vld [vmem:[%s148 + $0x5b8] sm:$0xff]
                %343 = vst [vmem:[%s149 + $0x300] sm:$0xff] %v342
                %v344 = vld [vmem:[%s148 + $0x5c0] sm:$0xff]
                %345 = vst [vmem:[%s149 + $0x308] sm:$0xff] %v344
                %v346 = vld [vmem:[%s148 + $0x5c8] sm:$0xff]
                %347 = vst [vmem:[%s149 + $0x310] sm:$0xff] %v346
                %v348 = vld [vmem:[%s148 + $0x5d0] sm:$0xff]
                %349 = vst [vmem:[%s149 + $0x318] sm:$0xff] %v348
                %v350 = vld [vmem:[%s148 + $0x5d8] sm:$0xff]
                %351 = vst [vmem:[%s149 + $0x320] sm:$0xff] %v350
                %v352 = vld [vmem:[%s148 + $0x5e0] sm:$0xff]
                %353 = vst [vmem:[%s149 + $0x328] sm:$0xff] %v352
                %v354 = vld [vmem:[%s148 + $0x5e8] sm:$0xff]
                %355 = vst [vmem:[%s149 + $0x330] sm:$0xff] %v354
                %v356 = vld [vmem:[%s148 + $0x5f0] sm:$0xff]
                %357 = vst [vmem:[%s149 + $0x338] sm:$0xff] %v356
                %v358 = vld [vmem:[%s148 + $0x5f8] sm:$0xff]
                %359 = vst [vmem:[%s149 + $0x340] sm:$0xff] %v358
                %v360 = vld [vmem:[%s148 + $0x600] sm:$0xff]
                %361 = vst [vmem:[%s149 + $0x348] sm:$0xff] %v360
                %v362 = vld [vmem:[%s148 + $0x608] sm:$0xff]
                %363 = vst [vmem:[%s149 + $0x350] sm:$0xff] %v362
                %v364 = vld [vmem:[%s148 + $0x610] sm:$0xff]
                %365 = vst [vmem:[%s149 + $0x358] sm:$0xff] %v364
                %v366 = vld [vmem:[%s148 + $0x618] sm:$0xff]
                %367 = vst [vmem:[%s149 + $0x360] sm:$0xff] %v366
                %v368 = vld [vmem:[%s148 + $0x620] sm:$0xff]
                %369 = vst [vmem:[%s149 + $0x368] sm:$0xff] %v368
                %v370 = vld [vmem:[%s148 + $0x628] sm:$0xff]
                %371 = vst [vmem:[%s149 + $0x370] sm:$0xff] %v370
                %v372 = vld [vmem:[%s148 + $0x630] sm:$0xff]
                %373 = vst [vmem:[%s149 + $0x378] sm:$0xff] %v372
                %v374 = vld [vmem:[%s148 + $0x638] sm:$0xff]
                %375 = vst [vmem:[%s149 + $0x380] sm:$0xff] %v374
                %v376 = vld [vmem:[%s148 + $0x640] sm:$0xff]
                %377 = vst [vmem:[%s149 + $0x388] sm:$0xff] %v376
                %v378 = vld [vmem:[%s148 + $0x648] sm:$0xff]
                %379 = vst [vmem:[%s149 + $0x390] sm:$0xff] %v378
                %v380 = vld [vmem:[%s148 + $0x650] sm:$0xff]
                %381 = vst [vmem:[%s149 + $0x398] sm:$0xff] %v380
                %v382 = vld [vmem:[%s148 + $0x740] sm:$0xff]
                %383 = vst [vmem:[%s149 + $0x3a0] sm:$0xff] %v382
                %v384 = vld [vmem:[%s148 + $0x748] sm:$0xff]
                %385 = vst [vmem:[%s149 + $0x3a8] sm:$0xff] %v384
                %v386 = vld [vmem:[%s148 + $0x750] sm:$0xff]
                %387 = vst [vmem:[%s149 + $0x3b0] sm:$0xff] %v386
                %v388 = vld [vmem:[%s148 + $0x758] sm:$0xff]
                %389 = vst [vmem:[%s149 + $0x3b8] sm:$0xff] %v388
                %v390 = vld [vmem:[%s148 + $0x760] sm:$0xff]
                %391 = vst [vmem:[%s149 + $0x3c0] sm:$0xff] %v390
                %v392 = vld [vmem:[%s148 + $0x768] sm:$0xff]
                %393 = vst [vmem:[%s149 + $0x3c8] sm:$0xff] %v392
                %v394 = vld [vmem:[%s148 + $0x770] sm:$0xff]
                %395 = vst [vmem:[%s149 + $0x3d0] sm:$0xff] %v394
                %v396 = vld [vmem:[%s148 + $0x778] sm:$0xff]
                %397 = vst [vmem:[%s149 + $0x3d8] sm:$0xff] %v396
                %v398 = vld [vmem:[%s148 + $0x780] sm:$0xff]
                %399 = vst [vmem:[%s149 + $0x3e0] sm:$0xff] %v398
                %v400 = vld [vmem:[%s148 + $0x788] sm:$0xff]
                %401 = vst [vmem:[%s149 + $0x3e8] sm:$0xff] %v400
                %v402 = vld [vmem:[%s148 + $0x790] sm:$0xff]
                %403 = vst [vmem:[%s149 + $0x3f0] sm:$0xff] %v402
                %v404 = vld [vmem:[%s148 + $0x798] sm:$0xff]
                %405 = vst [vmem:[%s149 + $0x3f8] sm:$0xff] %v404
                %v406 = vld [vmem:[%s148 + $0x7a0] sm:$0xff]
                %407 = vst [vmem:[%s149 + $0x400] sm:$0xff] %v406
                %v408 = vld [vmem:[%s148 + $0x7a8] sm:$0xff]
                %409 = vst [vmem:[%s149 + $0x408] sm:$0xff] %v408
                %v410 = vld [vmem:[%s148 + $0x7b0] sm:$0xff]
                %411 = vst [vmem:[%s149 + $0x410] sm:$0xff] %v410
                %v412 = vld [vmem:[%s148 + $0x7b8] sm:$0xff]
                %413 = vst [vmem:[%s149 + $0x418] sm:$0xff] %v412
                %v414 = vld [vmem:[%s148 + $0x7c0] sm:$0xff]
                %415 = vst [vmem:[%s149 + $0x420] sm:$0xff] %v414
                %v416 = vld [vmem:[%s148 + $0x7c8] sm:$0xff]
                %417 = vst [vmem:[%s149 + $0x428] sm:$0xff] %v416
                %v418 = vld [vmem:[%s148 + $0x7d0] sm:$0xff]
                %419 = vst [vmem:[%s149 + $0x430] sm:$0xff] %v418
                %v420 = vld [vmem:[%s148 + $0x7d8] sm:$0xff]
                %421 = vst [vmem:[%s149 + $0x438] sm:$0xff] %v420
                %v422 = vld [vmem:[%s148 + $0x7e0] sm:$0xff]
                %423 = vst [vmem:[%s149 + $0x440] sm:$0xff] %v422
                %v424 = vld [vmem:[%s148 + $0x7e8] sm:$0xff]
                %425 = vst [vmem:[%s149 + $0x448] sm:$0xff] %v424
                %v426 = vld [vmem:[%s148 + $0x7f0] sm:$0xff]
                %427 = vst [vmem:[%s149 + $0x450] sm:$0xff] %v426
                %v428 = vld [vmem:[%s148 + $0x7f8] sm:$0xff]
                %429 = vst [vmem:[%s149 + $0x458] sm:$0xff] %v428
                %v430 = vld [vmem:[%s148 + $0x800] sm:$0xff]
                %431 = vst [vmem:[%s149 + $0x460] sm:$0xff] %v430
                %v432 = vld [vmem:[%s148 + $0x808] sm:$0xff]
                %433 = vst [vmem:[%s149 + $0x468] sm:$0xff] %v432
                %v434 = vld [vmem:[%s148 + $0x810] sm:$0xff]
                %435 = vst [vmem:[%s149 + $0x470] sm:$0xff] %v434
                %v436 = vld [vmem:[%s148 + $0x818] sm:$0xff]
                %437 = vst [vmem:[%s149 + $0x478] sm:$0xff] %v436
                %v438 = vld [vmem:[%s148 + $0x820] sm:$0xff]
                %439 = vst [vmem:[%s149 + $0x480] sm:$0xff] %v438
                %v440 = vld [vmem:[%s148 + $0x910] sm:$0xff]
                %441 = vst [vmem:[%s149 + $0x488] sm:$0xff] %v440
                %v442 = vld [vmem:[%s148 + $0x918] sm:$0xff]
                %443 = vst [vmem:[%s149 + $0x490] sm:$0xff] %v442
                %v444 = vld [vmem:[%s148 + $0x920] sm:$0xff]
                %445 = vst [vmem:[%s149 + $0x498] sm:$0xff] %v444
                %v446 = vld [vmem:[%s148 + $0x928] sm:$0xff]
                %447 = vst [vmem:[%s149 + $0x4a0] sm:$0xff] %v446
                %v448 = vld [vmem:[%s148 + $0x930] sm:$0xff]
                %449 = vst [vmem:[%s149 + $0x4a8] sm:$0xff] %v448
                %v450 = vld [vmem:[%s148 + $0x938] sm:$0xff]
                %451 = vst [vmem:[%s149 + $0x4b0] sm:$0xff] %v450
                %v452 = vld [vmem:[%s148 + $0x940] sm:$0xff]
                %453 = vst [vmem:[%s149 + $0x4b8] sm:$0xff] %v452
                %v454 = vld [vmem:[%s148 + $0x948] sm:$0xff]
                %455 = vst [vmem:[%s149 + $0x4c0] sm:$0xff] %v454
                %v456 = vld [vmem:[%s148 + $0x950] sm:$0xff]
                %457 = vst [vmem:[%s149 + $0x4c8] sm:$0xff] %v456
                %v458 = vld [vmem:[%s148 + $0x958] sm:$0xff]
                %459 = vst [vmem:[%s149 + $0x4d0] sm:$0xff] %v458
                %v460 = vld [vmem:[%s148 + $0x960] sm:$0xff]
                %461 = vst [vmem:[%s149 + $0x4d8] sm:$0xff] %v460
                %v462 = vld [vmem:[%s148 + $0x968] sm:$0xff]
                %463 = vst [vmem:[%s149 + $0x4e0] sm:$0xff] %v462
                %v464 = vld [vmem:[%s148 + $0x970] sm:$0xff]
                %465 = vst [vmem:[%s149 + $0x4e8] sm:$0xff] %v464
                %v466 = vld [vmem:[%s148 + $0x978] sm:$0xff]
                %467 = vst [vmem:[%s149 + $0x4f0] sm:$0xff] %v466
                %v468 = vld [vmem:[%s148 + $0x980] sm:$0xff]
                %469 = vst [vmem:[%s149 + $0x4f8] sm:$0xff] %v468
                %v470 = vld [vmem:[%s148 + $0x988] sm:$0xff]
                %471 = vst [vmem:[%s149 + $0x500] sm:$0xff] %v470
                %v472 = vld [vmem:[%s148 + $0x990] sm:$0xff]
                %473 = vst [vmem:[%s149 + $0x508] sm:$0xff] %v472
                %v474 = vld [vmem:[%s148 + $0x998] sm:$0xff]
                %475 = vst [vmem:[%s149 + $0x510] sm:$0xff] %v474
                %v476 = vld [vmem:[%s148 + $0x9a0] sm:$0xff]
                %477 = vst [vmem:[%s149 + $0x518] sm:$0xff] %v476
                %v478 = vld [vmem:[%s148 + $0x9a8] sm:$0xff]
                %479 = vst [vmem:[%s149 + $0x520] sm:$0xff] %v478
                %v480 = vld [vmem:[%s148 + $0x9b0] sm:$0xff]
                %481 = vst [vmem:[%s149 + $0x528] sm:$0xff] %v480
                %v482 = vld [vmem:[%s148 + $0x9b8] sm:$0xff]
                %483 = vst [vmem:[%s149 + $0x530] sm:$0xff] %v482
                %v484 = vld [vmem:[%s148 + $0x9c0] sm:$0xff]
                %485 = vst [vmem:[%s149 + $0x538] sm:$0xff] %v484
                %v486 = vld [vmem:[%s148 + $0x9c8] sm:$0xff]
                %487 = vst [vmem:[%s149 + $0x540] sm:$0xff] %v486
                %v488 = vld [vmem:[%s148 + $0x9d0] sm:$0xff]
                %489 = vst [vmem:[%s149 + $0x548] sm:$0xff] %v488
                %v490 = vld [vmem:[%s148 + $0x9d8] sm:$0xff]
                %491 = vst [vmem:[%s149 + $0x550] sm:$0xff] %v490
                %v492 = vld [vmem:[%s148 + $0x9e0] sm:$0xff]
                %493 = vst [vmem:[%s149 + $0x558] sm:$0xff] %v492
                %v494 = vld [vmem:[%s148 + $0x9e8] sm:$0xff]
                %495 = vst [vmem:[%s149 + $0x560] sm:$0xff] %v494
                %v496 = vld [vmem:[%s148 + $0x9f0] sm:$0xff]
                %497 = vst [vmem:[%s149 + $0x568] sm:$0xff] %v496
                %v498 = vld [vmem:[%s148 + $0xae0] sm:$0xff]
                %499 = vst [vmem:[%s149 + $0x570] sm:$0xff] %v498
                %v500 = vld [vmem:[%s148 + $0xae8] sm:$0xff]
                %501 = vst [vmem:[%s149 + $0x578] sm:$0xff] %v500
                %v502 = vld [vmem:[%s148 + $0xaf0] sm:$0xff]
                %503 = vst [vmem:[%s149 + $0x580] sm:$0xff] %v502
                %v504 = vld [vmem:[%s148 + $0xaf8] sm:$0xff]
                %505 = vst [vmem:[%s149 + $0x588] sm:$0xff] %v504
                %v506 = vld [vmem:[%s148 + $0xb00] sm:$0xff]
                %507 = vst [vmem:[%s149 + $0x590] sm:$0xff] %v506
                %v508 = vld [vmem:[%s148 + $0xb08] sm:$0xff]
                %509 = vst [vmem:[%s149 + $0x598] sm:$0xff] %v508
                %v510 = vld [vmem:[%s148 + $0xb10] sm:$0xff]
                %511 = vst [vmem:[%s149 + $0x5a0] sm:$0xff] %v510
                %v512 = vld [vmem:[%s148 + $0xb18] sm:$0xff]
                %513 = vst [vmem:[%s149 + $0x5a8] sm:$0xff] %v512
                %v514 = vld [vmem:[%s148 + $0xb20] sm:$0xff]
                %515 = vst [vmem:[%s149 + $0x5b0] sm:$0xff] %v514
                %v516 = vld [vmem:[%s148 + $0xb28] sm:$0xff]
                %517 = vst [vmem:[%s149 + $0x5b8] sm:$0xff] %v516
                %v518 = vld [vmem:[%s148 + $0xb30] sm:$0xff]
                %519 = vst [vmem:[%s149 + $0x5c0] sm:$0xff] %v518
                %v520 = vld [vmem:[%s148 + $0xb38] sm:$0xff]
                %521 = vst [vmem:[%s149 + $0x5c8] sm:$0xff] %v520
                %v522 = vld [vmem:[%s148 + $0xb40] sm:$0xff]
                %523 = vst [vmem:[%s149 + $0x5d0] sm:$0xff] %v522
                %v524 = vld [vmem:[%s148 + $0xb48] sm:$0xff]
                %525 = vst [vmem:[%s149 + $0x5d8] sm:$0xff] %v524
                %v526 = vld [vmem:[%s148 + $0xb50] sm:$0xff]
                %527 = vst [vmem:[%s149 + $0x5e0] sm:$0xff] %v526
                %v528 = vld [vmem:[%s148 + $0xb58] sm:$0xff]
                %529 = vst [vmem:[%s149 + $0x5e8] sm:$0xff] %v528
                %v530 = vld [vmem:[%s148 + $0xb60] sm:$0xff]
                %531 = vst [vmem:[%s149 + $0x5f0] sm:$0xff] %v530
                %v532 = vld [vmem:[%s148 + $0xb68] sm:$0xff]
                %533 = vst [vmem:[%s149 + $0x5f8] sm:$0xff] %v532
                %v534 = vld [vmem:[%s148 + $0xb70] sm:$0xff]
                %535 = vst [vmem:[%s149 + $0x600] sm:$0xff] %v534
                %v536 = vld [vmem:[%s148 + $0xb78] sm:$0xff]
                %537 = vst [vmem:[%s149 + $0x608] sm:$0xff] %v536
                %v538 = vld [vmem:[%s148 + $0xb80] sm:$0xff]
                %539 = vst [vmem:[%s149 + $0x610] sm:$0xff] %v538
                %v540 = vld [vmem:[%s148 + $0xb88] sm:$0xff]
                %541 = vst [vmem:[%s149 + $0x618] sm:$0xff] %v540
                %v542 = vld [vmem:[%s148 + $0xb90] sm:$0xff]
                %543 = vst [vmem:[%s149 + $0x620] sm:$0xff] %v542
                %v544 = vld [vmem:[%s148 + $0xb98] sm:$0xff]
                %545 = vst [vmem:[%s149 + $0x628] sm:$0xff] %v544
                %v546 = vld [vmem:[%s148 + $0xba0] sm:$0xff]
                %547 = vst [vmem:[%s149 + $0x630] sm:$0xff] %v546
                %v548 = vld [vmem:[%s148 + $0xba8] sm:$0xff]
                %549 = vst [vmem:[%s149 + $0x638] sm:$0xff] %v548
                %v550 = vld [vmem:[%s148 + $0xbb0] sm:$0xff]
                %551 = vst [vmem:[%s149 + $0x640] sm:$0xff] %v550
                %v552 = vld [vmem:[%s148 + $0xbb8] sm:$0xff]
                %553 = vst [vmem:[%s149 + $0x648] sm:$0xff] %v552
                %v554 = vld [vmem:[%s148 + $0xbc0] sm:$0xff]
                %555 = vst [vmem:[%s149 + $0x650] sm:$0xff] %v554
                %v556 = vld [vmem:[%s148 + $0xcb0] sm:$0xff]
                %557 = vst [vmem:[%s149 + $0x658] sm:$0xff] %v556
                %v558 = vld [vmem:[%s148 + $0xcb8] sm:$0xff]
                %559 = vst [vmem:[%s149 + $0x660] sm:$0xff] %v558
                %v560 = vld [vmem:[%s148 + $0xcc0] sm:$0xff]
                %561 = vst [vmem:[%s149 + $0x668] sm:$0xff] %v560
                %v562 = vld [vmem:[%s148 + $0xcc8] sm:$0xff]
                %563 = vst [vmem:[%s149 + $0x670] sm:$0xff] %v562
                %v564 = vld [vmem:[%s148 + $0xcd0] sm:$0xff]
                %565 = vst [vmem:[%s149 + $0x678] sm:$0xff] %v564
                %v566 = vld [vmem:[%s148 + $0xcd8] sm:$0xff]
                %567 = vst [vmem:[%s149 + $0x680] sm:$0xff] %v566
                %v568 = vld [vmem:[%s148 + $0xce0] sm:$0xff]
                %569 = vst [vmem:[%s149 + $0x688] sm:$0xff] %v568
                %v570 = vld [vmem:[%s148 + $0xce8] sm:$0xff]
                %571 = vst [vmem:[%s149 + $0x690] sm:$0xff] %v570
                %v572 = vld [vmem:[%s148 + $0xcf0] sm:$0xff]
                %573 = vst [vmem:[%s149 + $0x698] sm:$0xff] %v572
                %v574 = vld [vmem:[%s148 + $0xcf8] sm:$0xff]
                %575 = vst [vmem:[%s149 + $0x6a0] sm:$0xff] %v574
                %v576 = vld [vmem:[%s148 + $0xd00] sm:$0xff]
                %577 = vst [vmem:[%s149 + $0x6a8] sm:$0xff] %v576
                %v578 = vld [vmem:[%s148 + $0xd08] sm:$0xff]
                %579 = vst [vmem:[%s149 + $0x6b0] sm:$0xff] %v578
                %v580 = vld [vmem:[%s148 + $0xd10] sm:$0xff]
                %581 = vst [vmem:[%s149 + $0x6b8] sm:$0xff] %v580
                %v582 = vld [vmem:[%s148 + $0xd18] sm:$0xff]
                %583 = vst [vmem:[%s149 + $0x6c0] sm:$0xff] %v582
                %v584 = vld [vmem:[%s148 + $0xd20] sm:$0xff]
                %585 = vst [vmem:[%s149 + $0x6c8] sm:$0xff] %v584
                %v586 = vld [vmem:[%s148 + $0xd28] sm:$0xff]
                %587 = vst [vmem:[%s149 + $0x6d0] sm:$0xff] %v586
                %v588 = vld [vmem:[%s148 + $0xd30] sm:$0xff]
                %589 = vst [vmem:[%s149 + $0x6d8] sm:$0xff] %v588
                %v590 = vld [vmem:[%s148 + $0xd38] sm:$0xff]
                %591 = vst [vmem:[%s149 + $0x6e0] sm:$0xff] %v590
                %v592 = vld [vmem:[%s148 + $0xd40] sm:$0xff]
                %593 = vst [vmem:[%s149 + $0x6e8] sm:$0xff] %v592
                %v594 = vld [vmem:[%s148 + $0xd48] sm:$0xff]
                %595 = vst [vmem:[%s149 + $0x6f0] sm:$0xff] %v594
                %v596 = vld [vmem:[%s148 + $0xd50] sm:$0xff]
                %597 = vst [vmem:[%s149 + $0x6f8] sm:$0xff] %v596
                %v598 = vld [vmem:[%s148 + $0xd58] sm:$0xff]
                %599 = vst [vmem:[%s149 + $0x700] sm:$0xff] %v598
                %v600 = vld [vmem:[%s148 + $0xd60] sm:$0xff]
                %601 = vst [vmem:[%s149 + $0x708] sm:$0xff] %v600
                %v602 = vld [vmem:[%s148 + $0xd68] sm:$0xff]
                %603 = vst [vmem:[%s149 + $0x710] sm:$0xff] %v602
                %v604 = vld [vmem:[%s148 + $0xd70] sm:$0xff]
                %605 = vst [vmem:[%s149 + $0x718] sm:$0xff] %v604
                %v606 = vld [vmem:[%s148 + $0xd78] sm:$0xff]
                %607 = vst [vmem:[%s149 + $0x720] sm:$0xff] %v606
                %v608 = vld [vmem:[%s148 + $0xd80] sm:$0xff]
                %609 = vst [vmem:[%s149 + $0x728] sm:$0xff] %v608
                %v610 = vld [vmem:[%s148 + $0xd88] sm:$0xff]
                %611 = vst [vmem:[%s149 + $0x730] sm:$0xff] %v610
                %v612 = vld [vmem:[%s148 + $0xd90] sm:$0xff]
                %613 = vst [vmem:[%s149 + $0x738] sm:$0xff] %v612
                %v614 = vld [vmem:[%s148 + $0xe80] sm:$0xff]
                %615 = vst [vmem:[%s149 + $0x740] sm:$0xff] %v614
                %v616 = vld [vmem:[%s148 + $0xe88] sm:$0xff]
                %617 = vst [vmem:[%s149 + $0x748] sm:$0xff] %v616
                %v618 = vld [vmem:[%s148 + $0xe90] sm:$0xff]
                %619 = vst [vmem:[%s149 + $0x750] sm:$0xff] %v618
                %v620 = vld [vmem:[%s148 + $0xe98] sm:$0xff]
                %621 = vst [vmem:[%s149 + $0x758] sm:$0xff] %v620
                %v622 = vld [vmem:[%s148 + $0xea0] sm:$0xff]
                %623 = vst [vmem:[%s149 + $0x760] sm:$0xff] %v622
                %v624 = vld [vmem:[%s148 + $0xea8] sm:$0xff]
                %625 = vst [vmem:[%s149 + $0x768] sm:$0xff] %v624
                %v626 = vld [vmem:[%s148 + $0xeb0] sm:$0xff]
                %627 = vst [vmem:[%s149 + $0x770] sm:$0xff] %v626
                %v628 = vld [vmem:[%s148 + $0xeb8] sm:$0xff]
                %629 = vst [vmem:[%s149 + $0x778] sm:$0xff] %v628
                %v630 = vld [vmem:[%s148 + $0xec0] sm:$0xff]
                %631 = vst [vmem:[%s149 + $0x780] sm:$0xff] %v630
                %v632 = vld [vmem:[%s148 + $0xec8] sm:$0xff]
                %633 = vst [vmem:[%s149 + $0x788] sm:$0xff] %v632
                %v634 = vld [vmem:[%s148 + $0xed0] sm:$0xff]
                %635 = vst [vmem:[%s149 + $0x790] sm:$0xff] %v634
                %v636 = vld [vmem:[%s148 + $0xed8] sm:$0xff]
                %637 = vst [vmem:[%s149 + $0x798] sm:$0xff] %v636
                %v638 = vld [vmem:[%s148 + $0xee0] sm:$0xff]
                %639 = vst [vmem:[%s149 + $0x7a0] sm:$0xff] %v638
                %v640 = vld [vmem:[%s148 + $0xee8] sm:$0xff]
                %641 = vst [vmem:[%s149 + $0x7a8] sm:$0xff] %v640
                %v642 = vld [vmem:[%s148 + $0xef0] sm:$0xff]
                %643 = vst [vmem:[%s149 + $0x7b0] sm:$0xff] %v642
                %v644 = vld [vmem:[%s148 + $0xef8] sm:$0xff]
                %645 = vst [vmem:[%s149 + $0x7b8] sm:$0xff] %v644
                %v646 = vld [vmem:[%s148 + $0xf00] sm:$0xff]
                %647 = vst [vmem:[%s149 + $0x7c0] sm:$0xff] %v646
                %v648 = vld [vmem:[%s148 + $0xf08] sm:$0xff]
                %649 = vst [vmem:[%s149 + $0x7c8] sm:$0xff] %v648
                %v650 = vld [vmem:[%s148 + $0xf10] sm:$0xff]
                %651 = vst [vmem:[%s149 + $0x7d0] sm:$0xff] %v650
                %v652 = vld [vmem:[%s148 + $0xf18] sm:$0xff]
                %653 = vst [vmem:[%s149 + $0x7d8] sm:$0xff] %v652
                %v654 = vld [vmem:[%s148 + $0xf20] sm:$0xff]
                %655 = vst [vmem:[%s149 + $0x7e0] sm:$0xff] %v654
                %v656 = vld [vmem:[%s148 + $0xf28] sm:$0xff]
                %657 = vst [vmem:[%s149 + $0x7e8] sm:$0xff] %v656
                %v658 = vld [vmem:[%s148 + $0xf30] sm:$0xff]
                %659 = vst [vmem:[%s149 + $0x7f0] sm:$0xff] %v658
                %v660 = vld [vmem:[%s148 + $0xf38] sm:$0xff]
                %661 = vst [vmem:[%s149 + $0x7f8] sm:$0xff] %v660
                %v662 = vld [vmem:[%s148 + $0xf40] sm:$0xff]
                %663 = vst [vmem:[%s149 + $0x800] sm:$0xff] %v662
                %v664 = vld [vmem:[%s148 + $0xf48] sm:$0xff]
                %665 = vst [vmem:[%s149 + $0x808] sm:$0xff] %v664
                %v666 = vld [vmem:[%s148 + $0xf50] sm:$0xff]
                %667 = vst [vmem:[%s149 + $0x810] sm:$0xff] %v666
                %v668 = vld [vmem:[%s148 + $0xf58] sm:$0xff]
                %669 = vst [vmem:[%s149 + $0x818] sm:$0xff] %v668
                %v670 = vld [vmem:[%s148 + $0xf60] sm:$0xff]
                %671 = vst [vmem:[%s149 + $0x820] sm:$0xff] %v670
                %v672 = vld [vmem:[%s148 + $0x1050] sm:$0xff]
                %673 = vst [vmem:[%s149 + $0x828] sm:$0xff] %v672
                %v674 = vld [vmem:[%s148 + $0x1058] sm:$0xff]
                %675 = vst [vmem:[%s149 + $0x830] sm:$0xff] %v674
                %v676 = vld [vmem:[%s148 + $0x1060] sm:$0xff]
                %677 = vst [vmem:[%s149 + $0x838] sm:$0xff] %v676
                %v678 = vld [vmem:[%s148 + $0x1068] sm:$0xff]
                %679 = vst [vmem:[%s149 + $0x840] sm:$0xff] %v678
                %v680 = vld [vmem:[%s148 + $0x1070] sm:$0xff]
                %681 = vst [vmem:[%s149 + $0x848] sm:$0xff] %v680
                %v682 = vld [vmem:[%s148 + $0x1078] sm:$0xff]
                %683 = vst [vmem:[%s149 + $0x850] sm:$0xff] %v682
                %v684 = vld [vmem:[%s148 + $0x1080] sm:$0xff]
                %685 = vst [vmem:[%s149 + $0x858] sm:$0xff] %v684
                %v686 = vld [vmem:[%s148 + $0x1088] sm:$0xff]
                %687 = vst [vmem:[%s149 + $0x860] sm:$0xff] %v686
                %v688 = vld [vmem:[%s148 + $0x1090] sm:$0xff]
                %689 = vst [vmem:[%s149 + $0x868] sm:$0xff] %v688
                %v690 = vld [vmem:[%s148 + $0x1098] sm:$0xff]
                %691 = vst [vmem:[%s149 + $0x870] sm:$0xff] %v690
                %v692 = vld [vmem:[%s148 + $0x10a0] sm:$0xff]
                %693 = vst [vmem:[%s149 + $0x878] sm:$0xff] %v692
                %v694 = vld [vmem:[%s148 + $0x10a8] sm:$0xff]
                %695 = vst [vmem:[%s149 + $0x880] sm:$0xff] %v694
                %v696 = vld [vmem:[%s148 + $0x10b0] sm:$0xff]
                %697 = vst [vmem:[%s149 + $0x888] sm:$0xff] %v696
                %v698 = vld [vmem:[%s148 + $0x10b8] sm:$0xff]
                %699 = vst [vmem:[%s149 + $0x890] sm:$0xff] %v698
                %v700 = vld [vmem:[%s148 + $0x10c0] sm:$0xff]
                %701 = vst [vmem:[%s149 + $0x898] sm:$0xff] %v700
                %v702 = vld [vmem:[%s148 + $0x10c8] sm:$0xff]
                %703 = vst [vmem:[%s149 + $0x8a0] sm:$0xff] %v702
                %v704 = vld [vmem:[%s148 + $0x10d0] sm:$0xff]
                %705 = vst [vmem:[%s149 + $0x8a8] sm:$0xff] %v704
                %v706 = vld [vmem:[%s148 + $0x10d8] sm:$0xff]
                %707 = vst [vmem:[%s149 + $0x8b0] sm:$0xff] %v706
                %v708 = vld [vmem:[%s148 + $0x10e0] sm:$0xff]
                %709 = vst [vmem:[%s149 + $0x8b8] sm:$0xff] %v708
                %v710 = vld [vmem:[%s148 + $0x10e8] sm:$0xff]
                %711 = vst [vmem:[%s149 + $0x8c0] sm:$0xff] %v710
                %v712 = vld [vmem:[%s148 + $0x10f0] sm:$0xff]
                %713 = vst [vmem:[%s149 + $0x8c8] sm:$0xff] %v712
                %v714 = vld [vmem:[%s148 + $0x10f8] sm:$0xff]
                %715 = vst [vmem:[%s149 + $0x8d0] sm:$0xff] %v714
                %v716 = vld [vmem:[%s148 + $0x1100] sm:$0xff]
                %717 = vst [vmem:[%s149 + $0x8d8] sm:$0xff] %v716
                %v718 = vld [vmem:[%s148 + $0x1108] sm:$0xff]
                %719 = vst [vmem:[%s149 + $0x8e0] sm:$0xff] %v718
                %v720 = vld [vmem:[%s148 + $0x1110] sm:$0xff]
                %721 = vst [vmem:[%s149 + $0x8e8] sm:$0xff] %v720
                %v722 = vld [vmem:[%s148 + $0x1118] sm:$0xff]
                %723 = vst [vmem:[%s149 + $0x8f0] sm:$0xff] %v722
                %v724 = vld [vmem:[%s148 + $0x1120] sm:$0xff]
                %725 = vst [vmem:[%s149 + $0x8f8] sm:$0xff] %v724
                %v726 = vld [vmem:[%s148 + $0x1128] sm:$0xff]
                %727 = vst [vmem:[%s149 + $0x900] sm:$0xff] %v726
                %v728 = vld [vmem:[%s148 + $0x1130] sm:$0xff]
                %729 = vst [vmem:[%s149 + $0x908] sm:$0xff] %v728
                %v730 = vld [vmem:[%s148 + $0x1220] sm:$0xff]
                %731 = vst [vmem:[%s149 + $0x910] sm:$0xff] %v730
                %v732 = vld [vmem:[%s148 + $0x1228] sm:$0xff]
                %733 = vst [vmem:[%s149 + $0x918] sm:$0xff] %v732
                %v734 = vld [vmem:[%s148 + $0x1230] sm:$0xff]
                %735 = vst [vmem:[%s149 + $0x920] sm:$0xff] %v734
                %v736 = vld [vmem:[%s148 + $0x1238] sm:$0xff]
                %737 = vst [vmem:[%s149 + $0x928] sm:$0xff] %v736
                %v738 = vld [vmem:[%s148 + $0x1240] sm:$0xff]
                %739 = vst [vmem:[%s149 + $0x930] sm:$0xff] %v738
                %v740 = vld [vmem:[%s148 + $0x1248] sm:$0xff]
                %741 = vst [vmem:[%s149 + $0x938] sm:$0xff] %v740
                %v742 = vld [vmem:[%s148 + $0x1250] sm:$0xff]
                %743 = vst [vmem:[%s149 + $0x940] sm:$0xff] %v742
                %v744 = vld [vmem:[%s148 + $0x1258] sm:$0xff]
                %745 = vst [vmem:[%s149 + $0x948] sm:$0xff] %v744
                %v746 = vld [vmem:[%s148 + $0x1260] sm:$0xff]
                %747 = vst [vmem:[%s149 + $0x950] sm:$0xff] %v746
                %v748 = vld [vmem:[%s148 + $0x1268] sm:$0xff]
                %749 = vst [vmem:[%s149 + $0x958] sm:$0xff] %v748
                %v750 = vld [vmem:[%s148 + $0x1270] sm:$0xff]
                %751 = vst [vmem:[%s149 + $0x960] sm:$0xff] %v750
                %v752 = vld [vmem:[%s148 + $0x1278] sm:$0xff]
                %753 = vst [vmem:[%s149 + $0x968] sm:$0xff] %v752
                %v754 = vld [vmem:[%s148 + $0x1280] sm:$0xff]
                %755 = vst [vmem:[%s149 + $0x970] sm:$0xff] %v754
                %v756 = vld [vmem:[%s148 + $0x1288] sm:$0xff]
                %757 = vst [vmem:[%s149 + $0x978] sm:$0xff] %v756
                %v758 = vld [vmem:[%s148 + $0x1290] sm:$0xff]
                %759 = vst [vmem:[%s149 + $0x980] sm:$0xff] %v758
                %v760 = vld [vmem:[%s148 + $0x1298] sm:$0xff]
                %761 = vst [vmem:[%s149 + $0x988] sm:$0xff] %v760
                %v762 = vld [vmem:[%s148 + $0x12a0] sm:$0xff]
                %763 = vst [vmem:[%s149 + $0x990] sm:$0xff] %v762
                %v764 = vld [vmem:[%s148 + $0x12a8] sm:$0xff]
                %765 = vst [vmem:[%s149 + $0x998] sm:$0xff] %v764
                %v766 = vld [vmem:[%s148 + $0x12b0] sm:$0xff]
                %767 = vst [vmem:[%s149 + $0x9a0] sm:$0xff] %v766
                %v768 = vld [vmem:[%s148 + $0x12b8] sm:$0xff]
                %769 = vst [vmem:[%s149 + $0x9a8] sm:$0xff] %v768
                %v770 = vld [vmem:[%s148 + $0x12c0] sm:$0xff]
                %771 = vst [vmem:[%s149 + $0x9b0] sm:$0xff] %v770
                %v772 = vld [vmem:[%s148 + $0x12c8] sm:$0xff]
                %773 = vst [vmem:[%s149 + $0x9b8] sm:$0xff] %v772
                %v774 = vld [vmem:[%s148 + $0x12d0] sm:$0xff]
                %775 = vst [vmem:[%s149 + $0x9c0] sm:$0xff] %v774
                %v776 = vld [vmem:[%s148 + $0x12d8] sm:$0xff]
                %777 = vst [vmem:[%s149 + $0x9c8] sm:$0xff] %v776
                %v778 = vld [vmem:[%s148 + $0x12e0] sm:$0xff]
                %779 = vst [vmem:[%s149 + $0x9d0] sm:$0xff] %v778
                %v780 = vld [vmem:[%s148 + $0x12e8] sm:$0xff]
                %781 = vst [vmem:[%s149 + $0x9d8] sm:$0xff] %v780
                %v782 = vld [vmem:[%s148 + $0x12f0] sm:$0xff]
                %783 = vst [vmem:[%s149 + $0x9e0] sm:$0xff] %v782
                %v784 = vld [vmem:[%s148 + $0x12f8] sm:$0xff]
                %785 = vst [vmem:[%s149 + $0x9e8] sm:$0xff] %v784
                %v786 = vld [vmem:[%s148 + $0x1300] sm:$0xff]
                %787 = vst [vmem:[%s149 + $0x9f0] sm:$0xff] %v786
                %v788 = vld [vmem:[%s148 + $0x13f0] sm:$0xff]
                %789 = vst [vmem:[%s149 + $0x9f8] sm:$0xff] %v788
                %v790 = vld [vmem:[%s148 + $0x13f8] sm:$0xff]
                %791 = vst [vmem:[%s149 + $0xa00] sm:$0xff] %v790
                %v792 = vld [vmem:[%s148 + $0x1400] sm:$0xff]
                %793 = vst [vmem:[%s149 + $0xa08] sm:$0xff] %v792
                %v794 = vld [vmem:[%s148 + $0x1408] sm:$0xff]
                %795 = vst [vmem:[%s149 + $0xa10] sm:$0xff] %v794
                %v796 = vld [vmem:[%s148 + $0x1410] sm:$0xff]
                %797 = vst [vmem:[%s149 + $0xa18] sm:$0xff] %v796
                %v798 = vld [vmem:[%s148 + $0x1418] sm:$0xff]
                %799 = vst [vmem:[%s149 + $0xa20] sm:$0xff] %v798
                %v800 = vld [vmem:[%s148 + $0x1420] sm:$0xff]
                %801 = vst [vmem:[%s149 + $0xa28] sm:$0xff] %v800
                %v802 = vld [vmem:[%s148 + $0x1428] sm:$0xff]
                %803 = vst [vmem:[%s149 + $0xa30] sm:$0xff] %v802
                %v804 = vld [vmem:[%s148 + $0x1430] sm:$0xff]
                %805 = vst [vmem:[%s149 + $0xa38] sm:$0xff] %v804
                %v806 = vld [vmem:[%s148 + $0x1438] sm:$0xff]
                %807 = vst [vmem:[%s149 + $0xa40] sm:$0xff] %v806
                %v808 = vld [vmem:[%s148 + $0x1440] sm:$0xff]
                %809 = vst [vmem:[%s149 + $0xa48] sm:$0xff] %v808
                %v810 = vld [vmem:[%s148 + $0x1448] sm:$0xff]
                %811 = vst [vmem:[%s149 + $0xa50] sm:$0xff] %v810
                %v812 = vld [vmem:[%s148 + $0x1450] sm:$0xff]
                %813 = vst [vmem:[%s149 + $0xa58] sm:$0xff] %v812
                %v814 = vld [vmem:[%s148 + $0x1458] sm:$0xff]
                %815 = vst [vmem:[%s149 + $0xa60] sm:$0xff] %v814
                %v816 = vld [vmem:[%s148 + $0x1460] sm:$0xff]
                %817 = vst [vmem:[%s149 + $0xa68] sm:$0xff] %v816
                %v818 = vld [vmem:[%s148 + $0x1468] sm:$0xff]
                %819 = vst [vmem:[%s149 + $0xa70] sm:$0xff] %v818
                %v820 = vld [vmem:[%s148 + $0x1470] sm:$0xff]
                %821 = vst [vmem:[%s149 + $0xa78] sm:$0xff] %v820
                %v822 = vld [vmem:[%s148 + $0x1478] sm:$0xff]
                %823 = vst [vmem:[%s149 + $0xa80] sm:$0xff] %v822
                %v824 = vld [vmem:[%s148 + $0x1480] sm:$0xff]
                %825 = vst [vmem:[%s149 + $0xa88] sm:$0xff] %v824
                %v826 = vld [vmem:[%s148 + $0x1488] sm:$0xff]
                %827 = vst [vmem:[%s149 + $0xa90] sm:$0xff] %v826
                %v828 = vld [vmem:[%s148 + $0x1490] sm:$0xff]
                %829 = vst [vmem:[%s149 + $0xa98] sm:$0xff] %v828
                %v830 = vld [vmem:[%s148 + $0x1498] sm:$0xff]
                %831 = vst [vmem:[%s149 + $0xaa0] sm:$0xff] %v830
                %v832 = vld [vmem:[%s148 + $0x14a0] sm:$0xff]
                %833 = vst [vmem:[%s149 + $0xaa8] sm:$0xff] %v832
                %v834 = vld [vmem:[%s148 + $0x14a8] sm:$0xff]
                %835 = vst [vmem:[%s149 + $0xab0] sm:$0xff] %v834
                %v836 = vld [vmem:[%s148 + $0x14b0] sm:$0xff]
                %837 = vst [vmem:[%s149 + $0xab8] sm:$0xff] %v836
                %v838 = vld [vmem:[%s148 + $0x14b8] sm:$0xff]
                %839 = vst [vmem:[%s149 + $0xac0] sm:$0xff] %v838
                %v840 = vld [vmem:[%s148 + $0x14c0] sm:$0xff]
                %841 = vst [vmem:[%s149 + $0xac8] sm:$0xff] %v840
                %v842 = vld [vmem:[%s148 + $0x14c8] sm:$0xff]
                %843 = vst [vmem:[%s149 + $0xad0] sm:$0xff] %v842
                %v844 = vld [vmem:[%s148 + $0x14d0] sm:$0xff]
                %845 = vst [vmem:[%s149 + $0xad8] sm:$0xff] %v844
                %v846 = vld [vmem:[%s148 + $0x15c0] sm:$0xff]
                %847 = vst [vmem:[%s149 + $0xae0] sm:$0xff] %v846
                %v848 = vld [vmem:[%s148 + $0x15c8] sm:$0xff]
                %849 = vst [vmem:[%s149 + $0xae8] sm:$0xff] %v848
                %v850 = vld [vmem:[%s148 + $0x15d0] sm:$0xff]
                %851 = vst [vmem:[%s149 + $0xaf0] sm:$0xff] %v850
                %v852 = vld [vmem:[%s148 + $0x15d8] sm:$0xff]
                %853 = vst [vmem:[%s149 + $0xaf8] sm:$0xff] %v852
                %v854 = vld [vmem:[%s148 + $0x15e0] sm:$0xff]
                %855 = vst [vmem:[%s149 + $0xb00] sm:$0xff] %v854
                %v856 = vld [vmem:[%s148 + $0x15e8] sm:$0xff]
                %857 = vst [vmem:[%s149 + $0xb08] sm:$0xff] %v856
                %v858 = vld [vmem:[%s148 + $0x15f0] sm:$0xff]
                %859 = vst [vmem:[%s149 + $0xb10] sm:$0xff] %v858
                %v860 = vld [vmem:[%s148 + $0x15f8] sm:$0xff]
                %861 = vst [vmem:[%s149 + $0xb18] sm:$0xff] %v860
                %v862 = vld [vmem:[%s148 + $0x1600] sm:$0xff]
                %863 = vst [vmem:[%s149 + $0xb20] sm:$0xff] %v862
                %v864 = vld [vmem:[%s148 + $0x1608] sm:$0xff]
                %865 = vst [vmem:[%s149 + $0xb28] sm:$0xff] %v864
                %v866 = vld [vmem:[%s148 + $0x1610] sm:$0xff]
                %867 = vst [vmem:[%s149 + $0xb30] sm:$0xff] %v866
                %v868 = vld [vmem:[%s148 + $0x1618] sm:$0xff]
                %869 = vst [vmem:[%s149 + $0xb38] sm:$0xff] %v868
                %v870 = vld [vmem:[%s148 + $0x1620] sm:$0xff]
                %871 = vst [vmem:[%s149 + $0xb40] sm:$0xff] %v870
                %v872 = vld [vmem:[%s148 + $0x1628] sm:$0xff]
                %873 = vst [vmem:[%s149 + $0xb48] sm:$0xff] %v872
                %v874 = vld [vmem:[%s148 + $0x1630] sm:$0xff]
                %875 = vst [vmem:[%s149 + $0xb50] sm:$0xff] %v874
                %v876 = vld [vmem:[%s148 + $0x1638] sm:$0xff]
                %877 = vst [vmem:[%s149 + $0xb58] sm:$0xff] %v876
                %v878 = vld [vmem:[%s148 + $0x1640] sm:$0xff]
                %879 = vst [vmem:[%s149 + $0xb60] sm:$0xff] %v878
                %v880 = vld [vmem:[%s148 + $0x1648] sm:$0xff]
                %881 = vst [vmem:[%s149 + $0xb68] sm:$0xff] %v880
                %v882 = vld [vmem:[%s148 + $0x1650] sm:$0xff]
                %883 = vst [vmem:[%s149 + $0xb70] sm:$0xff] %v882
                %v884 = vld [vmem:[%s148 + $0x1658] sm:$0xff]
                %885 = vst [vmem:[%s149 + $0xb78] sm:$0xff] %v884
                %v886 = vld [vmem:[%s148 + $0x1660] sm:$0xff]
                %887 = vst [vmem:[%s149 + $0xb80] sm:$0xff] %v886
                %v888 = vld [vmem:[%s148 + $0x1668] sm:$0xff]
                %889 = vst [vmem:[%s149 + $0xb88] sm:$0xff] %v888
                %v890 = vld [vmem:[%s148 + $0x1670] sm:$0xff]
                %891 = vst [vmem:[%s149 + $0xb90] sm:$0xff] %v890
                %v892 = vld [vmem:[%s148 + $0x1678] sm:$0xff]
                %893 = vst [vmem:[%s149 + $0xb98] sm:$0xff] %v892
                %v894 = vld [vmem:[%s148 + $0x1680] sm:$0xff]
                %895 = vst [vmem:[%s149 + $0xba0] sm:$0xff] %v894
                %v896 = vld [vmem:[%s148 + $0x1688] sm:$0xff]
                %897 = vst [vmem:[%s149 + $0xba8] sm:$0xff] %v896
                %v898 = vld [vmem:[%s148 + $0x1690] sm:$0xff]
                %899 = vst [vmem:[%s149 + $0xbb0] sm:$0xff] %v898
                %v900 = vld [vmem:[%s148 + $0x1698] sm:$0xff]
                %901 = vst [vmem:[%s149 + $0xbb8] sm:$0xff] %v900
                %v902 = vld [vmem:[%s148 + $0x16a0] sm:$0xff]
                %903 = vst [vmem:[%s149 + $0xbc0] sm:$0xff] %v902
                %v904 = vld [vmem:[%s148 + $0x1790] sm:$0xff]
                %905 = vst [vmem:[%s149 + $0xbc8] sm:$0xff] %v904
                %v906 = vld [vmem:[%s148 + $0x1798] sm:$0xff]
                %907 = vst [vmem:[%s149 + $0xbd0] sm:$0xff] %v906
                %v908 = vld [vmem:[%s148 + $0x17a0] sm:$0xff]
                %909 = vst [vmem:[%s149 + $0xbd8] sm:$0xff] %v908
                %v910 = vld [vmem:[%s148 + $0x17a8] sm:$0xff]
                %911 = vst [vmem:[%s149 + $0xbe0] sm:$0xff] %v910
                %v912 = vld [vmem:[%s148 + $0x17b0] sm:$0xff]
                %913 = vst [vmem:[%s149 + $0xbe8] sm:$0xff] %v912
                %v914 = vld [vmem:[%s148 + $0x17b8] sm:$0xff]
                %915 = vst [vmem:[%s149 + $0xbf0] sm:$0xff] %v914
                %v916 = vld [vmem:[%s148 + $0x17c0] sm:$0xff]
                %917 = vst [vmem:[%s149 + $0xbf8] sm:$0xff] %v916
                %v918 = vld [vmem:[%s148 + $0x17c8] sm:$0xff]
                %919 = vst [vmem:[%s149 + $0xc00] sm:$0xff] %v918
                %v920 = vld [vmem:[%s148 + $0x17d0] sm:$0xff]
                %921 = vst [vmem:[%s149 + $0xc08] sm:$0xff] %v920
                %v922 = vld [vmem:[%s148 + $0x17d8] sm:$0xff]
                %923 = vst [vmem:[%s149 + $0xc10] sm:$0xff] %v922
                %v924 = vld [vmem:[%s148 + $0x17e0] sm:$0xff]
                %925 = vst [vmem:[%s149 + $0xc18] sm:$0xff] %v924
                %v926 = vld [vmem:[%s148 + $0x17e8] sm:$0xff]
                %927 = vst [vmem:[%s149 + $0xc20] sm:$0xff] %v926
                %v928 = vld [vmem:[%s148 + $0x17f0] sm:$0xff]
                %929 = vst [vmem:[%s149 + $0xc28] sm:$0xff] %v928
                %v930 = vld [vmem:[%s148 + $0x17f8] sm:$0xff]
                %931 = vst [vmem:[%s149 + $0xc30] sm:$0xff] %v930
                %v932 = vld [vmem:[%s148 + $0x1800] sm:$0xff]
                %933 = vst [vmem:[%s149 + $0xc38] sm:$0xff] %v932
                %v934 = vld [vmem:[%s148 + $0x1808] sm:$0xff]
                %935 = vst [vmem:[%s149 + $0xc40] sm:$0xff] %v934
                %v936 = vld [vmem:[%s148 + $0x1810] sm:$0xff]
                %937 = vst [vmem:[%s149 + $0xc48] sm:$0xff] %v936
                %v938 = vld [vmem:[%s148 + $0x1818] sm:$0xff]
                %939 = vst [vmem:[%s149 + $0xc50] sm:$0xff] %v938
                %v940 = vld [vmem:[%s148 + $0x1820] sm:$0xff]
                %941 = vst [vmem:[%s149 + $0xc58] sm:$0xff] %v940
                %v942 = vld [vmem:[%s148 + $0x1828] sm:$0xff]
                %943 = vst [vmem:[%s149 + $0xc60] sm:$0xff] %v942
                %v944 = vld [vmem:[%s148 + $0x1830] sm:$0xff]
                %945 = vst [vmem:[%s149 + $0xc68] sm:$0xff] %v944
                %v946 = vld [vmem:[%s148 + $0x1838] sm:$0xff]
                %947 = vst [vmem:[%s149 + $0xc70] sm:$0xff] %v946
                %v948 = vld [vmem:[%s148 + $0x1840] sm:$0xff]
                %949 = vst [vmem:[%s149 + $0xc78] sm:$0xff] %v948
                %v950 = vld [vmem:[%s148 + $0x1848] sm:$0xff]
                %951 = vst [vmem:[%s149 + $0xc80] sm:$0xff] %v950
                %v952 = vld [vmem:[%s148 + $0x1850] sm:$0xff]
                %953 = vst [vmem:[%s149 + $0xc88] sm:$0xff] %v952
                %v954 = vld [vmem:[%s148 + $0x1858] sm:$0xff]
                %955 = vst [vmem:[%s149 + $0xc90] sm:$0xff] %v954
                %v956 = vld [vmem:[%s148 + $0x1860] sm:$0xff]
                %957 = vst [vmem:[%s149 + $0xc98] sm:$0xff] %v956
                %v958 = vld [vmem:[%s148 + $0x1868] sm:$0xff]
                %959 = vst [vmem:[%s149 + $0xca0] sm:$0xff] %v958
                %v960 = vld [vmem:[%s148 + $0x1870] sm:$0xff]
                %961 = vst [vmem:[%s149 + $0xca8] sm:$0xff] %v960
              $region41: #{fstn_forward.3} parent=35 // loop_footer
                %s147 = sadd.s32 1, %s143
              $region42: #{fstn_forward.3} parent=35 // loop_footer_branch
                %142 = sbr.rel target = $region38
              $region43: #{fstn_forward.3} parent=35 // loop_exit
                _
            $region36: #{fstn_forward.3} parent=31 // pred_fallthru
              _
            // Predicated region
            $region44: #{fstn_forward.3} parent=31 // pred_check
              _
            $region45: #{fstn_forward.3} parent=31 // pred_check_branch
              %963 = sbr.rel target = $region47
            $region46: #{fstn_forward.3} parent=31 // pred_region
              _
            $region47: #{fstn_forward.3} parent=31 // pred_fallthru
              _
          $region32: #{fstn_forward.3} parent=27 // pred_fallthru
            _
          %964 = vnop
        $region28: #{fstn_forward.3} parent=23 // pred_fallthru
          _
      $region24: #{fstn_forward.3} parent=5 // pred_fallthru
        _
      %p965 = scmp.le.s32.totalorder 1, %s9
      %p966 = scmp.lt.s32.totalorder %s9, 3
      %p967 = pnand %p965, %p966
      %p968 = pneg %p967
      // Predicated region
      $region48: #{fstn_forward.3} parent=5 // pred_check
        _
      $region49: #{fstn_forward.3} parent=5 // pred_check_branch
        %970 = sbr.rel (%p967) target = $region51
      $region50: #{fstn_forward.3} parent=5 // pred_region
        %s971 = ssub.s32 %s9, 1
        %s972 = sand.u32 %s43, 1
        %s973 = sand.u32 %s43, 1
        %s974 = smul.addr %s973, 3248
        %s975 = scalar_lea.vmem [#allocation2], %s974
        // Predicated region
        $region52: #{fstn_forward.3} parent=50 // pred_check
          %p976 = pneg %p56
        $region53: #{fstn_forward.3} parent=50 // pred_check_branch
          %978 = sbr.rel (%p976) target = $region55
        $region54: #{fstn_forward.3} parent=50 // pred_region
          _
        $region55: #{fstn_forward.3} parent=50 // pred_fallthru
          _
        %p979 = pneg %p30
        %p980 = pneg %p27
        %s981 = sand.u32 %s43, 1
        %s982 = sand.u32 %s43, 1
        %s983 = smul.addr %s982, 3248
        %s984 = scalar_lea.vmem [#allocation2], %s983
        %p985 = pneg %p56
        %p986 = pneg %p53
        %p987 = pneg %p77
        %p988 = pneg %p74
        %p989 = pneg %p103
        %p990 = pneg %p100
        %s991 = sand.u32 %s90, 1
        %s992 = sand.u32 %s90, 1
        %s993 = smul.addr %s992, 464
        %s994 = scalar_lea.vmem [#allocation3], %s993
        %s995 = smul.u32 58, %s14
        %s996 = smul.u32 58, %s14
        %v998 = vld [vmem:[%s0] sm:$0xf]
        %v999 = vld [vmem:[%s0 + $0x4] sm:$0xf]
        %v1000 = vld [vmem:[%s975] sm:$0xff]
        %v1001 = vld [vmem:[%s975 + $0x8] sm:$0xff]
        %v1002 = vld [vmem:[%s975 + $0x10] sm:$0xff]
        %v1003 = vld [vmem:[%s975 + $0x18] sm:$0xff]
        %v1004 = vld [vmem:[%s975 + $0x20] sm:$0xff]
        %v1005 = vld [vmem:[%s975 + $0x28] sm:$0xff]
        %v1006 = vld [vmem:[%s975 + $0x30] sm:$0xff]
        %v1007 = vld [vmem:[%s975 + $0x38] sm:$0xff]
        %v1008 = vld [vmem:[%s975 + $0x40] sm:$0xff]
        %v1009 = vld [vmem:[%s975 + $0x48] sm:$0xff]
        %v1010 = vld [vmem:[%s975 + $0x50] sm:$0xff]
        %v1011 = vld [vmem:[%s975 + $0x58] sm:$0xff]
        %v1012 = vld [vmem:[%s975 + $0x60] sm:$0xff]
        %v1013 = vld [vmem:[%s975 + $0x68] sm:$0xff]
        %v1014 = vld [vmem:[%s975 + $0x70] sm:$0xff]
        %v1015 = vld [vmem:[%s975 + $0x78] sm:$0xff]
        %v1016 = vld [vmem:[%s975 + $0x80] sm:$0xff]
        %v1017 = vld [vmem:[%s975 + $0x88] sm:$0xff]
        %v1018 = vld [vmem:[%s975 + $0x90] sm:$0xff]
        %v1019 = vld [vmem:[%s975 + $0x98] sm:$0xff]
        %v1020 = vld [vmem:[%s975 + $0xa0] sm:$0xff]
        %v1021 = vld [vmem:[%s975 + $0xa8] sm:$0xff]
        %v1022 = vld [vmem:[%s975 + $0xb0] sm:$0xff]
        %v1023 = vld [vmem:[%s975 + $0xb8] sm:$0xff]
        %v1024 = vld [vmem:[%s975 + $0xc0] sm:$0xff]
        %v1025 = vld [vmem:[%s975 + $0xc8] sm:$0xff]
        %v1026 = vld [vmem:[%s975 + $0xd0] sm:$0xff]
        %v1027 = vld [vmem:[%s975 + $0xd8] sm:$0xff]
        %v1028 = vld [vmem:[%s975 + $0xe0] sm:$0xff]
        %v1029 = vld [vmem:[%s975 + $0xe8] sm:$0xff]
        %v1030 = vld [vmem:[%s975 + $0xf0] sm:$0xff]
        %v1031 = vld [vmem:[%s975 + $0xf8] sm:$0xff]
        %v1032 = vld [vmem:[%s975 + $0x100] sm:$0xff]
        %v1033 = vld [vmem:[%s975 + $0x108] sm:$0xff]
        %v1034 = vld [vmem:[%s975 + $0x110] sm:$0xff]
        %v1035 = vld [vmem:[%s975 + $0x118] sm:$0xff]
        %v1036 = vld [vmem:[%s975 + $0x120] sm:$0xff]
        %v1037 = vld [vmem:[%s975 + $0x128] sm:$0xff]
        %v1038 = vld [vmem:[%s975 + $0x130] sm:$0xff]
        %v1039 = vld [vmem:[%s975 + $0x138] sm:$0xff]
        %v1040 = vld [vmem:[%s975 + $0x140] sm:$0xff]
        %v1041 = vld [vmem:[%s975 + $0x148] sm:$0xff]
        %v1042 = vld [vmem:[%s975 + $0x150] sm:$0xff]
        %v1043 = vld [vmem:[%s975 + $0x158] sm:$0xff]
        %v1044 = vld [vmem:[%s975 + $0x160] sm:$0xff]
        %v1045 = vld [vmem:[%s975 + $0x168] sm:$0xff]
        %v1046 = vld [vmem:[%s975 + $0x170] sm:$0xff]
        %v1047 = vld [vmem:[%s975 + $0x178] sm:$0xff]
        %v1048 = vld [vmem:[%s975 + $0x180] sm:$0xff]
        %v1049 = vld [vmem:[%s975 + $0x188] sm:$0xff]
        %v1050 = vld [vmem:[%s975 + $0x190] sm:$0xff]
        %v1051 = vld [vmem:[%s975 + $0x198] sm:$0xff]
        %v1052 = vld [vmem:[%s975 + $0x1a0] sm:$0xff]
        %v1053 = vld [vmem:[%s975 + $0x1a8] sm:$0xff]
        %v1054 = vld [vmem:[%s975 + $0x1b0] sm:$0xff]
        %v1055 = vld [vmem:[%s975 + $0x1b8] sm:$0xff]
        %v1056 = vld [vmem:[%s975 + $0x1c0] sm:$0xff]
        %v1057 = vld [vmem:[%s975 + $0x1c8] sm:$0xff]
        %v1058 = vld [vmem:[%s975 + $0x1d0] sm:$0xff]
        %v1059 = vld [vmem:[%s975 + $0x1d8] sm:$0xff]
        %v1060 = vld [vmem:[%s975 + $0x1e0] sm:$0xff]
        %v1061 = vld [vmem:[%s975 + $0x1e8] sm:$0xff]
        %v1062 = vld [vmem:[%s975 + $0x1f0] sm:$0xff]
        %v1063 = vld [vmem:[%s975 + $0x1f8] sm:$0xff]
        %v1064 = vld [vmem:[%s975 + $0x200] sm:$0xff]
        %v1065 = vld [vmem:[%s975 + $0x208] sm:$0xff]
        %v1066 = vld [vmem:[%s975 + $0x210] sm:$0xff]
        %v1067 = vld [vmem:[%s975 + $0x218] sm:$0xff]
        %v1068 = vld [vmem:[%s975 + $0x220] sm:$0xff]
        %v1069 = vld [vmem:[%s975 + $0x228] sm:$0xff]
        %v1070 = vld [vmem:[%s975 + $0x230] sm:$0xff]
        %v1071 = vld [vmem:[%s975 + $0x238] sm:$0xff]
        %v1072 = vld [vmem:[%s975 + $0x240] sm:$0xff]
        %v1073 = vld [vmem:[%s975 + $0x248] sm:$0xff]
        %v1074 = vld [vmem:[%s975 + $0x250] sm:$0xff]
        %v1075 = vld [vmem:[%s975 + $0x258] sm:$0xff]
        %v1076 = vld [vmem:[%s975 + $0x260] sm:$0xff]
        %v1077 = vld [vmem:[%s975 + $0x268] sm:$0xff]
        %v1078 = vld [vmem:[%s975 + $0x270] sm:$0xff]
        %v1079 = vld [vmem:[%s975 + $0x278] sm:$0xff]
        %v1080 = vld [vmem:[%s975 + $0x280] sm:$0xff]
        %v1081 = vld [vmem:[%s975 + $0x288] sm:$0xff]
        %v1082 = vld [vmem:[%s975 + $0x290] sm:$0xff]
        %v1083 = vld [vmem:[%s975 + $0x298] sm:$0xff]
        %v1084 = vld [vmem:[%s975 + $0x2a0] sm:$0xff]
        %v1085 = vld [vmem:[%s975 + $0x2a8] sm:$0xff]
        %v1086 = vld [vmem:[%s975 + $0x2b0] sm:$0xff]
        %v1087 = vld [vmem:[%s975 + $0x2b8] sm:$0xff]
        %v1088 = vld [vmem:[%s975 + $0x2c0] sm:$0xff]
        %v1089 = vld [vmem:[%s975 + $0x2c8] sm:$0xff]
        %v1090 = vld [vmem:[%s975 + $0x2d0] sm:$0xff]
        %v1091 = vld [vmem:[%s975 + $0x2d8] sm:$0xff]
        %v1092 = vld [vmem:[%s975 + $0x2e0] sm:$0xff]
        %v1093 = vld [vmem:[%s975 + $0x2e8] sm:$0xff]
        %v1094 = vld [vmem:[%s975 + $0x2f0] sm:$0xff]
        %v1095 = vld [vmem:[%s975 + $0x2f8] sm:$0xff]
        %v1096 = vld [vmem:[%s975 + $0x300] sm:$0xff]
        %v1097 = vld [vmem:[%s975 + $0x308] sm:$0xff]
        %v1098 = vld [vmem:[%s975 + $0x310] sm:$0xff]
        %v1099 = vld [vmem:[%s975 + $0x318] sm:$0xff]
        %v1100 = vld [vmem:[%s975 + $0x320] sm:$0xff]
        %v1101 = vld [vmem:[%s975 + $0x328] sm:$0xff]
        %v1102 = vld [vmem:[%s975 + $0x330] sm:$0xff]
        %v1103 = vld [vmem:[%s975 + $0x338] sm:$0xff]
        %v1104 = vld [vmem:[%s975 + $0x340] sm:$0xff]
        %v1105 = vld [vmem:[%s975 + $0x348] sm:$0xff]
        %v1106 = vld [vmem:[%s975 + $0x350] sm:$0xff]
        %v1107 = vld [vmem:[%s975 + $0x358] sm:$0xff]
        %v1108 = vld [vmem:[%s975 + $0x360] sm:$0xff]
        %v1109 = vld [vmem:[%s975 + $0x368] sm:$0xff]
        %v1110 = vld [vmem:[%s975 + $0x370] sm:$0xff]
        %v1111 = vld [vmem:[%s975 + $0x378] sm:$0xff]
        %v1112 = vld [vmem:[%s975 + $0x380] sm:$0xff]
        %v1113 = vld [vmem:[%s975 + $0x388] sm:$0xff]
        %v1114 = vld [vmem:[%s975 + $0x390] sm:$0xff]
        %v1115 = vld [vmem:[%s975 + $0x398] sm:$0xff]
        %v1116 = vld [vmem:[%s975 + $0x3a0] sm:$0xff]
        %v1117 = vld [vmem:[%s975 + $0x3a8] sm:$0xff]
        %v1118 = vld [vmem:[%s975 + $0x3b0] sm:$0xff]
        %v1119 = vld [vmem:[%s975 + $0x3b8] sm:$0xff]
        %v1120 = vld [vmem:[%s975 + $0x3c0] sm:$0xff]
        %v1121 = vld [vmem:[%s975 + $0x3c8] sm:$0xff]
        %v1122 = vld [vmem:[%s975 + $0x3d0] sm:$0xff]
        %v1123 = vld [vmem:[%s975 + $0x3d8] sm:$0xff]
        %v1124 = vld [vmem:[%s975 + $0x3e0] sm:$0xff]
        %v1125 = vld [vmem:[%s975 + $0x3e8] sm:$0xff]
        %v1126 = vld [vmem:[%s975 + $0x3f0] sm:$0xff]
        %v1127 = vld [vmem:[%s975 + $0x3f8] sm:$0xff]
        %v1128 = vld [vmem:[%s975 + $0x400] sm:$0xff]
        %v1129 = vld [vmem:[%s975 + $0x408] sm:$0xff]
        %v1130 = vld [vmem:[%s975 + $0x410] sm:$0xff]
        %v1131 = vld [vmem:[%s975 + $0x418] sm:$0xff]
        %v1132 = vld [vmem:[%s975 + $0x420] sm:$0xff]
        %v1133 = vld [vmem:[%s975 + $0x428] sm:$0xff]
        %v1134 = vld [vmem:[%s975 + $0x430] sm:$0xff]
        %v1135 = vld [vmem:[%s975 + $0x438] sm:$0xff]
        %v1136 = vld [vmem:[%s975 + $0x440] sm:$0xff]
        %v1137 = vld [vmem:[%s975 + $0x448] sm:$0xff]
        %v1138 = vld [vmem:[%s975 + $0x450] sm:$0xff]
        %v1139 = vld [vmem:[%s975 + $0x458] sm:$0xff]
        %v1140 = vld [vmem:[%s975 + $0x460] sm:$0xff]
        %v1141 = vld [vmem:[%s975 + $0x468] sm:$0xff]
        %v1142 = vld [vmem:[%s975 + $0x470] sm:$0xff]
        %v1143 = vld [vmem:[%s975 + $0x478] sm:$0xff]
        %v1144 = vld [vmem:[%s975 + $0x480] sm:$0xff]
        %v1145 = vld [vmem:[%s975 + $0x488] sm:$0xff]
        %v1146 = vld [vmem:[%s975 + $0x490] sm:$0xff]
        %v1147 = vld [vmem:[%s975 + $0x498] sm:$0xff]
        %v1148 = vld [vmem:[%s975 + $0x4a0] sm:$0xff]
        %v1149 = vld [vmem:[%s975 + $0x4a8] sm:$0xff]
        %v1150 = vld [vmem:[%s975 + $0x4b0] sm:$0xff]
        %v1151 = vld [vmem:[%s975 + $0x4b8] sm:$0xff]
        %v1152 = vld [vmem:[%s975 + $0x4c0] sm:$0xff]
        %v1153 = vld [vmem:[%s975 + $0x4c8] sm:$0xff]
        %v1154 = vld [vmem:[%s975 + $0x4d0] sm:$0xff]
        %v1155 = vld [vmem:[%s975 + $0x4d8] sm:$0xff]
        %v1156 = vld [vmem:[%s975 + $0x4e0] sm:$0xff]
        %v1157 = vld [vmem:[%s975 + $0x4e8] sm:$0xff]
        %v1158 = vld [vmem:[%s975 + $0x4f0] sm:$0xff]
        %v1159 = vld [vmem:[%s975 + $0x4f8] sm:$0xff]
        %v1160 = vld [vmem:[%s975 + $0x500] sm:$0xff]
        %v1161 = vld [vmem:[%s975 + $0x508] sm:$0xff]
        %v1162 = vld [vmem:[%s975 + $0x510] sm:$0xff]
        %v1163 = vld [vmem:[%s975 + $0x518] sm:$0xff]
        %v1164 = vld [vmem:[%s975 + $0x520] sm:$0xff]
        %v1165 = vld [vmem:[%s975 + $0x528] sm:$0xff]
        %v1166 = vld [vmem:[%s975 + $0x530] sm:$0xff]
        %v1167 = vld [vmem:[%s975 + $0x538] sm:$0xff]
        %v1168 = vld [vmem:[%s975 + $0x540] sm:$0xff]
        %v1169 = vld [vmem:[%s975 + $0x548] sm:$0xff]
        %v1170 = vld [vmem:[%s975 + $0x550] sm:$0xff]
        %v1171 = vld [vmem:[%s975 + $0x558] sm:$0xff]
        %v1172 = vld [vmem:[%s975 + $0x560] sm:$0xff]
        %v1173 = vld [vmem:[%s975 + $0x568] sm:$0xff]
        %v1174 = vld [vmem:[%s975 + $0x570] sm:$0xff]
        %v1175 = vld [vmem:[%s975 + $0x578] sm:$0xff]
        %v1176 = vld [vmem:[%s975 + $0x580] sm:$0xff]
        %v1177 = vld [vmem:[%s975 + $0x588] sm:$0xff]
        %v1178 = vld [vmem:[%s975 + $0x590] sm:$0xff]
        %v1179 = vld [vmem:[%s975 + $0x598] sm:$0xff]
        %v1180 = vld [vmem:[%s975 + $0x5a0] sm:$0xff]
        %v1181 = vld [vmem:[%s975 + $0x5a8] sm:$0xff]
        %v1182 = vld [vmem:[%s975 + $0x5b0] sm:$0xff]
        %v1183 = vld [vmem:[%s975 + $0x5b8] sm:$0xff]
        %v1184 = vld [vmem:[%s975 + $0x5c0] sm:$0xff]
        %v1185 = vld [vmem:[%s975 + $0x5c8] sm:$0xff]
        %v1186 = vld [vmem:[%s975 + $0x5d0] sm:$0xff]
        %v1187 = vld [vmem:[%s975 + $0x5d8] sm:$0xff]
        %v1188 = vld [vmem:[%s975 + $0x5e0] sm:$0xff]
        %v1189 = vld [vmem:[%s975 + $0x5e8] sm:$0xff]
        %v1190 = vld [vmem:[%s975 + $0x5f0] sm:$0xff]
        %v1191 = vld [vmem:[%s975 + $0x5f8] sm:$0xff]
        %v1192 = vld [vmem:[%s975 + $0x600] sm:$0xff]
        %v1193 = vld [vmem:[%s975 + $0x608] sm:$0xff]
        %v1194 = vld [vmem:[%s975 + $0x610] sm:$0xff]
        %v1195 = vld [vmem:[%s975 + $0x618] sm:$0xff]
        %v1196 = vld [vmem:[%s975 + $0x620] sm:$0xff]
        %v1197 = vld [vmem:[%s975 + $0x628] sm:$0xff]
        %v1198 = vld [vmem:[%s975 + $0x630] sm:$0xff]
        %v1199 = vld [vmem:[%s975 + $0x638] sm:$0xff]
        %v1200 = vld [vmem:[%s975 + $0x640] sm:$0xff]
        %v1201 = vld [vmem:[%s975 + $0x648] sm:$0xff]
        %v1202 = vld [vmem:[%s975 + $0x650] sm:$0xff]
        %v1203 = vld [vmem:[%s975 + $0x658] sm:$0xff]
        %v1204 = vld [vmem:[%s975 + $0x660] sm:$0xff]
        %v1205 = vld [vmem:[%s975 + $0x668] sm:$0xff]
        %v1206 = vld [vmem:[%s975 + $0x670] sm:$0xff]
        %v1207 = vld [vmem:[%s975 + $0x678] sm:$0xff]
        %v1208 = vld [vmem:[%s975 + $0x680] sm:$0xff]
        %v1209 = vld [vmem:[%s975 + $0x688] sm:$0xff]
        %v1210 = vld [vmem:[%s975 + $0x690] sm:$0xff]
        %v1211 = vld [vmem:[%s975 + $0x698] sm:$0xff]
        %v1212 = vld [vmem:[%s975 + $0x6a0] sm:$0xff]
        %v1213 = vld [vmem:[%s975 + $0x6a8] sm:$0xff]
        %v1214 = vld [vmem:[%s975 + $0x6b0] sm:$0xff]
        %v1215 = vld [vmem:[%s975 + $0x6b8] sm:$0xff]
        %v1216 = vld [vmem:[%s975 + $0x6c0] sm:$0xff]
        %v1217 = vld [vmem:[%s975 + $0x6c8] sm:$0xff]
        %v1218 = vld [vmem:[%s975 + $0x6d0] sm:$0xff]
        %v1219 = vld [vmem:[%s975 + $0x6d8] sm:$0xff]
        %v1220 = vld [vmem:[%s975 + $0x6e0] sm:$0xff]
        %v1221 = vld [vmem:[%s975 + $0x6e8] sm:$0xff]
        %v1222 = vld [vmem:[%s975 + $0x6f0] sm:$0xff]
        %v1223 = vld [vmem:[%s975 + $0x6f8] sm:$0xff]
        %v1224 = vld [vmem:[%s975 + $0x700] sm:$0xff]
        %v1225 = vld [vmem:[%s975 + $0x708] sm:$0xff]
        %v1226 = vld [vmem:[%s975 + $0x710] sm:$0xff]
        %v1227 = vld [vmem:[%s975 + $0x718] sm:$0xff]
        %v1228 = vld [vmem:[%s975 + $0x720] sm:$0xff]
        %v1229 = vld [vmem:[%s975 + $0x728] sm:$0xff]
        %v1230 = vld [vmem:[%s975 + $0x730] sm:$0xff]
        %v1231 = vld [vmem:[%s975 + $0x738] sm:$0xff]
        %v1232 = vld [vmem:[%s975 + $0x740] sm:$0xff]
        %v1233 = vld [vmem:[%s975 + $0x748] sm:$0xff]
        %v1234 = vld [vmem:[%s975 + $0x750] sm:$0xff]
        %v1235 = vld [vmem:[%s975 + $0x758] sm:$0xff]
        %v1236 = vld [vmem:[%s975 + $0x760] sm:$0xff]
        %v1237 = vld [vmem:[%s975 + $0x768] sm:$0xff]
        %v1238 = vld [vmem:[%s975 + $0x770] sm:$0xff]
        %v1239 = vld [vmem:[%s975 + $0x778] sm:$0xff]
        %v1240 = vld [vmem:[%s975 + $0x780] sm:$0xff]
        %v1241 = vld [vmem:[%s975 + $0x788] sm:$0xff]
        %v1242 = vld [vmem:[%s975 + $0x790] sm:$0xff]
        %v1243 = vld [vmem:[%s975 + $0x798] sm:$0xff]
        %v1244 = vld [vmem:[%s975 + $0x7a0] sm:$0xff]
        %v1245 = vld [vmem:[%s975 + $0x7a8] sm:$0xff]
        %v1246 = vld [vmem:[%s975 + $0x7b0] sm:$0xff]
        %v1247 = vld [vmem:[%s975 + $0x7b8] sm:$0xff]
        %v1248 = vld [vmem:[%s975 + $0x7c0] sm:$0xff]
        %v1249 = vld [vmem:[%s975 + $0x7c8] sm:$0xff]
        %v1250 = vld [vmem:[%s975 + $0x7d0] sm:$0xff]
        %v1251 = vld [vmem:[%s975 + $0x7d8] sm:$0xff]
        %v1252 = vld [vmem:[%s975 + $0x7e0] sm:$0xff]
        %v1253 = vld [vmem:[%s975 + $0x7e8] sm:$0xff]
        %v1254 = vld [vmem:[%s975 + $0x7f0] sm:$0xff]
        %v1255 = vld [vmem:[%s975 + $0x7f8] sm:$0xff]
        %v1256 = vld [vmem:[%s975 + $0x800] sm:$0xff]
        %v1257 = vld [vmem:[%s975 + $0x808] sm:$0xff]
        %v1258 = vld [vmem:[%s975 + $0x810] sm:$0xff]
        %v1259 = vld [vmem:[%s975 + $0x818] sm:$0xff]
        %v1260 = vld [vmem:[%s975 + $0x820] sm:$0xff]
        %v1261 = vld [vmem:[%s975 + $0x828] sm:$0xff]
        %v1262 = vld [vmem:[%s975 + $0x830] sm:$0xff]
        %v1263 = vld [vmem:[%s975 + $0x838] sm:$0xff]
        %v1264 = vld [vmem:[%s975 + $0x840] sm:$0xff]
        %v1265 = vld [vmem:[%s975 + $0x848] sm:$0xff]
        %v1266 = vld [vmem:[%s975 + $0x850] sm:$0xff]
        %v1267 = vld [vmem:[%s975 + $0x858] sm:$0xff]
        %v1268 = vld [vmem:[%s975 + $0x860] sm:$0xff]
        %v1269 = vld [vmem:[%s975 + $0x868] sm:$0xff]
        %v1270 = vld [vmem:[%s975 + $0x870] sm:$0xff]
        %v1271 = vld [vmem:[%s975 + $0x878] sm:$0xff]
        %v1272 = vld [vmem:[%s975 + $0x880] sm:$0xff]
        %v1273 = vld [vmem:[%s975 + $0x888] sm:$0xff]
        %v1274 = vld [vmem:[%s975 + $0x890] sm:$0xff]
        %v1275 = vld [vmem:[%s975 + $0x898] sm:$0xff]
        %v1276 = vld [vmem:[%s975 + $0x8a0] sm:$0xff]
        %v1277 = vld [vmem:[%s975 + $0x8a8] sm:$0xff]
        %v1278 = vld [vmem:[%s975 + $0x8b0] sm:$0xff]
        %v1279 = vld [vmem:[%s975 + $0x8b8] sm:$0xff]
        %v1280 = vld [vmem:[%s975 + $0x8c0] sm:$0xff]
        %v1281 = vld [vmem:[%s975 + $0x8c8] sm:$0xff]
        %v1282 = vld [vmem:[%s975 + $0x8d0] sm:$0xff]
        %v1283 = vld [vmem:[%s975 + $0x8d8] sm:$0xff]
        %v1284 = vld [vmem:[%s975 + $0x8e0] sm:$0xff]
        %v1285 = vld [vmem:[%s975 + $0x8e8] sm:$0xff]
        %v1286 = vld [vmem:[%s975 + $0x8f0] sm:$0xff]
        %v1287 = vld [vmem:[%s975 + $0x8f8] sm:$0xff]
        %v1288 = vld [vmem:[%s975 + $0x900] sm:$0xff]
        %v1289 = vld [vmem:[%s975 + $0x908] sm:$0xff]
        %v1290 = vld [vmem:[%s975 + $0x910] sm:$0xff]
        %v1291 = vld [vmem:[%s975 + $0x918] sm:$0xff]
        %v1292 = vld [vmem:[%s975 + $0x920] sm:$0xff]
        %v1293 = vld [vmem:[%s975 + $0x928] sm:$0xff]
        %v1294 = vld [vmem:[%s975 + $0x930] sm:$0xff]
        %v1295 = vld [vmem:[%s975 + $0x938] sm:$0xff]
        %v1296 = vld [vmem:[%s975 + $0x940] sm:$0xff]
        %v1297 = vld [vmem:[%s975 + $0x948] sm:$0xff]
        %v1298 = vld [vmem:[%s975 + $0x950] sm:$0xff]
        %v1299 = vld [vmem:[%s975 + $0x958] sm:$0xff]
        %v1300 = vld [vmem:[%s975 + $0x960] sm:$0xff]
        %v1301 = vld [vmem:[%s975 + $0x968] sm:$0xff]
        %v1302 = vld [vmem:[%s975 + $0x970] sm:$0xff]
        %v1303 = vld [vmem:[%s975 + $0x978] sm:$0xff]
        %v1304 = vld [vmem:[%s975 + $0x980] sm:$0xff]
        %v1305 = vld [vmem:[%s975 + $0x988] sm:$0xff]
        %v1306 = vld [vmem:[%s975 + $0x990] sm:$0xff]
        %v1307 = vld [vmem:[%s975 + $0x998] sm:$0xff]
        %v1308 = vld [vmem:[%s975 + $0x9a0] sm:$0xff]
        %v1309 = vld [vmem:[%s975 + $0x9a8] sm:$0xff]
        %v1310 = vld [vmem:[%s975 + $0x9b0] sm:$0xff]
        %v1311 = vld [vmem:[%s975 + $0x9b8] sm:$0xff]
        %v1312 = vld [vmem:[%s975 + $0x9c0] sm:$0xff]
        %v1313 = vld [vmem:[%s975 + $0x9c8] sm:$0xff]
        %v1314 = vld [vmem:[%s975 + $0x9d0] sm:$0xff]
        %v1315 = vld [vmem:[%s975 + $0x9d8] sm:$0xff]
        %v1316 = vld [vmem:[%s975 + $0x9e0] sm:$0xff]
        %v1317 = vld [vmem:[%s975 + $0x9e8] sm:$0xff]
        %v1318 = vld [vmem:[%s975 + $0x9f0] sm:$0xff]
        %v1319 = vld [vmem:[%s975 + $0x9f8] sm:$0xff]
        %v1320 = vld [vmem:[%s975 + $0xa00] sm:$0xff]
        %v1321 = vld [vmem:[%s975 + $0xa08] sm:$0xff]
        %v1322 = vld [vmem:[%s975 + $0xa10] sm:$0xff]
        %v1323 = vld [vmem:[%s975 + $0xa18] sm:$0xff]
        %v1324 = vld [vmem:[%s975 + $0xa20] sm:$0xff]
        %v1325 = vld [vmem:[%s975 + $0xa28] sm:$0xff]
        %v1326 = vld [vmem:[%s975 + $0xa30] sm:$0xff]
        %v1327 = vld [vmem:[%s975 + $0xa38] sm:$0xff]
        %v1328 = vld [vmem:[%s975 + $0xa40] sm:$0xff]
        %v1329 = vld [vmem:[%s975 + $0xa48] sm:$0xff]
        %v1330 = vld [vmem:[%s975 + $0xa50] sm:$0xff]
        %v1331 = vld [vmem:[%s975 + $0xa58] sm:$0xff]
        %v1332 = vld [vmem:[%s975 + $0xa60] sm:$0xff]
        %v1333 = vld [vmem:[%s975 + $0xa68] sm:$0xff]
        %v1334 = vld [vmem:[%s975 + $0xa70] sm:$0xff]
        %v1335 = vld [vmem:[%s975 + $0xa78] sm:$0xff]
        %v1336 = vld [vmem:[%s975 + $0xa80] sm:$0xff]
        %v1337 = vld [vmem:[%s975 + $0xa88] sm:$0xff]
        %v1338 = vld [vmem:[%s975 + $0xa90] sm:$0xff]
        %v1339 = vld [vmem:[%s975 + $0xa98] sm:$0xff]
        %v1340 = vld [vmem:[%s975 + $0xaa0] sm:$0xff]
        %v1341 = vld [vmem:[%s975 + $0xaa8] sm:$0xff]
        %v1342 = vld [vmem:[%s975 + $0xab0] sm:$0xff]
        %v1343 = vld [vmem:[%s975 + $0xab8] sm:$0xff]
        %v1344 = vld [vmem:[%s975 + $0xac0] sm:$0xff]
        %v1345 = vld [vmem:[%s975 + $0xac8] sm:$0xff]
        %v1346 = vld [vmem:[%s975 + $0xad0] sm:$0xff]
        %v1347 = vld [vmem:[%s975 + $0xad8] sm:$0xff]
        %v1348 = vld [vmem:[%s975 + $0xae0] sm:$0xff]
        %v1349 = vld [vmem:[%s975 + $0xae8] sm:$0xff]
        %v1350 = vld [vmem:[%s975 + $0xaf0] sm:$0xff]
        %v1351 = vld [vmem:[%s975 + $0xaf8] sm:$0xff]
        %v1352 = vld [vmem:[%s975 + $0xb00] sm:$0xff]
        %v1353 = vld [vmem:[%s975 + $0xb08] sm:$0xff]
        %v1354 = vld [vmem:[%s975 + $0xb10] sm:$0xff]
        %v1355 = vld [vmem:[%s975 + $0xb18] sm:$0xff]
        %v1356 = vld [vmem:[%s975 + $0xb20] sm:$0xff]
        %v1357 = vld [vmem:[%s975 + $0xb28] sm:$0xff]
        %v1358 = vld [vmem:[%s975 + $0xb30] sm:$0xff]
        %v1359 = vld [vmem:[%s975 + $0xb38] sm:$0xff]
        %v1360 = vld [vmem:[%s975 + $0xb40] sm:$0xff]
        %v1361 = vld [vmem:[%s975 + $0xb48] sm:$0xff]
        %v1362 = vld [vmem:[%s975 + $0xb50] sm:$0xff]
        %v1363 = vld [vmem:[%s975 + $0xb58] sm:$0xff]
        %v1364 = vld [vmem:[%s975 + $0xb60] sm:$0xff]
        %v1365 = vld [vmem:[%s975 + $0xb68] sm:$0xff]
        %v1366 = vld [vmem:[%s975 + $0xb70] sm:$0xff]
        %v1367 = vld [vmem:[%s975 + $0xb78] sm:$0xff]
        %v1368 = vld [vmem:[%s975 + $0xb80] sm:$0xff]
        %v1369 = vld [vmem:[%s975 + $0xb88] sm:$0xff]
        %v1370 = vld [vmem:[%s975 + $0xb90] sm:$0xff]
        %v1371 = vld [vmem:[%s975 + $0xb98] sm:$0xff]
        %v1372 = vld [vmem:[%s975 + $0xba0] sm:$0xff]
        %v1373 = vld [vmem:[%s975 + $0xba8] sm:$0xff]
        %v1374 = vld [vmem:[%s975 + $0xbb0] sm:$0xff]
        %v1375 = vld [vmem:[%s975 + $0xbb8] sm:$0xff]
        %v1376 = vld [vmem:[%s975 + $0xbc0] sm:$0xff]
        %v1377 = vld [vmem:[%s975 + $0xbc8] sm:$0xff]
        %v1378 = vld [vmem:[%s975 + $0xbd0] sm:$0xff]
        %v1379 = vld [vmem:[%s975 + $0xbd8] sm:$0xff]
        %v1380 = vld [vmem:[%s975 + $0xbe0] sm:$0xff]
        %v1381 = vld [vmem:[%s975 + $0xbe8] sm:$0xff]
        %v1382 = vld [vmem:[%s975 + $0xbf0] sm:$0xff]
        %v1383 = vld [vmem:[%s975 + $0xbf8] sm:$0xff]
        %v1384 = vld [vmem:[%s975 + $0xc00] sm:$0xff]
        %v1385 = vld [vmem:[%s975 + $0xc08] sm:$0xff]
        %v1386 = vld [vmem:[%s975 + $0xc10] sm:$0xff]
        %v1387 = vld [vmem:[%s975 + $0xc18] sm:$0xff]
        %v1388 = vld [vmem:[%s975 + $0xc20] sm:$0xff]
        %v1389 = vld [vmem:[%s975 + $0xc28] sm:$0xff]
        %v1390 = vld [vmem:[%s975 + $0xc30] sm:$0xff]
        %v1391 = vld [vmem:[%s975 + $0xc38] sm:$0xff]
        %v1392 = vld [vmem:[%s975 + $0xc40] sm:$0xff]
        %v1393 = vld [vmem:[%s975 + $0xc48] sm:$0xff]
        %v1394 = vld [vmem:[%s975 + $0xc50] sm:$0xff]
        %v1395 = vld [vmem:[%s975 + $0xc58] sm:$0xff]
        %v1396 = vld [vmem:[%s975 + $0xc60] sm:$0xff]
        %v1397 = vld [vmem:[%s975 + $0xc68] sm:$0xff]
        %v1398 = vld [vmem:[%s975 + $0xc70] sm:$0xff]
        %v1399 = vld [vmem:[%s975 + $0xc78] sm:$0xff]
        %v1400 = vld [vmem:[%s975 + $0xc80] sm:$0xff]
        %v1401 = vld [vmem:[%s975 + $0xc88] sm:$0xff]
        %v1402 = vld [vmem:[%s975 + $0xc90] sm:$0xff]
        %v1403 = vld [vmem:[%s975 + $0xc98] sm:$0xff]
        %v1404 = vld [vmem:[%s975 + $0xca0] sm:$0xff]
        %v1405 = vld [vmem:[%s975 + $0xca8] sm:$0xff]
        %v1406 = vld [vmem:[%s2] sm:$0xff]
        %v1407 = vld [vmem:[%s2 + $0x8] sm:$0xff]
        %1409 = vset.pattern.permute.xlu0 0
        %1410 = vperm.xlu0 %1409, %v1406
        %v1411 = vpop.permute.xlu0 %1410
        %1414 = vset.pattern.permute.xlu0 0
        %1415 = vperm.xlu0 %1414, %v1407
        %v1416 = vpop.permute.xlu0 %1415
        %v1420 = vunpack.c.l.b16 %v998
        %v1421 = vunpack.c.l.b16 %v999
        %v1422 = vpack.c.b16 %v1421, %v1420
        %v1829 = vunpack.c.l.b16 %v1000
        %v1830 = vunpack.c.h.b16 %v1000
        %v1831 = vunpack.c.l.b16 %v1001
        %v1832 = vunpack.c.h.b16 %v1001
        %v1833 = vunpack.c.l.b16 %v1002
        %v1834 = vunpack.c.h.b16 %v1002
        %v1835 = vunpack.c.l.b16 %v1003
        %v1836 = vunpack.c.h.b16 %v1003
        %v1837 = vunpack.c.l.b16 %v1004
        %v1838 = vunpack.c.h.b16 %v1004
        %v1839 = vunpack.c.l.b16 %v1005
        %v1840 = vunpack.c.h.b16 %v1005
        %v1841 = vunpack.c.l.b16 %v1006
        %v1842 = vunpack.c.h.b16 %v1006
        %v1843 = vunpack.c.l.b16 %v1007
        %v1844 = vunpack.c.h.b16 %v1007
        %v1845 = vunpack.c.l.b16 %v1008
        %v1846 = vunpack.c.h.b16 %v1008
        %v1847 = vunpack.c.l.b16 %v1009
        %v1848 = vunpack.c.h.b16 %v1009
        %v1849 = vunpack.c.l.b16 %v1010
        %v1850 = vunpack.c.h.b16 %v1010
        %v1851 = vunpack.c.l.b16 %v1011
        %v1852 = vunpack.c.h.b16 %v1011
        %v1853 = vunpack.c.l.b16 %v1012
        %v1854 = vunpack.c.h.b16 %v1012
        %v1855 = vunpack.c.l.b16 %v1013
        %v1856 = vunpack.c.h.b16 %v1013
        %v1857 = vunpack.c.l.b16 %v1014
        %v1858 = vunpack.c.h.b16 %v1014
        %v1859 = vunpack.c.l.b16 %v1015
        %v1860 = vunpack.c.h.b16 %v1015
        %v1861 = vunpack.c.l.b16 %v1016
        %v1862 = vunpack.c.h.b16 %v1016
        %v1863 = vunpack.c.l.b16 %v1017
        %v1864 = vunpack.c.h.b16 %v1017
        %v1865 = vunpack.c.l.b16 %v1018
        %v1866 = vunpack.c.h.b16 %v1018
        %v1867 = vunpack.c.l.b16 %v1019
        %v1868 = vunpack.c.h.b16 %v1019
        %v1869 = vunpack.c.l.b16 %v1020
        %v1870 = vunpack.c.h.b16 %v1020
        %v1871 = vunpack.c.l.b16 %v1021
        %v1872 = vunpack.c.h.b16 %v1021
        %v1873 = vunpack.c.l.b16 %v1022
        %v1874 = vunpack.c.h.b16 %v1022
        %v1875 = vunpack.c.l.b16 %v1023
        %v1876 = vunpack.c.h.b16 %v1023
        %v1877 = vunpack.c.l.b16 %v1024
        %v1878 = vunpack.c.h.b16 %v1024
        %v1879 = vunpack.c.l.b16 %v1025
        %v1880 = vunpack.c.h.b16 %v1025
        %v1881 = vunpack.c.l.b16 %v1026
        %v1882 = vunpack.c.h.b16 %v1026
        %v1883 = vunpack.c.l.b16 %v1027
        %v1884 = vunpack.c.h.b16 %v1027
        %v1885 = vunpack.c.l.b16 %v1028
        %v1886 = vunpack.c.h.b16 %v1028
        %v1887 = vunpack.c.l.b16 %v1029
        %v1888 = vunpack.c.h.b16 %v1029
        %v1889 = vunpack.c.l.b16 %v1030
        %v1890 = vunpack.c.h.b16 %v1030
        %v1891 = vunpack.c.l.b16 %v1031
        %v1892 = vunpack.c.h.b16 %v1031
        %v1893 = vunpack.c.l.b16 %v1032
        %v1894 = vunpack.c.h.b16 %v1032
        %v1895 = vunpack.c.l.b16 %v1033
        %v1896 = vunpack.c.h.b16 %v1033
        %v1897 = vunpack.c.l.b16 %v1034
        %v1898 = vunpack.c.h.b16 %v1034
        %v1899 = vunpack.c.l.b16 %v1035
        %v1900 = vunpack.c.h.b16 %v1035
        %v1901 = vunpack.c.l.b16 %v1036
        %v1902 = vunpack.c.h.b16 %v1036
        %v1903 = vunpack.c.l.b16 %v1037
        %v1904 = vunpack.c.h.b16 %v1037
        %v1905 = vunpack.c.l.b16 %v1038
        %v1906 = vunpack.c.h.b16 %v1038
        %v1907 = vunpack.c.l.b16 %v1039
        %v1908 = vunpack.c.h.b16 %v1039
        %v1909 = vunpack.c.l.b16 %v1040
        %v1910 = vunpack.c.h.b16 %v1040
        %v1911 = vunpack.c.l.b16 %v1041
        %v1912 = vunpack.c.h.b16 %v1041
        %v1913 = vunpack.c.l.b16 %v1042
        %v1914 = vunpack.c.h.b16 %v1042
        %v1915 = vunpack.c.l.b16 %v1043
        %v1916 = vunpack.c.h.b16 %v1043
        %v1917 = vunpack.c.l.b16 %v1044
        %v1918 = vunpack.c.h.b16 %v1044
        %v1919 = vunpack.c.l.b16 %v1045
        %v1920 = vunpack.c.h.b16 %v1045
        %v1921 = vunpack.c.l.b16 %v1046
        %v1922 = vunpack.c.h.b16 %v1046
        %v1923 = vunpack.c.l.b16 %v1047
        %v1924 = vunpack.c.h.b16 %v1047
        %v1925 = vunpack.c.l.b16 %v1048
        %v1926 = vunpack.c.h.b16 %v1048
        %v1927 = vunpack.c.l.b16 %v1049
        %v1928 = vunpack.c.h.b16 %v1049
        %v1929 = vunpack.c.l.b16 %v1050
        %v1930 = vunpack.c.h.b16 %v1050
        %v1931 = vunpack.c.l.b16 %v1051
        %v1932 = vunpack.c.h.b16 %v1051
        %v1933 = vunpack.c.l.b16 %v1052
        %v1934 = vunpack.c.h.b16 %v1052
        %v1935 = vunpack.c.l.b16 %v1053
        %v1936 = vunpack.c.h.b16 %v1053
        %v1937 = vunpack.c.l.b16 %v1054
        %v1938 = vunpack.c.h.b16 %v1054
        %v1939 = vunpack.c.l.b16 %v1055
        %v1940 = vunpack.c.h.b16 %v1055
        %v1941 = vunpack.c.l.b16 %v1056
        %v1942 = vunpack.c.h.b16 %v1056
        %v1943 = vunpack.c.l.b16 %v1057
        %v1944 = vunpack.c.h.b16 %v1057
        %v1945 = vunpack.c.l.b16 %v1058
        %v1946 = vunpack.c.h.b16 %v1058
        %v1947 = vunpack.c.l.b16 %v1059
        %v1948 = vunpack.c.h.b16 %v1059
        %v1949 = vunpack.c.l.b16 %v1060
        %v1950 = vunpack.c.h.b16 %v1060
        %v1951 = vunpack.c.l.b16 %v1061
        %v1952 = vunpack.c.h.b16 %v1061
        %v1953 = vunpack.c.l.b16 %v1062
        %v1954 = vunpack.c.h.b16 %v1062
        %v1955 = vunpack.c.l.b16 %v1063
        %v1956 = vunpack.c.h.b16 %v1063
        %v1957 = vunpack.c.l.b16 %v1064
        %v1958 = vunpack.c.h.b16 %v1064
        %v1959 = vunpack.c.l.b16 %v1065
        %v1960 = vunpack.c.h.b16 %v1065
        %v1961 = vunpack.c.l.b16 %v1066
        %v1962 = vunpack.c.h.b16 %v1066
        %v1963 = vunpack.c.l.b16 %v1067
        %v1964 = vunpack.c.h.b16 %v1067
        %v1965 = vunpack.c.l.b16 %v1068
        %v1966 = vunpack.c.h.b16 %v1068
        %v1967 = vunpack.c.l.b16 %v1069
        %v1968 = vunpack.c.h.b16 %v1069
        %v1969 = vunpack.c.l.b16 %v1070
        %v1970 = vunpack.c.h.b16 %v1070
        %v1971 = vunpack.c.l.b16 %v1071
        %v1972 = vunpack.c.h.b16 %v1071
        %v1973 = vunpack.c.l.b16 %v1072
        %v1974 = vunpack.c.h.b16 %v1072
        %v1975 = vunpack.c.l.b16 %v1073
        %v1976 = vunpack.c.h.b16 %v1073
        %v1977 = vunpack.c.l.b16 %v1074
        %v1978 = vunpack.c.h.b16 %v1074
        %v1979 = vunpack.c.l.b16 %v1075
        %v1980 = vunpack.c.h.b16 %v1075
        %v1981 = vunpack.c.l.b16 %v1076
        %v1982 = vunpack.c.h.b16 %v1076
        %v1983 = vunpack.c.l.b16 %v1077
        %v1984 = vunpack.c.h.b16 %v1077
        %v1985 = vunpack.c.l.b16 %v1078
        %v1986 = vunpack.c.h.b16 %v1078
        %v1987 = vunpack.c.l.b16 %v1079
        %v1988 = vunpack.c.h.b16 %v1079
        %v1989 = vunpack.c.l.b16 %v1080
        %v1990 = vunpack.c.h.b16 %v1080
        %v1991 = vunpack.c.l.b16 %v1081
        %v1992 = vunpack.c.h.b16 %v1081
        %v1993 = vunpack.c.l.b16 %v1082
        %v1994 = vunpack.c.h.b16 %v1082
        %v1995 = vunpack.c.l.b16 %v1083
        %v1996 = vunpack.c.h.b16 %v1083
        %v1997 = vunpack.c.l.b16 %v1084
        %v1998 = vunpack.c.h.b16 %v1084
        %v1999 = vunpack.c.l.b16 %v1085
        %v2000 = vunpack.c.h.b16 %v1085
        %v2001 = vunpack.c.l.b16 %v1086
        %v2002 = vunpack.c.h.b16 %v1086
        %v2003 = vunpack.c.l.b16 %v1087
        %v2004 = vunpack.c.h.b16 %v1087
        %v2005 = vunpack.c.l.b16 %v1088
        %v2006 = vunpack.c.h.b16 %v1088
        %v2007 = vunpack.c.l.b16 %v1089
        %v2008 = vunpack.c.h.b16 %v1089
        %v2009 = vunpack.c.l.b16 %v1090
        %v2010 = vunpack.c.h.b16 %v1090
        %v2011 = vunpack.c.l.b16 %v1091
        %v2012 = vunpack.c.h.b16 %v1091
        %v2013 = vunpack.c.l.b16 %v1092
        %v2014 = vunpack.c.h.b16 %v1092
        %v2015 = vunpack.c.l.b16 %v1093
        %v2016 = vunpack.c.h.b16 %v1093
        %v2017 = vunpack.c.l.b16 %v1094
        %v2018 = vunpack.c.h.b16 %v1094
        %v2019 = vunpack.c.l.b16 %v1095
        %v2020 = vunpack.c.h.b16 %v1095
        %v2021 = vunpack.c.l.b16 %v1096
        %v2022 = vunpack.c.h.b16 %v1096
        %v2023 = vunpack.c.l.b16 %v1097
        %v2024 = vunpack.c.h.b16 %v1097
        %v2025 = vunpack.c.l.b16 %v1098
        %v2026 = vunpack.c.h.b16 %v1098
        %v2027 = vunpack.c.l.b16 %v1099
        %v2028 = vunpack.c.h.b16 %v1099
        %v2029 = vunpack.c.l.b16 %v1100
        %v2030 = vunpack.c.h.b16 %v1100
        %v2031 = vunpack.c.l.b16 %v1101
        %v2032 = vunpack.c.h.b16 %v1101
        %v2033 = vunpack.c.l.b16 %v1102
        %v2034 = vunpack.c.h.b16 %v1102
        %v2035 = vunpack.c.l.b16 %v1103
        %v2036 = vunpack.c.h.b16 %v1103
        %v2037 = vunpack.c.l.b16 %v1104
        %v2038 = vunpack.c.h.b16 %v1104
        %v2039 = vunpack.c.l.b16 %v1105
        %v2040 = vunpack.c.h.b16 %v1105
        %v2041 = vunpack.c.l.b16 %v1106
        %v2042 = vunpack.c.h.b16 %v1106
        %v2043 = vunpack.c.l.b16 %v1107
        %v2044 = vunpack.c.h.b16 %v1107
        %v2045 = vunpack.c.l.b16 %v1108
        %v2046 = vunpack.c.h.b16 %v1108
        %v2047 = vunpack.c.l.b16 %v1109
        %v2048 = vunpack.c.h.b16 %v1109
        %v2049 = vunpack.c.l.b16 %v1110
        %v2050 = vunpack.c.h.b16 %v1110
        %v2051 = vunpack.c.l.b16 %v1111
        %v2052 = vunpack.c.h.b16 %v1111
        %v2053 = vunpack.c.l.b16 %v1112
        %v2054 = vunpack.c.h.b16 %v1112
        %v2055 = vunpack.c.l.b16 %v1113
        %v2056 = vunpack.c.h.b16 %v1113
        %v2057 = vunpack.c.l.b16 %v1114
        %v2058 = vunpack.c.h.b16 %v1114
        %v2059 = vunpack.c.l.b16 %v1115
        %v2060 = vunpack.c.h.b16 %v1115
        %v2061 = vunpack.c.l.b16 %v1116
        %v2062 = vunpack.c.h.b16 %v1116
        %v2063 = vunpack.c.l.b16 %v1117
        %v2064 = vunpack.c.h.b16 %v1117
        %v2065 = vunpack.c.l.b16 %v1118
        %v2066 = vunpack.c.h.b16 %v1118
        %v2067 = vunpack.c.l.b16 %v1119
        %v2068 = vunpack.c.h.b16 %v1119
        %v2069 = vunpack.c.l.b16 %v1120
        %v2070 = vunpack.c.h.b16 %v1120
        %v2071 = vunpack.c.l.b16 %v1121
        %v2072 = vunpack.c.h.b16 %v1121
        %v2073 = vunpack.c.l.b16 %v1122
        %v2074 = vunpack.c.h.b16 %v1122
        %v2075 = vunpack.c.l.b16 %v1123
        %v2076 = vunpack.c.h.b16 %v1123
        %v2077 = vunpack.c.l.b16 %v1124
        %v2078 = vunpack.c.h.b16 %v1124
        %v2079 = vunpack.c.l.b16 %v1125
        %v2080 = vunpack.c.h.b16 %v1125
        %v2081 = vunpack.c.l.b16 %v1126
        %v2082 = vunpack.c.h.b16 %v1126
        %v2083 = vunpack.c.l.b16 %v1127
        %v2084 = vunpack.c.h.b16 %v1127
        %v2085 = vunpack.c.l.b16 %v1128
        %v2086 = vunpack.c.h.b16 %v1128
        %v2087 = vunpack.c.l.b16 %v1129
        %v2088 = vunpack.c.h.b16 %v1129
        %v2089 = vunpack.c.l.b16 %v1130
        %v2090 = vunpack.c.h.b16 %v1130
        %v2091 = vunpack.c.l.b16 %v1131
        %v2092 = vunpack.c.h.b16 %v1131
        %v2093 = vunpack.c.l.b16 %v1132
        %v2094 = vunpack.c.h.b16 %v1132
        %v2095 = vunpack.c.l.b16 %v1133
        %v2096 = vunpack.c.h.b16 %v1133
        %v2097 = vunpack.c.l.b16 %v1134
        %v2098 = vunpack.c.h.b16 %v1134
        %v2099 = vunpack.c.l.b16 %v1135
        %v2100 = vunpack.c.h.b16 %v1135
        %v2101 = vunpack.c.l.b16 %v1136
        %v2102 = vunpack.c.h.b16 %v1136
        %v2103 = vunpack.c.l.b16 %v1137
        %v2104 = vunpack.c.h.b16 %v1137
        %v2105 = vunpack.c.l.b16 %v1138
        %v2106 = vunpack.c.h.b16 %v1138
        %v2107 = vunpack.c.l.b16 %v1139
        %v2108 = vunpack.c.h.b16 %v1139
        %v2109 = vunpack.c.l.b16 %v1140
        %v2110 = vunpack.c.h.b16 %v1140
        %v2111 = vunpack.c.l.b16 %v1141
        %v2112 = vunpack.c.h.b16 %v1141
        %v2113 = vunpack.c.l.b16 %v1142
        %v2114 = vunpack.c.h.b16 %v1142
        %v2115 = vunpack.c.l.b16 %v1143
        %v2116 = vunpack.c.h.b16 %v1143
        %v2117 = vunpack.c.l.b16 %v1144
        %v2118 = vunpack.c.h.b16 %v1144
        %v2119 = vunpack.c.l.b16 %v1145
        %v2120 = vunpack.c.h.b16 %v1145
        %v2121 = vunpack.c.l.b16 %v1146
        %v2122 = vunpack.c.h.b16 %v1146
        %v2123 = vunpack.c.l.b16 %v1147
        %v2124 = vunpack.c.h.b16 %v1147
        %v2125 = vunpack.c.l.b16 %v1148
        %v2126 = vunpack.c.h.b16 %v1148
        %v2127 = vunpack.c.l.b16 %v1149
        %v2128 = vunpack.c.h.b16 %v1149
        %v2129 = vunpack.c.l.b16 %v1150
        %v2130 = vunpack.c.h.b16 %v1150
        %v2131 = vunpack.c.l.b16 %v1151
        %v2132 = vunpack.c.h.b16 %v1151
        %v2133 = vunpack.c.l.b16 %v1152
        %v2134 = vunpack.c.h.b16 %v1152
        %v2135 = vunpack.c.l.b16 %v1153
        %v2136 = vunpack.c.h.b16 %v1153
        %v2137 = vunpack.c.l.b16 %v1154
        %v2138 = vunpack.c.h.b16 %v1154
        %v2139 = vunpack.c.l.b16 %v1155
        %v2140 = vunpack.c.h.b16 %v1155
        %v2141 = vunpack.c.l.b16 %v1156
        %v2142 = vunpack.c.h.b16 %v1156
        %v2143 = vunpack.c.l.b16 %v1157
        %v2144 = vunpack.c.h.b16 %v1157
        %v2145 = vunpack.c.l.b16 %v1158
        %v2146 = vunpack.c.h.b16 %v1158
        %v2147 = vunpack.c.l.b16 %v1159
        %v2148 = vunpack.c.h.b16 %v1159
        %v2149 = vunpack.c.l.b16 %v1160
        %v2150 = vunpack.c.h.b16 %v1160
        %v2151 = vunpack.c.l.b16 %v1161
        %v2152 = vunpack.c.h.b16 %v1161
        %v2153 = vunpack.c.l.b16 %v1162
        %v2154 = vunpack.c.h.b16 %v1162
        %v2155 = vunpack.c.l.b16 %v1163
        %v2156 = vunpack.c.h.b16 %v1163
        %v2157 = vunpack.c.l.b16 %v1164
        %v2158 = vunpack.c.h.b16 %v1164
        %v2159 = vunpack.c.l.b16 %v1165
        %v2160 = vunpack.c.h.b16 %v1165
        %v2161 = vunpack.c.l.b16 %v1166
        %v2162 = vunpack.c.h.b16 %v1166
        %v2163 = vunpack.c.l.b16 %v1167
        %v2164 = vunpack.c.h.b16 %v1167
        %v2165 = vunpack.c.l.b16 %v1168
        %v2166 = vunpack.c.h.b16 %v1168
        %v2167 = vunpack.c.l.b16 %v1169
        %v2168 = vunpack.c.h.b16 %v1169
        %v2169 = vunpack.c.l.b16 %v1170
        %v2170 = vunpack.c.h.b16 %v1170
        %v2171 = vunpack.c.l.b16 %v1171
        %v2172 = vunpack.c.h.b16 %v1171
        %v2173 = vunpack.c.l.b16 %v1172
        %v2174 = vunpack.c.h.b16 %v1172
        %v2175 = vunpack.c.l.b16 %v1173
        %v2176 = vunpack.c.h.b16 %v1173
        %v2177 = vunpack.c.l.b16 %v1174
        %v2178 = vunpack.c.h.b16 %v1174
        %v2179 = vunpack.c.l.b16 %v1175
        %v2180 = vunpack.c.h.b16 %v1175
        %v2181 = vunpack.c.l.b16 %v1176
        %v2182 = vunpack.c.h.b16 %v1176
        %v2183 = vunpack.c.l.b16 %v1177
        %v2184 = vunpack.c.h.b16 %v1177
        %v2185 = vunpack.c.l.b16 %v1178
        %v2186 = vunpack.c.h.b16 %v1178
        %v2187 = vunpack.c.l.b16 %v1179
        %v2188 = vunpack.c.h.b16 %v1179
        %v2189 = vunpack.c.l.b16 %v1180
        %v2190 = vunpack.c.h.b16 %v1180
        %v2191 = vunpack.c.l.b16 %v1181
        %v2192 = vunpack.c.h.b16 %v1181
        %v2193 = vunpack.c.l.b16 %v1182
        %v2194 = vunpack.c.h.b16 %v1182
        %v2195 = vunpack.c.l.b16 %v1183
        %v2196 = vunpack.c.h.b16 %v1183
        %v2197 = vunpack.c.l.b16 %v1184
        %v2198 = vunpack.c.h.b16 %v1184
        %v2199 = vunpack.c.l.b16 %v1185
        %v2200 = vunpack.c.h.b16 %v1185
        %v2201 = vunpack.c.l.b16 %v1186
        %v2202 = vunpack.c.h.b16 %v1186
        %v2203 = vunpack.c.l.b16 %v1187
        %v2204 = vunpack.c.h.b16 %v1187
        %v2205 = vunpack.c.l.b16 %v1188
        %v2206 = vunpack.c.h.b16 %v1188
        %v2207 = vunpack.c.l.b16 %v1189
        %v2208 = vunpack.c.h.b16 %v1189
        %v2209 = vunpack.c.l.b16 %v1190
        %v2210 = vunpack.c.h.b16 %v1190
        %v2211 = vunpack.c.l.b16 %v1191
        %v2212 = vunpack.c.h.b16 %v1191
        %v2213 = vunpack.c.l.b16 %v1192
        %v2214 = vunpack.c.h.b16 %v1192
        %v2215 = vunpack.c.l.b16 %v1193
        %v2216 = vunpack.c.h.b16 %v1193
        %v2217 = vunpack.c.l.b16 %v1194
        %v2218 = vunpack.c.h.b16 %v1194
        %v2219 = vunpack.c.l.b16 %v1195
        %v2220 = vunpack.c.h.b16 %v1195
        %v2221 = vunpack.c.l.b16 %v1196
        %v2222 = vunpack.c.h.b16 %v1196
        %v2223 = vunpack.c.l.b16 %v1197
        %v2224 = vunpack.c.h.b16 %v1197
        %v2225 = vunpack.c.l.b16 %v1198
        %v2226 = vunpack.c.h.b16 %v1198
        %v2227 = vunpack.c.l.b16 %v1199
        %v2228 = vunpack.c.h.b16 %v1199
        %v2229 = vunpack.c.l.b16 %v1200
        %v2230 = vunpack.c.h.b16 %v1200
        %v2231 = vunpack.c.l.b16 %v1201
        %v2232 = vunpack.c.h.b16 %v1201
        %v2233 = vunpack.c.l.b16 %v1202
        %v2234 = vunpack.c.h.b16 %v1202
        %v2235 = vunpack.c.l.b16 %v1203
        %v2236 = vunpack.c.h.b16 %v1203
        %v2237 = vunpack.c.l.b16 %v1204
        %v2238 = vunpack.c.h.b16 %v1204
        %v2239 = vunpack.c.l.b16 %v1205
        %v2240 = vunpack.c.h.b16 %v1205
        %v2241 = vunpack.c.l.b16 %v1206
        %v2242 = vunpack.c.h.b16 %v1206
        %v2243 = vunpack.c.l.b16 %v1207
        %v2244 = vunpack.c.h.b16 %v1207
        %v2245 = vunpack.c.l.b16 %v1208
        %v2246 = vunpack.c.h.b16 %v1208
        %v2247 = vunpack.c.l.b16 %v1209
        %v2248 = vunpack.c.h.b16 %v1209
        %v2249 = vunpack.c.l.b16 %v1210
        %v2250 = vunpack.c.h.b16 %v1210
        %v2251 = vunpack.c.l.b16 %v1211
        %v2252 = vunpack.c.h.b16 %v1211
        %v2253 = vunpack.c.l.b16 %v1212
        %v2254 = vunpack.c.h.b16 %v1212
        %v2255 = vunpack.c.l.b16 %v1213
        %v2256 = vunpack.c.h.b16 %v1213
        %v2257 = vunpack.c.l.b16 %v1214
        %v2258 = vunpack.c.h.b16 %v1214
        %v2259 = vunpack.c.l.b16 %v1215
        %v2260 = vunpack.c.h.b16 %v1215
        %v2261 = vunpack.c.l.b16 %v1216
        %v2262 = vunpack.c.h.b16 %v1216
        %v2263 = vunpack.c.l.b16 %v1217
        %v2264 = vunpack.c.h.b16 %v1217
        %v2265 = vunpack.c.l.b16 %v1218
        %v2266 = vunpack.c.h.b16 %v1218
        %v2267 = vunpack.c.l.b16 %v1219
        %v2268 = vunpack.c.h.b16 %v1219
        %v2269 = vunpack.c.l.b16 %v1220
        %v2270 = vunpack.c.h.b16 %v1220
        %v2271 = vunpack.c.l.b16 %v1221
        %v2272 = vunpack.c.h.b16 %v1221
        %v2273 = vunpack.c.l.b16 %v1222
        %v2274 = vunpack.c.h.b16 %v1222
        %v2275 = vunpack.c.l.b16 %v1223
        %v2276 = vunpack.c.h.b16 %v1223
        %v2277 = vunpack.c.l.b16 %v1224
        %v2278 = vunpack.c.h.b16 %v1224
        %v2279 = vunpack.c.l.b16 %v1225
        %v2280 = vunpack.c.h.b16 %v1225
        %v2281 = vunpack.c.l.b16 %v1226
        %v2282 = vunpack.c.h.b16 %v1226
        %v2283 = vunpack.c.l.b16 %v1227
        %v2284 = vunpack.c.h.b16 %v1227
        %v2285 = vunpack.c.l.b16 %v1228
        %v2286 = vunpack.c.h.b16 %v1228
        %v2287 = vunpack.c.l.b16 %v1229
        %v2288 = vunpack.c.h.b16 %v1229
        %v2289 = vunpack.c.l.b16 %v1230
        %v2290 = vunpack.c.h.b16 %v1230
        %v2291 = vunpack.c.l.b16 %v1231
        %v2292 = vunpack.c.h.b16 %v1231
        %v2293 = vunpack.c.l.b16 %v1232
        %v2294 = vunpack.c.h.b16 %v1232
        %v2295 = vunpack.c.l.b16 %v1233
        %v2296 = vunpack.c.h.b16 %v1233
        %v2297 = vunpack.c.l.b16 %v1234
        %v2298 = vunpack.c.h.b16 %v1234
        %v2299 = vunpack.c.l.b16 %v1235
        %v2300 = vunpack.c.h.b16 %v1235
        %v2301 = vunpack.c.l.b16 %v1236
        %v2302 = vunpack.c.h.b16 %v1236
        %v2303 = vunpack.c.l.b16 %v1237
        %v2304 = vunpack.c.h.b16 %v1237
        %v2305 = vunpack.c.l.b16 %v1238
        %v2306 = vunpack.c.h.b16 %v1238
        %v2307 = vunpack.c.l.b16 %v1239
        %v2308 = vunpack.c.h.b16 %v1239
        %v2309 = vunpack.c.l.b16 %v1240
        %v2310 = vunpack.c.h.b16 %v1240
        %v2311 = vunpack.c.l.b16 %v1241
        %v2312 = vunpack.c.h.b16 %v1241
        %v2313 = vunpack.c.l.b16 %v1242
        %v2314 = vunpack.c.h.b16 %v1242
        %v2315 = vunpack.c.l.b16 %v1243
        %v2316 = vunpack.c.h.b16 %v1243
        %v2317 = vunpack.c.l.b16 %v1244
        %v2318 = vunpack.c.h.b16 %v1244
        %v2319 = vunpack.c.l.b16 %v1245
        %v2320 = vunpack.c.h.b16 %v1245
        %v2321 = vunpack.c.l.b16 %v1246
        %v2322 = vunpack.c.h.b16 %v1246
        %v2323 = vunpack.c.l.b16 %v1247
        %v2324 = vunpack.c.h.b16 %v1247
        %v2325 = vunpack.c.l.b16 %v1248
        %v2326 = vunpack.c.h.b16 %v1248
        %v2327 = vunpack.c.l.b16 %v1249
        %v2328 = vunpack.c.h.b16 %v1249
        %v2329 = vunpack.c.l.b16 %v1250
        %v2330 = vunpack.c.h.b16 %v1250
        %v2331 = vunpack.c.l.b16 %v1251
        %v2332 = vunpack.c.h.b16 %v1251
        %v2333 = vunpack.c.l.b16 %v1252
        %v2334 = vunpack.c.h.b16 %v1252
        %v2335 = vunpack.c.l.b16 %v1253
        %v2336 = vunpack.c.h.b16 %v1253
        %v2337 = vunpack.c.l.b16 %v1254
        %v2338 = vunpack.c.h.b16 %v1254
        %v2339 = vunpack.c.l.b16 %v1255
        %v2340 = vunpack.c.h.b16 %v1255
        %v2341 = vunpack.c.l.b16 %v1256
        %v2342 = vunpack.c.h.b16 %v1256
        %v2343 = vunpack.c.l.b16 %v1257
        %v2344 = vunpack.c.h.b16 %v1257
        %v2345 = vunpack.c.l.b16 %v1258
        %v2346 = vunpack.c.h.b16 %v1258
        %v2347 = vunpack.c.l.b16 %v1259
        %v2348 = vunpack.c.h.b16 %v1259
        %v2349 = vunpack.c.l.b16 %v1260
        %v2350 = vunpack.c.h.b16 %v1260
        %v2351 = vunpack.c.l.b16 %v1261
        %v2352 = vunpack.c.h.b16 %v1261
        %v2353 = vunpack.c.l.b16 %v1262
        %v2354 = vunpack.c.h.b16 %v1262
        %v2355 = vunpack.c.l.b16 %v1263
        %v2356 = vunpack.c.h.b16 %v1263
        %v2357 = vunpack.c.l.b16 %v1264
        %v2358 = vunpack.c.h.b16 %v1264
        %v2359 = vunpack.c.l.b16 %v1265
        %v2360 = vunpack.c.h.b16 %v1265
        %v2361 = vunpack.c.l.b16 %v1266
        %v2362 = vunpack.c.h.b16 %v1266
        %v2363 = vunpack.c.l.b16 %v1267
        %v2364 = vunpack.c.h.b16 %v1267
        %v2365 = vunpack.c.l.b16 %v1268
        %v2366 = vunpack.c.h.b16 %v1268
        %v2367 = vunpack.c.l.b16 %v1269
        %v2368 = vunpack.c.h.b16 %v1269
        %v2369 = vunpack.c.l.b16 %v1270
        %v2370 = vunpack.c.h.b16 %v1270
        %v2371 = vunpack.c.l.b16 %v1271
        %v2372 = vunpack.c.h.b16 %v1271
        %v2373 = vunpack.c.l.b16 %v1272
        %v2374 = vunpack.c.h.b16 %v1272
        %v2375 = vunpack.c.l.b16 %v1273
        %v2376 = vunpack.c.h.b16 %v1273
        %v2377 = vunpack.c.l.b16 %v1274
        %v2378 = vunpack.c.h.b16 %v1274
        %v2379 = vunpack.c.l.b16 %v1275
        %v2380 = vunpack.c.h.b16 %v1275
        %v2381 = vunpack.c.l.b16 %v1276
        %v2382 = vunpack.c.h.b16 %v1276
        %v2383 = vunpack.c.l.b16 %v1277
        %v2384 = vunpack.c.h.b16 %v1277
        %v2385 = vunpack.c.l.b16 %v1278
        %v2386 = vunpack.c.h.b16 %v1278
        %v2387 = vunpack.c.l.b16 %v1279
        %v2388 = vunpack.c.h.b16 %v1279
        %v2389 = vunpack.c.l.b16 %v1280
        %v2390 = vunpack.c.h.b16 %v1280
        %v2391 = vunpack.c.l.b16 %v1281
        %v2392 = vunpack.c.h.b16 %v1281
        %v2393 = vunpack.c.l.b16 %v1282
        %v2394 = vunpack.c.h.b16 %v1282
        %v2395 = vunpack.c.l.b16 %v1283
        %v2396 = vunpack.c.h.b16 %v1283
        %v2397 = vunpack.c.l.b16 %v1284
        %v2398 = vunpack.c.h.b16 %v1284
        %v2399 = vunpack.c.l.b16 %v1285
        %v2400 = vunpack.c.h.b16 %v1285
        %v2401 = vunpack.c.l.b16 %v1286
        %v2402 = vunpack.c.h.b16 %v1286
        %v2403 = vunpack.c.l.b16 %v1287
        %v2404 = vunpack.c.h.b16 %v1287
        %v2405 = vunpack.c.l.b16 %v1288
        %v2406 = vunpack.c.h.b16 %v1288
        %v2407 = vunpack.c.l.b16 %v1289
        %v2408 = vunpack.c.h.b16 %v1289
        %v2409 = vunpack.c.l.b16 %v1290
        %v2410 = vunpack.c.h.b16 %v1290
        %v2411 = vunpack.c.l.b16 %v1291
        %v2412 = vunpack.c.h.b16 %v1291
        %v2413 = vunpack.c.l.b16 %v1292
        %v2414 = vunpack.c.h.b16 %v1292
        %v2415 = vunpack.c.l.b16 %v1293
        %v2416 = vunpack.c.h.b16 %v1293
        %v2417 = vunpack.c.l.b16 %v1294
        %v2418 = vunpack.c.h.b16 %v1294
        %v2419 = vunpack.c.l.b16 %v1295
        %v2420 = vunpack.c.h.b16 %v1295
        %v2421 = vunpack.c.l.b16 %v1296
        %v2422 = vunpack.c.h.b16 %v1296
        %v2423 = vunpack.c.l.b16 %v1297
        %v2424 = vunpack.c.h.b16 %v1297
        %v2425 = vunpack.c.l.b16 %v1298
        %v2426 = vunpack.c.h.b16 %v1298
        %v2427 = vunpack.c.l.b16 %v1299
        %v2428 = vunpack.c.h.b16 %v1299
        %v2429 = vunpack.c.l.b16 %v1300
        %v2430 = vunpack.c.h.b16 %v1300
        %v2431 = vunpack.c.l.b16 %v1301
        %v2432 = vunpack.c.h.b16 %v1301
        %v2433 = vunpack.c.l.b16 %v1302
        %v2434 = vunpack.c.h.b16 %v1302
        %v2435 = vunpack.c.l.b16 %v1303
        %v2436 = vunpack.c.h.b16 %v1303
        %v2437 = vunpack.c.l.b16 %v1304
        %v2438 = vunpack.c.h.b16 %v1304
        %v2439 = vunpack.c.l.b16 %v1305
        %v2440 = vunpack.c.h.b16 %v1305
        %v2441 = vunpack.c.l.b16 %v1306
        %v2442 = vunpack.c.h.b16 %v1306
        %v2443 = vunpack.c.l.b16 %v1307
        %v2444 = vunpack.c.h.b16 %v1307
        %v2445 = vunpack.c.l.b16 %v1308
        %v2446 = vunpack.c.h.b16 %v1308
        %v2447 = vunpack.c.l.b16 %v1309
        %v2448 = vunpack.c.h.b16 %v1309
        %v2449 = vunpack.c.l.b16 %v1310
        %v2450 = vunpack.c.h.b16 %v1310
        %v2451 = vunpack.c.l.b16 %v1311
        %v2452 = vunpack.c.h.b16 %v1311
        %v2453 = vunpack.c.l.b16 %v1312
        %v2454 = vunpack.c.h.b16 %v1312
        %v2455 = vunpack.c.l.b16 %v1313
        %v2456 = vunpack.c.h.b16 %v1313
        %v2457 = vunpack.c.l.b16 %v1314
        %v2458 = vunpack.c.h.b16 %v1314
        %v2459 = vunpack.c.l.b16 %v1315
        %v2460 = vunpack.c.h.b16 %v1315
        %v2461 = vunpack.c.l.b16 %v1316
        %v2462 = vunpack.c.h.b16 %v1316
        %v2463 = vunpack.c.l.b16 %v1317
        %v2464 = vunpack.c.h.b16 %v1317
        %v2465 = vunpack.c.l.b16 %v1318
        %v2466 = vunpack.c.h.b16 %v1318
        %v2467 = vunpack.c.l.b16 %v1319
        %v2468 = vunpack.c.h.b16 %v1319
        %v2469 = vunpack.c.l.b16 %v1320
        %v2470 = vunpack.c.h.b16 %v1320
        %v2471 = vunpack.c.l.b16 %v1321
        %v2472 = vunpack.c.h.b16 %v1321
        %v2473 = vunpack.c.l.b16 %v1322
        %v2474 = vunpack.c.h.b16 %v1322
        %v2475 = vunpack.c.l.b16 %v1323
        %v2476 = vunpack.c.h.b16 %v1323
        %v2477 = vunpack.c.l.b16 %v1324
        %v2478 = vunpack.c.h.b16 %v1324
        %v2479 = vunpack.c.l.b16 %v1325
        %v2480 = vunpack.c.h.b16 %v1325
        %v2481 = vunpack.c.l.b16 %v1326
        %v2482 = vunpack.c.h.b16 %v1326
        %v2483 = vunpack.c.l.b16 %v1327
        %v2484 = vunpack.c.h.b16 %v1327
        %v2485 = vunpack.c.l.b16 %v1328
        %v2486 = vunpack.c.h.b16 %v1328
        %v2487 = vunpack.c.l.b16 %v1329
        %v2488 = vunpack.c.h.b16 %v1329
        %v2489 = vunpack.c.l.b16 %v1330
        %v2490 = vunpack.c.h.b16 %v1330
        %v2491 = vunpack.c.l.b16 %v1331
        %v2492 = vunpack.c.h.b16 %v1331
        %v2493 = vunpack.c.l.b16 %v1332
        %v2494 = vunpack.c.h.b16 %v1332
        %v2495 = vunpack.c.l.b16 %v1333
        %v2496 = vunpack.c.h.b16 %v1333
        %v2497 = vunpack.c.l.b16 %v1334
        %v2498 = vunpack.c.h.b16 %v1334
        %v2499 = vunpack.c.l.b16 %v1335
        %v2500 = vunpack.c.h.b16 %v1335
        %v2501 = vunpack.c.l.b16 %v1336
        %v2502 = vunpack.c.h.b16 %v1336
        %v2503 = vunpack.c.l.b16 %v1337
        %v2504 = vunpack.c.h.b16 %v1337
        %v2505 = vunpack.c.l.b16 %v1338
        %v2506 = vunpack.c.h.b16 %v1338
        %v2507 = vunpack.c.l.b16 %v1339
        %v2508 = vunpack.c.h.b16 %v1339
        %v2509 = vunpack.c.l.b16 %v1340
        %v2510 = vunpack.c.h.b16 %v1340
        %v2511 = vunpack.c.l.b16 %v1341
        %v2512 = vunpack.c.h.b16 %v1341
        %v2513 = vunpack.c.l.b16 %v1342
        %v2514 = vunpack.c.h.b16 %v1342
        %v2515 = vunpack.c.l.b16 %v1343
        %v2516 = vunpack.c.h.b16 %v1343
        %v2517 = vunpack.c.l.b16 %v1344
        %v2518 = vunpack.c.h.b16 %v1344
        %v2519 = vunpack.c.l.b16 %v1345
        %v2520 = vunpack.c.h.b16 %v1345
        %v2521 = vunpack.c.l.b16 %v1346
        %v2522 = vunpack.c.h.b16 %v1346
        %v2523 = vunpack.c.l.b16 %v1347
        %v2524 = vunpack.c.h.b16 %v1347
        %v2525 = vunpack.c.l.b16 %v1348
        %v2526 = vunpack.c.h.b16 %v1348
        %v2527 = vunpack.c.l.b16 %v1349
        %v2528 = vunpack.c.h.b16 %v1349
        %v2529 = vunpack.c.l.b16 %v1350
        %v2530 = vunpack.c.h.b16 %v1350
        %v2531 = vunpack.c.l.b16 %v1351
        %v2532 = vunpack.c.h.b16 %v1351
        %v2533 = vunpack.c.l.b16 %v1352
        %v2534 = vunpack.c.h.b16 %v1352
        %v2535 = vunpack.c.l.b16 %v1353
        %v2536 = vunpack.c.h.b16 %v1353
        %v2537 = vunpack.c.l.b16 %v1354
        %v2538 = vunpack.c.h.b16 %v1354
        %v2539 = vunpack.c.l.b16 %v1355
        %v2540 = vunpack.c.h.b16 %v1355
        %v2541 = vunpack.c.l.b16 %v1356
        %v2542 = vunpack.c.h.b16 %v1356
        %v2543 = vunpack.c.l.b16 %v1357
        %v2544 = vunpack.c.h.b16 %v1357
        %v2545 = vunpack.c.l.b16 %v1358
        %v2546 = vunpack.c.h.b16 %v1358
        %v2547 = vunpack.c.l.b16 %v1359
        %v2548 = vunpack.c.h.b16 %v1359
        %v2549 = vunpack.c.l.b16 %v1360
        %v2550 = vunpack.c.h.b16 %v1360
        %v2551 = vunpack.c.l.b16 %v1361
        %v2552 = vunpack.c.h.b16 %v1361
        %v2553 = vunpack.c.l.b16 %v1362
        %v2554 = vunpack.c.h.b16 %v1362
        %v2555 = vunpack.c.l.b16 %v1363
        %v2556 = vunpack.c.h.b16 %v1363
        %v2557 = vunpack.c.l.b16 %v1364
        %v2558 = vunpack.c.h.b16 %v1364
        %v2559 = vunpack.c.l.b16 %v1365
        %v2560 = vunpack.c.h.b16 %v1365
        %v2561 = vunpack.c.l.b16 %v1366
        %v2562 = vunpack.c.h.b16 %v1366
        %v2563 = vunpack.c.l.b16 %v1367
        %v2564 = vunpack.c.h.b16 %v1367
        %v2565 = vunpack.c.l.b16 %v1368
        %v2566 = vunpack.c.h.b16 %v1368
        %v2567 = vunpack.c.l.b16 %v1369
        %v2568 = vunpack.c.h.b16 %v1369
        %v2569 = vunpack.c.l.b16 %v1370
        %v2570 = vunpack.c.h.b16 %v1370
        %v2571 = vunpack.c.l.b16 %v1371
        %v2572 = vunpack.c.h.b16 %v1371
        %v2573 = vunpack.c.l.b16 %v1372
        %v2574 = vunpack.c.h.b16 %v1372
        %v2575 = vunpack.c.l.b16 %v1373
        %v2576 = vunpack.c.h.b16 %v1373
        %v2577 = vunpack.c.l.b16 %v1374
        %v2578 = vunpack.c.h.b16 %v1374
        %v2579 = vunpack.c.l.b16 %v1375
        %v2580 = vunpack.c.h.b16 %v1375
        %v2581 = vunpack.c.l.b16 %v1376
        %v2582 = vunpack.c.h.b16 %v1376
        %v2583 = vunpack.c.l.b16 %v1377
        %v2584 = vunpack.c.h.b16 %v1377
        %v2585 = vunpack.c.l.b16 %v1378
        %v2586 = vunpack.c.h.b16 %v1378
        %v2587 = vunpack.c.l.b16 %v1379
        %v2588 = vunpack.c.h.b16 %v1379
        %v2589 = vunpack.c.l.b16 %v1380
        %v2590 = vunpack.c.h.b16 %v1380
        %v2591 = vunpack.c.l.b16 %v1381
        %v2592 = vunpack.c.h.b16 %v1381
        %v2593 = vunpack.c.l.b16 %v1382
        %v2594 = vunpack.c.h.b16 %v1382
        %v2595 = vunpack.c.l.b16 %v1383
        %v2596 = vunpack.c.h.b16 %v1383
        %v2597 = vunpack.c.l.b16 %v1384
        %v2598 = vunpack.c.h.b16 %v1384
        %v2599 = vunpack.c.l.b16 %v1385
        %v2600 = vunpack.c.h.b16 %v1385
        %v2601 = vunpack.c.l.b16 %v1386
        %v2602 = vunpack.c.h.b16 %v1386
        %v2603 = vunpack.c.l.b16 %v1387
        %v2604 = vunpack.c.h.b16 %v1387
        %v2605 = vunpack.c.l.b16 %v1388
        %v2606 = vunpack.c.h.b16 %v1388
        %v2607 = vunpack.c.l.b16 %v1389
        %v2608 = vunpack.c.h.b16 %v1389
        %v2609 = vunpack.c.l.b16 %v1390
        %v2610 = vunpack.c.h.b16 %v1390
        %v2611 = vunpack.c.l.b16 %v1391
        %v2612 = vunpack.c.h.b16 %v1391
        %v2613 = vunpack.c.l.b16 %v1392
        %v2614 = vunpack.c.h.b16 %v1392
        %v2615 = vunpack.c.l.b16 %v1393
        %v2616 = vunpack.c.h.b16 %v1393
        %v2617 = vunpack.c.l.b16 %v1394
        %v2618 = vunpack.c.h.b16 %v1394
        %v2619 = vunpack.c.l.b16 %v1395
        %v2620 = vunpack.c.h.b16 %v1395
        %v2621 = vunpack.c.l.b16 %v1396
        %v2622 = vunpack.c.h.b16 %v1396
        %v2623 = vunpack.c.l.b16 %v1397
        %v2624 = vunpack.c.h.b16 %v1397
        %v2625 = vunpack.c.l.b16 %v1398
        %v2626 = vunpack.c.h.b16 %v1398
        %v2627 = vunpack.c.l.b16 %v1399
        %v2628 = vunpack.c.h.b16 %v1399
        %v2629 = vunpack.c.l.b16 %v1400
        %v2630 = vunpack.c.h.b16 %v1400
        %v2631 = vunpack.c.l.b16 %v1401
        %v2632 = vunpack.c.h.b16 %v1401
        %v2633 = vunpack.c.l.b16 %v1402
        %v2634 = vunpack.c.h.b16 %v1402
        %v2635 = vunpack.c.l.b16 %v1403
        %v2636 = vunpack.c.h.b16 %v1403
        %v2637 = vunpack.c.l.b16 %v1404
        %v2638 = vunpack.c.h.b16 %v1404
        %v2639 = vunpack.c.l.b16 %v1405
        %v2640 = vunpack.c.h.b16 %v1405
        %v2641 = vpack.c.b16 %v1887, %v1829
        %v2642 = vpack.c.b16 %v1888, %v1830
        %v2643 = vpack.c.b16 %v1889, %v1831
        %v2644 = vpack.c.b16 %v1890, %v1832
        %v2645 = vpack.c.b16 %v1891, %v1833
        %v2646 = vpack.c.b16 %v1892, %v1834
        %v2647 = vpack.c.b16 %v1893, %v1835
        %v2648 = vpack.c.b16 %v1894, %v1836
        %v2649 = vpack.c.b16 %v1895, %v1837
        %v2650 = vpack.c.b16 %v1896, %v1838
        %v2651 = vpack.c.b16 %v1897, %v1839
        %v2652 = vpack.c.b16 %v1898, %v1840
        %v2653 = vpack.c.b16 %v1899, %v1841
        %v2654 = vpack.c.b16 %v1900, %v1842
        %v2655 = vpack.c.b16 %v1901, %v1843
        %v2656 = vpack.c.b16 %v1902, %v1844
        %v2657 = vpack.c.b16 %v1903, %v1845
        %v2658 = vpack.c.b16 %v1904, %v1846
        %v2659 = vpack.c.b16 %v1905, %v1847
        %v2660 = vpack.c.b16 %v1906, %v1848
        %v2661 = vpack.c.b16 %v1907, %v1849
        %v2662 = vpack.c.b16 %v1908, %v1850
        %v2663 = vpack.c.b16 %v1909, %v1851
        %v2664 = vpack.c.b16 %v1910, %v1852
        %v2665 = vpack.c.b16 %v1911, %v1853
        %v2666 = vpack.c.b16 %v1912, %v1854
        %v2667 = vpack.c.b16 %v1913, %v1855
        %v2668 = vpack.c.b16 %v1914, %v1856
        %v2669 = vpack.c.b16 %v1915, %v1857
        %v2670 = vpack.c.b16 %v1916, %v1858
        %v2671 = vpack.c.b16 %v1917, %v1859
        %v2672 = vpack.c.b16 %v1918, %v1860
        %v2673 = vpack.c.b16 %v1919, %v1861
        %v2674 = vpack.c.b16 %v1920, %v1862
        %v2675 = vpack.c.b16 %v1921, %v1863
        %v2676 = vpack.c.b16 %v1922, %v1864
        %v2677 = vpack.c.b16 %v1923, %v1865
        %v2678 = vpack.c.b16 %v1924, %v1866
        %v2679 = vpack.c.b16 %v1925, %v1867
        %v2680 = vpack.c.b16 %v1926, %v1868
        %v2681 = vpack.c.b16 %v1927, %v1869
        %v2682 = vpack.c.b16 %v1928, %v1870
        %v2683 = vpack.c.b16 %v1929, %v1871
        %v2684 = vpack.c.b16 %v1930, %v1872
        %v2685 = vpack.c.b16 %v1931, %v1873
        %v2686 = vpack.c.b16 %v1932, %v1874
        %v2687 = vpack.c.b16 %v1933, %v1875
        %v2688 = vpack.c.b16 %v1934, %v1876
        %v2689 = vpack.c.b16 %v1935, %v1877
        %v2690 = vpack.c.b16 %v1936, %v1878
        %v2691 = vpack.c.b16 %v1937, %v1879
        %v2692 = vpack.c.b16 %v1938, %v1880
        %v2693 = vpack.c.b16 %v1939, %v1881
        %v2694 = vpack.c.b16 %v1940, %v1882
        %v2695 = vpack.c.b16 %v1941, %v1883
        %v2696 = vpack.c.b16 %v1942, %v1884
        %v2697 = vpack.c.b16 %v1943, %v1885
        %v2698 = vpack.c.b16 %v1944, %v1886
        %v2699 = vpack.c.b16 %v2003, %v1945
        %v2700 = vpack.c.b16 %v2004, %v1946
        %v2701 = vpack.c.b16 %v2005, %v1947
        %v2702 = vpack.c.b16 %v2006, %v1948
        %v2703 = vpack.c.b16 %v2007, %v1949
        %v2704 = vpack.c.b16 %v2008, %v1950
        %v2705 = vpack.c.b16 %v2009, %v1951
        %v2706 = vpack.c.b16 %v2010, %v1952
        %v2707 = vpack.c.b16 %v2011, %v1953
        %v2708 = vpack.c.b16 %v2012, %v1954
        %v2709 = vpack.c.b16 %v2013, %v1955
        %v2710 = vpack.c.b16 %v2014, %v1956
        %v2711 = vpack.c.b16 %v2015, %v1957
        %v2712 = vpack.c.b16 %v2016, %v1958
        %v2713 = vpack.c.b16 %v2017, %v1959
        %v2714 = vpack.c.b16 %v2018, %v1960
        %v2715 = vpack.c.b16 %v2019, %v1961
        %v2716 = vpack.c.b16 %v2020, %v1962
        %v2717 = vpack.c.b16 %v2021, %v1963
        %v2718 = vpack.c.b16 %v2022, %v1964
        %v2719 = vpack.c.b16 %v2023, %v1965
        %v2720 = vpack.c.b16 %v2024, %v1966
        %v2721 = vpack.c.b16 %v2025, %v1967
        %v2722 = vpack.c.b16 %v2026, %v1968
        %v2723 = vpack.c.b16 %v2027, %v1969
        %v2724 = vpack.c.b16 %v2028, %v1970
        %v2725 = vpack.c.b16 %v2029, %v1971
        %v2726 = vpack.c.b16 %v2030, %v1972
        %v2727 = vpack.c.b16 %v2031, %v1973
        %v2728 = vpack.c.b16 %v2032, %v1974
        %v2729 = vpack.c.b16 %v2033, %v1975
        %v2730 = vpack.c.b16 %v2034, %v1976
        %v2731 = vpack.c.b16 %v2035, %v1977
        %v2732 = vpack.c.b16 %v2036, %v1978
        %v2733 = vpack.c.b16 %v2037, %v1979
        %v2734 = vpack.c.b16 %v2038, %v1980
        %v2735 = vpack.c.b16 %v2039, %v1981
        %v2736 = vpack.c.b16 %v2040, %v1982
        %v2737 = vpack.c.b16 %v2041, %v1983
        %v2738 = vpack.c.b16 %v2042, %v1984
        %v2739 = vpack.c.b16 %v2043, %v1985
        %v2740 = vpack.c.b16 %v2044, %v1986
        %v2741 = vpack.c.b16 %v2045, %v1987
        %v2742 = vpack.c.b16 %v2046, %v1988
        %v2743 = vpack.c.b16 %v2047, %v1989
        %v2744 = vpack.c.b16 %v2048, %v1990
        %v2745 = vpack.c.b16 %v2049, %v1991
        %v2746 = vpack.c.b16 %v2050, %v1992
        %v2747 = vpack.c.b16 %v2051, %v1993
        %v2748 = vpack.c.b16 %v2052, %v1994
        %v2749 = vpack.c.b16 %v2053, %v1995
        %v2750 = vpack.c.b16 %v2054, %v1996
        %v2751 = vpack.c.b16 %v2055, %v1997
        %v2752 = vpack.c.b16 %v2056, %v1998
        %v2753 = vpack.c.b16 %v2057, %v1999
        %v2754 = vpack.c.b16 %v2058, %v2000
        %v2755 = vpack.c.b16 %v2059, %v2001
        %v2756 = vpack.c.b16 %v2060, %v2002
        %v2757 = vpack.c.b16 %v2119, %v2061
        %v2758 = vpack.c.b16 %v2120, %v2062
        %v2759 = vpack.c.b16 %v2121, %v2063
        %v2760 = vpack.c.b16 %v2122, %v2064
        %v2761 = vpack.c.b16 %v2123, %v2065
        %v2762 = vpack.c.b16 %v2124, %v2066
        %v2763 = vpack.c.b16 %v2125, %v2067
        %v2764 = vpack.c.b16 %v2126, %v2068
        %v2765 = vpack.c.b16 %v2127, %v2069
        %v2766 = vpack.c.b16 %v2128, %v2070
        %v2767 = vpack.c.b16 %v2129, %v2071
        %v2768 = vpack.c.b16 %v2130, %v2072
        %v2769 = vpack.c.b16 %v2131, %v2073
        %v2770 = vpack.c.b16 %v2132, %v2074
        %v2771 = vpack.c.b16 %v2133, %v2075
        %v2772 = vpack.c.b16 %v2134, %v2076
        %v2773 = vpack.c.b16 %v2135, %v2077
        %v2774 = vpack.c.b16 %v2136, %v2078
        %v2775 = vpack.c.b16 %v2137, %v2079
        %v2776 = vpack.c.b16 %v2138, %v2080
        %v2777 = vpack.c.b16 %v2139, %v2081
        %v2778 = vpack.c.b16 %v2140, %v2082
        %v2779 = vpack.c.b16 %v2141, %v2083
        %v2780 = vpack.c.b16 %v2142, %v2084
        %v2781 = vpack.c.b16 %v2143, %v2085
        %v2782 = vpack.c.b16 %v2144, %v2086
        %v2783 = vpack.c.b16 %v2145, %v2087
        %v2784 = vpack.c.b16 %v2146, %v2088
        %v2785 = vpack.c.b16 %v2147, %v2089
        %v2786 = vpack.c.b16 %v2148, %v2090
        %v2787 = vpack.c.b16 %v2149, %v2091
        %v2788 = vpack.c.b16 %v2150, %v2092
        %v2789 = vpack.c.b16 %v2151, %v2093
        %v2790 = vpack.c.b16 %v2152, %v2094
        %v2791 = vpack.c.b16 %v2153, %v2095
        %v2792 = vpack.c.b16 %v2154, %v2096
        %v2793 = vpack.c.b16 %v2155, %v2097
        %v2794 = vpack.c.b16 %v2156, %v2098
        %v2795 = vpack.c.b16 %v2157, %v2099
        %v2796 = vpack.c.b16 %v2158, %v2100
        %v2797 = vpack.c.b16 %v2159, %v2101
        %v2798 = vpack.c.b16 %v2160, %v2102
        %v2799 = vpack.c.b16 %v2161, %v2103
        %v2800 = vpack.c.b16 %v2162, %v2104
        %v2801 = vpack.c.b16 %v2163, %v2105
        %v2802 = vpack.c.b16 %v2164, %v2106
        %v2803 = vpack.c.b16 %v2165, %v2107
        %v2804 = vpack.c.b16 %v2166, %v2108
        %v2805 = vpack.c.b16 %v2167, %v2109
        %v2806 = vpack.c.b16 %v2168, %v2110
        %v2807 = vpack.c.b16 %v2169, %v2111
        %v2808 = vpack.c.b16 %v2170, %v2112
        %v2809 = vpack.c.b16 %v2171, %v2113
        %v2810 = vpack.c.b16 %v2172, %v2114
        %v2811 = vpack.c.b16 %v2173, %v2115
        %v2812 = vpack.c.b16 %v2174, %v2116
        %v2813 = vpack.c.b16 %v2175, %v2117
        %v2814 = vpack.c.b16 %v2176, %v2118
        %v2815 = vpack.c.b16 %v2235, %v2177
        %v2816 = vpack.c.b16 %v2236, %v2178
        %v2817 = vpack.c.b16 %v2237, %v2179
        %v2818 = vpack.c.b16 %v2238, %v2180
        %v2819 = vpack.c.b16 %v2239, %v2181
        %v2820 = vpack.c.b16 %v2240, %v2182
        %v2821 = vpack.c.b16 %v2241, %v2183
        %v2822 = vpack.c.b16 %v2242, %v2184
        %v2823 = vpack.c.b16 %v2243, %v2185
        %v2824 = vpack.c.b16 %v2244, %v2186
        %v2825 = vpack.c.b16 %v2245, %v2187
        %v2826 = vpack.c.b16 %v2246, %v2188
        %v2827 = vpack.c.b16 %v2247, %v2189
        %v2828 = vpack.c.b16 %v2248, %v2190
        %v2829 = vpack.c.b16 %v2249, %v2191
        %v2830 = vpack.c.b16 %v2250, %v2192
        %v2831 = vpack.c.b16 %v2251, %v2193
        %v2832 = vpack.c.b16 %v2252, %v2194
        %v2833 = vpack.c.b16 %v2253, %v2195
        %v2834 = vpack.c.b16 %v2254, %v2196
        %v2835 = vpack.c.b16 %v2255, %v2197
        %v2836 = vpack.c.b16 %v2256, %v2198
        %v2837 = vpack.c.b16 %v2257, %v2199
        %v2838 = vpack.c.b16 %v2258, %v2200
        %v2839 = vpack.c.b16 %v2259, %v2201
        %v2840 = vpack.c.b16 %v2260, %v2202
        %v2841 = vpack.c.b16 %v2261, %v2203
        %v2842 = vpack.c.b16 %v2262, %v2204
        %v2843 = vpack.c.b16 %v2263, %v2205
        %v2844 = vpack.c.b16 %v2264, %v2206
        %v2845 = vpack.c.b16 %v2265, %v2207
        %v2846 = vpack.c.b16 %v2266, %v2208
        %v2847 = vpack.c.b16 %v2267, %v2209
        %v2848 = vpack.c.b16 %v2268, %v2210
        %v2849 = vpack.c.b16 %v2269, %v2211
        %v2850 = vpack.c.b16 %v2270, %v2212
        %v2851 = vpack.c.b16 %v2271, %v2213
        %v2852 = vpack.c.b16 %v2272, %v2214
        %v2853 = vpack.c.b16 %v2273, %v2215
        %v2854 = vpack.c.b16 %v2274, %v2216
        %v2855 = vpack.c.b16 %v2275, %v2217
        %v2856 = vpack.c.b16 %v2276, %v2218
        %v2857 = vpack.c.b16 %v2277, %v2219
        %v2858 = vpack.c.b16 %v2278, %v2220
        %v2859 = vpack.c.b16 %v2279, %v2221
        %v2860 = vpack.c.b16 %v2280, %v2222
        %v2861 = vpack.c.b16 %v2281, %v2223
        %v2862 = vpack.c.b16 %v2282, %v2224
        %v2863 = vpack.c.b16 %v2283, %v2225
        %v2864 = vpack.c.b16 %v2284, %v2226
        %v2865 = vpack.c.b16 %v2285, %v2227
        %v2866 = vpack.c.b16 %v2286, %v2228
        %v2867 = vpack.c.b16 %v2287, %v2229
        %v2868 = vpack.c.b16 %v2288, %v2230
        %v2869 = vpack.c.b16 %v2289, %v2231
        %v2870 = vpack.c.b16 %v2290, %v2232
        %v2871 = vpack.c.b16 %v2291, %v2233
        %v2872 = vpack.c.b16 %v2292, %v2234
        %v2873 = vpack.c.b16 %v2351, %v2293
        %v2874 = vpack.c.b16 %v2352, %v2294
        %v2875 = vpack.c.b16 %v2353, %v2295
        %v2876 = vpack.c.b16 %v2354, %v2296
        %v2877 = vpack.c.b16 %v2355, %v2297
        %v2878 = vpack.c.b16 %v2356, %v2298
        %v2879 = vpack.c.b16 %v2357, %v2299
        %v2880 = vpack.c.b16 %v2358, %v2300
        %v2881 = vpack.c.b16 %v2359, %v2301
        %v2882 = vpack.c.b16 %v2360, %v2302
        %v2883 = vpack.c.b16 %v2361, %v2303
        %v2884 = vpack.c.b16 %v2362, %v2304
        %v2885 = vpack.c.b16 %v2363, %v2305
        %v2886 = vpack.c.b16 %v2364, %v2306
        %v2887 = vpack.c.b16 %v2365, %v2307
        %v2888 = vpack.c.b16 %v2366, %v2308
        %v2889 = vpack.c.b16 %v2367, %v2309
        %v2890 = vpack.c.b16 %v2368, %v2310
        %v2891 = vpack.c.b16 %v2369, %v2311
        %v2892 = vpack.c.b16 %v2370, %v2312
        %v2893 = vpack.c.b16 %v2371, %v2313
        %v2894 = vpack.c.b16 %v2372, %v2314
        %v2895 = vpack.c.b16 %v2373, %v2315
        %v2896 = vpack.c.b16 %v2374, %v2316
        %v2897 = vpack.c.b16 %v2375, %v2317
        %v2898 = vpack.c.b16 %v2376, %v2318
        %v2899 = vpack.c.b16 %v2377, %v2319
        %v2900 = vpack.c.b16 %v2378, %v2320
        %v2901 = vpack.c.b16 %v2379, %v2321
        %v2902 = vpack.c.b16 %v2380, %v2322
        %v2903 = vpack.c.b16 %v2381, %v2323
        %v2904 = vpack.c.b16 %v2382, %v2324
        %v2905 = vpack.c.b16 %v2383, %v2325
        %v2906 = vpack.c.b16 %v2384, %v2326
        %v2907 = vpack.c.b16 %v2385, %v2327
        %v2908 = vpack.c.b16 %v2386, %v2328
        %v2909 = vpack.c.b16 %v2387, %v2329
        %v2910 = vpack.c.b16 %v2388, %v2330
        %v2911 = vpack.c.b16 %v2389, %v2331
        %v2912 = vpack.c.b16 %v2390, %v2332
        %v2913 = vpack.c.b16 %v2391, %v2333
        %v2914 = vpack.c.b16 %v2392, %v2334
        %v2915 = vpack.c.b16 %v2393, %v2335
        %v2916 = vpack.c.b16 %v2394, %v2336
        %v2917 = vpack.c.b16 %v2395, %v2337
        %v2918 = vpack.c.b16 %v2396, %v2338
        %v2919 = vpack.c.b16 %v2397, %v2339
        %v2920 = vpack.c.b16 %v2398, %v2340
        %v2921 = vpack.c.b16 %v2399, %v2341
        %v2922 = vpack.c.b16 %v2400, %v2342
        %v2923 = vpack.c.b16 %v2401, %v2343
        %v2924 = vpack.c.b16 %v2402, %v2344
        %v2925 = vpack.c.b16 %v2403, %v2345
        %v2926 = vpack.c.b16 %v2404, %v2346
        %v2927 = vpack.c.b16 %v2405, %v2347
        %v2928 = vpack.c.b16 %v2406, %v2348
        %v2929 = vpack.c.b16 %v2407, %v2349
        %v2930 = vpack.c.b16 %v2408, %v2350
        %v2931 = vpack.c.b16 %v2467, %v2409
        %v2932 = vpack.c.b16 %v2468, %v2410
        %v2933 = vpack.c.b16 %v2469, %v2411
        %v2934 = vpack.c.b16 %v2470, %v2412
        %v2935 = vpack.c.b16 %v2471, %v2413
        %v2936 = vpack.c.b16 %v2472, %v2414
        %v2937 = vpack.c.b16 %v2473, %v2415
        %v2938 = vpack.c.b16 %v2474, %v2416
        %v2939 = vpack.c.b16 %v2475, %v2417
        %v2940 = vpack.c.b16 %v2476, %v2418
        %v2941 = vpack.c.b16 %v2477, %v2419
        %v2942 = vpack.c.b16 %v2478, %v2420
        %v2943 = vpack.c.b16 %v2479, %v2421
        %v2944 = vpack.c.b16 %v2480, %v2422
        %v2945 = vpack.c.b16 %v2481, %v2423
        %v2946 = vpack.c.b16 %v2482, %v2424
        %v2947 = vpack.c.b16 %v2483, %v2425
        %v2948 = vpack.c.b16 %v2484, %v2426
        %v2949 = vpack.c.b16 %v2485, %v2427
        %v2950 = vpack.c.b16 %v2486, %v2428
        %v2951 = vpack.c.b16 %v2487, %v2429
        %v2952 = vpack.c.b16 %v2488, %v2430
        %v2953 = vpack.c.b16 %v2489, %v2431
        %v2954 = vpack.c.b16 %v2490, %v2432
        %v2955 = vpack.c.b16 %v2491, %v2433
        %v2956 = vpack.c.b16 %v2492, %v2434
        %v2957 = vpack.c.b16 %v2493, %v2435
        %v2958 = vpack.c.b16 %v2494, %v2436
        %v2959 = vpack.c.b16 %v2495, %v2437
        %v2960 = vpack.c.b16 %v2496, %v2438
        %v2961 = vpack.c.b16 %v2497, %v2439
        %v2962 = vpack.c.b16 %v2498, %v2440
        %v2963 = vpack.c.b16 %v2499, %v2441
        %v2964 = vpack.c.b16 %v2500, %v2442
        %v2965 = vpack.c.b16 %v2501, %v2443
        %v2966 = vpack.c.b16 %v2502, %v2444
        %v2967 = vpack.c.b16 %v2503, %v2445
        %v2968 = vpack.c.b16 %v2504, %v2446
        %v2969 = vpack.c.b16 %v2505, %v2447
        %v2970 = vpack.c.b16 %v2506, %v2448
        %v2971 = vpack.c.b16 %v2507, %v2449
        %v2972 = vpack.c.b16 %v2508, %v2450
        %v2973 = vpack.c.b16 %v2509, %v2451
        %v2974 = vpack.c.b16 %v2510, %v2452
        %v2975 = vpack.c.b16 %v2511, %v2453
        %v2976 = vpack.c.b16 %v2512, %v2454
        %v2977 = vpack.c.b16 %v2513, %v2455
        %v2978 = vpack.c.b16 %v2514, %v2456
        %v2979 = vpack.c.b16 %v2515, %v2457
        %v2980 = vpack.c.b16 %v2516, %v2458
        %v2981 = vpack.c.b16 %v2517, %v2459
        %v2982 = vpack.c.b16 %v2518, %v2460
        %v2983 = vpack.c.b16 %v2519, %v2461
        %v2984 = vpack.c.b16 %v2520, %v2462
        %v2985 = vpack.c.b16 %v2521, %v2463
        %v2986 = vpack.c.b16 %v2522, %v2464
        %v2987 = vpack.c.b16 %v2523, %v2465
        %v2988 = vpack.c.b16 %v2524, %v2466
        %v2989 = vpack.c.b16 %v2583, %v2525
        %v2990 = vpack.c.b16 %v2584, %v2526
        %v2991 = vpack.c.b16 %v2585, %v2527
        %v2992 = vpack.c.b16 %v2586, %v2528
        %v2993 = vpack.c.b16 %v2587, %v2529
        %v2994 = vpack.c.b16 %v2588, %v2530
        %v2995 = vpack.c.b16 %v2589, %v2531
        %v2996 = vpack.c.b16 %v2590, %v2532
        %v2997 = vpack.c.b16 %v2591, %v2533
        %v2998 = vpack.c.b16 %v2592, %v2534
        %v2999 = vpack.c.b16 %v2593, %v2535
        %v3000 = vpack.c.b16 %v2594, %v2536
        %v3001 = vpack.c.b16 %v2595, %v2537
        %v3002 = vpack.c.b16 %v2596, %v2538
        %v3003 = vpack.c.b16 %v2597, %v2539
        %v3004 = vpack.c.b16 %v2598, %v2540
        %v3005 = vpack.c.b16 %v2599, %v2541
        %v3006 = vpack.c.b16 %v2600, %v2542
        %v3007 = vpack.c.b16 %v2601, %v2543
        %v3008 = vpack.c.b16 %v2602, %v2544
        %v3009 = vpack.c.b16 %v2603, %v2545
        %v3010 = vpack.c.b16 %v2604, %v2546
        %v3011 = vpack.c.b16 %v2605, %v2547
        %v3012 = vpack.c.b16 %v2606, %v2548
        %v3013 = vpack.c.b16 %v2607, %v2549
        %v3014 = vpack.c.b16 %v2608, %v2550
        %v3015 = vpack.c.b16 %v2609, %v2551
        %v3016 = vpack.c.b16 %v2610, %v2552
        %v3017 = vpack.c.b16 %v2611, %v2553
        %v3018 = vpack.c.b16 %v2612, %v2554
        %v3019 = vpack.c.b16 %v2613, %v2555
        %v3020 = vpack.c.b16 %v2614, %v2556
        %v3021 = vpack.c.b16 %v2615, %v2557
        %v3022 = vpack.c.b16 %v2616, %v2558
        %v3023 = vpack.c.b16 %v2617, %v2559
        %v3024 = vpack.c.b16 %v2618, %v2560
        %v3025 = vpack.c.b16 %v2619, %v2561
        %v3026 = vpack.c.b16 %v2620, %v2562
        %v3027 = vpack.c.b16 %v2621, %v2563
        %v3028 = vpack.c.b16 %v2622, %v2564
        %v3029 = vpack.c.b16 %v2623, %v2565
        %v3030 = vpack.c.b16 %v2624, %v2566
        %v3031 = vpack.c.b16 %v2625, %v2567
        %v3032 = vpack.c.b16 %v2626, %v2568
        %v3033 = vpack.c.b16 %v2627, %v2569
        %v3034 = vpack.c.b16 %v2628, %v2570
        %v3035 = vpack.c.b16 %v2629, %v2571
        %v3036 = vpack.c.b16 %v2630, %v2572
        %v3037 = vpack.c.b16 %v2631, %v2573
        %v3038 = vpack.c.b16 %v2632, %v2574
        %v3039 = vpack.c.b16 %v2633, %v2575
        %v3040 = vpack.c.b16 %v2634, %v2576
        %v3041 = vpack.c.b16 %v2635, %v2577
        %v3042 = vpack.c.b16 %v2636, %v2578
        %v3043 = vpack.c.b16 %v2637, %v2579
        %v3044 = vpack.c.b16 %v2638, %v2580
        %v3045 = vpack.c.b16 %v2639, %v2581
        %v3046 = vpack.c.b16 %v2640, %v2582
        %vm3453 = vcmask 916480
        %v3455 = vsel %vm3453, %v1422, 0
        %3457 = vmatpush.bf16.msra.mxu0 0
        %3458 = vmatpush.bf16.msra.mxu0 %v2989
        %3459 = vmatpush.bf16.msra.mxu0 %v2931
        %3460 = vmatpush.bf16.msra.mxu0 %v2873
        %3461 = vmatpush.bf16.msra.mxu0 %v2815
        %3462 = vmatpush.bf16.msra.mxu0 %v2757
        %3463 = vmatpush.bf16.msra.mxu0 %v2699
        %3464 = vmatpush.bf16.msra.mxu0 %v2641
        %3465 = vmatmul.bf16.gmra.mxu0 %v3455
        %v3466 = vpop.f32.mrf.mxu0
        %v3467 = vadd.f32 %v1411, %v3466
        %v3468 = vpop.f32.mrf.mxu0
        %v3469 = vadd.f32 %v1416, %v3468
        %3470 = vdwg.mxu0
        %3471 = vmatpush.bf16.msra.mxu0 0
        %3472 = vmatpush.bf16.msra.mxu0 %v2990
        %3473 = vmatpush.bf16.msra.mxu0 %v2932
        %3474 = vmatpush.bf16.msra.mxu0 %v2874
        %3475 = vmatpush.bf16.msra.mxu0 %v2816
        %3476 = vmatpush.bf16.msra.mxu0 %v2758
        %3477 = vmatpush.bf16.msra.mxu0 %v2700
        %3478 = vmatpush.bf16.msra.mxu0 %v2642
        %3479 = vmatmul.bf16.gmra.mxu0 %v3455
        %v3480 = vpop.f32.mrf.mxu0
        %v3481 = vadd.f32 %v1411, %v3480
        %v3482 = vpop.f32.mrf.mxu0
        %v3483 = vadd.f32 %v1416, %v3482
        %3484 = vdwg.mxu0
        %3485 = vmatpush.bf16.msra.mxu0 0
        %3486 = vmatpush.bf16.msra.mxu0 %v2991
        %3487 = vmatpush.bf16.msra.mxu0 %v2933
        %3488 = vmatpush.bf16.msra.mxu0 %v2875
        %3489 = vmatpush.bf16.msra.mxu0 %v2817
        %3490 = vmatpush.bf16.msra.mxu0 %v2759
        %3491 = vmatpush.bf16.msra.mxu0 %v2701
        %3492 = vmatpush.bf16.msra.mxu0 %v2643
        %3493 = vmatmul.bf16.gmra.mxu0 %v3455
        %v3494 = vpop.f32.mrf.mxu0
        %v3495 = vadd.f32 %v1411, %v3494
        %v3496 = vpop.f32.mrf.mxu0
        %v3497 = vadd.f32 %v1416, %v3496
        %3498 = vdwg.mxu0
        %3499 = vmatpush.bf16.msra.mxu0 0
        %3500 = vmatpush.bf16.msra.mxu0 %v2992
        %3501 = vmatpush.bf16.msra.mxu0 %v2934
        %3502 = vmatpush.bf16.msra.mxu0 %v2876
        %3503 = vmatpush.bf16.msra.mxu0 %v2818
        %3504 = vmatpush.bf16.msra.mxu0 %v2760
        %3505 = vmatpush.bf16.msra.mxu0 %v2702
        %3506 = vmatpush.bf16.msra.mxu0 %v2644
        %3507 = vmatmul.bf16.gmra.mxu0 %v3455
        %v3508 = vpop.f32.mrf.mxu0
        %v3509 = vadd.f32 %v1411, %v3508
        %v3510 = vpop.f32.mrf.mxu0
        %v3511 = vadd.f32 %v1416, %v3510
        %3512 = vdwg.mxu0
        %3513 = vmatpush.bf16.msra.mxu0 0
        %3514 = vmatpush.bf16.msra.mxu0 %v2993
        %3515 = vmatpush.bf16.msra.mxu0 %v2935
        %3516 = vmatpush.bf16.msra.mxu0 %v2877
        %3517 = vmatpush.bf16.msra.mxu0 %v2819
        %3518 = vmatpush.bf16.msra.mxu0 %v2761
        %3519 = vmatpush.bf16.msra.mxu0 %v2703
        %3520 = vmatpush.bf16.msra.mxu0 %v2645
        %3521 = vmatmul.bf16.gmra.mxu0 %v3455
        %v3522 = vpop.f32.mrf.mxu0
        %v3523 = vadd.f32 %v1411, %v3522
        %v3524 = vpop.f32.mrf.mxu0
        %v3525 = vadd.f32 %v1416, %v3524
        %3526 = vdwg.mxu0
        %3527 = vmatpush.bf16.msra.mxu0 0
        %3528 = vmatpush.bf16.msra.mxu0 %v2994
        %3529 = vmatpush.bf16.msra.mxu0 %v2936
        %3530 = vmatpush.bf16.msra.mxu0 %v2878
        %3531 = vmatpush.bf16.msra.mxu0 %v2820
        %3532 = vmatpush.bf16.msra.mxu0 %v2762
        %3533 = vmatpush.bf16.msra.mxu0 %v2704
        %3534 = vmatpush.bf16.msra.mxu0 %v2646
        %3535 = vmatmul.bf16.gmra.mxu0 %v3455
        %v3536 = vpop.f32.mrf.mxu0
        %v3537 = vadd.f32 %v1411, %v3536
        %v3538 = vpop.f32.mrf.mxu0
        %v3539 = vadd.f32 %v1416, %v3538
        %3540 = vdwg.mxu0
        %3541 = vmatpush.bf16.msra.mxu0 0
        %3542 = vmatpush.bf16.msra.mxu0 %v2995
        %3543 = vmatpush.bf16.msra.mxu0 %v2937
        %3544 = vmatpush.bf16.msra.mxu0 %v2879
        %3545 = vmatpush.bf16.msra.mxu0 %v2821
        %3546 = vmatpush.bf16.msra.mxu0 %v2763
        %3547 = vmatpush.bf16.msra.mxu0 %v2705
        %3548 = vmatpush.bf16.msra.mxu0 %v2647
        %3549 = vmatmul.bf16.gmra.mxu0 %v3455
        %v3550 = vpop.f32.mrf.mxu0
        %v3551 = vadd.f32 %v1411, %v3550
        %v3552 = vpop.f32.mrf.mxu0
        %v3553 = vadd.f32 %v1416, %v3552
        %3554 = vdwg.mxu0
        %3555 = vmatpush.bf16.msra.mxu0 0
        %3556 = vmatpush.bf16.msra.mxu0 %v2996
        %3557 = vmatpush.bf16.msra.mxu0 %v2938
        %3558 = vmatpush.bf16.msra.mxu0 %v2880
        %3559 = vmatpush.bf16.msra.mxu0 %v2822
        %3560 = vmatpush.bf16.msra.mxu0 %v2764
        %3561 = vmatpush.bf16.msra.mxu0 %v2706
        %3562 = vmatpush.bf16.msra.mxu0 %v2648
        %3563 = vmatmul.bf16.gmra.mxu0 %v3455
        %v3564 = vpop.f32.mrf.mxu0
        %v3565 = vadd.f32 %v1411, %v3564
        %v3566 = vpop.f32.mrf.mxu0
        %v3567 = vadd.f32 %v1416, %v3566
        %3568 = vdwg.mxu0
        %3569 = vmatpush.bf16.msra.mxu0 0
        %3570 = vmatpush.bf16.msra.mxu0 %v2997
        %3571 = vmatpush.bf16.msra.mxu0 %v2939
        %3572 = vmatpush.bf16.msra.mxu0 %v2881
        %3573 = vmatpush.bf16.msra.mxu0 %v2823
        %3574 = vmatpush.bf16.msra.mxu0 %v2765
        %3575 = vmatpush.bf16.msra.mxu0 %v2707
        %3576 = vmatpush.bf16.msra.mxu0 %v2649
        %3577 = vmatmul.bf16.gmra.mxu0 %v3455
        %v3578 = vpop.f32.mrf.mxu0
        %v3579 = vadd.f32 %v1411, %v3578
        %v3580 = vpop.f32.mrf.mxu0
        %v3581 = vadd.f32 %v1416, %v3580
        %3582 = vdwg.mxu0
        %3583 = vmatpush.bf16.msra.mxu0 0
        %3584 = vmatpush.bf16.msra.mxu0 %v2998
        %3585 = vmatpush.bf16.msra.mxu0 %v2940
        %3586 = vmatpush.bf16.msra.mxu0 %v2882
        %3587 = vmatpush.bf16.msra.mxu0 %v2824
        %3588 = vmatpush.bf16.msra.mxu0 %v2766
        %3589 = vmatpush.bf16.msra.mxu0 %v2708
        %3590 = vmatpush.bf16.msra.mxu0 %v2650
        %3591 = vmatmul.bf16.gmra.mxu0 %v3455
        %v3592 = vpop.f32.mrf.mxu0
        %v3593 = vadd.f32 %v1411, %v3592
        %v3594 = vpop.f32.mrf.mxu0
        %v3595 = vadd.f32 %v1416, %v3594
        %3596 = vdwg.mxu0
        %3597 = vmatpush.bf16.msra.mxu0 0
        %3598 = vmatpush.bf16.msra.mxu0 %v2999
        %3599 = vmatpush.bf16.msra.mxu0 %v2941
        %3600 = vmatpush.bf16.msra.mxu0 %v2883
        %3601 = vmatpush.bf16.msra.mxu0 %v2825
        %3602 = vmatpush.bf16.msra.mxu0 %v2767
        %3603 = vmatpush.bf16.msra.mxu0 %v2709
        %3604 = vmatpush.bf16.msra.mxu0 %v2651
        %3605 = vmatmul.bf16.gmra.mxu0 %v3455
        %v3606 = vpop.f32.mrf.mxu0
        %v3607 = vadd.f32 %v1411, %v3606
        %v3608 = vpop.f32.mrf.mxu0
        %v3609 = vadd.f32 %v1416, %v3608
        %3610 = vdwg.mxu0
        %3611 = vmatpush.bf16.msra.mxu0 0
        %3612 = vmatpush.bf16.msra.mxu0 %v3000
        %3613 = vmatpush.bf16.msra.mxu0 %v2942
        %3614 = vmatpush.bf16.msra.mxu0 %v2884
        %3615 = vmatpush.bf16.msra.mxu0 %v2826
        %3616 = vmatpush.bf16.msra.mxu0 %v2768
        %3617 = vmatpush.bf16.msra.mxu0 %v2710
        %3618 = vmatpush.bf16.msra.mxu0 %v2652
        %3619 = vmatmul.bf16.gmra.mxu0 %v3455
        %v3620 = vpop.f32.mrf.mxu0
        %v3621 = vadd.f32 %v1411, %v3620
        %v3622 = vpop.f32.mrf.mxu0
        %v3623 = vadd.f32 %v1416, %v3622
        %3624 = vdwg.mxu0
        %3625 = vmatpush.bf16.msra.mxu0 0
        %3626 = vmatpush.bf16.msra.mxu0 %v3001
        %3627 = vmatpush.bf16.msra.mxu0 %v2943
        %3628 = vmatpush.bf16.msra.mxu0 %v2885
        %3629 = vmatpush.bf16.msra.mxu0 %v2827
        %3630 = vmatpush.bf16.msra.mxu0 %v2769
        %3631 = vmatpush.bf16.msra.mxu0 %v2711
        %3632 = vmatpush.bf16.msra.mxu0 %v2653
        %3633 = vmatmul.bf16.gmra.mxu0 %v3455
        %v3634 = vpop.f32.mrf.mxu0
        %v3635 = vadd.f32 %v1411, %v3634
        %v3636 = vpop.f32.mrf.mxu0
        %v3637 = vadd.f32 %v1416, %v3636
        %3638 = vdwg.mxu0
        %3639 = vmatpush.bf16.msra.mxu0 0
        %3640 = vmatpush.bf16.msra.mxu0 %v3002
        %3641 = vmatpush.bf16.msra.mxu0 %v2944
        %3642 = vmatpush.bf16.msra.mxu0 %v2886
        %3643 = vmatpush.bf16.msra.mxu0 %v2828
        %3644 = vmatpush.bf16.msra.mxu0 %v2770
        %3645 = vmatpush.bf16.msra.mxu0 %v2712
        %3646 = vmatpush.bf16.msra.mxu0 %v2654
        %3647 = vmatmul.bf16.gmra.mxu0 %v3455
        %v3648 = vpop.f32.mrf.mxu0
        %v3649 = vadd.f32 %v1411, %v3648
        %v3650 = vpop.f32.mrf.mxu0
        %v3651 = vadd.f32 %v1416, %v3650
        %3652 = vdwg.mxu0
        %3653 = vmatpush.bf16.msra.mxu0 0
        %3654 = vmatpush.bf16.msra.mxu0 %v3003
        %3655 = vmatpush.bf16.msra.mxu0 %v2945
        %3656 = vmatpush.bf16.msra.mxu0 %v2887
        %3657 = vmatpush.bf16.msra.mxu0 %v2829
        %3658 = vmatpush.bf16.msra.mxu0 %v2771
        %3659 = vmatpush.bf16.msra.mxu0 %v2713
        %3660 = vmatpush.bf16.msra.mxu0 %v2655
        %3661 = vmatmul.bf16.gmra.mxu0 %v3455
        %v3662 = vpop.f32.mrf.mxu0
        %v3663 = vadd.f32 %v1411, %v3662
        %v3664 = vpop.f32.mrf.mxu0
        %v3665 = vadd.f32 %v1416, %v3664
        %3666 = vdwg.mxu0
        %3667 = vmatpush.bf16.msra.mxu0 0
        %3668 = vmatpush.bf16.msra.mxu0 %v3004
        %3669 = vmatpush.bf16.msra.mxu0 %v2946
        %3670 = vmatpush.bf16.msra.mxu0 %v2888
        %3671 = vmatpush.bf16.msra.mxu0 %v2830
        %3672 = vmatpush.bf16.msra.mxu0 %v2772
        %3673 = vmatpush.bf16.msra.mxu0 %v2714
        %3674 = vmatpush.bf16.msra.mxu0 %v2656
        %3675 = vmatmul.bf16.gmra.mxu0 %v3455
        %v3676 = vpop.f32.mrf.mxu0
        %v3677 = vadd.f32 %v1411, %v3676
        %v3678 = vpop.f32.mrf.mxu0
        %v3679 = vadd.f32 %v1416, %v3678
        %3680 = vdwg.mxu0
        %3681 = vmatpush.bf16.msra.mxu0 0
        %3682 = vmatpush.bf16.msra.mxu0 %v3005
        %3683 = vmatpush.bf16.msra.mxu0 %v2947
        %3684 = vmatpush.bf16.msra.mxu0 %v2889
        %3685 = vmatpush.bf16.msra.mxu0 %v2831
        %3686 = vmatpush.bf16.msra.mxu0 %v2773
        %3687 = vmatpush.bf16.msra.mxu0 %v2715
        %3688 = vmatpush.bf16.msra.mxu0 %v2657
        %3689 = vmatmul.bf16.gmra.mxu0 %v3455
        %v3690 = vpop.f32.mrf.mxu0
        %v3691 = vadd.f32 %v1411, %v3690
        %v3692 = vpop.f32.mrf.mxu0
        %v3693 = vadd.f32 %v1416, %v3692
        %3694 = vdwg.mxu0
        %3695 = vmatpush.bf16.msra.mxu0 0
        %3696 = vmatpush.bf16.msra.mxu0 %v3006
        %3697 = vmatpush.bf16.msra.mxu0 %v2948
        %3698 = vmatpush.bf16.msra.mxu0 %v2890
        %3699 = vmatpush.bf16.msra.mxu0 %v2832
        %3700 = vmatpush.bf16.msra.mxu0 %v2774
        %3701 = vmatpush.bf16.msra.mxu0 %v2716
        %3702 = vmatpush.bf16.msra.mxu0 %v2658
        %3703 = vmatmul.bf16.gmra.mxu0 %v3455
        %v3704 = vpop.f32.mrf.mxu0
        %v3705 = vadd.f32 %v1411, %v3704
        %v3706 = vpop.f32.mrf.mxu0
        %v3707 = vadd.f32 %v1416, %v3706
        %3708 = vdwg.mxu0
        %3709 = vmatpush.bf16.msra.mxu0 0
        %3710 = vmatpush.bf16.msra.mxu0 %v3007
        %3711 = vmatpush.bf16.msra.mxu0 %v2949
        %3712 = vmatpush.bf16.msra.mxu0 %v2891
        %3713 = vmatpush.bf16.msra.mxu0 %v2833
        %3714 = vmatpush.bf16.msra.mxu0 %v2775
        %3715 = vmatpush.bf16.msra.mxu0 %v2717
        %3716 = vmatpush.bf16.msra.mxu0 %v2659
        %3717 = vmatmul.bf16.gmra.mxu0 %v3455
        %v3718 = vpop.f32.mrf.mxu0
        %v3719 = vadd.f32 %v1411, %v3718
        %v3720 = vpop.f32.mrf.mxu0
        %v3721 = vadd.f32 %v1416, %v3720
        %3722 = vdwg.mxu0
        %3723 = vmatpush.bf16.msra.mxu0 0
        %3724 = vmatpush.bf16.msra.mxu0 %v3008
        %3725 = vmatpush.bf16.msra.mxu0 %v2950
        %3726 = vmatpush.bf16.msra.mxu0 %v2892
        %3727 = vmatpush.bf16.msra.mxu0 %v2834
        %3728 = vmatpush.bf16.msra.mxu0 %v2776
        %3729 = vmatpush.bf16.msra.mxu0 %v2718
        %3730 = vmatpush.bf16.msra.mxu0 %v2660
        %3731 = vmatmul.bf16.gmra.mxu0 %v3455
        %v3732 = vpop.f32.mrf.mxu0
        %v3733 = vadd.f32 %v1411, %v3732
        %v3734 = vpop.f32.mrf.mxu0
        %v3735 = vadd.f32 %v1416, %v3734
        %3736 = vdwg.mxu0
        %3737 = vmatpush.bf16.msra.mxu0 0
        %3738 = vmatpush.bf16.msra.mxu0 %v3009
        %3739 = vmatpush.bf16.msra.mxu0 %v2951
        %3740 = vmatpush.bf16.msra.mxu0 %v2893
        %3741 = vmatpush.bf16.msra.mxu0 %v2835
        %3742 = vmatpush.bf16.msra.mxu0 %v2777
        %3743 = vmatpush.bf16.msra.mxu0 %v2719
        %3744 = vmatpush.bf16.msra.mxu0 %v2661
        %3745 = vmatmul.bf16.gmra.mxu0 %v3455
        %v3746 = vpop.f32.mrf.mxu0
        %v3747 = vadd.f32 %v1411, %v3746
        %v3748 = vpop.f32.mrf.mxu0
        %v3749 = vadd.f32 %v1416, %v3748
        %3750 = vdwg.mxu0
        %3751 = vmatpush.bf16.msra.mxu0 0
        %3752 = vmatpush.bf16.msra.mxu0 %v3010
        %3753 = vmatpush.bf16.msra.mxu0 %v2952
        %3754 = vmatpush.bf16.msra.mxu0 %v2894
        %3755 = vmatpush.bf16.msra.mxu0 %v2836
        %3756 = vmatpush.bf16.msra.mxu0 %v2778
        %3757 = vmatpush.bf16.msra.mxu0 %v2720
        %3758 = vmatpush.bf16.msra.mxu0 %v2662
        %3759 = vmatmul.bf16.gmra.mxu0 %v3455
        %v3760 = vpop.f32.mrf.mxu0
        %v3761 = vadd.f32 %v1411, %v3760
        %v3762 = vpop.f32.mrf.mxu0
        %v3763 = vadd.f32 %v1416, %v3762
        %3764 = vdwg.mxu0
        %3765 = vmatpush.bf16.msra.mxu0 0
        %3766 = vmatpush.bf16.msra.mxu0 %v3011
        %3767 = vmatpush.bf16.msra.mxu0 %v2953
        %3768 = vmatpush.bf16.msra.mxu0 %v2895
        %3769 = vmatpush.bf16.msra.mxu0 %v2837
        %3770 = vmatpush.bf16.msra.mxu0 %v2779
        %3771 = vmatpush.bf16.msra.mxu0 %v2721
        %3772 = vmatpush.bf16.msra.mxu0 %v2663
        %3773 = vmatmul.bf16.gmra.mxu0 %v3455
        %v3774 = vpop.f32.mrf.mxu0
        %v3775 = vadd.f32 %v1411, %v3774
        %v3776 = vpop.f32.mrf.mxu0
        %v3777 = vadd.f32 %v1416, %v3776
        %3778 = vdwg.mxu0
        %3779 = vmatpush.bf16.msra.mxu0 0
        %3780 = vmatpush.bf16.msra.mxu0 %v3012
        %3781 = vmatpush.bf16.msra.mxu0 %v2954
        %3782 = vmatpush.bf16.msra.mxu0 %v2896
        %3783 = vmatpush.bf16.msra.mxu0 %v2838
        %3784 = vmatpush.bf16.msra.mxu0 %v2780
        %3785 = vmatpush.bf16.msra.mxu0 %v2722
        %3786 = vmatpush.bf16.msra.mxu0 %v2664
        %3787 = vmatmul.bf16.gmra.mxu0 %v3455
        %v3788 = vpop.f32.mrf.mxu0
        %v3789 = vadd.f32 %v1411, %v3788
        %v3790 = vpop.f32.mrf.mxu0
        %v3791 = vadd.f32 %v1416, %v3790
        %3792 = vdwg.mxu0
        %3793 = vmatpush.bf16.msra.mxu0 0
        %3794 = vmatpush.bf16.msra.mxu0 %v3013
        %3795 = vmatpush.bf16.msra.mxu0 %v2955
        %3796 = vmatpush.bf16.msra.mxu0 %v2897
        %3797 = vmatpush.bf16.msra.mxu0 %v2839
        %3798 = vmatpush.bf16.msra.mxu0 %v2781
        %3799 = vmatpush.bf16.msra.mxu0 %v2723
        %3800 = vmatpush.bf16.msra.mxu0 %v2665
        %3801 = vmatmul.bf16.gmra.mxu0 %v3455
        %v3802 = vpop.f32.mrf.mxu0
        %v3803 = vadd.f32 %v1411, %v3802
        %v3804 = vpop.f32.mrf.mxu0
        %v3805 = vadd.f32 %v1416, %v3804
        %3806 = vdwg.mxu0
        %3807 = vmatpush.bf16.msra.mxu0 0
        %3808 = vmatpush.bf16.msra.mxu0 %v3014
        %3809 = vmatpush.bf16.msra.mxu0 %v2956
        %3810 = vmatpush.bf16.msra.mxu0 %v2898
        %3811 = vmatpush.bf16.msra.mxu0 %v2840
        %3812 = vmatpush.bf16.msra.mxu0 %v2782
        %3813 = vmatpush.bf16.msra.mxu0 %v2724
        %3814 = vmatpush.bf16.msra.mxu0 %v2666
        %3815 = vmatmul.bf16.gmra.mxu0 %v3455
        %v3816 = vpop.f32.mrf.mxu0
        %v3817 = vadd.f32 %v1411, %v3816
        %v3818 = vpop.f32.mrf.mxu0
        %v3819 = vadd.f32 %v1416, %v3818
        %3820 = vdwg.mxu0
        %3821 = vmatpush.bf16.msra.mxu0 0
        %3822 = vmatpush.bf16.msra.mxu0 %v3015
        %3823 = vmatpush.bf16.msra.mxu0 %v2957
        %3824 = vmatpush.bf16.msra.mxu0 %v2899
        %3825 = vmatpush.bf16.msra.mxu0 %v2841
        %3826 = vmatpush.bf16.msra.mxu0 %v2783
        %3827 = vmatpush.bf16.msra.mxu0 %v2725
        %3828 = vmatpush.bf16.msra.mxu0 %v2667
        %3829 = vmatmul.bf16.gmra.mxu0 %v3455
        %v3830 = vpop.f32.mrf.mxu0
        %v3831 = vadd.f32 %v1411, %v3830
        %v3832 = vpop.f32.mrf.mxu0
        %v3833 = vadd.f32 %v1416, %v3832
        %3834 = vdwg.mxu0
        %3835 = vmatpush.bf16.msra.mxu0 0
        %3836 = vmatpush.bf16.msra.mxu0 %v3016
        %3837 = vmatpush.bf16.msra.mxu0 %v2958
        %3838 = vmatpush.bf16.msra.mxu0 %v2900
        %3839 = vmatpush.bf16.msra.mxu0 %v2842
        %3840 = vmatpush.bf16.msra.mxu0 %v2784
        %3841 = vmatpush.bf16.msra.mxu0 %v2726
        %3842 = vmatpush.bf16.msra.mxu0 %v2668
        %3843 = vmatmul.bf16.gmra.mxu0 %v3455
        %v3844 = vpop.f32.mrf.mxu0
        %v3845 = vadd.f32 %v1411, %v3844
        %v3846 = vpop.f32.mrf.mxu0
        %v3847 = vadd.f32 %v1416, %v3846
        %3848 = vdwg.mxu0
        %3849 = vmatpush.bf16.msra.mxu0 0
        %3850 = vmatpush.bf16.msra.mxu0 %v3017
        %3851 = vmatpush.bf16.msra.mxu0 %v2959
        %3852 = vmatpush.bf16.msra.mxu0 %v2901
        %3853 = vmatpush.bf16.msra.mxu0 %v2843
        %3854 = vmatpush.bf16.msra.mxu0 %v2785
        %3855 = vmatpush.bf16.msra.mxu0 %v2727
        %3856 = vmatpush.bf16.msra.mxu0 %v2669
        %3857 = vmatmul.bf16.gmra.mxu0 %v3455
        %v3858 = vpop.f32.mrf.mxu0
        %v3859 = vadd.f32 %v1411, %v3858
        %v3860 = vpop.f32.mrf.mxu0
        %v3861 = vadd.f32 %v1416, %v3860
        %3862 = vdwg.mxu0
        %3863 = vmatpush.bf16.msra.mxu0 0
        %3864 = vmatpush.bf16.msra.mxu0 %v3018
        %3865 = vmatpush.bf16.msra.mxu0 %v2960
        %3866 = vmatpush.bf16.msra.mxu0 %v2902
        %3867 = vmatpush.bf16.msra.mxu0 %v2844
        %3868 = vmatpush.bf16.msra.mxu0 %v2786
        %3869 = vmatpush.bf16.msra.mxu0 %v2728
        %3870 = vmatpush.bf16.msra.mxu0 %v2670
        %3871 = vmatmul.bf16.gmra.mxu0 %v3455
        %v3872 = vpop.f32.mrf.mxu0
        %v3873 = vadd.f32 %v1411, %v3872
        %v3874 = vpop.f32.mrf.mxu0
        %v3875 = vadd.f32 %v1416, %v3874
        %3876 = vdwg.mxu0
        %3877 = vmatpush.bf16.msra.mxu0 0
        %3878 = vmatpush.bf16.msra.mxu0 %v3019
        %3879 = vmatpush.bf16.msra.mxu0 %v2961
        %3880 = vmatpush.bf16.msra.mxu0 %v2903
        %3881 = vmatpush.bf16.msra.mxu0 %v2845
        %3882 = vmatpush.bf16.msra.mxu0 %v2787
        %3883 = vmatpush.bf16.msra.mxu0 %v2729
        %3884 = vmatpush.bf16.msra.mxu0 %v2671
        %3885 = vmatmul.bf16.gmra.mxu0 %v3455
        %v3886 = vpop.f32.mrf.mxu0
        %v3887 = vadd.f32 %v1411, %v3886
        %v3888 = vpop.f32.mrf.mxu0
        %v3889 = vadd.f32 %v1416, %v3888
        %3890 = vdwg.mxu0
        %3891 = vmatpush.bf16.msra.mxu0 0
        %3892 = vmatpush.bf16.msra.mxu0 %v3020
        %3893 = vmatpush.bf16.msra.mxu0 %v2962
        %3894 = vmatpush.bf16.msra.mxu0 %v2904
        %3895 = vmatpush.bf16.msra.mxu0 %v2846
        %3896 = vmatpush.bf16.msra.mxu0 %v2788
        %3897 = vmatpush.bf16.msra.mxu0 %v2730
        %3898 = vmatpush.bf16.msra.mxu0 %v2672
        %3899 = vmatmul.bf16.gmra.mxu0 %v3455
        %v3900 = vpop.f32.mrf.mxu0
        %v3901 = vadd.f32 %v1411, %v3900
        %v3902 = vpop.f32.mrf.mxu0
        %v3903 = vadd.f32 %v1416, %v3902
        %3904 = vdwg.mxu0
        %3905 = vmatpush.bf16.msra.mxu0 0
        %3906 = vmatpush.bf16.msra.mxu0 %v3021
        %3907 = vmatpush.bf16.msra.mxu0 %v2963
        %3908 = vmatpush.bf16.msra.mxu0 %v2905
        %3909 = vmatpush.bf16.msra.mxu0 %v2847
        %3910 = vmatpush.bf16.msra.mxu0 %v2789
        %3911 = vmatpush.bf16.msra.mxu0 %v2731
        %3912 = vmatpush.bf16.msra.mxu0 %v2673
        %3913 = vmatmul.bf16.gmra.mxu0 %v3455
        %v3914 = vpop.f32.mrf.mxu0
        %v3915 = vadd.f32 %v1411, %v3914
        %v3916 = vpop.f32.mrf.mxu0
        %v3917 = vadd.f32 %v1416, %v3916
        %3918 = vdwg.mxu0
        %3919 = vmatpush.bf16.msra.mxu0 0
        %3920 = vmatpush.bf16.msra.mxu0 %v3022
        %3921 = vmatpush.bf16.msra.mxu0 %v2964
        %3922 = vmatpush.bf16.msra.mxu0 %v2906
        %3923 = vmatpush.bf16.msra.mxu0 %v2848
        %3924 = vmatpush.bf16.msra.mxu0 %v2790
        %3925 = vmatpush.bf16.msra.mxu0 %v2732
        %3926 = vmatpush.bf16.msra.mxu0 %v2674
        %3927 = vmatmul.bf16.gmra.mxu0 %v3455
        %v3928 = vpop.f32.mrf.mxu0
        %v3929 = vadd.f32 %v1411, %v3928
        %v3930 = vpop.f32.mrf.mxu0
        %v3931 = vadd.f32 %v1416, %v3930
        %3932 = vdwg.mxu0
        %3933 = vmatpush.bf16.msra.mxu0 0
        %3934 = vmatpush.bf16.msra.mxu0 %v3023
        %3935 = vmatpush.bf16.msra.mxu0 %v2965
        %3936 = vmatpush.bf16.msra.mxu0 %v2907
        %3937 = vmatpush.bf16.msra.mxu0 %v2849
        %3938 = vmatpush.bf16.msra.mxu0 %v2791
        %3939 = vmatpush.bf16.msra.mxu0 %v2733
        %3940 = vmatpush.bf16.msra.mxu0 %v2675
        %3941 = vmatmul.bf16.gmra.mxu0 %v3455
        %v3942 = vpop.f32.mrf.mxu0
        %v3943 = vadd.f32 %v1411, %v3942
        %v3944 = vpop.f32.mrf.mxu0
        %v3945 = vadd.f32 %v1416, %v3944
        %3946 = vdwg.mxu0
        %3947 = vmatpush.bf16.msra.mxu0 0
        %3948 = vmatpush.bf16.msra.mxu0 %v3024
        %3949 = vmatpush.bf16.msra.mxu0 %v2966
        %3950 = vmatpush.bf16.msra.mxu0 %v2908
        %3951 = vmatpush.bf16.msra.mxu0 %v2850
        %3952 = vmatpush.bf16.msra.mxu0 %v2792
        %3953 = vmatpush.bf16.msra.mxu0 %v2734
        %3954 = vmatpush.bf16.msra.mxu0 %v2676
        %3955 = vmatmul.bf16.gmra.mxu0 %v3455
        %v3956 = vpop.f32.mrf.mxu0
        %v3957 = vadd.f32 %v1411, %v3956
        %v3958 = vpop.f32.mrf.mxu0
        %v3959 = vadd.f32 %v1416, %v3958
        %3960 = vdwg.mxu0
        %3961 = vmatpush.bf16.msra.mxu0 0
        %3962 = vmatpush.bf16.msra.mxu0 %v3025
        %3963 = vmatpush.bf16.msra.mxu0 %v2967
        %3964 = vmatpush.bf16.msra.mxu0 %v2909
        %3965 = vmatpush.bf16.msra.mxu0 %v2851
        %3966 = vmatpush.bf16.msra.mxu0 %v2793
        %3967 = vmatpush.bf16.msra.mxu0 %v2735
        %3968 = vmatpush.bf16.msra.mxu0 %v2677
        %3969 = vmatmul.bf16.gmra.mxu0 %v3455
        %v3970 = vpop.f32.mrf.mxu0
        %v3971 = vadd.f32 %v1411, %v3970
        %v3972 = vpop.f32.mrf.mxu0
        %v3973 = vadd.f32 %v1416, %v3972
        %3974 = vdwg.mxu0
        %3975 = vmatpush.bf16.msra.mxu0 0
        %3976 = vmatpush.bf16.msra.mxu0 %v3026
        %3977 = vmatpush.bf16.msra.mxu0 %v2968
        %3978 = vmatpush.bf16.msra.mxu0 %v2910
        %3979 = vmatpush.bf16.msra.mxu0 %v2852
        %3980 = vmatpush.bf16.msra.mxu0 %v2794
        %3981 = vmatpush.bf16.msra.mxu0 %v2736
        %3982 = vmatpush.bf16.msra.mxu0 %v2678
        %3983 = vmatmul.bf16.gmra.mxu0 %v3455
        %v3984 = vpop.f32.mrf.mxu0
        %v3985 = vadd.f32 %v1411, %v3984
        %v3986 = vpop.f32.mrf.mxu0
        %v3987 = vadd.f32 %v1416, %v3986
        %3988 = vdwg.mxu0
        %3989 = vmatpush.bf16.msra.mxu0 0
        %3990 = vmatpush.bf16.msra.mxu0 %v3027
        %3991 = vmatpush.bf16.msra.mxu0 %v2969
        %3992 = vmatpush.bf16.msra.mxu0 %v2911
        %3993 = vmatpush.bf16.msra.mxu0 %v2853
        %3994 = vmatpush.bf16.msra.mxu0 %v2795
        %3995 = vmatpush.bf16.msra.mxu0 %v2737
        %3996 = vmatpush.bf16.msra.mxu0 %v2679
        %3997 = vmatmul.bf16.gmra.mxu0 %v3455
        %v3998 = vpop.f32.mrf.mxu0
        %v3999 = vadd.f32 %v1411, %v3998
        %v4000 = vpop.f32.mrf.mxu0
        %v4001 = vadd.f32 %v1416, %v4000
        %4002 = vdwg.mxu0
        %4003 = vmatpush.bf16.msra.mxu0 0
        %4004 = vmatpush.bf16.msra.mxu0 %v3028
        %4005 = vmatpush.bf16.msra.mxu0 %v2970
        %4006 = vmatpush.bf16.msra.mxu0 %v2912
        %4007 = vmatpush.bf16.msra.mxu0 %v2854
        %4008 = vmatpush.bf16.msra.mxu0 %v2796
        %4009 = vmatpush.bf16.msra.mxu0 %v2738
        %4010 = vmatpush.bf16.msra.mxu0 %v2680
        %4011 = vmatmul.bf16.gmra.mxu0 %v3455
        %v4012 = vpop.f32.mrf.mxu0
        %v4013 = vadd.f32 %v1411, %v4012
        %v4014 = vpop.f32.mrf.mxu0
        %v4015 = vadd.f32 %v1416, %v4014
        %4016 = vdwg.mxu0
        %4017 = vmatpush.bf16.msra.mxu0 0
        %4018 = vmatpush.bf16.msra.mxu0 %v3029
        %4019 = vmatpush.bf16.msra.mxu0 %v2971
        %4020 = vmatpush.bf16.msra.mxu0 %v2913
        %4021 = vmatpush.bf16.msra.mxu0 %v2855
        %4022 = vmatpush.bf16.msra.mxu0 %v2797
        %4023 = vmatpush.bf16.msra.mxu0 %v2739
        %4024 = vmatpush.bf16.msra.mxu0 %v2681
        %4025 = vmatmul.bf16.gmra.mxu0 %v3455
        %v4026 = vpop.f32.mrf.mxu0
        %v4027 = vadd.f32 %v1411, %v4026
        %v4028 = vpop.f32.mrf.mxu0
        %v4029 = vadd.f32 %v1416, %v4028
        %4030 = vdwg.mxu0
        %4031 = vmatpush.bf16.msra.mxu0 0
        %4032 = vmatpush.bf16.msra.mxu0 %v3030
        %4033 = vmatpush.bf16.msra.mxu0 %v2972
        %4034 = vmatpush.bf16.msra.mxu0 %v2914
        %4035 = vmatpush.bf16.msra.mxu0 %v2856
        %4036 = vmatpush.bf16.msra.mxu0 %v2798
        %4037 = vmatpush.bf16.msra.mxu0 %v2740
        %4038 = vmatpush.bf16.msra.mxu0 %v2682
        %4039 = vmatmul.bf16.gmra.mxu0 %v3455
        %v4040 = vpop.f32.mrf.mxu0
        %v4041 = vadd.f32 %v1411, %v4040
        %v4042 = vpop.f32.mrf.mxu0
        %v4043 = vadd.f32 %v1416, %v4042
        %4044 = vdwg.mxu0
        %4045 = vmatpush.bf16.msra.mxu0 0
        %4046 = vmatpush.bf16.msra.mxu0 %v3031
        %4047 = vmatpush.bf16.msra.mxu0 %v2973
        %4048 = vmatpush.bf16.msra.mxu0 %v2915
        %4049 = vmatpush.bf16.msra.mxu0 %v2857
        %4050 = vmatpush.bf16.msra.mxu0 %v2799
        %4051 = vmatpush.bf16.msra.mxu0 %v2741
        %4052 = vmatpush.bf16.msra.mxu0 %v2683
        %4053 = vmatmul.bf16.gmra.mxu0 %v3455
        %v4054 = vpop.f32.mrf.mxu0
        %v4055 = vadd.f32 %v1411, %v4054
        %v4056 = vpop.f32.mrf.mxu0
        %v4057 = vadd.f32 %v1416, %v4056
        %4058 = vdwg.mxu0
        %4059 = vmatpush.bf16.msra.mxu0 0
        %4060 = vmatpush.bf16.msra.mxu0 %v3032
        %4061 = vmatpush.bf16.msra.mxu0 %v2974
        %4062 = vmatpush.bf16.msra.mxu0 %v2916
        %4063 = vmatpush.bf16.msra.mxu0 %v2858
        %4064 = vmatpush.bf16.msra.mxu0 %v2800
        %4065 = vmatpush.bf16.msra.mxu0 %v2742
        %4066 = vmatpush.bf16.msra.mxu0 %v2684
        %4067 = vmatmul.bf16.gmra.mxu0 %v3455
        %v4068 = vpop.f32.mrf.mxu0
        %v4069 = vadd.f32 %v1411, %v4068
        %v4070 = vpop.f32.mrf.mxu0
        %v4071 = vadd.f32 %v1416, %v4070
        %4072 = vdwg.mxu0
        %4073 = vmatpush.bf16.msra.mxu0 0
        %4074 = vmatpush.bf16.msra.mxu0 %v3033
        %4075 = vmatpush.bf16.msra.mxu0 %v2975
        %4076 = vmatpush.bf16.msra.mxu0 %v2917
        %4077 = vmatpush.bf16.msra.mxu0 %v2859
        %4078 = vmatpush.bf16.msra.mxu0 %v2801
        %4079 = vmatpush.bf16.msra.mxu0 %v2743
        %4080 = vmatpush.bf16.msra.mxu0 %v2685
        %4081 = vmatmul.bf16.gmra.mxu0 %v3455
        %v4082 = vpop.f32.mrf.mxu0
        %v4083 = vadd.f32 %v1411, %v4082
        %v4084 = vpop.f32.mrf.mxu0
        %v4085 = vadd.f32 %v1416, %v4084
        %4086 = vdwg.mxu0
        %4087 = vmatpush.bf16.msra.mxu0 0
        %4088 = vmatpush.bf16.msra.mxu0 %v3034
        %4089 = vmatpush.bf16.msra.mxu0 %v2976
        %4090 = vmatpush.bf16.msra.mxu0 %v2918
        %4091 = vmatpush.bf16.msra.mxu0 %v2860
        %4092 = vmatpush.bf16.msra.mxu0 %v2802
        %4093 = vmatpush.bf16.msra.mxu0 %v2744
        %4094 = vmatpush.bf16.msra.mxu0 %v2686
        %4095 = vmatmul.bf16.gmra.mxu0 %v3455
        %v4096 = vpop.f32.mrf.mxu0
        %v4097 = vadd.f32 %v1411, %v4096
        %v4098 = vpop.f32.mrf.mxu0
        %v4099 = vadd.f32 %v1416, %v4098
        %4100 = vdwg.mxu0
        %4101 = vmatpush.bf16.msra.mxu0 0
        %4102 = vmatpush.bf16.msra.mxu0 %v3035
        %4103 = vmatpush.bf16.msra.mxu0 %v2977
        %4104 = vmatpush.bf16.msra.mxu0 %v2919
        %4105 = vmatpush.bf16.msra.mxu0 %v2861
        %4106 = vmatpush.bf16.msra.mxu0 %v2803
        %4107 = vmatpush.bf16.msra.mxu0 %v2745
        %4108 = vmatpush.bf16.msra.mxu0 %v2687
        %4109 = vmatmul.bf16.gmra.mxu0 %v3455
        %v4110 = vpop.f32.mrf.mxu0
        %v4111 = vadd.f32 %v1411, %v4110
        %v4112 = vpop.f32.mrf.mxu0
        %v4113 = vadd.f32 %v1416, %v4112
        %4114 = vdwg.mxu0
        %4115 = vmatpush.bf16.msra.mxu0 0
        %4116 = vmatpush.bf16.msra.mxu0 %v3036
        %4117 = vmatpush.bf16.msra.mxu0 %v2978
        %4118 = vmatpush.bf16.msra.mxu0 %v2920
        %4119 = vmatpush.bf16.msra.mxu0 %v2862
        %4120 = vmatpush.bf16.msra.mxu0 %v2804
        %4121 = vmatpush.bf16.msra.mxu0 %v2746
        %4122 = vmatpush.bf16.msra.mxu0 %v2688
        %4123 = vmatmul.bf16.gmra.mxu0 %v3455
        %v4124 = vpop.f32.mrf.mxu0
        %v4125 = vadd.f32 %v1411, %v4124
        %v4126 = vpop.f32.mrf.mxu0
        %v4127 = vadd.f32 %v1416, %v4126
        %4128 = vdwg.mxu0
        %4129 = vmatpush.bf16.msra.mxu0 0
        %4130 = vmatpush.bf16.msra.mxu0 %v3037
        %4131 = vmatpush.bf16.msra.mxu0 %v2979
        %4132 = vmatpush.bf16.msra.mxu0 %v2921
        %4133 = vmatpush.bf16.msra.mxu0 %v2863
        %4134 = vmatpush.bf16.msra.mxu0 %v2805
        %4135 = vmatpush.bf16.msra.mxu0 %v2747
        %4136 = vmatpush.bf16.msra.mxu0 %v2689
        %4137 = vmatmul.bf16.gmra.mxu0 %v3455
        %v4138 = vpop.f32.mrf.mxu0
        %v4139 = vadd.f32 %v1411, %v4138
        %v4140 = vpop.f32.mrf.mxu0
        %v4141 = vadd.f32 %v1416, %v4140
        %4142 = vdwg.mxu0
        %4143 = vmatpush.bf16.msra.mxu0 0
        %4144 = vmatpush.bf16.msra.mxu0 %v3038
        %4145 = vmatpush.bf16.msra.mxu0 %v2980
        %4146 = vmatpush.bf16.msra.mxu0 %v2922
        %4147 = vmatpush.bf16.msra.mxu0 %v2864
        %4148 = vmatpush.bf16.msra.mxu0 %v2806
        %4149 = vmatpush.bf16.msra.mxu0 %v2748
        %4150 = vmatpush.bf16.msra.mxu0 %v2690
        %4151 = vmatmul.bf16.gmra.mxu0 %v3455
        %v4152 = vpop.f32.mrf.mxu0
        %v4153 = vadd.f32 %v1411, %v4152
        %v4154 = vpop.f32.mrf.mxu0
        %v4155 = vadd.f32 %v1416, %v4154
        %4156 = vdwg.mxu0
        %4157 = vmatpush.bf16.msra.mxu0 0
        %4158 = vmatpush.bf16.msra.mxu0 %v3039
        %4159 = vmatpush.bf16.msra.mxu0 %v2981
        %4160 = vmatpush.bf16.msra.mxu0 %v2923
        %4161 = vmatpush.bf16.msra.mxu0 %v2865
        %4162 = vmatpush.bf16.msra.mxu0 %v2807
        %4163 = vmatpush.bf16.msra.mxu0 %v2749
        %4164 = vmatpush.bf16.msra.mxu0 %v2691
        %4165 = vmatmul.bf16.gmra.mxu0 %v3455
        %v4166 = vpop.f32.mrf.mxu0
        %v4167 = vadd.f32 %v1411, %v4166
        %v4168 = vpop.f32.mrf.mxu0
        %v4169 = vadd.f32 %v1416, %v4168
        %4170 = vdwg.mxu0
        %4171 = vmatpush.bf16.msra.mxu0 0
        %4172 = vmatpush.bf16.msra.mxu0 %v3040
        %4173 = vmatpush.bf16.msra.mxu0 %v2982
        %4174 = vmatpush.bf16.msra.mxu0 %v2924
        %4175 = vmatpush.bf16.msra.mxu0 %v2866
        %4176 = vmatpush.bf16.msra.mxu0 %v2808
        %4177 = vmatpush.bf16.msra.mxu0 %v2750
        %4178 = vmatpush.bf16.msra.mxu0 %v2692
        %4179 = vmatmul.bf16.gmra.mxu0 %v3455
        %v4180 = vpop.f32.mrf.mxu0
        %v4181 = vadd.f32 %v1411, %v4180
        %v4182 = vpop.f32.mrf.mxu0
        %v4183 = vadd.f32 %v1416, %v4182
        %4184 = vdwg.mxu0
        %4185 = vmatpush.bf16.msra.mxu0 0
        %4186 = vmatpush.bf16.msra.mxu0 %v3041
        %4187 = vmatpush.bf16.msra.mxu0 %v2983
        %4188 = vmatpush.bf16.msra.mxu0 %v2925
        %4189 = vmatpush.bf16.msra.mxu0 %v2867
        %4190 = vmatpush.bf16.msra.mxu0 %v2809
        %4191 = vmatpush.bf16.msra.mxu0 %v2751
        %4192 = vmatpush.bf16.msra.mxu0 %v2693
        %4193 = vmatmul.bf16.gmra.mxu0 %v3455
        %v4194 = vpop.f32.mrf.mxu0
        %v4195 = vadd.f32 %v1411, %v4194
        %v4196 = vpop.f32.mrf.mxu0
        %v4197 = vadd.f32 %v1416, %v4196
        %4198 = vdwg.mxu0
        %4199 = vmatpush.bf16.msra.mxu0 0
        %4200 = vmatpush.bf16.msra.mxu0 %v3042
        %4201 = vmatpush.bf16.msra.mxu0 %v2984
        %4202 = vmatpush.bf16.msra.mxu0 %v2926
        %4203 = vmatpush.bf16.msra.mxu0 %v2868
        %4204 = vmatpush.bf16.msra.mxu0 %v2810
        %4205 = vmatpush.bf16.msra.mxu0 %v2752
        %4206 = vmatpush.bf16.msra.mxu0 %v2694
        %4207 = vmatmul.bf16.gmra.mxu0 %v3455
        %v4208 = vpop.f32.mrf.mxu0
        %v4209 = vadd.f32 %v1411, %v4208
        %v4210 = vpop.f32.mrf.mxu0
        %v4211 = vadd.f32 %v1416, %v4210
        %4212 = vdwg.mxu0
        %4213 = vmatpush.bf16.msra.mxu0 0
        %4214 = vmatpush.bf16.msra.mxu0 %v3043
        %4215 = vmatpush.bf16.msra.mxu0 %v2985
        %4216 = vmatpush.bf16.msra.mxu0 %v2927
        %4217 = vmatpush.bf16.msra.mxu0 %v2869
        %4218 = vmatpush.bf16.msra.mxu0 %v2811
        %4219 = vmatpush.bf16.msra.mxu0 %v2753
        %4220 = vmatpush.bf16.msra.mxu0 %v2695
        %4221 = vmatmul.bf16.gmra.mxu0 %v3455
        %v4222 = vpop.f32.mrf.mxu0
        %v4223 = vadd.f32 %v1411, %v4222
        %v4224 = vpop.f32.mrf.mxu0
        %v4225 = vadd.f32 %v1416, %v4224
        %4226 = vdwg.mxu0
        %4227 = vmatpush.bf16.msra.mxu0 0
        %4228 = vmatpush.bf16.msra.mxu0 %v3044
        %4229 = vmatpush.bf16.msra.mxu0 %v2986
        %4230 = vmatpush.bf16.msra.mxu0 %v2928
        %4231 = vmatpush.bf16.msra.mxu0 %v2870
        %4232 = vmatpush.bf16.msra.mxu0 %v2812
        %4233 = vmatpush.bf16.msra.mxu0 %v2754
        %4234 = vmatpush.bf16.msra.mxu0 %v2696
        %4235 = vmatmul.bf16.gmra.mxu0 %v3455
        %v4236 = vpop.f32.mrf.mxu0
        %v4237 = vadd.f32 %v1411, %v4236
        %v4238 = vpop.f32.mrf.mxu0
        %v4239 = vadd.f32 %v1416, %v4238
        %4240 = vdwg.mxu0
        %4241 = vmatpush.bf16.msra.mxu0 0
        %4242 = vmatpush.bf16.msra.mxu0 %v3045
        %4243 = vmatpush.bf16.msra.mxu0 %v2987
        %4244 = vmatpush.bf16.msra.mxu0 %v2929
        %4245 = vmatpush.bf16.msra.mxu0 %v2871
        %4246 = vmatpush.bf16.msra.mxu0 %v2813
        %4247 = vmatpush.bf16.msra.mxu0 %v2755
        %4248 = vmatpush.bf16.msra.mxu0 %v2697
        %4249 = vmatmul.bf16.gmra.mxu0 %v3455
        %v4250 = vpop.f32.mrf.mxu0
        %v4251 = vadd.f32 %v1411, %v4250
        %v4252 = vpop.f32.mrf.mxu0
        %v4253 = vadd.f32 %v1416, %v4252
        %4254 = vdwg.mxu0
        %4255 = vmatpush.bf16.msra.mxu0 0
        %4256 = vmatpush.bf16.msra.mxu0 %v3046
        %4257 = vmatpush.bf16.msra.mxu0 %v2988
        %4258 = vmatpush.bf16.msra.mxu0 %v2930
        %4259 = vmatpush.bf16.msra.mxu0 %v2872
        %4260 = vmatpush.bf16.msra.mxu0 %v2814
        %4261 = vmatpush.bf16.msra.mxu0 %v2756
        %4262 = vmatpush.bf16.msra.mxu0 %v2698
        %4263 = vmatmul.bf16.gmra.mxu0 %v3455
        %v4264 = vpop.f32.mrf.mxu0
        %v4265 = vadd.f32 %v1411, %v4264
        %v4266 = vpop.f32.mrf.mxu0
        %v4267 = vadd.f32 %v1416, %v4266
        %4268 = vdwg.mxu0
        %vm4269 = vcmp.ge.f32.partialorder %v3467, 0.0
        %vm4270 = vcmp.ge.f32.partialorder %v3481, 0.0
        %vm4271 = vcmp.ge.f32.partialorder %v3495, 0.0
        %vm4272 = vcmp.ge.f32.partialorder %v3509, 0.0
        %vm4273 = vcmp.ge.f32.partialorder %v3523, 0.0
        %vm4274 = vcmp.ge.f32.partialorder %v3537, 0.0
        %vm4275 = vcmp.ge.f32.partialorder %v3551, 0.0
        %vm4276 = vcmp.ge.f32.partialorder %v3565, 0.0
        %vm4277 = vcmp.ge.f32.partialorder %v3579, 0.0
        %vm4278 = vcmp.ge.f32.partialorder %v3593, 0.0
        %vm4279 = vcmp.ge.f32.partialorder %v3607, 0.0
        %vm4280 = vcmp.ge.f32.partialorder %v3621, 0.0
        %vm4281 = vcmp.ge.f32.partialorder %v3635, 0.0
        %vm4282 = vcmp.ge.f32.partialorder %v3649, 0.0
        %vm4283 = vcmp.ge.f32.partialorder %v3663, 0.0
        %vm4284 = vcmp.ge.f32.partialorder %v3677, 0.0
        %vm4285 = vcmp.ge.f32.partialorder %v3691, 0.0
        %vm4286 = vcmp.ge.f32.partialorder %v3705, 0.0
        %vm4287 = vcmp.ge.f32.partialorder %v3719, 0.0
        %vm4288 = vcmp.ge.f32.partialorder %v3733, 0.0
        %vm4289 = vcmp.ge.f32.partialorder %v3747, 0.0
        %vm4290 = vcmp.ge.f32.partialorder %v3761, 0.0
        %vm4291 = vcmp.ge.f32.partialorder %v3775, 0.0
        %vm4292 = vcmp.ge.f32.partialorder %v3789, 0.0
        %vm4293 = vcmp.ge.f32.partialorder %v3803, 0.0
        %vm4294 = vcmp.ge.f32.partialorder %v3817, 0.0
        %vm4295 = vcmp.ge.f32.partialorder %v3831, 0.0
        %vm4296 = vcmp.ge.f32.partialorder %v3845, 0.0
        %vm4297 = vcmp.ge.f32.partialorder %v3859, 0.0
        %vm4298 = vcmp.ge.f32.partialorder %v3873, 0.0
        %vm4299 = vcmp.ge.f32.partialorder %v3887, 0.0
        %vm4300 = vcmp.ge.f32.partialorder %v3901, 0.0
        %vm4301 = vcmp.ge.f32.partialorder %v3915, 0.0
        %vm4302 = vcmp.ge.f32.partialorder %v3929, 0.0
        %vm4303 = vcmp.ge.f32.partialorder %v3943, 0.0
        %vm4304 = vcmp.ge.f32.partialorder %v3957, 0.0
        %vm4305 = vcmp.ge.f32.partialorder %v3971, 0.0
        %vm4306 = vcmp.ge.f32.partialorder %v3985, 0.0
        %vm4307 = vcmp.ge.f32.partialorder %v3999, 0.0
        %vm4308 = vcmp.ge.f32.partialorder %v4013, 0.0
        %vm4309 = vcmp.ge.f32.partialorder %v4027, 0.0
        %vm4310 = vcmp.ge.f32.partialorder %v4041, 0.0
        %vm4311 = vcmp.ge.f32.partialorder %v4055, 0.0
        %vm4312 = vcmp.ge.f32.partialorder %v4069, 0.0
        %vm4313 = vcmp.ge.f32.partialorder %v4083, 0.0
        %vm4314 = vcmp.ge.f32.partialorder %v4097, 0.0
        %vm4315 = vcmp.ge.f32.partialorder %v4111, 0.0
        %vm4316 = vcmp.ge.f32.partialorder %v4125, 0.0
        %vm4317 = vcmp.ge.f32.partialorder %v4139, 0.0
        %vm4318 = vcmp.ge.f32.partialorder %v4153, 0.0
        %vm4319 = vcmp.ge.f32.partialorder %v4167, 0.0
        %vm4320 = vcmp.ge.f32.partialorder %v4181, 0.0
        %vm4321 = vcmp.ge.f32.partialorder %v4195, 0.0
        %vm4322 = vcmp.ge.f32.partialorder %v4209, 0.0
        %vm4323 = vcmp.ge.f32.partialorder %v4223, 0.0
        %vm4324 = vcmp.ge.f32.partialorder %v4237, 0.0
        %vm4325 = vcmp.ge.f32.partialorder %v4251, 0.0
        %vm4326 = vcmp.ge.f32.partialorder %v4265, 0.0
        %vm4327 = vcmp.ge.f32.partialorder %v3469, 0.0
        %vm4328 = vcmp.ge.f32.partialorder %v3483, 0.0
        %vm4329 = vcmp.ge.f32.partialorder %v3497, 0.0
        %vm4330 = vcmp.ge.f32.partialorder %v3511, 0.0
        %vm4331 = vcmp.ge.f32.partialorder %v3525, 0.0
        %vm4332 = vcmp.ge.f32.partialorder %v3539, 0.0
        %vm4333 = vcmp.ge.f32.partialorder %v3553, 0.0
        %vm4334 = vcmp.ge.f32.partialorder %v3567, 0.0
        %vm4335 = vcmp.ge.f32.partialorder %v3581, 0.0
        %vm4336 = vcmp.ge.f32.partialorder %v3595, 0.0
        %vm4337 = vcmp.ge.f32.partialorder %v3609, 0.0
        %vm4338 = vcmp.ge.f32.partialorder %v3623, 0.0
        %vm4339 = vcmp.ge.f32.partialorder %v3637, 0.0
        %vm4340 = vcmp.ge.f32.partialorder %v3651, 0.0
        %vm4341 = vcmp.ge.f32.partialorder %v3665, 0.0
        %vm4342 = vcmp.ge.f32.partialorder %v3679, 0.0
        %vm4343 = vcmp.ge.f32.partialorder %v3693, 0.0
        %vm4344 = vcmp.ge.f32.partialorder %v3707, 0.0
        %vm4345 = vcmp.ge.f32.partialorder %v3721, 0.0
        %vm4346 = vcmp.ge.f32.partialorder %v3735, 0.0
        %vm4347 = vcmp.ge.f32.partialorder %v3749, 0.0
        %vm4348 = vcmp.ge.f32.partialorder %v3763, 0.0
        %vm4349 = vcmp.ge.f32.partialorder %v3777, 0.0
        %vm4350 = vcmp.ge.f32.partialorder %v3791, 0.0
        %vm4351 = vcmp.ge.f32.partialorder %v3805, 0.0
        %vm4352 = vcmp.ge.f32.partialorder %v3819, 0.0
        %vm4353 = vcmp.ge.f32.partialorder %v3833, 0.0
        %vm4354 = vcmp.ge.f32.partialorder %v3847, 0.0
        %vm4355 = vcmp.ge.f32.partialorder %v3861, 0.0
        %vm4356 = vcmp.ge.f32.partialorder %v3875, 0.0
        %vm4357 = vcmp.ge.f32.partialorder %v3889, 0.0
        %vm4358 = vcmp.ge.f32.partialorder %v3903, 0.0
        %vm4359 = vcmp.ge.f32.partialorder %v3917, 0.0
        %vm4360 = vcmp.ge.f32.partialorder %v3931, 0.0
        %vm4361 = vcmp.ge.f32.partialorder %v3945, 0.0
        %vm4362 = vcmp.ge.f32.partialorder %v3959, 0.0
        %vm4363 = vcmp.ge.f32.partialorder %v3973, 0.0
        %vm4364 = vcmp.ge.f32.partialorder %v3987, 0.0
        %vm4365 = vcmp.ge.f32.partialorder %v4001, 0.0
        %vm4366 = vcmp.ge.f32.partialorder %v4015, 0.0
        %vm4367 = vcmp.ge.f32.partialorder %v4029, 0.0
        %vm4368 = vcmp.ge.f32.partialorder %v4043, 0.0
        %vm4369 = vcmp.ge.f32.partialorder %v4057, 0.0
        %vm4370 = vcmp.ge.f32.partialorder %v4071, 0.0
        %vm4371 = vcmp.ge.f32.partialorder %v4085, 0.0
        %vm4372 = vcmp.ge.f32.partialorder %v4099, 0.0
        %vm4373 = vcmp.ge.f32.partialorder %v4113, 0.0
        %vm4374 = vcmp.ge.f32.partialorder %v4127, 0.0
        %vm4375 = vcmp.ge.f32.partialorder %v4141, 0.0
        %vm4376 = vcmp.ge.f32.partialorder %v4155, 0.0
        %vm4377 = vcmp.ge.f32.partialorder %v4169, 0.0
        %vm4378 = vcmp.ge.f32.partialorder %v4183, 0.0
        %vm4379 = vcmp.ge.f32.partialorder %v4197, 0.0
        %vm4380 = vcmp.ge.f32.partialorder %v4211, 0.0
        %vm4381 = vcmp.ge.f32.partialorder %v4225, 0.0
        %vm4382 = vcmp.ge.f32.partialorder %v4239, 0.0
        %vm4383 = vcmp.ge.f32.partialorder %v4253, 0.0
        %vm4384 = vcmp.ge.f32.partialorder %v4267, 0.0
        %v4385 = vmul.f32 %v3467, 0.2
        %v4386 = vmul.f32 %v3481, 0.2
        %v4387 = vmul.f32 %v3495, 0.2
        %v4388 = vmul.f32 %v3509, 0.2
        %v4389 = vmul.f32 %v3523, 0.2
        %v4390 = vmul.f32 %v3537, 0.2
        %v4391 = vmul.f32 %v3551, 0.2
        %v4392 = vmul.f32 %v3565, 0.2
        %v4393 = vmul.f32 %v3579, 0.2
        %v4394 = vmul.f32 %v3593, 0.2
        %v4395 = vmul.f32 %v3607, 0.2
        %v4396 = vmul.f32 %v3621, 0.2
        %v4397 = vmul.f32 %v3635, 0.2
        %v4398 = vmul.f32 %v3649, 0.2
        %v4399 = vmul.f32 %v3663, 0.2
        %v4400 = vmul.f32 %v3677, 0.2
        %v4401 = vmul.f32 %v3691, 0.2
        %v4402 = vmul.f32 %v3705, 0.2
        %v4403 = vmul.f32 %v3719, 0.2
        %v4404 = vmul.f32 %v3733, 0.2
        %v4405 = vmul.f32 %v3747, 0.2
        %v4406 = vmul.f32 %v3761, 0.2
        %v4407 = vmul.f32 %v3775, 0.2
        %v4408 = vmul.f32 %v3789, 0.2
        %v4409 = vmul.f32 %v3803, 0.2
        %v4410 = vmul.f32 %v3817, 0.2
        %v4411 = vmul.f32 %v3831, 0.2
        %v4412 = vmul.f32 %v3845, 0.2
        %v4413 = vmul.f32 %v3859, 0.2
        %v4414 = vmul.f32 %v3873, 0.2
        %v4415 = vmul.f32 %v3887, 0.2
        %v4416 = vmul.f32 %v3901, 0.2
        %v4417 = vmul.f32 %v3915, 0.2
        %v4418 = vmul.f32 %v3929, 0.2
        %v4419 = vmul.f32 %v3943, 0.2
        %v4420 = vmul.f32 %v3957, 0.2
        %v4421 = vmul.f32 %v3971, 0.2
        %v4422 = vmul.f32 %v3985, 0.2
        %v4423 = vmul.f32 %v3999, 0.2
        %v4424 = vmul.f32 %v4013, 0.2
        %v4425 = vmul.f32 %v4027, 0.2
        %v4426 = vmul.f32 %v4041, 0.2
        %v4427 = vmul.f32 %v4055, 0.2
        %v4428 = vmul.f32 %v4069, 0.2
        %v4429 = vmul.f32 %v4083, 0.2
        %v4430 = vmul.f32 %v4097, 0.2
        %v4431 = vmul.f32 %v4111, 0.2
        %v4432 = vmul.f32 %v4125, 0.2
        %v4433 = vmul.f32 %v4139, 0.2
        %v4434 = vmul.f32 %v4153, 0.2
        %v4435 = vmul.f32 %v4167, 0.2
        %v4436 = vmul.f32 %v4181, 0.2
        %v4437 = vmul.f32 %v4195, 0.2
        %v4438 = vmul.f32 %v4209, 0.2
        %v4439 = vmul.f32 %v4223, 0.2
        %v4440 = vmul.f32 %v4237, 0.2
        %v4441 = vmul.f32 %v4251, 0.2
        %v4442 = vmul.f32 %v4265, 0.2
        %v4443 = vmul.f32 %v3469, 0.2
        %v4444 = vmul.f32 %v3483, 0.2
        %v4445 = vmul.f32 %v3497, 0.2
        %v4446 = vmul.f32 %v3511, 0.2
        %v4447 = vmul.f32 %v3525, 0.2
        %v4448 = vmul.f32 %v3539, 0.2
        %v4449 = vmul.f32 %v3553, 0.2
        %v4450 = vmul.f32 %v3567, 0.2
        %v4451 = vmul.f32 %v3581, 0.2
        %v4452 = vmul.f32 %v3595, 0.2
        %v4453 = vmul.f32 %v3609, 0.2
        %v4454 = vmul.f32 %v3623, 0.2
        %v4455 = vmul.f32 %v3637, 0.2
        %v4456 = vmul.f32 %v3651, 0.2
        %v4457 = vmul.f32 %v3665, 0.2
        %v4458 = vmul.f32 %v3679, 0.2
        %v4459 = vmul.f32 %v3693, 0.2
        %v4460 = vmul.f32 %v3707, 0.2
        %v4461 = vmul.f32 %v3721, 0.2
        %v4462 = vmul.f32 %v3735, 0.2
        %v4463 = vmul.f32 %v3749, 0.2
        %v4464 = vmul.f32 %v3763, 0.2
        %v4465 = vmul.f32 %v3777, 0.2
        %v4466 = vmul.f32 %v3791, 0.2
        %v4467 = vmul.f32 %v3805, 0.2
        %v4468 = vmul.f32 %v3819, 0.2
        %v4469 = vmul.f32 %v3833, 0.2
        %v4470 = vmul.f32 %v3847, 0.2
        %v4471 = vmul.f32 %v3861, 0.2
        %v4472 = vmul.f32 %v3875, 0.2
        %v4473 = vmul.f32 %v3889, 0.2
        %v4474 = vmul.f32 %v3903, 0.2
        %v4475 = vmul.f32 %v3917, 0.2
        %v4476 = vmul.f32 %v3931, 0.2
        %v4477 = vmul.f32 %v3945, 0.2
        %v4478 = vmul.f32 %v3959, 0.2
        %v4479 = vmul.f32 %v3973, 0.2
        %v4480 = vmul.f32 %v3987, 0.2
        %v4481 = vmul.f32 %v4001, 0.2
        %v4482 = vmul.f32 %v4015, 0.2
        %v4483 = vmul.f32 %v4029, 0.2
        %v4484 = vmul.f32 %v4043, 0.2
        %v4485 = vmul.f32 %v4057, 0.2
        %v4486 = vmul.f32 %v4071, 0.2
        %v4487 = vmul.f32 %v4085, 0.2
        %v4488 = vmul.f32 %v4099, 0.2
        %v4489 = vmul.f32 %v4113, 0.2
        %v4490 = vmul.f32 %v4127, 0.2
        %v4491 = vmul.f32 %v4141, 0.2
        %v4492 = vmul.f32 %v4155, 0.2
        %v4493 = vmul.f32 %v4169, 0.2
        %v4494 = vmul.f32 %v4183, 0.2
        %v4495 = vmul.f32 %v4197, 0.2
        %v4496 = vmul.f32 %v4211, 0.2
        %v4497 = vmul.f32 %v4225, 0.2
        %v4498 = vmul.f32 %v4239, 0.2
        %v4499 = vmul.f32 %v4253, 0.2
        %v4500 = vmul.f32 %v4267, 0.2
        %v4501 = vsel %vm4269, %v3467, %v4385
        %v4502 = vsel %vm4270, %v3481, %v4386
        %v4503 = vsel %vm4271, %v3495, %v4387
        %v4504 = vsel %vm4272, %v3509, %v4388
        %v4505 = vsel %vm4273, %v3523, %v4389
        %v4506 = vsel %vm4274, %v3537, %v4390
        %v4507 = vsel %vm4275, %v3551, %v4391
        %v4508 = vsel %vm4276, %v3565, %v4392
        %v4509 = vsel %vm4277, %v3579, %v4393
        %v4510 = vsel %vm4278, %v3593, %v4394
        %v4511 = vsel %vm4279, %v3607, %v4395
        %v4512 = vsel %vm4280, %v3621, %v4396
        %v4513 = vsel %vm4281, %v3635, %v4397
        %v4514 = vsel %vm4282, %v3649, %v4398
        %v4515 = vsel %vm4283, %v3663, %v4399
        %v4516 = vsel %vm4284, %v3677, %v4400
        %v4517 = vsel %vm4285, %v3691, %v4401
        %v4518 = vsel %vm4286, %v3705, %v4402
        %v4519 = vsel %vm4287, %v3719, %v4403
        %v4520 = vsel %vm4288, %v3733, %v4404
        %v4521 = vsel %vm4289, %v3747, %v4405
        %v4522 = vsel %vm4290, %v3761, %v4406
        %v4523 = vsel %vm4291, %v3775, %v4407
        %v4524 = vsel %vm4292, %v3789, %v4408
        %v4525 = vsel %vm4293, %v3803, %v4409
        %v4526 = vsel %vm4294, %v3817, %v4410
        %v4527 = vsel %vm4295, %v3831, %v4411
        %v4528 = vsel %vm4296, %v3845, %v4412
        %v4529 = vsel %vm4297, %v3859, %v4413
        %v4530 = vsel %vm4298, %v3873, %v4414
        %v4531 = vsel %vm4299, %v3887, %v4415
        %v4532 = vsel %vm4300, %v3901, %v4416
        %v4533 = vsel %vm4301, %v3915, %v4417
        %v4534 = vsel %vm4302, %v3929, %v4418
        %v4535 = vsel %vm4303, %v3943, %v4419
        %v4536 = vsel %vm4304, %v3957, %v4420
        %v4537 = vsel %vm4305, %v3971, %v4421
        %v4538 = vsel %vm4306, %v3985, %v4422
        %v4539 = vsel %vm4307, %v3999, %v4423
        %v4540 = vsel %vm4308, %v4013, %v4424
        %v4541 = vsel %vm4309, %v4027, %v4425
        %v4542 = vsel %vm4310, %v4041, %v4426
        %v4543 = vsel %vm4311, %v4055, %v4427
        %v4544 = vsel %vm4312, %v4069, %v4428
        %v4545 = vsel %vm4313, %v4083, %v4429
        %v4546 = vsel %vm4314, %v4097, %v4430
        %v4547 = vsel %vm4315, %v4111, %v4431
        %v4548 = vsel %vm4316, %v4125, %v4432
        %v4549 = vsel %vm4317, %v4139, %v4433
        %v4550 = vsel %vm4318, %v4153, %v4434
        %v4551 = vsel %vm4319, %v4167, %v4435
        %v4552 = vsel %vm4320, %v4181, %v4436
        %v4553 = vsel %vm4321, %v4195, %v4437
        %v4554 = vsel %vm4322, %v4209, %v4438
        %v4555 = vsel %vm4323, %v4223, %v4439
        %v4556 = vsel %vm4324, %v4237, %v4440
        %v4557 = vsel %vm4325, %v4251, %v4441
        %v4558 = vsel %vm4326, %v4265, %v4442
        %v4559 = vsel %vm4327, %v3469, %v4443
        %v4560 = vsel %vm4328, %v3483, %v4444
        %v4561 = vsel %vm4329, %v3497, %v4445
        %v4562 = vsel %vm4330, %v3511, %v4446
        %v4563 = vsel %vm4331, %v3525, %v4447
        %v4564 = vsel %vm4332, %v3539, %v4448
        %v4565 = vsel %vm4333, %v3553, %v4449
        %v4566 = vsel %vm4334, %v3567, %v4450
        %v4567 = vsel %vm4335, %v3581, %v4451
        %v4568 = vsel %vm4336, %v3595, %v4452
        %v4569 = vsel %vm4337, %v3609, %v4453
        %v4570 = vsel %vm4338, %v3623, %v4454
        %v4571 = vsel %vm4339, %v3637, %v4455
        %v4572 = vsel %vm4340, %v3651, %v4456
        %v4573 = vsel %vm4341, %v3665, %v4457
        %v4574 = vsel %vm4342, %v3679, %v4458
        %v4575 = vsel %vm4343, %v3693, %v4459
        %v4576 = vsel %vm4344, %v3707, %v4460
        %v4577 = vsel %vm4345, %v3721, %v4461
        %v4578 = vsel %vm4346, %v3735, %v4462
        %v4579 = vsel %vm4347, %v3749, %v4463
        %v4580 = vsel %vm4348, %v3763, %v4464
        %v4581 = vsel %vm4349, %v3777, %v4465
        %v4582 = vsel %vm4350, %v3791, %v4466
        %v4583 = vsel %vm4351, %v3805, %v4467
        %v4584 = vsel %vm4352, %v3819, %v4468
        %v4585 = vsel %vm4353, %v3833, %v4469
        %v4586 = vsel %vm4354, %v3847, %v4470
        %v4587 = vsel %vm4355, %v3861, %v4471
        %v4588 = vsel %vm4356, %v3875, %v4472
        %v4589 = vsel %vm4357, %v3889, %v4473
        %v4590 = vsel %vm4358, %v3903, %v4474
        %v4591 = vsel %vm4359, %v3917, %v4475
        %v4592 = vsel %vm4360, %v3931, %v4476
        %v4593 = vsel %vm4361, %v3945, %v4477
        %v4594 = vsel %vm4362, %v3959, %v4478
        %v4595 = vsel %vm4363, %v3973, %v4479
        %v4596 = vsel %vm4364, %v3987, %v4480
        %v4597 = vsel %vm4365, %v4001, %v4481
        %v4598 = vsel %vm4366, %v4015, %v4482
        %v4599 = vsel %vm4367, %v4029, %v4483
        %v4600 = vsel %vm4368, %v4043, %v4484
        %v4601 = vsel %vm4369, %v4057, %v4485
        %v4602 = vsel %vm4370, %v4071, %v4486
        %v4603 = vsel %vm4371, %v4085, %v4487
        %v4604 = vsel %vm4372, %v4099, %v4488
        %v4605 = vsel %vm4373, %v4113, %v4489
        %v4606 = vsel %vm4374, %v4127, %v4490
        %v4607 = vsel %vm4375, %v4141, %v4491
        %v4608 = vsel %vm4376, %v4155, %v4492
        %v4609 = vsel %vm4377, %v4169, %v4493
        %v4610 = vsel %vm4378, %v4183, %v4494
        %v4611 = vsel %vm4379, %v4197, %v4495
        %v4612 = vsel %vm4380, %v4211, %v4496
        %v4613 = vsel %vm4381, %v4225, %v4497
        %v4614 = vsel %vm4382, %v4239, %v4498
        %v4615 = vsel %vm4383, %v4253, %v4499
        %v4616 = vsel %vm4384, %v4267, %v4500
        %v4617 = vpack.c.bf16 %v4502, %v4501
        %v4618 = vpack.c.bf16 %v4504, %v4503
        %v4619 = vpack.c.bf16 %v4506, %v4505
        %v4620 = vpack.c.bf16 %v4508, %v4507
        %v4621 = vpack.c.bf16 %v4510, %v4509
        %v4622 = vpack.c.bf16 %v4512, %v4511
        %v4623 = vpack.c.bf16 %v4514, %v4513
        %v4624 = vpack.c.bf16 %v4516, %v4515
        %v4625 = vpack.c.bf16 %v4518, %v4517
        %v4626 = vpack.c.bf16 %v4520, %v4519
        %v4627 = vpack.c.bf16 %v4522, %v4521
        %v4628 = vpack.c.bf16 %v4524, %v4523
        %v4629 = vpack.c.bf16 %v4526, %v4525
        %v4630 = vpack.c.bf16 %v4528, %v4527
        %v4631 = vpack.c.bf16 %v4530, %v4529
        %v4632 = vpack.c.bf16 %v4532, %v4531
        %v4633 = vpack.c.bf16 %v4534, %v4533
        %v4634 = vpack.c.bf16 %v4536, %v4535
        %v4635 = vpack.c.bf16 %v4538, %v4537
        %v4636 = vpack.c.bf16 %v4540, %v4539
        %v4637 = vpack.c.bf16 %v4542, %v4541
        %v4638 = vpack.c.bf16 %v4544, %v4543
        %v4639 = vpack.c.bf16 %v4546, %v4545
        %v4640 = vpack.c.bf16 %v4548, %v4547
        %v4641 = vpack.c.bf16 %v4550, %v4549
        %v4642 = vpack.c.bf16 %v4552, %v4551
        %v4643 = vpack.c.bf16 %v4554, %v4553
        %v4644 = vpack.c.bf16 %v4556, %v4555
        %v4645 = vpack.c.bf16 %v4558, %v4557
        %v4646 = vpack.c.bf16 %v4560, %v4559
        %v4647 = vpack.c.bf16 %v4562, %v4561
        %v4648 = vpack.c.bf16 %v4564, %v4563
        %v4649 = vpack.c.bf16 %v4566, %v4565
        %v4650 = vpack.c.bf16 %v4568, %v4567
        %v4651 = vpack.c.bf16 %v4570, %v4569
        %v4652 = vpack.c.bf16 %v4572, %v4571
        %v4653 = vpack.c.bf16 %v4574, %v4573
        %v4654 = vpack.c.bf16 %v4576, %v4575
        %v4655 = vpack.c.bf16 %v4578, %v4577
        %v4656 = vpack.c.bf16 %v4580, %v4579
        %v4657 = vpack.c.bf16 %v4582, %v4581
        %v4658 = vpack.c.bf16 %v4584, %v4583
        %v4659 = vpack.c.bf16 %v4586, %v4585
        %v4660 = vpack.c.bf16 %v4588, %v4587
        %v4661 = vpack.c.bf16 %v4590, %v4589
        %v4662 = vpack.c.bf16 %v4592, %v4591
        %v4663 = vpack.c.bf16 %v4594, %v4593
        %v4664 = vpack.c.bf16 %v4596, %v4595
        %v4665 = vpack.c.bf16 %v4598, %v4597
        %v4666 = vpack.c.bf16 %v4600, %v4599
        %v4667 = vpack.c.bf16 %v4602, %v4601
        %v4668 = vpack.c.bf16 %v4604, %v4603
        %v4669 = vpack.c.bf16 %v4606, %v4605
        %v4670 = vpack.c.bf16 %v4608, %v4607
        %v4671 = vpack.c.bf16 %v4610, %v4609
        %v4672 = vpack.c.bf16 %v4612, %v4611
        %v4673 = vpack.c.bf16 %v4614, %v4613
        %v4674 = vpack.c.bf16 %v4616, %v4615
        %4675 = vst [vmem:[%s994] sm:$0xff] %v4617
        %4676 = vst [vmem:[%s994 + $0x8] sm:$0xff] %v4618
        %4677 = vst [vmem:[%s994 + $0x10] sm:$0xff] %v4619
        %4678 = vst [vmem:[%s994 + $0x18] sm:$0xff] %v4620
        %4679 = vst [vmem:[%s994 + $0x20] sm:$0xff] %v4621
        %4680 = vst [vmem:[%s994 + $0x28] sm:$0xff] %v4622
        %4681 = vst [vmem:[%s994 + $0x30] sm:$0xff] %v4623
        %4682 = vst [vmem:[%s994 + $0x38] sm:$0xff] %v4624
        %4683 = vst [vmem:[%s994 + $0x40] sm:$0xff] %v4625
        %4684 = vst [vmem:[%s994 + $0x48] sm:$0xff] %v4626
        %4685 = vst [vmem:[%s994 + $0x50] sm:$0xff] %v4627
        %4686 = vst [vmem:[%s994 + $0x58] sm:$0xff] %v4628
        %4687 = vst [vmem:[%s994 + $0x60] sm:$0xff] %v4629
        %4688 = vst [vmem:[%s994 + $0x68] sm:$0xff] %v4630
        %4689 = vst [vmem:[%s994 + $0x70] sm:$0xff] %v4631
        %4690 = vst [vmem:[%s994 + $0x78] sm:$0xff] %v4632
        %4691 = vst [vmem:[%s994 + $0x80] sm:$0xff] %v4633
        %4692 = vst [vmem:[%s994 + $0x88] sm:$0xff] %v4634
        %4693 = vst [vmem:[%s994 + $0x90] sm:$0xff] %v4635
        %4694 = vst [vmem:[%s994 + $0x98] sm:$0xff] %v4636
        %4695 = vst [vmem:[%s994 + $0xa0] sm:$0xff] %v4637
        %4696 = vst [vmem:[%s994 + $0xa8] sm:$0xff] %v4638
        %4697 = vst [vmem:[%s994 + $0xb0] sm:$0xff] %v4639
        %4698 = vst [vmem:[%s994 + $0xb8] sm:$0xff] %v4640
        %4699 = vst [vmem:[%s994 + $0xc0] sm:$0xff] %v4641
        %4700 = vst [vmem:[%s994 + $0xc8] sm:$0xff] %v4642
        %4701 = vst [vmem:[%s994 + $0xd0] sm:$0xff] %v4643
        %4702 = vst [vmem:[%s994 + $0xd8] sm:$0xff] %v4644
        %4703 = vst [vmem:[%s994 + $0xe0] sm:$0xff] %v4645
        %4704 = vst [vmem:[%s994 + $0xe8] sm:$0xff] %v4646
        %4705 = vst [vmem:[%s994 + $0xf0] sm:$0xff] %v4647
        %4706 = vst [vmem:[%s994 + $0xf8] sm:$0xff] %v4648
        %4707 = vst [vmem:[%s994 + $0x100] sm:$0xff] %v4649
        %4708 = vst [vmem:[%s994 + $0x108] sm:$0xff] %v4650
        %4709 = vst [vmem:[%s994 + $0x110] sm:$0xff] %v4651
        %4710 = vst [vmem:[%s994 + $0x118] sm:$0xff] %v4652
        %4711 = vst [vmem:[%s994 + $0x120] sm:$0xff] %v4653
        %4712 = vst [vmem:[%s994 + $0x128] sm:$0xff] %v4654
        %4713 = vst [vmem:[%s994 + $0x130] sm:$0xff] %v4655
        %4714 = vst [vmem:[%s994 + $0x138] sm:$0xff] %v4656
        %4715 = vst [vmem:[%s994 + $0x140] sm:$0xff] %v4657
        %4716 = vst [vmem:[%s994 + $0x148] sm:$0xff] %v4658
        %4717 = vst [vmem:[%s994 + $0x150] sm:$0xff] %v4659
        %4718 = vst [vmem:[%s994 + $0x158] sm:$0xff] %v4660
        %4719 = vst [vmem:[%s994 + $0x160] sm:$0xff] %v4661
        %4720 = vst [vmem:[%s994 + $0x168] sm:$0xff] %v4662
        %4721 = vst [vmem:[%s994 + $0x170] sm:$0xff] %v4663
        %4722 = vst [vmem:[%s994 + $0x178] sm:$0xff] %v4664
        %4723 = vst [vmem:[%s994 + $0x180] sm:$0xff] %v4665
        %4724 = vst [vmem:[%s994 + $0x188] sm:$0xff] %v4666
        %4725 = vst [vmem:[%s994 + $0x190] sm:$0xff] %v4667
        %4726 = vst [vmem:[%s994 + $0x198] sm:$0xff] %v4668
        %4727 = vst [vmem:[%s994 + $0x1a0] sm:$0xff] %v4669
        %4728 = vst [vmem:[%s994 + $0x1a8] sm:$0xff] %v4670
        %4729 = vst [vmem:[%s994 + $0x1b0] sm:$0xff] %v4671
        %4730 = vst [vmem:[%s994 + $0x1b8] sm:$0xff] %v4672
        %4731 = vst [vmem:[%s994 + $0x1c0] sm:$0xff] %v4673
        %4732 = vst [vmem:[%s994 + $0x1c8] sm:$0xff] %v4674
        %s4733 = sand.u32 %s90, 1
        %s4734 = sand.u32 %s90, 1
        %s4735 = smul.addr %s4734, 464
        %s4736 = scalar_lea.vmem [#allocation3], %s4735
        // Predicated region
        $region56: #{fstn_forward.3} parent=50 // pred_check
          %p4737 = pneg %p100
        $region57: #{fstn_forward.3} parent=50 // pred_check_branch
          %4739 = sbr.rel (%p4737) target = $region59
        $region58: #{fstn_forward.3} parent=50 // pred_region
          %s4740 = smul.u32 58, %s14
          %s4741 = smul.addr %s4740, 4
          %s4742 = scalar_lea.vmem %s3, %s4741
          // Predicated region
          $region60: #{fstn_forward.3} parent=58 // pred_check
            _
          $region61: #{fstn_forward.3} parent=58 // pred_check_branch
            %4744 = sbr.rel (0) target = $region63
          $region62: #{fstn_forward.3} parent=58 // pred_region
            // Predicated region
            $region64: #{fstn_forward.3} parent=62 // pred_check
              _
            $region65: #{fstn_forward.3} parent=62 // pred_check_branch
              %4746 = sbr.rel (0) target = $region67
            $region66: #{fstn_forward.3} parent=62 // pred_region
              loop: start=0, step=1, limit=1
              $region68: #{fstn_forward.3} parent=66 // loop_pre_header
                _
              $region69: #{fstn_forward.3} parent=66 // loop_header
                %s4748 = sphi 0, %s4752
                %p4749 = scmp.ge.s32.totalorder %s4748, 1
                %s4753 = sphi %s4736, %s4736
                %s4754 = sphi %s4742, %s4742
              $region70: #{fstn_forward.3} parent=66 // loop_header_branch
                %4751 = sbr.rel (%p4749) target = $region74
              $region71: #{fstn_forward.3} parent=66 // loop_body
                %v4755 = vld [vmem:[%s4753] sm:$0xff]
                %4756 = vst [vmem:[%s4754] sm:$0xff] %v4755
                %v4757 = vld [vmem:[%s4753 + $0x8] sm:$0xff]
                %4758 = vst [vmem:[%s4754 + $0x8] sm:$0xff] %v4757
                %v4759 = vld [vmem:[%s4753 + $0x10] sm:$0xff]
                %4760 = vst [vmem:[%s4754 + $0x10] sm:$0xff] %v4759
                %v4761 = vld [vmem:[%s4753 + $0x18] sm:$0xff]
                %4762 = vst [vmem:[%s4754 + $0x18] sm:$0xff] %v4761
                %v4763 = vld [vmem:[%s4753 + $0x20] sm:$0xff]
                %4764 = vst [vmem:[%s4754 + $0x20] sm:$0xff] %v4763
                %v4765 = vld [vmem:[%s4753 + $0x28] sm:$0xff]
                %4766 = vst [vmem:[%s4754 + $0x28] sm:$0xff] %v4765
                %v4767 = vld [vmem:[%s4753 + $0x30] sm:$0xff]
                %4768 = vst [vmem:[%s4754 + $0x30] sm:$0xff] %v4767
                %v4769 = vld [vmem:[%s4753 + $0x38] sm:$0xff]
                %4770 = vst [vmem:[%s4754 + $0x38] sm:$0xff] %v4769
                %v4771 = vld [vmem:[%s4753 + $0x40] sm:$0xff]
                %4772 = vst [vmem:[%s4754 + $0x40] sm:$0xff] %v4771
                %v4773 = vld [vmem:[%s4753 + $0x48] sm:$0xff]
                %4774 = vst [vmem:[%s4754 + $0x48] sm:$0xff] %v4773
                %v4775 = vld [vmem:[%s4753 + $0x50] sm:$0xff]
                %4776 = vst [vmem:[%s4754 + $0x50] sm:$0xff] %v4775
                %v4777 = vld [vmem:[%s4753 + $0x58] sm:$0xff]
                %4778 = vst [vmem:[%s4754 + $0x58] sm:$0xff] %v4777
                %v4779 = vld [vmem:[%s4753 + $0x60] sm:$0xff]
                %4780 = vst [vmem:[%s4754 + $0x60] sm:$0xff] %v4779
                %v4781 = vld [vmem:[%s4753 + $0x68] sm:$0xff]
                %4782 = vst [vmem:[%s4754 + $0x68] sm:$0xff] %v4781
                %v4783 = vld [vmem:[%s4753 + $0x70] sm:$0xff]
                %4784 = vst [vmem:[%s4754 + $0x70] sm:$0xff] %v4783
                %v4785 = vld [vmem:[%s4753 + $0x78] sm:$0xff]
                %4786 = vst [vmem:[%s4754 + $0x78] sm:$0xff] %v4785
                %v4787 = vld [vmem:[%s4753 + $0x80] sm:$0xff]
                %4788 = vst [vmem:[%s4754 + $0x80] sm:$0xff] %v4787
                %v4789 = vld [vmem:[%s4753 + $0x88] sm:$0xff]
                %4790 = vst [vmem:[%s4754 + $0x88] sm:$0xff] %v4789
                %v4791 = vld [vmem:[%s4753 + $0x90] sm:$0xff]
                %4792 = vst [vmem:[%s4754 + $0x90] sm:$0xff] %v4791
                %v4793 = vld [vmem:[%s4753 + $0x98] sm:$0xff]
                %4794 = vst [vmem:[%s4754 + $0x98] sm:$0xff] %v4793
                %v4795 = vld [vmem:[%s4753 + $0xa0] sm:$0xff]
                %4796 = vst [vmem:[%s4754 + $0xa0] sm:$0xff] %v4795
                %v4797 = vld [vmem:[%s4753 + $0xa8] sm:$0xff]
                %4798 = vst [vmem:[%s4754 + $0xa8] sm:$0xff] %v4797
                %v4799 = vld [vmem:[%s4753 + $0xb0] sm:$0xff]
                %4800 = vst [vmem:[%s4754 + $0xb0] sm:$0xff] %v4799
                %v4801 = vld [vmem:[%s4753 + $0xb8] sm:$0xff]
                %4802 = vst [vmem:[%s4754 + $0xb8] sm:$0xff] %v4801
                %v4803 = vld [vmem:[%s4753 + $0xc0] sm:$0xff]
                %4804 = vst [vmem:[%s4754 + $0xc0] sm:$0xff] %v4803
                %v4805 = vld [vmem:[%s4753 + $0xc8] sm:$0xff]
                %4806 = vst [vmem:[%s4754 + $0xc8] sm:$0xff] %v4805
                %v4807 = vld [vmem:[%s4753 + $0xd0] sm:$0xff]
                %4808 = vst [vmem:[%s4754 + $0xd0] sm:$0xff] %v4807
                %v4809 = vld [vmem:[%s4753 + $0xd8] sm:$0xff]
                %4810 = vst [vmem:[%s4754 + $0xd8] sm:$0xff] %v4809
                %v4811 = vld [vmem:[%s4753 + $0xe0] sm:$0xff]
                %4812 = vst [vmem:[%s4754 + $0xe0] sm:$0xff] %v4811
                %v4813 = vld [vmem:[%s4753 + $0xe8] sm:$0xff]
                %4814 = vst [vmem:[%s4754 + $0x1d0] sm:$0xff] %v4813
                %v4815 = vld [vmem:[%s4753 + $0xf0] sm:$0xff]
                %4816 = vst [vmem:[%s4754 + $0x1d8] sm:$0xff] %v4815
                %v4817 = vld [vmem:[%s4753 + $0xf8] sm:$0xff]
                %4818 = vst [vmem:[%s4754 + $0x1e0] sm:$0xff] %v4817
                %v4819 = vld [vmem:[%s4753 + $0x100] sm:$0xff]
                %4820 = vst [vmem:[%s4754 + $0x1e8] sm:$0xff] %v4819
                %v4821 = vld [vmem:[%s4753 + $0x108] sm:$0xff]
                %4822 = vst [vmem:[%s4754 + $0x1f0] sm:$0xff] %v4821
                %v4823 = vld [vmem:[%s4753 + $0x110] sm:$0xff]
                %4824 = vst [vmem:[%s4754 + $0x1f8] sm:$0xff] %v4823
                %v4825 = vld [vmem:[%s4753 + $0x118] sm:$0xff]
                %4826 = vst [vmem:[%s4754 + $0x200] sm:$0xff] %v4825
                %v4827 = vld [vmem:[%s4753 + $0x120] sm:$0xff]
                %4828 = vst [vmem:[%s4754 + $0x208] sm:$0xff] %v4827
                %v4829 = vld [vmem:[%s4753 + $0x128] sm:$0xff]
                %4830 = vst [vmem:[%s4754 + $0x210] sm:$0xff] %v4829
                %v4831 = vld [vmem:[%s4753 + $0x130] sm:$0xff]
                %4832 = vst [vmem:[%s4754 + $0x218] sm:$0xff] %v4831
                %v4833 = vld [vmem:[%s4753 + $0x138] sm:$0xff]
                %4834 = vst [vmem:[%s4754 + $0x220] sm:$0xff] %v4833
                %v4835 = vld [vmem:[%s4753 + $0x140] sm:$0xff]
                %4836 = vst [vmem:[%s4754 + $0x228] sm:$0xff] %v4835
                %v4837 = vld [vmem:[%s4753 + $0x148] sm:$0xff]
                %4838 = vst [vmem:[%s4754 + $0x230] sm:$0xff] %v4837
                %v4839 = vld [vmem:[%s4753 + $0x150] sm:$0xff]
                %4840 = vst [vmem:[%s4754 + $0x238] sm:$0xff] %v4839
                %v4841 = vld [vmem:[%s4753 + $0x158] sm:$0xff]
                %4842 = vst [vmem:[%s4754 + $0x240] sm:$0xff] %v4841
                %v4843 = vld [vmem:[%s4753 + $0x160] sm:$0xff]
                %4844 = vst [vmem:[%s4754 + $0x248] sm:$0xff] %v4843
                %v4845 = vld [vmem:[%s4753 + $0x168] sm:$0xff]
                %4846 = vst [vmem:[%s4754 + $0x250] sm:$0xff] %v4845
                %v4847 = vld [vmem:[%s4753 + $0x170] sm:$0xff]
                %4848 = vst [vmem:[%s4754 + $0x258] sm:$0xff] %v4847
                %v4849 = vld [vmem:[%s4753 + $0x178] sm:$0xff]
                %4850 = vst [vmem:[%s4754 + $0x260] sm:$0xff] %v4849
                %v4851 = vld [vmem:[%s4753 + $0x180] sm:$0xff]
                %4852 = vst [vmem:[%s4754 + $0x268] sm:$0xff] %v4851
                %v4853 = vld [vmem:[%s4753 + $0x188] sm:$0xff]
                %4854 = vst [vmem:[%s4754 + $0x270] sm:$0xff] %v4853
                %v4855 = vld [vmem:[%s4753 + $0x190] sm:$0xff]
                %4856 = vst [vmem:[%s4754 + $0x278] sm:$0xff] %v4855
                %v4857 = vld [vmem:[%s4753 + $0x198] sm:$0xff]
                %4858 = vst [vmem:[%s4754 + $0x280] sm:$0xff] %v4857
                %v4859 = vld [vmem:[%s4753 + $0x1a0] sm:$0xff]
                %4860 = vst [vmem:[%s4754 + $0x288] sm:$0xff] %v4859
                %v4861 = vld [vmem:[%s4753 + $0x1a8] sm:$0xff]
                %4862 = vst [vmem:[%s4754 + $0x290] sm:$0xff] %v4861
                %v4863 = vld [vmem:[%s4753 + $0x1b0] sm:$0xff]
                %4864 = vst [vmem:[%s4754 + $0x298] sm:$0xff] %v4863
                %v4865 = vld [vmem:[%s4753 + $0x1b8] sm:$0xff]
                %4866 = vst [vmem:[%s4754 + $0x2a0] sm:$0xff] %v4865
                %v4867 = vld [vmem:[%s4753 + $0x1c0] sm:$0xff]
                %4868 = vst [vmem:[%s4754 + $0x2a8] sm:$0xff] %v4867
                %v4869 = vld [vmem:[%s4753 + $0x1c8] sm:$0xff]
                %4870 = vst [vmem:[%s4754 + $0x2b0] sm:$0xff] %v4869
              $region72: #{fstn_forward.3} parent=66 // loop_footer
                %s4752 = sadd.s32 1, %s4748
              $region73: #{fstn_forward.3} parent=66 // loop_footer_branch
                %4747 = sbr.rel target = $region69
              $region74: #{fstn_forward.3} parent=66 // loop_exit
                _
            $region67: #{fstn_forward.3} parent=62 // pred_fallthru
              _
            // Predicated region
            $region75: #{fstn_forward.3} parent=62 // pred_check
              _
            $region76: #{fstn_forward.3} parent=62 // pred_check_branch
              %4872 = sbr.rel target = $region78
            $region77: #{fstn_forward.3} parent=62 // pred_region
              _
            $region78: #{fstn_forward.3} parent=62 // pred_fallthru
              _
          $region63: #{fstn_forward.3} parent=58 // pred_fallthru
            _
          %4873 = vnop
        $region59: #{fstn_forward.3} parent=50 // pred_fallthru
          _
      $region51: #{fstn_forward.3} parent=5 // pred_fallthru
        _
      %p4874 = scmp.le.s32.totalorder 2, %s9
      // Predicated region
      $region79: #{fstn_forward.3} parent=5 // pred_check
        %p4875 = pneg %p4874
      $region80: #{fstn_forward.3} parent=5 // pred_check_branch
        %4877 = sbr.rel (%p4875) target = $region82
      $region81: #{fstn_forward.3} parent=5 // pred_region
        %s4878 = ssub.s32 %s9, 2
        // Predicated region
        $region83: #{fstn_forward.3} parent=81 // pred_check
          %p4879 = pneg %p106
        $region84: #{fstn_forward.3} parent=81 // pred_check_branch
          %4881 = sbr.rel (%p4879) target = $region86
        $region85: #{fstn_forward.3} parent=81 // pred_region
          %s4882 = sand.u32 %s91, 1
          %s4883 = sand.u32 %s91, 1
          %s4884 = smul.addr %s4883, 464
          %s4885 = scalar_lea.vmem [#allocation3], %s4884
        $region86: #{fstn_forward.3} parent=81 // pred_fallthru
          _
      $region82: #{fstn_forward.3} parent=5 // pred_fallthru
        _
    $region6: #{fstn_forward.3} parent=1 // loop_footer
      %s13 = sadd.s32 1, %s9
    $region7: #{fstn_forward.3} parent=1 // loop_footer_branch
      %8 = sbr.rel target = $region3
    $region8: #{fstn_forward.3} parent=1 // loop_exit
      _

// kernel: fstn_forward.4
$region0: #{fstn_forward.4}
  #allocation0 [shape = 'u32[]', space=smem, size = 0x4, offset = 0x4, fixed_abs, tag = 'smem constant byte address 0x4 - core index']
  #allocation1 [shape = 'u32[72,128]{1,0:T(1,128)}', space=vmem, size = 0x9000, scoped, tag = 'internal scratch']
  %s0 = inlined_call_operand.vmem [shape: bf16[16,144], index: 0, kind: input, shape index: {}]
  %s1 = inlined_call_operand.vmem [shape: bf16[144,3698], index: 1, kind: input, shape index: {}]
  %s2 = inlined_call_operand.vmem [shape: f32[16,1], index: 2, kind: input, shape index: {}]
  %s3 = inlined_call_operand.vmem [shape: bf16[16,3698], index: 3, kind: output, shape index: {}]
  %s4 = sld [smem:[#allocation0]]
  $region173: #{fstn_forward.4} parent=0
    _
  %s6 = ssub.s32 1, %s4
  %s7 = scalar_select 0, %s6, %s4
  $region1: #{fstn_forward.4} parent=0
    #allocation2 [shape = 'u8[1179648]{0}', space=vmem, size = 0x120000, scoped, tag = 'input window, operand 1']
    #allocation3 [shape = 'u8[131072]{0}', space=vmem, size = 0x20000, scoped, tag = 'output window, operand 0']
    loop: start=0, step=1, limit=4
    $region2: #{fstn_forward.4} parent=1 // loop_pre_header
      _
    $region3: #{fstn_forward.4} parent=1 // loop_header
      %s9 = sphi 0, %s13
      %p10 = scmp.ge.s32.totalorder %s9, 4
      %s17 = sphi 0, %s17
      %s19 = sphi 0, %s17
      %s20 = sphi 0, %s19
      %s34 = sphi 0, %s20
      %s40 = sphi 0, %s42
      %s43 = sphi 0, %s40
      %s44 = sphi 0, %s43
      %s60 = sphi 0, %s44
      %s64 = sphi 0, %s64
      %s66 = sphi 0, %s64
      %s67 = sphi 0, %s66
      %s81 = sphi 0, %s67
      %s87 = sphi 0, %s89
      %s90 = sphi 0, %s87
      %s91 = sphi 0, %s90
      %s107 = sphi 0, %s91
    $region4: #{fstn_forward.4} parent=1 // loop_header_branch
      %12 = sbr.rel (%p10) target = $region8
    $region5: #{fstn_forward.4} parent=1 // loop_body
      %s14 = ssub.s32 %s9, 1
      %s15 = ssub.s32 %s9, 2
      %s16 = sadd.s32 %s9, 1
      %s18 = sadd.s32 %s17, 1
      %p21 = scmp.eq.s32.totalorder %s9, 1
      %p22 = scmp.ne.s32.totalorder %s17, %s19
      %p23 = scmp.eq.s32.totalorder %s9, 0
      %p24 = por %p22, %p23
      %p25 = scmp.ne.s32.totalorder %s17, %s19
      %p26 = scmp.eq.s32.totalorder %s14, 1
      %p27 = por %p25, %p26
      %p28 = scmp.ne.s32.totalorder %s19, %s20
      %p29 = scmp.eq.s32.totalorder %s14, 0
      %p30 = por %p28, %p29
      %p31 = scmp.ne.s32.totalorder %s19, %s20
      %p32 = scmp.eq.s32.totalorder %s15, 1
      %p33 = por %p31, %p32
      %p35 = scmp.ne.s32.totalorder %s20, %s34
      %p36 = scmp.eq.s32.totalorder %s15, 0
      %p37 = por %p35, %p36
      %s38 = ssub.s32 %s9, %s16
      %p39 = scmp.eq.s32.totalorder %s38, 0
      %s41 = sadd.s32 %s40, 1
      %s42 = scalar_select %p39, %s40, %s41
      %p45 = pneg %p39
      %p46 = scmp.eq.s32.totalorder %s9, 1
      %p47 = por %p45, %p46
      %p48 = scmp.ne.s32.totalorder %s40, %s43
      %p49 = scmp.eq.s32.totalorder %s9, 0
      %p50 = por %p48, %p49
      %p51 = scmp.ne.s32.totalorder %s40, %s43
      %p52 = scmp.eq.s32.totalorder %s14, 1
      %p53 = por %p51, %p52
      %p54 = scmp.ne.s32.totalorder %s43, %s44
      %p55 = scmp.eq.s32.totalorder %s14, 0
      %p56 = por %p54, %p55
      %p57 = scmp.ne.s32.totalorder %s43, %s44
      %p58 = scmp.eq.s32.totalorder %s15, 1
      %p59 = por %p57, %p58
      %p61 = scmp.ne.s32.totalorder %s44, %s60
      %p62 = scmp.eq.s32.totalorder %s15, 0
      %p63 = por %p61, %p62
      %s65 = sadd.s32 %s64, 1
      %p68 = scmp.eq.s32.totalorder %s9, 1
      %p69 = scmp.ne.s32.totalorder %s64, %s66
      %p70 = scmp.eq.s32.totalorder %s9, 0
      %p71 = por %p69, %p70
      %p72 = scmp.ne.s32.totalorder %s64, %s66
      %p73 = scmp.eq.s32.totalorder %s14, 1
      %p74 = por %p72, %p73
      %p75 = scmp.ne.s32.totalorder %s66, %s67
      %p76 = scmp.eq.s32.totalorder %s14, 0
      %p77 = por %p75, %p76
      %p78 = scmp.ne.s32.totalorder %s66, %s67
      %p79 = scmp.eq.s32.totalorder %s15, 1
      %p80 = por %p78, %p79
      %p82 = scmp.ne.s32.totalorder %s67, %s81
      %p83 = scmp.eq.s32.totalorder %s15, 0
      %p84 = por %p82, %p83
      %s85 = ssub.s32 %s9, %s16
      %p86 = scmp.eq.s32.totalorder %s85, 0
      %s88 = sadd.s32 %s87, 1
      %s89 = scalar_select %p86, %s87, %s88
      %p92 = pneg %p86
      %p93 = scmp.eq.s32.totalorder %s9, 1
      %p94 = por %p92, %p93
      %p95 = scmp.ne.s32.totalorder %s87, %s90
      %p96 = scmp.eq.s32.totalorder %s9, 0
      %p97 = por %p95, %p96
      %p98 = scmp.ne.s32.totalorder %s87, %s90
      %p99 = scmp.eq.s32.totalorder %s14, 1
      %p100 = por %p98, %p99
      %p101 = scmp.ne.s32.totalorder %s90, %s91
      %p102 = scmp.eq.s32.totalorder %s14, 0
      %p103 = por %p101, %p102
      %p104 = scmp.ne.s32.totalorder %s90, %s91
      %p105 = scmp.eq.s32.totalorder %s15, 1
      %p106 = por %p104, %p105
      %p108 = scmp.ne.s32.totalorder %s91, %s107
      %p109 = scmp.eq.s32.totalorder %s15, 0
      %p110 = por %p108, %p109
      %p111 = scmp.le.s32.totalorder 1, %s9
      %p112 = scmp.lt.s32.totalorder %s9, 3
      %p113 = pnand %p111, %p112
      %p114 = pneg %p113
      // Predicated region
      $region9: #{fstn_forward.4} parent=5 // pred_check
        _
      $region10: #{fstn_forward.4} parent=5 // pred_check_branch
        %116 = sbr.rel (%p113) target = $region12
      $region11: #{fstn_forward.4} parent=5 // pred_region
        %s117 = ssub.s32 %s9, 1
        // Predicated region
        $region13: #{fstn_forward.4} parent=11 // pred_check
          %p118 = pneg %p30
        $region14: #{fstn_forward.4} parent=11 // pred_check_branch
          %120 = sbr.rel (%p118) target = $region16
        $region15: #{fstn_forward.4} parent=11 // pred_region
          _
        $region16: #{fstn_forward.4} parent=11 // pred_fallthru
          _
        // Predicated region
        $region17: #{fstn_forward.4} parent=11 // pred_check
          %p121 = pneg %p77
        $region18: #{fstn_forward.4} parent=11 // pred_check_branch
          %123 = sbr.rel (%p121) target = $region20
        $region19: #{fstn_forward.4} parent=11 // pred_region
          _
        $region20: #{fstn_forward.4} parent=11 // pred_fallthru
          _
      $region12: #{fstn_forward.4} parent=5 // pred_fallthru
        _
      %p124 = scmp.lt.s32.totalorder %s9, 2
      // Predicated region
      $region21: #{fstn_forward.4} parent=5 // pred_check
        %p125 = pneg %p124
      $region22: #{fstn_forward.4} parent=5 // pred_check_branch
        %127 = sbr.rel (%p125) target = $region24
      $region23: #{fstn_forward.4} parent=5 // pred_region
        // Predicated region
        $region25: #{fstn_forward.4} parent=23 // pred_check
          %p128 = pneg %p50
        $region26: #{fstn_forward.4} parent=23 // pred_check_branch
          %130 = sbr.rel (%p128) target = $region28
        $region27: #{fstn_forward.4} parent=23 // pred_region
          %s131 = sand.u32 %s40, 1
          %s132 = sand.u32 %s40, 1
          %s133 = smul.addr %s132, 1152
          %s134 = scalar_lea.vmem [#allocation2], %s133
          %s135 = smul.u32 16, %s9
          %s136 = ssub.s32 29, %s135
          %p137 = scmp.lt.s32.totalorder %s136, 16
          %s138 = scalar_select %p137, %s136, 16
          %s139 = smul.u32 72, %s138
          %p140 = scmp.ne.s32.totalorder 0, %s139
          %s141 = smul.addr %s135, 4
          %s142 = scalar_lea.vmem %s1, %s141
          %s143 = smul.u32 %s138, 4
          // Predicated region
          $region29: #{fstn_forward.4} parent=27 // pred_check
            %p144 = pneg %p140
          $region30: #{fstn_forward.4} parent=27 // pred_check_branch
            %146 = sbr.rel (%p144) target = $region32
          $region31: #{fstn_forward.4} parent=27 // pred_region
            %p147 = scmp.lt.u32.totalorder %s143, 8
            %p148 = pneg %p147
            // Predicated region
            $region33: #{fstn_forward.4} parent=31 // pred_check
              _
            $region34: #{fstn_forward.4} parent=31 // pred_check_branch
              %150 = sbr.rel (%p147) target = $region36
            $region35: #{fstn_forward.4} parent=31 // pred_region
              %s200 = sand.u32 %s143, 7
              %p201 = scmp.eq.s32.totalorder %s200, 0
              // Predicated region
              $region48: #{fstn_forward.4} parent=35 // pred_check
                %p202 = pneg %p201
              $region49: #{fstn_forward.4} parent=35 // pred_check_branch
                %204 = sbr.rel (%p202) target = $region51
              $region50: #{fstn_forward.4} parent=35 // pred_region
                %s205 = sshrl.u32 %s143, 3
                %s206 = sshrl.u32 %s205, 1
                // While loop
                $region52: #{fstn_forward.4} parent=50 // loop_pre_header
                  _
                $region53: #{fstn_forward.4} parent=50 // loop_header
                  %s208 = sphi 0, %s210
                  %p209 = scmp.ge.s32.totalorder %s208, %s206
                  %s213 = sphi 0, %s290
                  %s214 = sphi %s142, %s293
                  %s215 = sphi %s134, %s294
                $region54: #{fstn_forward.4} parent=50 // loop_header_branch
                  %212 = sbr.rel (%p209) target = $region58
                $region55: #{fstn_forward.4} parent=50 // loop_body
                  %v216 = vld [vmem:[%s214] sm:$0xff]
                  %217 = vst [vmem:[%s215] sm:$0xff] %v216
                  %v218 = vld [vmem:[%s214 + $0x8] sm:$0xff]
                  %219 = vst [vmem:[%s215 + $0x8] sm:$0xff] %v218
                  %v220 = vld [vmem:[%s214 + $0x74] sm:$0xff]
                  %221 = vst [vmem:[%s215 + $0x40] sm:$0xff] %v220
                  %v222 = vld [vmem:[%s214 + $0x7c] sm:$0xff]
                  %223 = vst [vmem:[%s215 + $0x48] sm:$0xff] %v222
                  %v224 = vld [vmem:[%s214 + $0xe8] sm:$0xff]
                  %225 = vst [vmem:[%s215 + $0x80] sm:$0xff] %v224
                  %v226 = vld [vmem:[%s214 + $0xf0] sm:$0xff]
                  %227 = vst [vmem:[%s215 + $0x88] sm:$0xff] %v226
                  %v228 = vld [vmem:[%s214 + $0x15c] sm:$0xff]
                  %229 = vst [vmem:[%s215 + $0xc0] sm:$0xff] %v228
                  %v230 = vld [vmem:[%s214 + $0x164] sm:$0xff]
                  %231 = vst [vmem:[%s215 + $0xc8] sm:$0xff] %v230
                  %v232 = vld [vmem:[%s214 + $0x1d0] sm:$0xff]
                  %233 = vst [vmem:[%s215 + $0x100] sm:$0xff] %v232
                  %v234 = vld [vmem:[%s214 + $0x1d8] sm:$0xff]
                  %235 = vst [vmem:[%s215 + $0x108] sm:$0xff] %v234
                  %v236 = vld [vmem:[%s214 + $0x244] sm:$0xff]
                  %237 = vst [vmem:[%s215 + $0x140] sm:$0xff] %v236
                  %v238 = vld [vmem:[%s214 + $0x24c] sm:$0xff]
                  %239 = vst [vmem:[%s215 + $0x148] sm:$0xff] %v238
                  %v240 = vld [vmem:[%s214 + $0x2b8] sm:$0xff]
                  %241 = vst [vmem:[%s215 + $0x180] sm:$0xff] %v240
                  %v242 = vld [vmem:[%s214 + $0x2c0] sm:$0xff]
                  %243 = vst [vmem:[%s215 + $0x188] sm:$0xff] %v242
                  %v244 = vld [vmem:[%s214 + $0x32c] sm:$0xff]
                  %245 = vst [vmem:[%s215 + $0x1c0] sm:$0xff] %v244
                  %v246 = vld [vmem:[%s214 + $0x334] sm:$0xff]
                  %247 = vst [vmem:[%s215 + $0x1c8] sm:$0xff] %v246
                  %v248 = vld [vmem:[%s214 + $0x3a0] sm:$0xff]
                  %249 = vst [vmem:[%s215 + $0x200] sm:$0xff] %v248
                  %v250 = vld [vmem:[%s214 + $0x3a8] sm:$0xff]
                  %251 = vst [vmem:[%s215 + $0x208] sm:$0xff] %v250
                  %v252 = vld [vmem:[%s214 + $0x414] sm:$0xff]
                  %253 = vst [vmem:[%s215 + $0x240] sm:$0xff] %v252
                  %v254 = vld [vmem:[%s214 + $0x41c] sm:$0xff]
                  %255 = vst [vmem:[%s215 + $0x248] sm:$0xff] %v254
                  %v256 = vld [vmem:[%s214 + $0x488] sm:$0xff]
                  %257 = vst [vmem:[%s215 + $0x280] sm:$0xff] %v256
                  %v258 = vld [vmem:[%s214 + $0x490] sm:$0xff]
                  %259 = vst [vmem:[%s215 + $0x288] sm:$0xff] %v258
                  %v260 = vld [vmem:[%s214 + $0x4fc] sm:$0xff]
                  %261 = vst [vmem:[%s215 + $0x2c0] sm:$0xff] %v260
                  %v262 = vld [vmem:[%s214 + $0x504] sm:$0xff]
                  %263 = vst [vmem:[%s215 + $0x2c8] sm:$0xff] %v262
                  %v264 = vld [vmem:[%s214 + $0x570] sm:$0xff]
                  %265 = vst [vmem:[%s215 + $0x300] sm:$0xff] %v264
                  %v266 = vld [vmem:[%s214 + $0x578] sm:$0xff]
                  %267 = vst [vmem:[%s215 + $0x308] sm:$0xff] %v266
                  %v268 = vld [vmem:[%s214 + $0x5e4] sm:$0xff]
                  %269 = vst [vmem:[%s215 + $0x340] sm:$0xff] %v268
                  %v270 = vld [vmem:[%s214 + $0x5ec] sm:$0xff]
                  %271 = vst [vmem:[%s215 + $0x348] sm:$0xff] %v270
                  %v272 = vld [vmem:[%s214 + $0x658] sm:$0xff]
                  %273 = vst [vmem:[%s215 + $0x380] sm:$0xff] %v272
                  %v274 = vld [vmem:[%s214 + $0x660] sm:$0xff]
                  %275 = vst [vmem:[%s215 + $0x388] sm:$0xff] %v274
                  %v276 = vld [vmem:[%s214 + $0x6cc] sm:$0xff]
                  %277 = vst [vmem:[%s215 + $0x3c0] sm:$0xff] %v276
                  %v278 = vld [vmem:[%s214 + $0x6d4] sm:$0xff]
                  %279 = vst [vmem:[%s215 + $0x3c8] sm:$0xff] %v278
                  %v280 = vld [vmem:[%s214 + $0x740] sm:$0xff]
                  %281 = vst [vmem:[%s215 + $0x400] sm:$0xff] %v280
                  %v282 = vld [vmem:[%s214 + $0x748] sm:$0xff]
                  %283 = vst [vmem:[%s215 + $0x408] sm:$0xff] %v282
                  %v284 = vld [vmem:[%s214 + $0x7b4] sm:$0xff]
                  %285 = vst [vmem:[%s215 + $0x440] sm:$0xff] %v284
                  %v286 = vld [vmem:[%s214 + $0x7bc] sm:$0xff]
                  %287 = vst [vmem:[%s215 + $0x448] sm:$0xff] %v286
                  %s288 = sadd.s32 1, %s213
                  %p289 = scmp.ge.s32.totalorder %s288, %s206
                  %s290 = scalar_select %p289, 0, %s288
                  %s291 = smul.u32 %s290, 16
                  %s292 = smul.u32 %s290, 16
                  %s293 = scalar_lea.vmem %s142, %s291
                  %s294 = scalar_lea.vmem %s134, %s292 [#allocation2]
                $region56: #{fstn_forward.4} parent=50 // loop_footer
                  %s210 = sadd.s32 %s208, 1
                $region57: #{fstn_forward.4} parent=50 // loop_footer_branch
                  %207 = sbr.rel target = $region53
                $region58: #{fstn_forward.4} parent=50 // loop_exit
                  _
                %s295 = sshrl.u32 %s205, 1
                %s296 = sand.u32 %s205, 1
                %s297 = smul.u32 %s295, 2
                %s298 = smul.u32 8, %s297
                %s299 = scalar_lea.vmem %s142, %s298
                %s300 = smul.u32 8, %s297
                %s301 = scalar_lea.vmem %s134, %s300 [#allocation2]
                // While loop
                $region59: #{fstn_forward.4} parent=50 // loop_pre_header
                  _
                $region60: #{fstn_forward.4} parent=50 // loop_header
                  %s303 = sphi 0, %s305
                  %p304 = scmp.ge.s32.totalorder %s303, %s296
                  %s308 = sphi 0, %s349
                  %s309 = sphi %s299, %s352
                  %s310 = sphi %s301, %s353
                $region61: #{fstn_forward.4} parent=50 // loop_header_branch
                  %307 = sbr.rel (%p304) target = $region65
                $region62: #{fstn_forward.4} parent=50 // loop_body
                  %v311 = vld [vmem:[%s309] sm:$0xff]
                  %312 = vst [vmem:[%s310] sm:$0xff] %v311
                  %v313 = vld [vmem:[%s309 + $0x74] sm:$0xff]
                  %314 = vst [vmem:[%s310 + $0x40] sm:$0xff] %v313
                  %v315 = vld [vmem:[%s309 + $0xe8] sm:$0xff]
                  %316 = vst [vmem:[%s310 + $0x80] sm:$0xff] %v315
                  %v317 = vld [vmem:[%s309 + $0x15c] sm:$0xff]
                  %318 = vst [vmem:[%s310 + $0xc0] sm:$0xff] %v317
                  %v319 = vld [vmem:[%s309 + $0x1d0] sm:$0xff]
                  %320 = vst [vmem:[%s310 + $0x100] sm:$0xff] %v319
                  %v321 = vld [vmem:[%s309 + $0x244] sm:$0xff]
                  %322 = vst [vmem:[%s310 + $0x140] sm:$0xff] %v321
                  %v323 = vld [vmem:[%s309 + $0x2b8] sm:$0xff]
                  %324 = vst [vmem:[%s310 + $0x180] sm:$0xff] %v323
                  %v325 = vld [vmem:[%s309 + $0x32c] sm:$0xff]
                  %326 = vst [vmem:[%s310 + $0x1c0] sm:$0xff] %v325
                  %v327 = vld [vmem:[%s309 + $0x3a0] sm:$0xff]
                  %328 = vst [vmem:[%s310 + $0x200] sm:$0xff] %v327
                  %v329 = vld [vmem:[%s309 + $0x414] sm:$0xff]
                  %330 = vst [vmem:[%s310 + $0x240] sm:$0xff] %v329
                  %v331 = vld [vmem:[%s309 + $0x488] sm:$0xff]
                  %332 = vst [vmem:[%s310 + $0x280] sm:$0xff] %v331
                  %v333 = vld [vmem:[%s309 + $0x4fc] sm:$0xff]
                  %334 = vst [vmem:[%s310 + $0x2c0] sm:$0xff] %v333
                  %v335 = vld [vmem:[%s309 + $0x570] sm:$0xff]
                  %336 = vst [vmem:[%s310 + $0x300] sm:$0xff] %v335
                  %v337 = vld [vmem:[%s309 + $0x5e4] sm:$0xff]
                  %338 = vst [vmem:[%s310 + $0x340] sm:$0xff] %v337
                  %v339 = vld [vmem:[%s309 + $0x658] sm:$0xff]
                  %340 = vst [vmem:[%s310 + $0x380] sm:$0xff] %v339
                  %v341 = vld [vmem:[%s309 + $0x6cc] sm:$0xff]
                  %342 = vst [vmem:[%s310 + $0x3c0] sm:$0xff] %v341
                  %v343 = vld [vmem:[%s309 + $0x740] sm:$0xff]
                  %344 = vst [vmem:[%s310 + $0x400] sm:$0xff] %v343
                  %v345 = vld [vmem:[%s309 + $0x7b4] sm:$0xff]
                  %346 = vst [vmem:[%s310 + $0x440] sm:$0xff] %v345
                  %s347 = sadd.s32 1, %s308
                  %p348 = scmp.ge.s32.totalorder %s347, %s296
                  %s349 = scalar_select %p348, 0, %s347
                  %s350 = smul.u32 %s349, 8
                  %s351 = smul.u32 %s349, 8
                  %s352 = scalar_lea.vmem %s299, %s350
                  %s353 = scalar_lea.vmem %s301, %s351 [#allocation2]
                $region63: #{fstn_forward.4} parent=50 // loop_footer
                  %s305 = sadd.s32 %s303, 1
                $region64: #{fstn_forward.4} parent=50 // loop_footer_branch
                  %302 = sbr.rel target = $region60
                $region65: #{fstn_forward.4} parent=50 // loop_exit
                  _
              $region51: #{fstn_forward.4} parent=35 // pred_fallthru
                _
              %p354 = pneg %p201
              // Predicated region
              $region66: #{fstn_forward.4} parent=35 // pred_check
                _
              $region67: #{fstn_forward.4} parent=35 // pred_check_branch
                %356 = sbr.rel (%p201) target = $region69
              $region68: #{fstn_forward.4} parent=35 // pred_region
                %s357 = sand.u32 %s143, 7
                %s358 = ssub.s32 %s143, %s357
                %s359 = scalar_lea.vmem %s142, %s358
                %s360 = ssub.s32 %s143, %s357
                %s361 = scalar_lea.vmem %s134, %s360 [#allocation2]
                %s362 = sshrl.u32 %s143, 3
                %s363 = sshrl.u32 %s362, 1
                // While loop
                $region70: #{fstn_forward.4} parent=68 // loop_pre_header
                  _
                $region71: #{fstn_forward.4} parent=68 // loop_header
                  %s365 = sphi 0, %s367
                  %p366 = scmp.ge.s32.totalorder %s365, %s363
                  %s370 = sphi 0, %s447
                  %s371 = sphi %s142, %s450
                  %s372 = sphi %s134, %s451
                $region72: #{fstn_forward.4} parent=68 // loop_header_branch
                  %369 = sbr.rel (%p366) target = $region76
                $region73: #{fstn_forward.4} parent=68 // loop_body
                  %v373 = vld [vmem:[%s371] sm:$0xff]
                  %374 = vst [vmem:[%s372] sm:$0xff] %v373
                  %v375 = vld [vmem:[%s371 + $0x8] sm:$0xff]
                  %376 = vst [vmem:[%s372 + $0x8] sm:$0xff] %v375
                  %v377 = vld [vmem:[%s371 + $0x74] sm:$0xff]
                  %378 = vst [vmem:[%s372 + $0x40] sm:$0xff] %v377
                  %v379 = vld [vmem:[%s371 + $0x7c] sm:$0xff]
                  %380 = vst [vmem:[%s372 + $0x48] sm:$0xff] %v379
                  %v381 = vld [vmem:[%s371 + $0xe8] sm:$0xff]
                  %382 = vst [vmem:[%s372 + $0x80] sm:$0xff] %v381
                  %v383 = vld [vmem:[%s371 + $0xf0] sm:$0xff]
                  %384 = vst [vmem:[%s372 + $0x88] sm:$0xff] %v383
                  %v385 = vld [vmem:[%s371 + $0x15c] sm:$0xff]
                  %386 = vst [vmem:[%s372 + $0xc0] sm:$0xff] %v385
                  %v387 = vld [vmem:[%s371 + $0x164] sm:$0xff]
                  %388 = vst [vmem:[%s372 + $0xc8] sm:$0xff] %v387
                  %v389 = vld [vmem:[%s371 + $0x1d0] sm:$0xff]
                  %390 = vst [vmem:[%s372 + $0x100] sm:$0xff] %v389
                  %v391 = vld [vmem:[%s371 + $0x1d8] sm:$0xff]
                  %392 = vst [vmem:[%s372 + $0x108] sm:$0xff] %v391
                  %v393 = vld [vmem:[%s371 + $0x244] sm:$0xff]
                  %394 = vst [vmem:[%s372 + $0x140] sm:$0xff] %v393
                  %v395 = vld [vmem:[%s371 + $0x24c] sm:$0xff]
                  %396 = vst [vmem:[%s372 + $0x148] sm:$0xff] %v395
                  %v397 = vld [vmem:[%s371 + $0x2b8] sm:$0xff]
                  %398 = vst [vmem:[%s372 + $0x180] sm:$0xff] %v397
                  %v399 = vld [vmem:[%s371 + $0x2c0] sm:$0xff]
                  %400 = vst [vmem:[%s372 + $0x188] sm:$0xff] %v399
                  %v401 = vld [vmem:[%s371 + $0x32c] sm:$0xff]
                  %402 = vst [vmem:[%s372 + $0x1c0] sm:$0xff] %v401
                  %v403 = vld [vmem:[%s371 + $0x334] sm:$0xff]
                  %404 = vst [vmem:[%s372 + $0x1c8] sm:$0xff] %v403
                  %v405 = vld [vmem:[%s371 + $0x3a0] sm:$0xff]
                  %406 = vst [vmem:[%s372 + $0x200] sm:$0xff] %v405
                  %v407 = vld [vmem:[%s371 + $0x3a8] sm:$0xff]
                  %408 = vst [vmem:[%s372 + $0x208] sm:$0xff] %v407
                  %v409 = vld [vmem:[%s371 + $0x414] sm:$0xff]
                  %410 = vst [vmem:[%s372 + $0x240] sm:$0xff] %v409
                  %v411 = vld [vmem:[%s371 + $0x41c] sm:$0xff]
                  %412 = vst [vmem:[%s372 + $0x248] sm:$0xff] %v411
                  %v413 = vld [vmem:[%s371 + $0x488] sm:$0xff]
                  %414 = vst [vmem:[%s372 + $0x280] sm:$0xff] %v413
                  %v415 = vld [vmem:[%s371 + $0x490] sm:$0xff]
                  %416 = vst [vmem:[%s372 + $0x288] sm:$0xff] %v415
                  %v417 = vld [vmem:[%s371 + $0x4fc] sm:$0xff]
                  %418 = vst [vmem:[%s372 + $0x2c0] sm:$0xff] %v417
                  %v419 = vld [vmem:[%s371 + $0x504] sm:$0xff]
                  %420 = vst [vmem:[%s372 + $0x2c8] sm:$0xff] %v419
                  %v421 = vld [vmem:[%s371 + $0x570] sm:$0xff]
                  %422 = vst [vmem:[%s372 + $0x300] sm:$0xff] %v421
                  %v423 = vld [vmem:[%s371 + $0x578] sm:$0xff]
                  %424 = vst [vmem:[%s372 + $0x308] sm:$0xff] %v423
                  %v425 = vld [vmem:[%s371 + $0x5e4] sm:$0xff]
                  %426 = vst [vmem:[%s372 + $0x340] sm:$0xff] %v425
                  %v427 = vld [vmem:[%s371 + $0x5ec] sm:$0xff]
                  %428 = vst [vmem:[%s372 + $0x348] sm:$0xff] %v427
                  %v429 = vld [vmem:[%s371 + $0x658] sm:$0xff]
                  %430 = vst [vmem:[%s372 + $0x380] sm:$0xff] %v429
                  %v431 = vld [vmem:[%s371 + $0x660] sm:$0xff]
                  %432 = vst [vmem:[%s372 + $0x388] sm:$0xff] %v431
                  %v433 = vld [vmem:[%s371 + $0x6cc] sm:$0xff]
                  %434 = vst [vmem:[%s372 + $0x3c0] sm:$0xff] %v433
                  %v435 = vld [vmem:[%s371 + $0x6d4] sm:$0xff]
                  %436 = vst [vmem:[%s372 + $0x3c8] sm:$0xff] %v435
                  %v437 = vld [vmem:[%s371 + $0x740] sm:$0xff]
                  %438 = vst [vmem:[%s372 + $0x400] sm:$0xff] %v437
                  %v439 = vld [vmem:[%s371 + $0x748] sm:$0xff]
                  %440 = vst [vmem:[%s372 + $0x408] sm:$0xff] %v439
                  %v441 = vld [vmem:[%s371 + $0x7b4] sm:$0xff]
                  %442 = vst [vmem:[%s372 + $0x440] sm:$0xff] %v441
                  %v443 = vld [vmem:[%s371 + $0x7bc] sm:$0xff]
                  %444 = vst [vmem:[%s372 + $0x448] sm:$0xff] %v443
                  %s445 = sadd.s32 1, %s370
                  %p446 = scmp.ge.s32.totalorder %s445, %s363
                  %s447 = scalar_select %p446, 0, %s445
                  %s448 = smul.u32 %s447, 16
                  %s449 = smul.u32 %s447, 16
                  %s450 = scalar_lea.vmem %s142, %s448
                  %s451 = scalar_lea.vmem %s134, %s449 [#allocation2]
                $region74: #{fstn_forward.4} parent=68 // loop_footer
                  %s367 = sadd.s32 %s365, 1
                $region75: #{fstn_forward.4} parent=68 // loop_footer_branch
                  %364 = sbr.rel target = $region71
                $region76: #{fstn_forward.4} parent=68 // loop_exit
                  _
                %s452 = sshrl.u32 %s362, 1
                %s453 = sand.u32 %s362, 1
                %s454 = smul.u32 %s452, 2
                %s455 = smul.u32 8, %s454
                %s456 = scalar_lea.vmem %s142, %s455
                %s457 = smul.u32 8, %s454
                %s458 = scalar_lea.vmem %s134, %s457 [#allocation2]
                // While loop
                $region77: #{fstn_forward.4} parent=68 // loop_pre_header
                  _
                $region78: #{fstn_forward.4} parent=68 // loop_header
                  %s460 = sphi 0, %s462
                  %p461 = scmp.ge.s32.totalorder %s460, %s453
                  %s465 = sphi 0, %s506
                  %s466 = sphi %s456, %s509
                  %s467 = sphi %s458, %s510
                $region79: #{fstn_forward.4} parent=68 // loop_header_branch
                  %464 = sbr.rel (%p461) target = $region83
                $region80: #{fstn_forward.4} parent=68 // loop_body
                  %v468 = vld [vmem:[%s466] sm:$0xff]
                  %469 = vst [vmem:[%s467] sm:$0xff] %v468
                  %v470 = vld [vmem:[%s466 + $0x74] sm:$0xff]
                  %471 = vst [vmem:[%s467 + $0x40] sm:$0xff] %v470
                  %v472 = vld [vmem:[%s466 + $0xe8] sm:$0xff]
                  %473 = vst [vmem:[%s467 + $0x80] sm:$0xff] %v472
                  %v474 = vld [vmem:[%s466 + $0x15c] sm:$0xff]
                  %475 = vst [vmem:[%s467 + $0xc0] sm:$0xff] %v474
                  %v476 = vld [vmem:[%s466 + $0x1d0] sm:$0xff]
                  %477 = vst [vmem:[%s467 + $0x100] sm:$0xff] %v476
                  %v478 = vld [vmem:[%s466 + $0x244] sm:$0xff]
                  %479 = vst [vmem:[%s467 + $0x140] sm:$0xff] %v478
                  %v480 = vld [vmem:[%s466 + $0x2b8] sm:$0xff]
                  %481 = vst [vmem:[%s467 + $0x180] sm:$0xff] %v480
                  %v482 = vld [vmem:[%s466 + $0x32c] sm:$0xff]
                  %483 = vst [vmem:[%s467 + $0x1c0] sm:$0xff] %v482
                  %v484 = vld [vmem:[%s466 + $0x3a0] sm:$0xff]
                  %485 = vst [vmem:[%s467 + $0x200] sm:$0xff] %v484
                  %v486 = vld [vmem:[%s466 + $0x414] sm:$0xff]
                  %487 = vst [vmem:[%s467 + $0x240] sm:$0xff] %v486
                  %v488 = vld [vmem:[%s466 + $0x488] sm:$0xff]
                  %489 = vst [vmem:[%s467 + $0x280] sm:$0xff] %v488
                  %v490 = vld [vmem:[%s466 + $0x4fc] sm:$0xff]
                  %491 = vst [vmem:[%s467 + $0x2c0] sm:$0xff] %v490
                  %v492 = vld [vmem:[%s466 + $0x570] sm:$0xff]
                  %493 = vst [vmem:[%s467 + $0x300] sm:$0xff] %v492
                  %v494 = vld [vmem:[%s466 + $0x5e4] sm:$0xff]
                  %495 = vst [vmem:[%s467 + $0x340] sm:$0xff] %v494
                  %v496 = vld [vmem:[%s466 + $0x658] sm:$0xff]
                  %497 = vst [vmem:[%s467 + $0x380] sm:$0xff] %v496
                  %v498 = vld [vmem:[%s466 + $0x6cc] sm:$0xff]
                  %499 = vst [vmem:[%s467 + $0x3c0] sm:$0xff] %v498
                  %v500 = vld [vmem:[%s466 + $0x740] sm:$0xff]
                  %501 = vst [vmem:[%s467 + $0x400] sm:$0xff] %v500
                  %v502 = vld [vmem:[%s466 + $0x7b4] sm:$0xff]
                  %503 = vst [vmem:[%s467 + $0x440] sm:$0xff] %v502
                  %s504 = sadd.s32 1, %s465
                  %p505 = scmp.ge.s32.totalorder %s504, %s453
                  %s506 = scalar_select %p505, 0, %s504
                  %s507 = smul.u32 %s506, 8
                  %s508 = smul.u32 %s506, 8
                  %s509 = scalar_lea.vmem %s456, %s507
                  %s510 = scalar_lea.vmem %s458, %s508 [#allocation2]
                $region81: #{fstn_forward.4} parent=68 // loop_footer
                  %s462 = sadd.s32 %s460, 1
                $region82: #{fstn_forward.4} parent=68 // loop_footer_branch
                  %459 = sbr.rel target = $region78
                $region83: #{fstn_forward.4} parent=68 // loop_exit
                  _
                %s511 = sshll.u32 1, %s357
                %s512 = ssub.s32 %s511, 1
                loop: start=0, step=1, limit=1
                $region84: #{fstn_forward.4} parent=68 // loop_pre_header
                  _
                $region85: #{fstn_forward.4} parent=68 // loop_header
                  %s514 = sphi 0, %s518
                  %p515 = scmp.ge.s32.totalorder %s514, 1
                  %s519 = sphi %s359, %s359
                  %s520 = sphi %s361, %s361
                $region86: #{fstn_forward.4} parent=68 // loop_header_branch
                  %517 = sbr.rel (%p515) target = $region90
                $region87: #{fstn_forward.4} parent=68 // loop_body
                  %v521 = vld [vmem:[%s519] sm:%s512]
                  %522 = vst [vmem:[%s520] sm:%s512] %v521
                  %v523 = vld [vmem:[%s519 + $0x74] sm:%s512]
                  %524 = vst [vmem:[%s520 + $0x40] sm:%s512] %v523
                  %v525 = vld [vmem:[%s519 + $0xe8] sm:%s512]
                  %526 = vst [vmem:[%s520 + $0x80] sm:%s512] %v525
                  %v527 = vld [vmem:[%s519 + $0x15c] sm:%s512]
                  %528 = vst [vmem:[%s520 + $0xc0] sm:%s512] %v527
                  %v529 = vld [vmem:[%s519 + $0x1d0] sm:%s512]
                  %530 = vst [vmem:[%s520 + $0x100] sm:%s512] %v529
                  %v531 = vld [vmem:[%s519 + $0x244] sm:%s512]
                  %532 = vst [vmem:[%s520 + $0x140] sm:%s512] %v531
                  %v533 = vld [vmem:[%s519 + $0x2b8] sm:%s512]
                  %534 = vst [vmem:[%s520 + $0x180] sm:%s512] %v533
                  %v535 = vld [vmem:[%s519 + $0x32c] sm:%s512]
                  %536 = vst [vmem:[%s520 + $0x1c0] sm:%s512] %v535
                  %v537 = vld [vmem:[%s519 + $0x3a0] sm:%s512]
                  %538 = vst [vmem:[%s520 + $0x200] sm:%s512] %v537
                  %v539 = vld [vmem:[%s519 + $0x414] sm:%s512]
                  %540 = vst [vmem:[%s520 + $0x240] sm:%s512] %v539
                  %v541 = vld [vmem:[%s519 + $0x488] sm:%s512]
                  %542 = vst [vmem:[%s520 + $0x280] sm:%s512] %v541
                  %v543 = vld [vmem:[%s519 + $0x4fc] sm:%s512]
                  %544 = vst [vmem:[%s520 + $0x2c0] sm:%s512] %v543
                  %v545 = vld [vmem:[%s519 + $0x570] sm:%s512]
                  %546 = vst [vmem:[%s520 + $0x300] sm:%s512] %v545
                  %v547 = vld [vmem:[%s519 + $0x5e4] sm:%s512]
                  %548 = vst [vmem:[%s520 + $0x340] sm:%s512] %v547
                  %v549 = vld [vmem:[%s519 + $0x658] sm:%s512]
                  %550 = vst [vmem:[%s520 + $0x380] sm:%s512] %v549
                  %v551 = vld [vmem:[%s519 + $0x6cc] sm:%s512]
                  %552 = vst [vmem:[%s520 + $0x3c0] sm:%s512] %v551
                  %v553 = vld [vmem:[%s519 + $0x740] sm:%s512]
                  %554 = vst [vmem:[%s520 + $0x400] sm:%s512] %v553
                  %v555 = vld [vmem:[%s519 + $0x7b4] sm:%s512]
                  %556 = vst [vmem:[%s520 + $0x440] sm:%s512] %v555
                $region88: #{fstn_forward.4} parent=68 // loop_footer
                  %s518 = sadd.s32 1, %s514
                $region89: #{fstn_forward.4} parent=68 // loop_footer_branch
                  %513 = sbr.rel target = $region85
                $region90: #{fstn_forward.4} parent=68 // loop_exit
                  _
              $region69: #{fstn_forward.4} parent=35 // pred_fallthru
                _
            $region36: #{fstn_forward.4} parent=31 // pred_fallthru
              _
            // Predicated region
            $region37: #{fstn_forward.4} parent=31 // pred_check
              %p151 = pneg %p147
            $region38: #{fstn_forward.4} parent=31 // pred_check_branch
              %153 = sbr.rel (%p151) target = $region40
            $region39: #{fstn_forward.4} parent=31 // pred_region
              %s154 = sshll.u32 1, %s143
              %s155 = ssub.s32 %s154, 1
              loop: start=0, step=1, limit=1
              $region41: #{fstn_forward.4} parent=39 // loop_pre_header
                _
              $region42: #{fstn_forward.4} parent=39 // loop_header
                %s157 = sphi 0, %s161
                %p158 = scmp.ge.s32.totalorder %s157, 1
                %s162 = sphi %s142, %s142
                %s163 = sphi %s134, %s134
              $region43: #{fstn_forward.4} parent=39 // loop_header_branch
                %160 = sbr.rel (%p158) target = $region47
              $region44: #{fstn_forward.4} parent=39 // loop_body
                %v164 = vld [vmem:[%s162] sm:%s155]
                %165 = vst [vmem:[%s163] sm:%s155] %v164
                %v166 = vld [vmem:[%s162 + $0x74] sm:%s155]
                %167 = vst [vmem:[%s163 + $0x40] sm:%s155] %v166
                %v168 = vld [vmem:[%s162 + $0xe8] sm:%s155]
                %169 = vst [vmem:[%s163 + $0x80] sm:%s155] %v168
                %v170 = vld [vmem:[%s162 + $0x15c] sm:%s155]
                %171 = vst [vmem:[%s163 + $0xc0] sm:%s155] %v170
                %v172 = vld [vmem:[%s162 + $0x1d0] sm:%s155]
                %173 = vst [vmem:[%s163 + $0x100] sm:%s155] %v172
                %v174 = vld [vmem:[%s162 + $0x244] sm:%s155]
                %175 = vst [vmem:[%s163 + $0x140] sm:%s155] %v174
                %v176 = vld [vmem:[%s162 + $0x2b8] sm:%s155]
                %177 = vst [vmem:[%s163 + $0x180] sm:%s155] %v176
                %v178 = vld [vmem:[%s162 + $0x32c] sm:%s155]
                %179 = vst [vmem:[%s163 + $0x1c0] sm:%s155] %v178
                %v180 = vld [vmem:[%s162 + $0x3a0] sm:%s155]
                %181 = vst [vmem:[%s163 + $0x200] sm:%s155] %v180
                %v182 = vld [vmem:[%s162 + $0x414] sm:%s155]
                %183 = vst [vmem:[%s163 + $0x240] sm:%s155] %v182
                %v184 = vld [vmem:[%s162 + $0x488] sm:%s155]
                %185 = vst [vmem:[%s163 + $0x280] sm:%s155] %v184
                %v186 = vld [vmem:[%s162 + $0x4fc] sm:%s155]
                %187 = vst [vmem:[%s163 + $0x2c0] sm:%s155] %v186
                %v188 = vld [vmem:[%s162 + $0x570] sm:%s155]
                %189 = vst [vmem:[%s163 + $0x300] sm:%s155] %v188
                %v190 = vld [vmem:[%s162 + $0x5e4] sm:%s155]
                %191 = vst [vmem:[%s163 + $0x340] sm:%s155] %v190
                %v192 = vld [vmem:[%s162 + $0x658] sm:%s155]
                %193 = vst [vmem:[%s163 + $0x380] sm:%s155] %v192
                %v194 = vld [vmem:[%s162 + $0x6cc] sm:%s155]
                %195 = vst [vmem:[%s163 + $0x3c0] sm:%s155] %v194
                %v196 = vld [vmem:[%s162 + $0x740] sm:%s155]
                %197 = vst [vmem:[%s163 + $0x400] sm:%s155] %v196
                %v198 = vld [vmem:[%s162 + $0x7b4] sm:%s155]
                %199 = vst [vmem:[%s163 + $0x440] sm:%s155] %v198
              $region45: #{fstn_forward.4} parent=39 // loop_footer
                %s161 = sadd.s32 1, %s157
              $region46: #{fstn_forward.4} parent=39 // loop_footer_branch
                %156 = sbr.rel target = $region42
              $region47: #{fstn_forward.4} parent=39 // loop_exit
                _
            $region40: #{fstn_forward.4} parent=31 // pred_fallthru
              _
          $region32: #{fstn_forward.4} parent=27 // pred_fallthru
            _
          %557 = vnop
        $region28: #{fstn_forward.4} parent=23 // pred_fallthru
          _
      $region24: #{fstn_forward.4} parent=5 // pred_fallthru
        _
      %p558 = scmp.le.s32.totalorder 1, %s9
      %p559 = scmp.lt.s32.totalorder %s9, 3
      %p560 = pnand %p558, %p559
      %p561 = pneg %p560
      // Predicated region
      $region91: #{fstn_forward.4} parent=5 // pred_check
        _
      $region92: #{fstn_forward.4} parent=5 // pred_check_branch
        %563 = sbr.rel (%p560) target = $region94
      $region93: #{fstn_forward.4} parent=5 // pred_region
        %s564 = ssub.s32 %s9, 1
        %s565 = sand.u32 %s43, 1
        %s566 = sand.u32 %s43, 1
        %s567 = smul.addr %s566, 1152
        %s568 = scalar_lea.vmem [#allocation2], %s567
        // Predicated region
        $region95: #{fstn_forward.4} parent=93 // pred_check
          %p569 = pneg %p56
        $region96: #{fstn_forward.4} parent=93 // pred_check_branch
          %571 = sbr.rel (%p569) target = $region98
        $region97: #{fstn_forward.4} parent=93 // pred_region
          _
        $region98: #{fstn_forward.4} parent=93 // pred_fallthru
          _
        %p572 = pneg %p30
        %p573 = pneg %p27
        %s574 = sand.u32 %s43, 1
        %s575 = sand.u32 %s43, 1
        %s576 = smul.addr %s575, 1152
        %s577 = scalar_lea.vmem [#allocation2], %s576
        %p578 = pneg %p56
        %p579 = pneg %p53
        %p580 = pneg %p77
        %p581 = pneg %p74
        %p582 = pneg %p103
        %p583 = pneg %p100
        %s584 = sand.u32 %s90, 1
        %s585 = sand.u32 %s90, 1
        %s586 = smul.addr %s585, 128
        %s587 = scalar_lea.vmem [#allocation3], %s586
        %s588 = smul.u32 16, %s14
        %s589 = ssub.s32 29, %s588
        %p590 = scmp.lt.s32.totalorder %s589, 16
        %s591 = scalar_select %p590, %s589, 16
        %s592 = smul.u32 72, %s591
        %s593 = smul.u32 16, %s14
        %s594 = ssub.s32 29, %s593
        %p595 = scmp.lt.s32.totalorder %s594, 16
        %s596 = scalar_select %p595, %s594, 16
        %s597 = smul.u32 8, %s596
        %v599 = vld [vmem:[%s0] sm:$0xff]
        %v600 = vld [vmem:[%s0 + $0x8] sm:$0xff]
        %v601 = vld [vmem:[%s568] sm:$0xff]
        %v602 = vld [vmem:[%s568 + $0x8] sm:$0xff]
        %v603 = vld [vmem:[%s568 + $0x10] sm:$0xff]
        %v604 = vld [vmem:[%s568 + $0x18] sm:$0xff]
        %v605 = vld [vmem:[%s568 + $0x20] sm:$0xff]
        %v606 = vld [vmem:[%s568 + $0x28] sm:$0xff]
        %v607 = vld [vmem:[%s568 + $0x30] sm:$0xff]
        %v608 = vld [vmem:[%s568 + $0x38] sm:$0xff]
        %v609 = vld [vmem:[%s568 + $0x40] sm:$0xff]
        %v610 = vld [vmem:[%s568 + $0x48] sm:$0xff]
        %v611 = vld [vmem:[%s568 + $0x50] sm:$0xff]
        %v612 = vld [vmem:[%s568 + $0x58] sm:$0xff]
        %v613 = vld [vmem:[%s568 + $0x60] sm:$0xff]
        %v614 = vld [vmem:[%s568 + $0x68] sm:$0xff]
        %v615 = vld [vmem:[%s568 + $0x70] sm:$0xff]
        %v616 = vld [vmem:[%s568 + $0x78] sm:$0xff]
        %v617 = vld [vmem:[%s568 + $0x80] sm:$0xff]
        %v618 = vld [vmem:[%s568 + $0x88] sm:$0xff]
        %v619 = vld [vmem:[%s568 + $0x90] sm:$0xff]
        %v620 = vld [vmem:[%s568 + $0x98] sm:$0xff]
        %v621 = vld [vmem:[%s568 + $0xa0] sm:$0xff]
        %v622 = vld [vmem:[%s568 + $0xa8] sm:$0xff]
        %v623 = vld [vmem:[%s568 + $0xb0] sm:$0xff]
        %v624 = vld [vmem:[%s568 + $0xb8] sm:$0xff]
        %v625 = vld [vmem:[%s568 + $0xc0] sm:$0xff]
        %v626 = vld [vmem:[%s568 + $0xc8] sm:$0xff]
        %v627 = vld [vmem:[%s568 + $0xd0] sm:$0xff]
        %v628 = vld [vmem:[%s568 + $0xd8] sm:$0xff]
        %v629 = vld [vmem:[%s568 + $0xe0] sm:$0xff]
        %v630 = vld [vmem:[%s568 + $0xe8] sm:$0xff]
        %v631 = vld [vmem:[%s568 + $0xf0] sm:$0xff]
        %v632 = vld [vmem:[%s568 + $0xf8] sm:$0xff]
        %v633 = vld [vmem:[%s568 + $0x100] sm:$0xff]
        %v634 = vld [vmem:[%s568 + $0x108] sm:$0xff]
        %v635 = vld [vmem:[%s568 + $0x110] sm:$0xff]
        %v636 = vld [vmem:[%s568 + $0x118] sm:$0xff]
        %v637 = vld [vmem:[%s568 + $0x120] sm:$0xff]
        %v638 = vld [vmem:[%s568 + $0x128] sm:$0xff]
        %v639 = vld [vmem:[%s568 + $0x130] sm:$0xff]
        %v640 = vld [vmem:[%s568 + $0x138] sm:$0xff]
        %v641 = vld [vmem:[%s568 + $0x140] sm:$0xff]
        %v642 = vld [vmem:[%s568 + $0x148] sm:$0xff]
        %v643 = vld [vmem:[%s568 + $0x150] sm:$0xff]
        %v644 = vld [vmem:[%s568 + $0x158] sm:$0xff]
        %v645 = vld [vmem:[%s568 + $0x160] sm:$0xff]
        %v646 = vld [vmem:[%s568 + $0x168] sm:$0xff]
        %v647 = vld [vmem:[%s568 + $0x170] sm:$0xff]
        %v648 = vld [vmem:[%s568 + $0x178] sm:$0xff]
        %v649 = vld [vmem:[%s568 + $0x180] sm:$0xff]
        %v650 = vld [vmem:[%s568 + $0x188] sm:$0xff]
        %v651 = vld [vmem:[%s568 + $0x190] sm:$0xff]
        %v652 = vld [vmem:[%s568 + $0x198] sm:$0xff]
        %v653 = vld [vmem:[%s568 + $0x1a0] sm:$0xff]
        %v654 = vld [vmem:[%s568 + $0x1a8] sm:$0xff]
        %v655 = vld [vmem:[%s568 + $0x1b0] sm:$0xff]
        %v656 = vld [vmem:[%s568 + $0x1b8] sm:$0xff]
        %v657 = vld [vmem:[%s568 + $0x1c0] sm:$0xff]
        %v658 = vld [vmem:[%s568 + $0x1c8] sm:$0xff]
        %v659 = vld [vmem:[%s568 + $0x1d0] sm:$0xff]
        %v660 = vld [vmem:[%s568 + $0x1d8] sm:$0xff]
        %v661 = vld [vmem:[%s568 + $0x1e0] sm:$0xff]
        %v662 = vld [vmem:[%s568 + $0x1e8] sm:$0xff]
        %v663 = vld [vmem:[%s568 + $0x1f0] sm:$0xff]
        %v664 = vld [vmem:[%s568 + $0x1f8] sm:$0xff]
        %v665 = vld [vmem:[%s568 + $0x200] sm:$0xff]
        %v666 = vld [vmem:[%s568 + $0x208] sm:$0xff]
        %v667 = vld [vmem:[%s568 + $0x210] sm:$0xff]
        %v668 = vld [vmem:[%s568 + $0x218] sm:$0xff]
        %v669 = vld [vmem:[%s568 + $0x220] sm:$0xff]
        %v670 = vld [vmem:[%s568 + $0x228] sm:$0xff]
        %v671 = vld [vmem:[%s568 + $0x230] sm:$0xff]
        %v672 = vld [vmem:[%s568 + $0x238] sm:$0xff]
        %v673 = vld [vmem:[%s568 + $0x240] sm:$0xff]
        %v674 = vld [vmem:[%s568 + $0x248] sm:$0xff]
        %v675 = vld [vmem:[%s568 + $0x250] sm:$0xff]
        %v676 = vld [vmem:[%s568 + $0x258] sm:$0xff]
        %v677 = vld [vmem:[%s568 + $0x260] sm:$0xff]
        %v678 = vld [vmem:[%s568 + $0x268] sm:$0xff]
        %v679 = vld [vmem:[%s568 + $0x270] sm:$0xff]
        %v680 = vld [vmem:[%s568 + $0x278] sm:$0xff]
        %v681 = vld [vmem:[%s568 + $0x280] sm:$0xff]
        %v682 = vld [vmem:[%s568 + $0x288] sm:$0xff]
        %v683 = vld [vmem:[%s568 + $0x290] sm:$0xff]
        %v684 = vld [vmem:[%s568 + $0x298] sm:$0xff]
        %v685 = vld [vmem:[%s568 + $0x2a0] sm:$0xff]
        %v686 = vld [vmem:[%s568 + $0x2a8] sm:$0xff]
        %v687 = vld [vmem:[%s568 + $0x2b0] sm:$0xff]
        %v688 = vld [vmem:[%s568 + $0x2b8] sm:$0xff]
        %v689 = vld [vmem:[%s568 + $0x2c0] sm:$0xff]
        %v690 = vld [vmem:[%s568 + $0x2c8] sm:$0xff]
        %v691 = vld [vmem:[%s568 + $0x2d0] sm:$0xff]
        %v692 = vld [vmem:[%s568 + $0x2d8] sm:$0xff]
        %v693 = vld [vmem:[%s568 + $0x2e0] sm:$0xff]
        %v694 = vld [vmem:[%s568 + $0x2e8] sm:$0xff]
        %v695 = vld [vmem:[%s568 + $0x2f0] sm:$0xff]
        %v696 = vld [vmem:[%s568 + $0x2f8] sm:$0xff]
        %v697 = vld [vmem:[%s568 + $0x300] sm:$0xff]
        %v698 = vld [vmem:[%s568 + $0x308] sm:$0xff]
        %v699 = vld [vmem:[%s568 + $0x310] sm:$0xff]
        %v700 = vld [vmem:[%s568 + $0x318] sm:$0xff]
        %v701 = vld [vmem:[%s568 + $0x320] sm:$0xff]
        %v702 = vld [vmem:[%s568 + $0x328] sm:$0xff]
        %v703 = vld [vmem:[%s568 + $0x330] sm:$0xff]
        %v704 = vld [vmem:[%s568 + $0x338] sm:$0xff]
        %v705 = vld [vmem:[%s568 + $0x340] sm:$0xff]
        %v706 = vld [vmem:[%s568 + $0x348] sm:$0xff]
        %v707 = vld [vmem:[%s568 + $0x350] sm:$0xff]
        %v708 = vld [vmem:[%s568 + $0x358] sm:$0xff]
        %v709 = vld [vmem:[%s568 + $0x360] sm:$0xff]
        %v710 = vld [vmem:[%s568 + $0x368] sm:$0xff]
        %v711 = vld [vmem:[%s568 + $0x370] sm:$0xff]
        %v712 = vld [vmem:[%s568 + $0x378] sm:$0xff]
        %v713 = vld [vmem:[%s568 + $0x380] sm:$0xff]
        %v714 = vld [vmem:[%s568 + $0x388] sm:$0xff]
        %v715 = vld [vmem:[%s568 + $0x390] sm:$0xff]
        %v716 = vld [vmem:[%s568 + $0x398] sm:$0xff]
        %v717 = vld [vmem:[%s568 + $0x3a0] sm:$0xff]
        %v718 = vld [vmem:[%s568 + $0x3a8] sm:$0xff]
        %v719 = vld [vmem:[%s568 + $0x3b0] sm:$0xff]
        %v720 = vld [vmem:[%s568 + $0x3b8] sm:$0xff]
        %v721 = vld [vmem:[%s568 + $0x3c0] sm:$0xff]
        %v722 = vld [vmem:[%s568 + $0x3c8] sm:$0xff]
        %v723 = vld [vmem:[%s568 + $0x3d0] sm:$0xff]
        %v724 = vld [vmem:[%s568 + $0x3d8] sm:$0xff]
        %v725 = vld [vmem:[%s568 + $0x3e0] sm:$0xff]
        %v726 = vld [vmem:[%s568 + $0x3e8] sm:$0xff]
        %v727 = vld [vmem:[%s568 + $0x3f0] sm:$0xff]
        %v728 = vld [vmem:[%s568 + $0x3f8] sm:$0xff]
        %v729 = vld [vmem:[%s568 + $0x400] sm:$0xff]
        %v730 = vld [vmem:[%s568 + $0x408] sm:$0xff]
        %v731 = vld [vmem:[%s568 + $0x410] sm:$0xff]
        %v732 = vld [vmem:[%s568 + $0x418] sm:$0xff]
        %v733 = vld [vmem:[%s568 + $0x420] sm:$0xff]
        %v734 = vld [vmem:[%s568 + $0x428] sm:$0xff]
        %v735 = vld [vmem:[%s568 + $0x430] sm:$0xff]
        %v736 = vld [vmem:[%s568 + $0x438] sm:$0xff]
        %v737 = vld [vmem:[%s568 + $0x440] sm:$0xff]
        %v738 = vld [vmem:[%s568 + $0x448] sm:$0xff]
        %v739 = vld [vmem:[%s568 + $0x450] sm:$0xff]
        %v740 = vld [vmem:[%s568 + $0x458] sm:$0xff]
        %v741 = vld [vmem:[%s568 + $0x460] sm:$0xff]
        %v742 = vld [vmem:[%s568 + $0x468] sm:$0xff]
        %v743 = vld [vmem:[%s568 + $0x470] sm:$0xff]
        %v744 = vld [vmem:[%s568 + $0x478] sm:$0xff]
        %v745 = vld [vmem:[%s2] sm:$0xff]
        %v746 = vld [vmem:[%s2 + $0x8] sm:$0xff]
        %748 = vset.pattern.permute.xlu0 0
        %749 = vperm.xlu0 %748, %v745
        %v750 = vpop.permute.xlu0 %749
        %753 = vset.pattern.permute.xlu0 0
        %754 = vperm.xlu0 %753, %v746
        %v755 = vpop.permute.xlu0 %754
        %v759 = vunpack.c.l.b16 %v599
        %v760 = vunpack.c.h.b16 %v599
        %v761 = vunpack.c.l.b16 %v600
        %v762 = vunpack.c.h.b16 %v600
        %v763 = vpack.c.b16 %v761, %v759
        %v764 = vpack.c.b16 %v762, %v760
        %v910 = vunpack.c.l.b16 %v601
        %v911 = vunpack.c.h.b16 %v601
        %v912 = vunpack.c.l.b16 %v602
        %v913 = vunpack.c.h.b16 %v602
        %v914 = vunpack.c.l.b16 %v603
        %v915 = vunpack.c.h.b16 %v603
        %v916 = vunpack.c.l.b16 %v604
        %v917 = vunpack.c.h.b16 %v604
        %v918 = vunpack.c.l.b16 %v605
        %v919 = vunpack.c.h.b16 %v605
        %v920 = vunpack.c.l.b16 %v606
        %v921 = vunpack.c.h.b16 %v606
        %v922 = vunpack.c.l.b16 %v607
        %v923 = vunpack.c.h.b16 %v607
        %v924 = vunpack.c.l.b16 %v608
        %v925 = vunpack.c.h.b16 %v608
        %v926 = vunpack.c.l.b16 %v609
        %v927 = vunpack.c.h.b16 %v609
        %v928 = vunpack.c.l.b16 %v610
        %v929 = vunpack.c.h.b16 %v610
        %v930 = vunpack.c.l.b16 %v611
        %v931 = vunpack.c.h.b16 %v611
        %v932 = vunpack.c.l.b16 %v612
        %v933 = vunpack.c.h.b16 %v612
        %v934 = vunpack.c.l.b16 %v613
        %v935 = vunpack.c.h.b16 %v613
        %v936 = vunpack.c.l.b16 %v614
        %v937 = vunpack.c.h.b16 %v614
        %v938 = vunpack.c.l.b16 %v615
        %v939 = vunpack.c.h.b16 %v615
        %v940 = vunpack.c.l.b16 %v616
        %v941 = vunpack.c.h.b16 %v616
        %v942 = vunpack.c.l.b16 %v617
        %v943 = vunpack.c.h.b16 %v617
        %v944 = vunpack.c.l.b16 %v618
        %v945 = vunpack.c.h.b16 %v618
        %v946 = vunpack.c.l.b16 %v619
        %v947 = vunpack.c.h.b16 %v619
        %v948 = vunpack.c.l.b16 %v620
        %v949 = vunpack.c.h.b16 %v620
        %v950 = vunpack.c.l.b16 %v621
        %v951 = vunpack.c.h.b16 %v621
        %v952 = vunpack.c.l.b16 %v622
        %v953 = vunpack.c.h.b16 %v622
        %v954 = vunpack.c.l.b16 %v623
        %v955 = vunpack.c.h.b16 %v623
        %v956 = vunpack.c.l.b16 %v624
        %v957 = vunpack.c.h.b16 %v624
        %v958 = vunpack.c.l.b16 %v625
        %v959 = vunpack.c.h.b16 %v625
        %v960 = vunpack.c.l.b16 %v626
        %v961 = vunpack.c.h.b16 %v626
        %v962 = vunpack.c.l.b16 %v627
        %v963 = vunpack.c.h.b16 %v627
        %v964 = vunpack.c.l.b16 %v628
        %v965 = vunpack.c.h.b16 %v628
        %v966 = vunpack.c.l.b16 %v629
        %v967 = vunpack.c.h.b16 %v629
        %v968 = vunpack.c.l.b16 %v630
        %v969 = vunpack.c.h.b16 %v630
        %v970 = vunpack.c.l.b16 %v631
        %v971 = vunpack.c.h.b16 %v631
        %v972 = vunpack.c.l.b16 %v632
        %v973 = vunpack.c.h.b16 %v632
        %v974 = vunpack.c.l.b16 %v633
        %v975 = vunpack.c.h.b16 %v633
        %v976 = vunpack.c.l.b16 %v634
        %v977 = vunpack.c.h.b16 %v634
        %v978 = vunpack.c.l.b16 %v635
        %v979 = vunpack.c.h.b16 %v635
        %v980 = vunpack.c.l.b16 %v636
        %v981 = vunpack.c.h.b16 %v636
        %v982 = vunpack.c.l.b16 %v637
        %v983 = vunpack.c.h.b16 %v637
        %v984 = vunpack.c.l.b16 %v638
        %v985 = vunpack.c.h.b16 %v638
        %v986 = vunpack.c.l.b16 %v639
        %v987 = vunpack.c.h.b16 %v639
        %v988 = vunpack.c.l.b16 %v640
        %v989 = vunpack.c.h.b16 %v640
        %v990 = vunpack.c.l.b16 %v641
        %v991 = vunpack.c.h.b16 %v641
        %v992 = vunpack.c.l.b16 %v642
        %v993 = vunpack.c.h.b16 %v642
        %v994 = vunpack.c.l.b16 %v643
        %v995 = vunpack.c.h.b16 %v643
        %v996 = vunpack.c.l.b16 %v644
        %v997 = vunpack.c.h.b16 %v644
        %v998 = vunpack.c.l.b16 %v645
        %v999 = vunpack.c.h.b16 %v645
        %v1000 = vunpack.c.l.b16 %v646
        %v1001 = vunpack.c.h.b16 %v646
        %v1002 = vunpack.c.l.b16 %v647
        %v1003 = vunpack.c.h.b16 %v647
        %v1004 = vunpack.c.l.b16 %v648
        %v1005 = vunpack.c.h.b16 %v648
        %v1006 = vunpack.c.l.b16 %v649
        %v1007 = vunpack.c.h.b16 %v649
        %v1008 = vunpack.c.l.b16 %v650
        %v1009 = vunpack.c.h.b16 %v650
        %v1010 = vunpack.c.l.b16 %v651
        %v1011 = vunpack.c.h.b16 %v651
        %v1012 = vunpack.c.l.b16 %v652
        %v1013 = vunpack.c.h.b16 %v652
        %v1014 = vunpack.c.l.b16 %v653
        %v1015 = vunpack.c.h.b16 %v653
        %v1016 = vunpack.c.l.b16 %v654
        %v1017 = vunpack.c.h.b16 %v654
        %v1018 = vunpack.c.l.b16 %v655
        %v1019 = vunpack.c.h.b16 %v655
        %v1020 = vunpack.c.l.b16 %v656
        %v1021 = vunpack.c.h.b16 %v656
        %v1022 = vunpack.c.l.b16 %v657
        %v1023 = vunpack.c.h.b16 %v657
        %v1024 = vunpack.c.l.b16 %v658
        %v1025 = vunpack.c.h.b16 %v658
        %v1026 = vunpack.c.l.b16 %v659
        %v1027 = vunpack.c.h.b16 %v659
        %v1028 = vunpack.c.l.b16 %v660
        %v1029 = vunpack.c.h.b16 %v660
        %v1030 = vunpack.c.l.b16 %v661
        %v1031 = vunpack.c.h.b16 %v661
        %v1032 = vunpack.c.l.b16 %v662
        %v1033 = vunpack.c.h.b16 %v662
        %v1034 = vunpack.c.l.b16 %v663
        %v1035 = vunpack.c.h.b16 %v663
        %v1036 = vunpack.c.l.b16 %v664
        %v1037 = vunpack.c.h.b16 %v664
        %v1038 = vunpack.c.l.b16 %v665
        %v1039 = vunpack.c.h.b16 %v665
        %v1040 = vunpack.c.l.b16 %v666
        %v1041 = vunpack.c.h.b16 %v666
        %v1042 = vunpack.c.l.b16 %v667
        %v1043 = vunpack.c.h.b16 %v667
        %v1044 = vunpack.c.l.b16 %v668
        %v1045 = vunpack.c.h.b16 %v668
        %v1046 = vunpack.c.l.b16 %v669
        %v1047 = vunpack.c.h.b16 %v669
        %v1048 = vunpack.c.l.b16 %v670
        %v1049 = vunpack.c.h.b16 %v670
        %v1050 = vunpack.c.l.b16 %v671
        %v1051 = vunpack.c.h.b16 %v671
        %v1052 = vunpack.c.l.b16 %v672
        %v1053 = vunpack.c.h.b16 %v672
        %v1054 = vunpack.c.l.b16 %v673
        %v1055 = vunpack.c.h.b16 %v673
        %v1056 = vunpack.c.l.b16 %v674
        %v1057 = vunpack.c.h.b16 %v674
        %v1058 = vunpack.c.l.b16 %v675
        %v1059 = vunpack.c.h.b16 %v675
        %v1060 = vunpack.c.l.b16 %v676
        %v1061 = vunpack.c.h.b16 %v676
        %v1062 = vunpack.c.l.b16 %v677
        %v1063 = vunpack.c.h.b16 %v677
        %v1064 = vunpack.c.l.b16 %v678
        %v1065 = vunpack.c.h.b16 %v678
        %v1066 = vunpack.c.l.b16 %v679
        %v1067 = vunpack.c.h.b16 %v679
        %v1068 = vunpack.c.l.b16 %v680
        %v1069 = vunpack.c.h.b16 %v680
        %v1070 = vunpack.c.l.b16 %v681
        %v1071 = vunpack.c.h.b16 %v681
        %v1072 = vunpack.c.l.b16 %v682
        %v1073 = vunpack.c.h.b16 %v682
        %v1074 = vunpack.c.l.b16 %v683
        %v1075 = vunpack.c.h.b16 %v683
        %v1076 = vunpack.c.l.b16 %v684
        %v1077 = vunpack.c.h.b16 %v684
        %v1078 = vunpack.c.l.b16 %v685
        %v1079 = vunpack.c.h.b16 %v685
        %v1080 = vunpack.c.l.b16 %v686
        %v1081 = vunpack.c.h.b16 %v686
        %v1082 = vunpack.c.l.b16 %v687
        %v1083 = vunpack.c.h.b16 %v687
        %v1084 = vunpack.c.l.b16 %v688
        %v1085 = vunpack.c.h.b16 %v688
        %v1086 = vunpack.c.l.b16 %v689
        %v1087 = vunpack.c.h.b16 %v689
        %v1088 = vunpack.c.l.b16 %v690
        %v1089 = vunpack.c.h.b16 %v690
        %v1090 = vunpack.c.l.b16 %v691
        %v1091 = vunpack.c.h.b16 %v691
        %v1092 = vunpack.c.l.b16 %v692
        %v1093 = vunpack.c.h.b16 %v692
        %v1094 = vunpack.c.l.b16 %v693
        %v1095 = vunpack.c.h.b16 %v693
        %v1096 = vunpack.c.l.b16 %v694
        %v1097 = vunpack.c.h.b16 %v694
        %v1098 = vunpack.c.l.b16 %v695
        %v1099 = vunpack.c.h.b16 %v695
        %v1100 = vunpack.c.l.b16 %v696
        %v1101 = vunpack.c.h.b16 %v696
        %v1102 = vunpack.c.l.b16 %v697
        %v1103 = vunpack.c.h.b16 %v697
        %v1104 = vunpack.c.l.b16 %v698
        %v1105 = vunpack.c.h.b16 %v698
        %v1106 = vunpack.c.l.b16 %v699
        %v1107 = vunpack.c.h.b16 %v699
        %v1108 = vunpack.c.l.b16 %v700
        %v1109 = vunpack.c.h.b16 %v700
        %v1110 = vunpack.c.l.b16 %v701
        %v1111 = vunpack.c.h.b16 %v701
        %v1112 = vunpack.c.l.b16 %v702
        %v1113 = vunpack.c.h.b16 %v702
        %v1114 = vunpack.c.l.b16 %v703
        %v1115 = vunpack.c.h.b16 %v703
        %v1116 = vunpack.c.l.b16 %v704
        %v1117 = vunpack.c.h.b16 %v704
        %v1118 = vunpack.c.l.b16 %v705
        %v1119 = vunpack.c.h.b16 %v705
        %v1120 = vunpack.c.l.b16 %v706
        %v1121 = vunpack.c.h.b16 %v706
        %v1122 = vunpack.c.l.b16 %v707
        %v1123 = vunpack.c.h.b16 %v707
        %v1124 = vunpack.c.l.b16 %v708
        %v1125 = vunpack.c.h.b16 %v708
        %v1126 = vunpack.c.l.b16 %v709
        %v1127 = vunpack.c.h.b16 %v709
        %v1128 = vunpack.c.l.b16 %v710
        %v1129 = vunpack.c.h.b16 %v710
        %v1130 = vunpack.c.l.b16 %v711
        %v1131 = vunpack.c.h.b16 %v711
        %v1132 = vunpack.c.l.b16 %v712
        %v1133 = vunpack.c.h.b16 %v712
        %v1134 = vunpack.c.l.b16 %v713
        %v1135 = vunpack.c.h.b16 %v713
        %v1136 = vunpack.c.l.b16 %v714
        %v1137 = vunpack.c.h.b16 %v714
        %v1138 = vunpack.c.l.b16 %v715
        %v1139 = vunpack.c.h.b16 %v715
        %v1140 = vunpack.c.l.b16 %v716
        %v1141 = vunpack.c.h.b16 %v716
        %v1142 = vunpack.c.l.b16 %v717
        %v1143 = vunpack.c.h.b16 %v717
        %v1144 = vunpack.c.l.b16 %v718
        %v1145 = vunpack.c.h.b16 %v718
        %v1146 = vunpack.c.l.b16 %v719
        %v1147 = vunpack.c.h.b16 %v719
        %v1148 = vunpack.c.l.b16 %v720
        %v1149 = vunpack.c.h.b16 %v720
        %v1150 = vunpack.c.l.b16 %v721
        %v1151 = vunpack.c.h.b16 %v721
        %v1152 = vunpack.c.l.b16 %v722
        %v1153 = vunpack.c.h.b16 %v722
        %v1154 = vunpack.c.l.b16 %v723
        %v1155 = vunpack.c.h.b16 %v723
        %v1156 = vunpack.c.l.b16 %v724
        %v1157 = vunpack.c.h.b16 %v724
        %v1158 = vunpack.c.l.b16 %v725
        %v1159 = vunpack.c.h.b16 %v725
        %v1160 = vunpack.c.l.b16 %v726
        %v1161 = vunpack.c.h.b16 %v726
        %v1162 = vunpack.c.l.b16 %v727
        %v1163 = vunpack.c.h.b16 %v727
        %v1164 = vunpack.c.l.b16 %v728
        %v1165 = vunpack.c.h.b16 %v728
        %v1166 = vunpack.c.l.b16 %v729
        %v1167 = vunpack.c.h.b16 %v729
        %v1168 = vunpack.c.l.b16 %v730
        %v1169 = vunpack.c.h.b16 %v730
        %v1170 = vunpack.c.l.b16 %v731
        %v1171 = vunpack.c.h.b16 %v731
        %v1172 = vunpack.c.l.b16 %v732
        %v1173 = vunpack.c.h.b16 %v732
        %v1174 = vunpack.c.l.b16 %v733
        %v1175 = vunpack.c.h.b16 %v733
        %v1176 = vunpack.c.l.b16 %v734
        %v1177 = vunpack.c.h.b16 %v734
        %v1178 = vunpack.c.l.b16 %v735
        %v1179 = vunpack.c.h.b16 %v735
        %v1180 = vunpack.c.l.b16 %v736
        %v1181 = vunpack.c.h.b16 %v736
        %v1182 = vunpack.c.l.b16 %v737
        %v1183 = vunpack.c.h.b16 %v737
        %v1184 = vunpack.c.l.b16 %v738
        %v1185 = vunpack.c.h.b16 %v738
        %v1186 = vunpack.c.l.b16 %v739
        %v1187 = vunpack.c.h.b16 %v739
        %v1188 = vunpack.c.l.b16 %v740
        %v1189 = vunpack.c.h.b16 %v740
        %v1190 = vunpack.c.l.b16 %v741
        %v1191 = vunpack.c.h.b16 %v741
        %v1192 = vunpack.c.l.b16 %v742
        %v1193 = vunpack.c.h.b16 %v742
        %v1194 = vunpack.c.l.b16 %v743
        %v1195 = vunpack.c.h.b16 %v743
        %v1196 = vunpack.c.l.b16 %v744
        %v1197 = vunpack.c.h.b16 %v744
        %v1198 = vpack.c.b16 %v926, %v910
        %v1199 = vpack.c.b16 %v927, %v911
        %v1200 = vpack.c.b16 %v928, %v912
        %v1201 = vpack.c.b16 %v929, %v913
        %v1202 = vpack.c.b16 %v930, %v914
        %v1203 = vpack.c.b16 %v931, %v915
        %v1204 = vpack.c.b16 %v932, %v916
        %v1205 = vpack.c.b16 %v933, %v917
        %v1206 = vpack.c.b16 %v934, %v918
        %v1207 = vpack.c.b16 %v935, %v919
        %v1208 = vpack.c.b16 %v936, %v920
        %v1209 = vpack.c.b16 %v937, %v921
        %v1210 = vpack.c.b16 %v938, %v922
        %v1211 = vpack.c.b16 %v939, %v923
        %v1212 = vpack.c.b16 %v940, %v924
        %v1213 = vpack.c.b16 %v941, %v925
        %v1214 = vpack.c.b16 %v958, %v942
        %v1215 = vpack.c.b16 %v959, %v943
        %v1216 = vpack.c.b16 %v960, %v944
        %v1217 = vpack.c.b16 %v961, %v945
        %v1218 = vpack.c.b16 %v962, %v946
        %v1219 = vpack.c.b16 %v963, %v947
        %v1220 = vpack.c.b16 %v964, %v948
        %v1221 = vpack.c.b16 %v965, %v949
        %v1222 = vpack.c.b16 %v966, %v950
        %v1223 = vpack.c.b16 %v967, %v951
        %v1224 = vpack.c.b16 %v968, %v952
        %v1225 = vpack.c.b16 %v969, %v953
        %v1226 = vpack.c.b16 %v970, %v954
        %v1227 = vpack.c.b16 %v971, %v955
        %v1228 = vpack.c.b16 %v972, %v956
        %v1229 = vpack.c.b16 %v973, %v957
        %v1230 = vpack.c.b16 %v990, %v974
        %v1231 = vpack.c.b16 %v991, %v975
        %v1232 = vpack.c.b16 %v992, %v976
        %v1233 = vpack.c.b16 %v993, %v977
        %v1234 = vpack.c.b16 %v994, %v978
        %v1235 = vpack.c.b16 %v995, %v979
        %v1236 = vpack.c.b16 %v996, %v980
        %v1237 = vpack.c.b16 %v997, %v981
        %v1238 = vpack.c.b16 %v998, %v982
        %v1239 = vpack.c.b16 %v999, %v983
        %v1240 = vpack.c.b16 %v1000, %v984
        %v1241 = vpack.c.b16 %v1001, %v985
        %v1242 = vpack.c.b16 %v1002, %v986
        %v1243 = vpack.c.b16 %v1003, %v987
        %v1244 = vpack.c.b16 %v1004, %v988
        %v1245 = vpack.c.b16 %v1005, %v989
        %v1246 = vpack.c.b16 %v1022, %v1006
        %v1247 = vpack.c.b16 %v1023, %v1007
        %v1248 = vpack.c.b16 %v1024, %v1008
        %v1249 = vpack.c.b16 %v1025, %v1009
        %v1250 = vpack.c.b16 %v1026, %v1010
        %v1251 = vpack.c.b16 %v1027, %v1011
        %v1252 = vpack.c.b16 %v1028, %v1012
        %v1253 = vpack.c.b16 %v1029, %v1013
        %v1254 = vpack.c.b16 %v1030, %v1014
        %v1255 = vpack.c.b16 %v1031, %v1015
        %v1256 = vpack.c.b16 %v1032, %v1016
        %v1257 = vpack.c.b16 %v1033, %v1017
        %v1258 = vpack.c.b16 %v1034, %v1018
        %v1259 = vpack.c.b16 %v1035, %v1019
        %v1260 = vpack.c.b16 %v1036, %v1020
        %v1261 = vpack.c.b16 %v1037, %v1021
        %v1262 = vpack.c.b16 %v1054, %v1038
        %v1263 = vpack.c.b16 %v1055, %v1039
        %v1264 = vpack.c.b16 %v1056, %v1040
        %v1265 = vpack.c.b16 %v1057, %v1041
        %v1266 = vpack.c.b16 %v1058, %v1042
        %v1267 = vpack.c.b16 %v1059, %v1043
        %v1268 = vpack.c.b16 %v1060, %v1044
        %v1269 = vpack.c.b16 %v1061, %v1045
        %v1270 = vpack.c.b16 %v1062, %v1046
        %v1271 = vpack.c.b16 %v1063, %v1047
        %v1272 = vpack.c.b16 %v1064, %v1048
        %v1273 = vpack.c.b16 %v1065, %v1049
        %v1274 = vpack.c.b16 %v1066, %v1050
        %v1275 = vpack.c.b16 %v1067, %v1051
        %v1276 = vpack.c.b16 %v1068, %v1052
        %v1277 = vpack.c.b16 %v1069, %v1053
        %v1278 = vpack.c.b16 %v1086, %v1070
        %v1279 = vpack.c.b16 %v1087, %v1071
        %v1280 = vpack.c.b16 %v1088, %v1072
        %v1281 = vpack.c.b16 %v1089, %v1073
        %v1282 = vpack.c.b16 %v1090, %v1074
        %v1283 = vpack.c.b16 %v1091, %v1075
        %v1284 = vpack.c.b16 %v1092, %v1076
        %v1285 = vpack.c.b16 %v1093, %v1077
        %v1286 = vpack.c.b16 %v1094, %v1078
        %v1287 = vpack.c.b16 %v1095, %v1079
        %v1288 = vpack.c.b16 %v1096, %v1080
        %v1289 = vpack.c.b16 %v1097, %v1081
        %v1290 = vpack.c.b16 %v1098, %v1082
        %v1291 = vpack.c.b16 %v1099, %v1083
        %v1292 = vpack.c.b16 %v1100, %v1084
        %v1293 = vpack.c.b16 %v1101, %v1085
        %v1294 = vpack.c.b16 %v1118, %v1102
        %v1295 = vpack.c.b16 %v1119, %v1103
        %v1296 = vpack.c.b16 %v1120, %v1104
        %v1297 = vpack.c.b16 %v1121, %v1105
        %v1298 = vpack.c.b16 %v1122, %v1106
        %v1299 = vpack.c.b16 %v1123, %v1107
        %v1300 = vpack.c.b16 %v1124, %v1108
        %v1301 = vpack.c.b16 %v1125, %v1109
        %v1302 = vpack.c.b16 %v1126, %v1110
        %v1303 = vpack.c.b16 %v1127, %v1111
        %v1304 = vpack.c.b16 %v1128, %v1112
        %v1305 = vpack.c.b16 %v1129, %v1113
        %v1306 = vpack.c.b16 %v1130, %v1114
        %v1307 = vpack.c.b16 %v1131, %v1115
        %v1308 = vpack.c.b16 %v1132, %v1116
        %v1309 = vpack.c.b16 %v1133, %v1117
        %v1310 = vpack.c.b16 %v1150, %v1134
        %v1311 = vpack.c.b16 %v1151, %v1135
        %v1312 = vpack.c.b16 %v1152, %v1136
        %v1313 = vpack.c.b16 %v1153, %v1137
        %v1314 = vpack.c.b16 %v1154, %v1138
        %v1315 = vpack.c.b16 %v1155, %v1139
        %v1316 = vpack.c.b16 %v1156, %v1140
        %v1317 = vpack.c.b16 %v1157, %v1141
        %v1318 = vpack.c.b16 %v1158, %v1142
        %v1319 = vpack.c.b16 %v1159, %v1143
        %v1320 = vpack.c.b16 %v1160, %v1144
        %v1321 = vpack.c.b16 %v1161, %v1145
        %v1322 = vpack.c.b16 %v1162, %v1146
        %v1323 = vpack.c.b16 %v1163, %v1147
        %v1324 = vpack.c.b16 %v1164, %v1148
        %v1325 = vpack.c.b16 %v1165, %v1149
        %v1326 = vpack.c.b16 %v1182, %v1166
        %v1327 = vpack.c.b16 %v1183, %v1167
        %v1328 = vpack.c.b16 %v1184, %v1168
        %v1329 = vpack.c.b16 %v1185, %v1169
        %v1330 = vpack.c.b16 %v1186, %v1170
        %v1331 = vpack.c.b16 %v1187, %v1171
        %v1332 = vpack.c.b16 %v1188, %v1172
        %v1333 = vpack.c.b16 %v1189, %v1173
        %v1334 = vpack.c.b16 %v1190, %v1174
        %v1335 = vpack.c.b16 %v1191, %v1175
        %v1336 = vpack.c.b16 %v1192, %v1176
        %v1337 = vpack.c.b16 %v1193, %v1177
        %v1338 = vpack.c.b16 %v1194, %v1178
        %v1339 = vpack.c.b16 %v1195, %v1179
        %v1340 = vpack.c.b16 %v1196, %v1180
        %v1341 = vpack.c.b16 %v1197, %v1181
        %vm1486 = vcmask 130048
        %v1488 = vsel %vm1486, %v764, 0
        %1490 = vmatpush.bf16.msra.mxu0 %v1310
        %1491 = vmatpush.bf16.msra.mxu0 %v1294
        %1492 = vmatpush.bf16.msra.mxu0 %v1278
        %1493 = vmatpush.bf16.msra.mxu0 %v1262
        %1494 = vmatpush.bf16.msra.mxu0 %v1246
        %1495 = vmatpush.bf16.msra.mxu0 %v1230
        %1496 = vmatpush.bf16.msra.mxu0 %v1214
        %1497 = vmatpush.bf16.msra.mxu0 %v1198
        %1498 = vmatmul.bf16.gmra.mxu0 %v763
        %v1499 = vpop.f32.mrf.mxu0
        %v1500 = vadd.f32 %v750, %v1499
        %v1501 = vpop.f32.mrf.mxu0
        %v1502 = vadd.f32 %v755, %v1501
        %1503 = vdwg.mxu0
        %1504 = vmatpush.bf16.msra.mxu0 0
        %1505 = vmatpush.bf16.msra.mxu0 0
        %1506 = vmatpush.bf16.msra.mxu0 0
        %1507 = vmatpush.bf16.msra.mxu0 0
        %1508 = vmatpush.bf16.msra.mxu0 0
        %1509 = vmatpush.bf16.msra.mxu0 0
        %1510 = vmatpush.bf16.msra.mxu0 0
        %1511 = vmatpush.bf16.msra.mxu0 %v1326
        %1512 = vmatmul.bf16.gmra.mxu0 %v1488
        %v1513 = vpop.f32.mrf.mxu0
        %v1514 = vadd.f32 %v1500, %v1513
        %v1515 = vpop.f32.mrf.mxu0
        %v1516 = vadd.f32 %v1502, %v1515
        %1517 = vdwg.mxu0
        %1518 = vmatpush.bf16.msra.mxu0 %v1311
        %1519 = vmatpush.bf16.msra.mxu0 %v1295
        %1520 = vmatpush.bf16.msra.mxu0 %v1279
        %1521 = vmatpush.bf16.msra.mxu0 %v1263
        %1522 = vmatpush.bf16.msra.mxu0 %v1247
        %1523 = vmatpush.bf16.msra.mxu0 %v1231
        %1524 = vmatpush.bf16.msra.mxu0 %v1215
        %1525 = vmatpush.bf16.msra.mxu0 %v1199
        %1526 = vmatmul.bf16.gmra.mxu0 %v763
        %v1527 = vpop.f32.mrf.mxu0
        %v1528 = vadd.f32 %v750, %v1527
        %v1529 = vpop.f32.mrf.mxu0
        %v1530 = vadd.f32 %v755, %v1529
        %1531 = vdwg.mxu0
        %1532 = vmatpush.bf16.msra.mxu0 0
        %1533 = vmatpush.bf16.msra.mxu0 0
        %1534 = vmatpush.bf16.msra.mxu0 0
        %1535 = vmatpush.bf16.msra.mxu0 0
        %1536 = vmatpush.bf16.msra.mxu0 0
        %1537 = vmatpush.bf16.msra.mxu0 0
        %1538 = vmatpush.bf16.msra.mxu0 0
        %1539 = vmatpush.bf16.msra.mxu0 %v1327
        %1540 = vmatmul.bf16.gmra.mxu0 %v1488
        %v1541 = vpop.f32.mrf.mxu0
        %v1542 = vadd.f32 %v1528, %v1541
        %v1543 = vpop.f32.mrf.mxu0
        %v1544 = vadd.f32 %v1530, %v1543
        %1545 = vdwg.mxu0
        %1546 = vmatpush.bf16.msra.mxu0 %v1312
        %1547 = vmatpush.bf16.msra.mxu0 %v1296
        %1548 = vmatpush.bf16.msra.mxu0 %v1280
        %1549 = vmatpush.bf16.msra.mxu0 %v1264
        %1550 = vmatpush.bf16.msra.mxu0 %v1248
        %1551 = vmatpush.bf16.msra.mxu0 %v1232
        %1552 = vmatpush.bf16.msra.mxu0 %v1216
        %1553 = vmatpush.bf16.msra.mxu0 %v1200
        %1554 = vmatmul.bf16.gmra.mxu0 %v763
        %v1555 = vpop.f32.mrf.mxu0
        %v1556 = vadd.f32 %v750, %v1555
        %v1557 = vpop.f32.mrf.mxu0
        %v1558 = vadd.f32 %v755, %v1557
        %1559 = vdwg.mxu0
        %1560 = vmatpush.bf16.msra.mxu0 0
        %1561 = vmatpush.bf16.msra.mxu0 0
        %1562 = vmatpush.bf16.msra.mxu0 0
        %1563 = vmatpush.bf16.msra.mxu0 0
        %1564 = vmatpush.bf16.msra.mxu0 0
        %1565 = vmatpush.bf16.msra.mxu0 0
        %1566 = vmatpush.bf16.msra.mxu0 0
        %1567 = vmatpush.bf16.msra.mxu0 %v1328
        %1568 = vmatmul.bf16.gmra.mxu0 %v1488
        %v1569 = vpop.f32.mrf.mxu0
        %v1570 = vadd.f32 %v1556, %v1569
        %v1571 = vpop.f32.mrf.mxu0
        %v1572 = vadd.f32 %v1558, %v1571
        %1573 = vdwg.mxu0
        %1574 = vmatpush.bf16.msra.mxu0 %v1313
        %1575 = vmatpush.bf16.msra.mxu0 %v1297
        %1576 = vmatpush.bf16.msra.mxu0 %v1281
        %1577 = vmatpush.bf16.msra.mxu0 %v1265
        %1578 = vmatpush.bf16.msra.mxu0 %v1249
        %1579 = vmatpush.bf16.msra.mxu0 %v1233
        %1580 = vmatpush.bf16.msra.mxu0 %v1217
        %1581 = vmatpush.bf16.msra.mxu0 %v1201
        %1582 = vmatmul.bf16.gmra.mxu0 %v763
        %v1583 = vpop.f32.mrf.mxu0
        %v1584 = vadd.f32 %v750, %v1583
        %v1585 = vpop.f32.mrf.mxu0
        %v1586 = vadd.f32 %v755, %v1585
        %1587 = vdwg.mxu0
        %1588 = vmatpush.bf16.msra.mxu0 0
        %1589 = vmatpush.bf16.msra.mxu0 0
        %1590 = vmatpush.bf16.msra.mxu0 0
        %1591 = vmatpush.bf16.msra.mxu0 0
        %1592 = vmatpush.bf16.msra.mxu0 0
        %1593 = vmatpush.bf16.msra.mxu0 0
        %1594 = vmatpush.bf16.msra.mxu0 0
        %1595 = vmatpush.bf16.msra.mxu0 %v1329
        %1596 = vmatmul.bf16.gmra.mxu0 %v1488
        %v1597 = vpop.f32.mrf.mxu0
        %v1598 = vadd.f32 %v1584, %v1597
        %v1599 = vpop.f32.mrf.mxu0
        %v1600 = vadd.f32 %v1586, %v1599
        %1601 = vdwg.mxu0
        %1602 = vmatpush.bf16.msra.mxu0 %v1314
        %1603 = vmatpush.bf16.msra.mxu0 %v1298
        %1604 = vmatpush.bf16.msra.mxu0 %v1282
        %1605 = vmatpush.bf16.msra.mxu0 %v1266
        %1606 = vmatpush.bf16.msra.mxu0 %v1250
        %1607 = vmatpush.bf16.msra.mxu0 %v1234
        %1608 = vmatpush.bf16.msra.mxu0 %v1218
        %1609 = vmatpush.bf16.msra.mxu0 %v1202
        %1610 = vmatmul.bf16.gmra.mxu0 %v763
        %v1611 = vpop.f32.mrf.mxu0
        %v1612 = vadd.f32 %v750, %v1611
        %v1613 = vpop.f32.mrf.mxu0
        %v1614 = vadd.f32 %v755, %v1613
        %1615 = vdwg.mxu0
        %1616 = vmatpush.bf16.msra.mxu0 0
        %1617 = vmatpush.bf16.msra.mxu0 0
        %1618 = vmatpush.bf16.msra.mxu0 0
        %1619 = vmatpush.bf16.msra.mxu0 0
        %1620 = vmatpush.bf16.msra.mxu0 0
        %1621 = vmatpush.bf16.msra.mxu0 0
        %1622 = vmatpush.bf16.msra.mxu0 0
        %1623 = vmatpush.bf16.msra.mxu0 %v1330
        %1624 = vmatmul.bf16.gmra.mxu0 %v1488
        %v1625 = vpop.f32.mrf.mxu0
        %v1626 = vadd.f32 %v1612, %v1625
        %v1627 = vpop.f32.mrf.mxu0
        %v1628 = vadd.f32 %v1614, %v1627
        %1629 = vdwg.mxu0
        %1630 = vmatpush.bf16.msra.mxu0 %v1315
        %1631 = vmatpush.bf16.msra.mxu0 %v1299
        %1632 = vmatpush.bf16.msra.mxu0 %v1283
        %1633 = vmatpush.bf16.msra.mxu0 %v1267
        %1634 = vmatpush.bf16.msra.mxu0 %v1251
        %1635 = vmatpush.bf16.msra.mxu0 %v1235
        %1636 = vmatpush.bf16.msra.mxu0 %v1219
        %1637 = vmatpush.bf16.msra.mxu0 %v1203
        %1638 = vmatmul.bf16.gmra.mxu0 %v763
        %v1639 = vpop.f32.mrf.mxu0
        %v1640 = vadd.f32 %v750, %v1639
        %v1641 = vpop.f32.mrf.mxu0
        %v1642 = vadd.f32 %v755, %v1641
        %1643 = vdwg.mxu0
        %1644 = vmatpush.bf16.msra.mxu0 0
        %1645 = vmatpush.bf16.msra.mxu0 0
        %1646 = vmatpush.bf16.msra.mxu0 0
        %1647 = vmatpush.bf16.msra.mxu0 0
        %1648 = vmatpush.bf16.msra.mxu0 0
        %1649 = vmatpush.bf16.msra.mxu0 0
        %1650 = vmatpush.bf16.msra.mxu0 0
        %1651 = vmatpush.bf16.msra.mxu0 %v1331
        %1652 = vmatmul.bf16.gmra.mxu0 %v1488
        %v1653 = vpop.f32.mrf.mxu0
        %v1654 = vadd.f32 %v1640, %v1653
        %v1655 = vpop.f32.mrf.mxu0
        %v1656 = vadd.f32 %v1642, %v1655
        %1657 = vdwg.mxu0
        %1658 = vmatpush.bf16.msra.mxu0 %v1316
        %1659 = vmatpush.bf16.msra.mxu0 %v1300
        %1660 = vmatpush.bf16.msra.mxu0 %v1284
        %1661 = vmatpush.bf16.msra.mxu0 %v1268
        %1662 = vmatpush.bf16.msra.mxu0 %v1252
        %1663 = vmatpush.bf16.msra.mxu0 %v1236
        %1664 = vmatpush.bf16.msra.mxu0 %v1220
        %1665 = vmatpush.bf16.msra.mxu0 %v1204
        %1666 = vmatmul.bf16.gmra.mxu0 %v763
        %v1667 = vpop.f32.mrf.mxu0
        %v1668 = vadd.f32 %v750, %v1667
        %v1669 = vpop.f32.mrf.mxu0
        %v1670 = vadd.f32 %v755, %v1669
        %1671 = vdwg.mxu0
        %1672 = vmatpush.bf16.msra.mxu0 0
        %1673 = vmatpush.bf16.msra.mxu0 0
        %1674 = vmatpush.bf16.msra.mxu0 0
        %1675 = vmatpush.bf16.msra.mxu0 0
        %1676 = vmatpush.bf16.msra.mxu0 0
        %1677 = vmatpush.bf16.msra.mxu0 0
        %1678 = vmatpush.bf16.msra.mxu0 0
        %1679 = vmatpush.bf16.msra.mxu0 %v1332
        %1680 = vmatmul.bf16.gmra.mxu0 %v1488
        %v1681 = vpop.f32.mrf.mxu0
        %v1682 = vadd.f32 %v1668, %v1681
        %v1683 = vpop.f32.mrf.mxu0
        %v1684 = vadd.f32 %v1670, %v1683
        %1685 = vdwg.mxu0
        %1686 = vmatpush.bf16.msra.mxu0 %v1317
        %1687 = vmatpush.bf16.msra.mxu0 %v1301
        %1688 = vmatpush.bf16.msra.mxu0 %v1285
        %1689 = vmatpush.bf16.msra.mxu0 %v1269
        %1690 = vmatpush.bf16.msra.mxu0 %v1253
        %1691 = vmatpush.bf16.msra.mxu0 %v1237
        %1692 = vmatpush.bf16.msra.mxu0 %v1221
        %1693 = vmatpush.bf16.msra.mxu0 %v1205
        %1694 = vmatmul.bf16.gmra.mxu0 %v763
        %v1695 = vpop.f32.mrf.mxu0
        %v1696 = vadd.f32 %v750, %v1695
        %v1697 = vpop.f32.mrf.mxu0
        %v1698 = vadd.f32 %v755, %v1697
        %1699 = vdwg.mxu0
        %1700 = vmatpush.bf16.msra.mxu0 0
        %1701 = vmatpush.bf16.msra.mxu0 0
        %1702 = vmatpush.bf16.msra.mxu0 0
        %1703 = vmatpush.bf16.msra.mxu0 0
        %1704 = vmatpush.bf16.msra.mxu0 0
        %1705 = vmatpush.bf16.msra.mxu0 0
        %1706 = vmatpush.bf16.msra.mxu0 0
        %1707 = vmatpush.bf16.msra.mxu0 %v1333
        %1708 = vmatmul.bf16.gmra.mxu0 %v1488
        %v1709 = vpop.f32.mrf.mxu0
        %v1710 = vadd.f32 %v1696, %v1709
        %v1711 = vpop.f32.mrf.mxu0
        %v1712 = vadd.f32 %v1698, %v1711
        %1713 = vdwg.mxu0
        %1714 = vmatpush.bf16.msra.mxu0 %v1318
        %1715 = vmatpush.bf16.msra.mxu0 %v1302
        %1716 = vmatpush.bf16.msra.mxu0 %v1286
        %1717 = vmatpush.bf16.msra.mxu0 %v1270
        %1718 = vmatpush.bf16.msra.mxu0 %v1254
        %1719 = vmatpush.bf16.msra.mxu0 %v1238
        %1720 = vmatpush.bf16.msra.mxu0 %v1222
        %1721 = vmatpush.bf16.msra.mxu0 %v1206
        %1722 = vmatmul.bf16.gmra.mxu0 %v763
        %v1723 = vpop.f32.mrf.mxu0
        %v1724 = vadd.f32 %v750, %v1723
        %v1725 = vpop.f32.mrf.mxu0
        %v1726 = vadd.f32 %v755, %v1725
        %1727 = vdwg.mxu0
        %1728 = vmatpush.bf16.msra.mxu0 0
        %1729 = vmatpush.bf16.msra.mxu0 0
        %1730 = vmatpush.bf16.msra.mxu0 0
        %1731 = vmatpush.bf16.msra.mxu0 0
        %1732 = vmatpush.bf16.msra.mxu0 0
        %1733 = vmatpush.bf16.msra.mxu0 0
        %1734 = vmatpush.bf16.msra.mxu0 0
        %1735 = vmatpush.bf16.msra.mxu0 %v1334
        %1736 = vmatmul.bf16.gmra.mxu0 %v1488
        %v1737 = vpop.f32.mrf.mxu0
        %v1738 = vadd.f32 %v1724, %v1737
        %v1739 = vpop.f32.mrf.mxu0
        %v1740 = vadd.f32 %v1726, %v1739
        %1741 = vdwg.mxu0
        %1742 = vmatpush.bf16.msra.mxu0 %v1319
        %1743 = vmatpush.bf16.msra.mxu0 %v1303
        %1744 = vmatpush.bf16.msra.mxu0 %v1287
        %1745 = vmatpush.bf16.msra.mxu0 %v1271
        %1746 = vmatpush.bf16.msra.mxu0 %v1255
        %1747 = vmatpush.bf16.msra.mxu0 %v1239
        %1748 = vmatpush.bf16.msra.mxu0 %v1223
        %1749 = vmatpush.bf16.msra.mxu0 %v1207
        %1750 = vmatmul.bf16.gmra.mxu0 %v763
        %v1751 = vpop.f32.mrf.mxu0
        %v1752 = vadd.f32 %v750, %v1751
        %v1753 = vpop.f32.mrf.mxu0
        %v1754 = vadd.f32 %v755, %v1753
        %1755 = vdwg.mxu0
        %1756 = vmatpush.bf16.msra.mxu0 0
        %1757 = vmatpush.bf16.msra.mxu0 0
        %1758 = vmatpush.bf16.msra.mxu0 0
        %1759 = vmatpush.bf16.msra.mxu0 0
        %1760 = vmatpush.bf16.msra.mxu0 0
        %1761 = vmatpush.bf16.msra.mxu0 0
        %1762 = vmatpush.bf16.msra.mxu0 0
        %1763 = vmatpush.bf16.msra.mxu0 %v1335
        %1764 = vmatmul.bf16.gmra.mxu0 %v1488
        %v1765 = vpop.f32.mrf.mxu0
        %v1766 = vadd.f32 %v1752, %v1765
        %v1767 = vpop.f32.mrf.mxu0
        %v1768 = vadd.f32 %v1754, %v1767
        %1769 = vdwg.mxu0
        %1770 = vmatpush.bf16.msra.mxu0 %v1320
        %1771 = vmatpush.bf16.msra.mxu0 %v1304
        %1772 = vmatpush.bf16.msra.mxu0 %v1288
        %1773 = vmatpush.bf16.msra.mxu0 %v1272
        %1774 = vmatpush.bf16.msra.mxu0 %v1256
        %1775 = vmatpush.bf16.msra.mxu0 %v1240
        %1776 = vmatpush.bf16.msra.mxu0 %v1224
        %1777 = vmatpush.bf16.msra.mxu0 %v1208
        %1778 = vmatmul.bf16.gmra.mxu0 %v763
        %v1779 = vpop.f32.mrf.mxu0
        %v1780 = vadd.f32 %v750, %v1779
        %v1781 = vpop.f32.mrf.mxu0
        %v1782 = vadd.f32 %v755, %v1781
        %1783 = vdwg.mxu0
        %1784 = vmatpush.bf16.msra.mxu0 0
        %1785 = vmatpush.bf16.msra.mxu0 0
        %1786 = vmatpush.bf16.msra.mxu0 0
        %1787 = vmatpush.bf16.msra.mxu0 0
        %1788 = vmatpush.bf16.msra.mxu0 0
        %1789 = vmatpush.bf16.msra.mxu0 0
        %1790 = vmatpush.bf16.msra.mxu0 0
        %1791 = vmatpush.bf16.msra.mxu0 %v1336
        %1792 = vmatmul.bf16.gmra.mxu0 %v1488
        %v1793 = vpop.f32.mrf.mxu0
        %v1794 = vadd.f32 %v1780, %v1793
        %v1795 = vpop.f32.mrf.mxu0
        %v1796 = vadd.f32 %v1782, %v1795
        %1797 = vdwg.mxu0
        %1798 = vmatpush.bf16.msra.mxu0 %v1321
        %1799 = vmatpush.bf16.msra.mxu0 %v1305
        %1800 = vmatpush.bf16.msra.mxu0 %v1289
        %1801 = vmatpush.bf16.msra.mxu0 %v1273
        %1802 = vmatpush.bf16.msra.mxu0 %v1257
        %1803 = vmatpush.bf16.msra.mxu0 %v1241
        %1804 = vmatpush.bf16.msra.mxu0 %v1225
        %1805 = vmatpush.bf16.msra.mxu0 %v1209
        %1806 = vmatmul.bf16.gmra.mxu0 %v763
        %v1807 = vpop.f32.mrf.mxu0
        %v1808 = vadd.f32 %v750, %v1807
        %v1809 = vpop.f32.mrf.mxu0
        %v1810 = vadd.f32 %v755, %v1809
        %1811 = vdwg.mxu0
        %1812 = vmatpush.bf16.msra.mxu0 0
        %1813 = vmatpush.bf16.msra.mxu0 0
        %1814 = vmatpush.bf16.msra.mxu0 0
        %1815 = vmatpush.bf16.msra.mxu0 0
        %1816 = vmatpush.bf16.msra.mxu0 0
        %1817 = vmatpush.bf16.msra.mxu0 0
        %1818 = vmatpush.bf16.msra.mxu0 0
        %1819 = vmatpush.bf16.msra.mxu0 %v1337
        %1820 = vmatmul.bf16.gmra.mxu0 %v1488
        %v1821 = vpop.f32.mrf.mxu0
        %v1822 = vadd.f32 %v1808, %v1821
        %v1823 = vpop.f32.mrf.mxu0
        %v1824 = vadd.f32 %v1810, %v1823
        %1825 = vdwg.mxu0
        %1826 = vmatpush.bf16.msra.mxu0 %v1322
        %1827 = vmatpush.bf16.msra.mxu0 %v1306
        %1828 = vmatpush.bf16.msra.mxu0 %v1290
        %1829 = vmatpush.bf16.msra.mxu0 %v1274
        %1830 = vmatpush.bf16.msra.mxu0 %v1258
        %1831 = vmatpush.bf16.msra.mxu0 %v1242
        %1832 = vmatpush.bf16.msra.mxu0 %v1226
        %1833 = vmatpush.bf16.msra.mxu0 %v1210
        %1834 = vmatmul.bf16.gmra.mxu0 %v763
        %v1835 = vpop.f32.mrf.mxu0
        %v1836 = vadd.f32 %v750, %v1835
        %v1837 = vpop.f32.mrf.mxu0
        %v1838 = vadd.f32 %v755, %v1837
        %1839 = vdwg.mxu0
        %1840 = vmatpush.bf16.msra.mxu0 0
        %1841 = vmatpush.bf16.msra.mxu0 0
        %1842 = vmatpush.bf16.msra.mxu0 0
        %1843 = vmatpush.bf16.msra.mxu0 0
        %1844 = vmatpush.bf16.msra.mxu0 0
        %1845 = vmatpush.bf16.msra.mxu0 0
        %1846 = vmatpush.bf16.msra.mxu0 0
        %1847 = vmatpush.bf16.msra.mxu0 %v1338
        %1848 = vmatmul.bf16.gmra.mxu0 %v1488
        %v1849 = vpop.f32.mrf.mxu0
        %v1850 = vadd.f32 %v1836, %v1849
        %v1851 = vpop.f32.mrf.mxu0
        %v1852 = vadd.f32 %v1838, %v1851
        %1853 = vdwg.mxu0
        %1854 = vmatpush.bf16.msra.mxu0 %v1323
        %1855 = vmatpush.bf16.msra.mxu0 %v1307
        %1856 = vmatpush.bf16.msra.mxu0 %v1291
        %1857 = vmatpush.bf16.msra.mxu0 %v1275
        %1858 = vmatpush.bf16.msra.mxu0 %v1259
        %1859 = vmatpush.bf16.msra.mxu0 %v1243
        %1860 = vmatpush.bf16.msra.mxu0 %v1227
        %1861 = vmatpush.bf16.msra.mxu0 %v1211
        %1862 = vmatmul.bf16.gmra.mxu0 %v763
        %v1863 = vpop.f32.mrf.mxu0
        %v1864 = vadd.f32 %v750, %v1863
        %v1865 = vpop.f32.mrf.mxu0
        %v1866 = vadd.f32 %v755, %v1865
        %1867 = vdwg.mxu0
        %1868 = vmatpush.bf16.msra.mxu0 0
        %1869 = vmatpush.bf16.msra.mxu0 0
        %1870 = vmatpush.bf16.msra.mxu0 0
        %1871 = vmatpush.bf16.msra.mxu0 0
        %1872 = vmatpush.bf16.msra.mxu0 0
        %1873 = vmatpush.bf16.msra.mxu0 0
        %1874 = vmatpush.bf16.msra.mxu0 0
        %1875 = vmatpush.bf16.msra.mxu0 %v1339
        %1876 = vmatmul.bf16.gmra.mxu0 %v1488
        %v1877 = vpop.f32.mrf.mxu0
        %v1878 = vadd.f32 %v1864, %v1877
        %v1879 = vpop.f32.mrf.mxu0
        %v1880 = vadd.f32 %v1866, %v1879
        %1881 = vdwg.mxu0
        %1882 = vmatpush.bf16.msra.mxu0 %v1324
        %1883 = vmatpush.bf16.msra.mxu0 %v1308
        %1884 = vmatpush.bf16.msra.mxu0 %v1292
        %1885 = vmatpush.bf16.msra.mxu0 %v1276
        %1886 = vmatpush.bf16.msra.mxu0 %v1260
        %1887 = vmatpush.bf16.msra.mxu0 %v1244
        %1888 = vmatpush.bf16.msra.mxu0 %v1228
        %1889 = vmatpush.bf16.msra.mxu0 %v1212
        %1890 = vmatmul.bf16.gmra.mxu0 %v763
        %v1891 = vpop.f32.mrf.mxu0
        %v1892 = vadd.f32 %v750, %v1891
        %v1893 = vpop.f32.mrf.mxu0
        %v1894 = vadd.f32 %v755, %v1893
        %1895 = vdwg.mxu0
        %1896 = vmatpush.bf16.msra.mxu0 0
        %1897 = vmatpush.bf16.msra.mxu0 0
        %1898 = vmatpush.bf16.msra.mxu0 0
        %1899 = vmatpush.bf16.msra.mxu0 0
        %1900 = vmatpush.bf16.msra.mxu0 0
        %1901 = vmatpush.bf16.msra.mxu0 0
        %1902 = vmatpush.bf16.msra.mxu0 0
        %1903 = vmatpush.bf16.msra.mxu0 %v1340
        %1904 = vmatmul.bf16.gmra.mxu0 %v1488
        %v1905 = vpop.f32.mrf.mxu0
        %v1906 = vadd.f32 %v1892, %v1905
        %v1907 = vpop.f32.mrf.mxu0
        %v1908 = vadd.f32 %v1894, %v1907
        %1909 = vdwg.mxu0
        %1910 = vmatpush.bf16.msra.mxu0 %v1325
        %1911 = vmatpush.bf16.msra.mxu0 %v1309
        %1912 = vmatpush.bf16.msra.mxu0 %v1293
        %1913 = vmatpush.bf16.msra.mxu0 %v1277
        %1914 = vmatpush.bf16.msra.mxu0 %v1261
        %1915 = vmatpush.bf16.msra.mxu0 %v1245
        %1916 = vmatpush.bf16.msra.mxu0 %v1229
        %1917 = vmatpush.bf16.msra.mxu0 %v1213
        %1918 = vmatmul.bf16.gmra.mxu0 %v763
        %v1919 = vpop.f32.mrf.mxu0
        %v1920 = vadd.f32 %v750, %v1919
        %v1921 = vpop.f32.mrf.mxu0
        %v1922 = vadd.f32 %v755, %v1921
        %1923 = vdwg.mxu0
        %1924 = vmatpush.bf16.msra.mxu0 0
        %1925 = vmatpush.bf16.msra.mxu0 0
        %1926 = vmatpush.bf16.msra.mxu0 0
        %1927 = vmatpush.bf16.msra.mxu0 0
        %1928 = vmatpush.bf16.msra.mxu0 0
        %1929 = vmatpush.bf16.msra.mxu0 0
        %1930 = vmatpush.bf16.msra.mxu0 0
        %1931 = vmatpush.bf16.msra.mxu0 %v1341
        %1932 = vmatmul.bf16.gmra.mxu0 %v1488
        %v1933 = vpop.f32.mrf.mxu0
        %v1934 = vadd.f32 %v1920, %v1933
        %v1935 = vpop.f32.mrf.mxu0
        %v1936 = vadd.f32 %v1922, %v1935
        %1937 = vdwg.mxu0
        %vm1938 = vcmp.ge.f32.partialorder %v1514, 0.0
        %vm1939 = vcmp.ge.f32.partialorder %v1542, 0.0
        %vm1940 = vcmp.ge.f32.partialorder %v1570, 0.0
        %vm1941 = vcmp.ge.f32.partialorder %v1598, 0.0
        %vm1942 = vcmp.ge.f32.partialorder %v1626, 0.0
        %vm1943 = vcmp.ge.f32.partialorder %v1654, 0.0
        %vm1944 = vcmp.ge.f32.partialorder %v1682, 0.0
        %vm1945 = vcmp.ge.f32.partialorder %v1710, 0.0
        %vm1946 = vcmp.ge.f32.partialorder %v1738, 0.0
        %vm1947 = vcmp.ge.f32.partialorder %v1766, 0.0
        %vm1948 = vcmp.ge.f32.partialorder %v1794, 0.0
        %vm1949 = vcmp.ge.f32.partialorder %v1822, 0.0
        %vm1950 = vcmp.ge.f32.partialorder %v1850, 0.0
        %vm1951 = vcmp.ge.f32.partialorder %v1878, 0.0
        %vm1952 = vcmp.ge.f32.partialorder %v1906, 0.0
        %vm1953 = vcmp.ge.f32.partialorder %v1934, 0.0
        %vm1954 = vcmp.ge.f32.partialorder %v1516, 0.0
        %vm1955 = vcmp.ge.f32.partialorder %v1544, 0.0
        %vm1956 = vcmp.ge.f32.partialorder %v1572, 0.0
        %vm1957 = vcmp.ge.f32.partialorder %v1600, 0.0
        %vm1958 = vcmp.ge.f32.partialorder %v1628, 0.0
        %vm1959 = vcmp.ge.f32.partialorder %v1656, 0.0
        %vm1960 = vcmp.ge.f32.partialorder %v1684, 0.0
        %vm1961 = vcmp.ge.f32.partialorder %v1712, 0.0
        %vm1962 = vcmp.ge.f32.partialorder %v1740, 0.0
        %vm1963 = vcmp.ge.f32.partialorder %v1768, 0.0
        %vm1964 = vcmp.ge.f32.partialorder %v1796, 0.0
        %vm1965 = vcmp.ge.f32.partialorder %v1824, 0.0
        %vm1966 = vcmp.ge.f32.partialorder %v1852, 0.0
        %vm1967 = vcmp.ge.f32.partialorder %v1880, 0.0
        %vm1968 = vcmp.ge.f32.partialorder %v1908, 0.0
        %vm1969 = vcmp.ge.f32.partialorder %v1936, 0.0
        %v1970 = vmul.f32 %v1514, 0.2
        %v1971 = vmul.f32 %v1542, 0.2
        %v1972 = vmul.f32 %v1570, 0.2
        %v1973 = vmul.f32 %v1598, 0.2
        %v1974 = vmul.f32 %v1626, 0.2
        %v1975 = vmul.f32 %v1654, 0.2
        %v1976 = vmul.f32 %v1682, 0.2
        %v1977 = vmul.f32 %v1710, 0.2
        %v1978 = vmul.f32 %v1738, 0.2
        %v1979 = vmul.f32 %v1766, 0.2
        %v1980 = vmul.f32 %v1794, 0.2
        %v1981 = vmul.f32 %v1822, 0.2
        %v1982 = vmul.f32 %v1850, 0.2
        %v1983 = vmul.f32 %v1878, 0.2
        %v1984 = vmul.f32 %v1906, 0.2
        %v1985 = vmul.f32 %v1934, 0.2
        %v1986 = vmul.f32 %v1516, 0.2
        %v1987 = vmul.f32 %v1544, 0.2
        %v1988 = vmul.f32 %v1572, 0.2
        %v1989 = vmul.f32 %v1600, 0.2
        %v1990 = vmul.f32 %v1628, 0.2
        %v1991 = vmul.f32 %v1656, 0.2
        %v1992 = vmul.f32 %v1684, 0.2
        %v1993 = vmul.f32 %v1712, 0.2
        %v1994 = vmul.f32 %v1740, 0.2
        %v1995 = vmul.f32 %v1768, 0.2
        %v1996 = vmul.f32 %v1796, 0.2
        %v1997 = vmul.f32 %v1824, 0.2
        %v1998 = vmul.f32 %v1852, 0.2
        %v1999 = vmul.f32 %v1880, 0.2
        %v2000 = vmul.f32 %v1908, 0.2
        %v2001 = vmul.f32 %v1936, 0.2
        %v2002 = vsel %vm1938, %v1514, %v1970
        %v2003 = vsel %vm1939, %v1542, %v1971
        %v2004 = vsel %vm1940, %v1570, %v1972
        %v2005 = vsel %vm1941, %v1598, %v1973
        %v2006 = vsel %vm1942, %v1626, %v1974
        %v2007 = vsel %vm1943, %v1654, %v1975
        %v2008 = vsel %vm1944, %v1682, %v1976
        %v2009 = vsel %vm1945, %v1710, %v1977
        %v2010 = vsel %vm1946, %v1738, %v1978
        %v2011 = vsel %vm1947, %v1766, %v1979
        %v2012 = vsel %vm1948, %v1794, %v1980
        %v2013 = vsel %vm1949, %v1822, %v1981
        %v2014 = vsel %vm1950, %v1850, %v1982
        %v2015 = vsel %vm1951, %v1878, %v1983
        %v2016 = vsel %vm1952, %v1906, %v1984
        %v2017 = vsel %vm1953, %v1934, %v1985
        %v2018 = vsel %vm1954, %v1516, %v1986
        %v2019 = vsel %vm1955, %v1544, %v1987
        %v2020 = vsel %vm1956, %v1572, %v1988
        %v2021 = vsel %vm1957, %v1600, %v1989
        %v2022 = vsel %vm1958, %v1628, %v1990
        %v2023 = vsel %vm1959, %v1656, %v1991
        %v2024 = vsel %vm1960, %v1684, %v1992
        %v2025 = vsel %vm1961, %v1712, %v1993
        %v2026 = vsel %vm1962, %v1740, %v1994
        %v2027 = vsel %vm1963, %v1768, %v1995
        %v2028 = vsel %vm1964, %v1796, %v1996
        %v2029 = vsel %vm1965, %v1824, %v1997
        %v2030 = vsel %vm1966, %v1852, %v1998
        %v2031 = vsel %vm1967, %v1880, %v1999
        %v2032 = vsel %vm1968, %v1908, %v2000
        %v2033 = vsel %vm1969, %v1936, %v2001
        %v2034 = vpack.c.bf16 %v2003, %v2002
        %v2035 = vpack.c.bf16 %v2005, %v2004
        %v2036 = vpack.c.bf16 %v2007, %v2006
        %v2037 = vpack.c.bf16 %v2009, %v2008
        %v2038 = vpack.c.bf16 %v2011, %v2010
        %v2039 = vpack.c.bf16 %v2013, %v2012
        %v2040 = vpack.c.bf16 %v2015, %v2014
        %v2041 = vpack.c.bf16 %v2017, %v2016
        %v2042 = vpack.c.bf16 %v2019, %v2018
        %v2043 = vpack.c.bf16 %v2021, %v2020
        %v2044 = vpack.c.bf16 %v2023, %v2022
        %v2045 = vpack.c.bf16 %v2025, %v2024
        %v2046 = vpack.c.bf16 %v2027, %v2026
        %v2047 = vpack.c.bf16 %v2029, %v2028
        %v2048 = vpack.c.bf16 %v2031, %v2030
        %v2049 = vpack.c.bf16 %v2033, %v2032
        %2050 = vst [vmem:[%s587] sm:$0xff] %v2034
        %2051 = vst [vmem:[%s587 + $0x8] sm:$0xff] %v2035
        %2052 = vst [vmem:[%s587 + $0x10] sm:$0xff] %v2036
        %2053 = vst [vmem:[%s587 + $0x18] sm:$0xff] %v2037
        %2054 = vst [vmem:[%s587 + $0x20] sm:$0xff] %v2038
        %2055 = vst [vmem:[%s587 + $0x28] sm:$0xff] %v2039
        %2056 = vst [vmem:[%s587 + $0x30] sm:$0xff] %v2040
        %2057 = vst [vmem:[%s587 + $0x38] sm:$0xff] %v2041
        %2058 = vst [vmem:[%s587 + $0x40] sm:$0xff] %v2042
        %2059 = vst [vmem:[%s587 + $0x48] sm:$0xff] %v2043
        %2060 = vst [vmem:[%s587 + $0x50] sm:$0xff] %v2044
        %2061 = vst [vmem:[%s587 + $0x58] sm:$0xff] %v2045
        %2062 = vst [vmem:[%s587 + $0x60] sm:$0xff] %v2046
        %2063 = vst [vmem:[%s587 + $0x68] sm:$0xff] %v2047
        %2064 = vst [vmem:[%s587 + $0x70] sm:$0xff] %v2048
        %2065 = vst [vmem:[%s587 + $0x78] sm:$0xff] %v2049
        %s2066 = sand.u32 %s90, 1
        %s2067 = sand.u32 %s90, 1
        %s2068 = smul.addr %s2067, 128
        %s2069 = scalar_lea.vmem [#allocation3], %s2068
        // Predicated region
        $region99: #{fstn_forward.4} parent=93 // pred_check
          %p2070 = pneg %p100
        $region100: #{fstn_forward.4} parent=93 // pred_check_branch
          %2072 = sbr.rel (%p2070) target = $region102
        $region101: #{fstn_forward.4} parent=93 // pred_region
          %s2073 = smul.u32 16, %s14
          %s2074 = ssub.s32 29, %s2073
          %p2075 = scmp.lt.s32.totalorder %s2074, 16
          %s2076 = scalar_select %p2075, %s2074, 16
          %s2077 = smul.u32 8, %s2076
          %p2078 = scmp.ne.s32.totalorder 0, %s2077
          %s2079 = smul.addr %s2073, 4
          %s2080 = scalar_lea.vmem %s3, %s2079
          %s2081 = smul.u32 %s2076, 4
          // Predicated region
          $region103: #{fstn_forward.4} parent=101 // pred_check
            %p2082 = pneg %p2078
          $region104: #{fstn_forward.4} parent=101 // pred_check_branch
            %2084 = sbr.rel (%p2082) target = $region106
          $region105: #{fstn_forward.4} parent=101 // pred_region
            %p2085 = scmp.lt.u32.totalorder %s2081, 8
            %p2086 = pneg %p2085
            // Predicated region
            $region107: #{fstn_forward.4} parent=105 // pred_check
              _
            $region108: #{fstn_forward.4} parent=105 // pred_check_branch
              %2088 = sbr.rel (%p2085) target = $region110
            $region109: #{fstn_forward.4} parent=105 // pred_region
              %s2106 = sand.u32 %s2081, 7
              %p2107 = scmp.eq.s32.totalorder %s2106, 0
              // Predicated region
              $region122: #{fstn_forward.4} parent=109 // pred_check
                %p2108 = pneg %p2107
              $region123: #{fstn_forward.4} parent=109 // pred_check_branch
                %2110 = sbr.rel (%p2108) target = $region125
              $region124: #{fstn_forward.4} parent=109 // pred_region
                %s2111 = sshrl.u32 %s2081, 3
                %s2112 = sshrl.u32 %s2111, 4
                // While loop
                $region126: #{fstn_forward.4} parent=124 // loop_pre_header
                  _
                $region127: #{fstn_forward.4} parent=124 // loop_header
                  %s2114 = sphi 0, %s2116
                  %p2115 = scmp.ge.s32.totalorder %s2114, %s2112
                  %s2119 = sphi 0, %s2188
                  %s2120 = sphi %s2069, %s2191
                  %s2121 = sphi %s2080, %s2192
                $region128: #{fstn_forward.4} parent=124 // loop_header_branch
                  %2118 = sbr.rel (%p2115) target = $region132
                $region129: #{fstn_forward.4} parent=124 // loop_body
                  %v2122 = vld [vmem:[%s2120] sm:$0xff]
                  %2123 = vst [vmem:[%s2121] sm:$0xff] %v2122
                  %v2124 = vld [vmem:[%s2120 + $0x8] sm:$0xff]
                  %2125 = vst [vmem:[%s2121 + $0x8] sm:$0xff] %v2124
                  %v2126 = vld [vmem:[%s2120 + $0x10] sm:$0xff]
                  %2127 = vst [vmem:[%s2121 + $0x10] sm:$0xff] %v2126
                  %v2128 = vld [vmem:[%s2120 + $0x18] sm:$0xff]
                  %2129 = vst [vmem:[%s2121 + $0x18] sm:$0xff] %v2128
                  %v2130 = vld [vmem:[%s2120 + $0x20] sm:$0xff]
                  %2131 = vst [vmem:[%s2121 + $0x20] sm:$0xff] %v2130
                  %v2132 = vld [vmem:[%s2120 + $0x28] sm:$0xff]
                  %2133 = vst [vmem:[%s2121 + $0x28] sm:$0xff] %v2132
                  %v2134 = vld [vmem:[%s2120 + $0x30] sm:$0xff]
                  %2135 = vst [vmem:[%s2121 + $0x30] sm:$0xff] %v2134
                  %v2136 = vld [vmem:[%s2120 + $0x38] sm:$0xff]
                  %2137 = vst [vmem:[%s2121 + $0x38] sm:$0xff] %v2136
                  %v2138 = vld [vmem:[%s2120 + $0x40] sm:$0xff]
                  %2139 = vst [vmem:[%s2121 + $0x40] sm:$0xff] %v2138
                  %v2140 = vld [vmem:[%s2120 + $0x48] sm:$0xff]
                  %2141 = vst [vmem:[%s2121 + $0x48] sm:$0xff] %v2140
                  %v2142 = vld [vmem:[%s2120 + $0x50] sm:$0xff]
                  %2143 = vst [vmem:[%s2121 + $0x50] sm:$0xff] %v2142
                  %v2144 = vld [vmem:[%s2120 + $0x58] sm:$0xff]
                  %2145 = vst [vmem:[%s2121 + $0x58] sm:$0xff] %v2144
                  %v2146 = vld [vmem:[%s2120 + $0x60] sm:$0xff]
                  %2147 = vst [vmem:[%s2121 + $0x60] sm:$0xff] %v2146
                  %v2148 = vld [vmem:[%s2120 + $0x68] sm:$0xff]
                  %2149 = vst [vmem:[%s2121 + $0x68] sm:$0xff] %v2148
                  %v2150 = vld [vmem:[%s2120 + $0x70] sm:$0xff]
                  %2151 = vst [vmem:[%s2121 + $0x70] sm:$0xff] %v2150
                  %v2152 = vld [vmem:[%s2120 + $0x78] sm:$0xff]
                  %2153 = vst [vmem:[%s2121 + $0x78] sm:$0xff] %v2152
                  %v2154 = vld [vmem:[%s2120 + $0x40] sm:$0xff]
                  %2155 = vst [vmem:[%s2121 + $0x74] sm:$0xff] %v2154
                  %v2156 = vld [vmem:[%s2120 + $0x48] sm:$0xff]
                  %2157 = vst [vmem:[%s2121 + $0x7c] sm:$0xff] %v2156
                  %v2158 = vld [vmem:[%s2120 + $0x50] sm:$0xff]
                  %2159 = vst [vmem:[%s2121 + $0x84] sm:$0xff] %v2158
                  %v2160 = vld [vmem:[%s2120 + $0x58] sm:$0xff]
                  %2161 = vst [vmem:[%s2121 + $0x8c] sm:$0xff] %v2160
                  %v2162 = vld [vmem:[%s2120 + $0x60] sm:$0xff]
                  %2163 = vst [vmem:[%s2121 + $0x94] sm:$0xff] %v2162
                  %v2164 = vld [vmem:[%s2120 + $0x68] sm:$0xff]
                  %2165 = vst [vmem:[%s2121 + $0x9c] sm:$0xff] %v2164
                  %v2166 = vld [vmem:[%s2120 + $0x70] sm:$0xff]
                  %2167 = vst [vmem:[%s2121 + $0xa4] sm:$0xff] %v2166
                  %v2168 = vld [vmem:[%s2120 + $0x78] sm:$0xff]
                  %2169 = vst [vmem:[%s2121 + $0xac] sm:$0xff] %v2168
                  %v2170 = vld [vmem:[%s2120 + $0x80] sm:$0xff]
                  %2171 = vst [vmem:[%s2121 + $0xb4] sm:$0xff] %v2170
                  %v2172 = vld [vmem:[%s2120 + $0x88] sm:$0xff]
                  %2173 = vst [vmem:[%s2121 + $0xbc] sm:$0xff] %v2172
                  %v2174 = vld [vmem:[%s2120 + $0x90] sm:$0xff]
                  %2175 = vst [vmem:[%s2121 + $0xc4] sm:$0xff] %v2174
                  %v2176 = vld [vmem:[%s2120 + $0x98] sm:$0xff]
                  %2177 = vst [vmem:[%s2121 + $0xcc] sm:$0xff] %v2176
                  %v2178 = vld [vmem:[%s2120 + $0xa0] sm:$0xff]
                  %2179 = vst [vmem:[%s2121 + $0xd4] sm:$0xff] %v2178
                  %v2180 = vld [vmem:[%s2120 + $0xa8] sm:$0xff]
                  %2181 = vst [vmem:[%s2121 + $0xdc] sm:$0xff] %v2180
                  %v2182 = vld [vmem:[%s2120 + $0xb0] sm:$0xff]
                  %2183 = vst [vmem:[%s2121 + $0xe4] sm:$0xff] %v2182
                  %v2184 = vld [vmem:[%s2120 + $0xb8] sm:$0xff]
                  %2185 = vst [vmem:[%s2121 + $0xec] sm:$0xff] %v2184
                  %s2186 = sadd.s32 1, %s2119
                  %p2187 = scmp.ge.s32.totalorder %s2186, %s2112
                  %s2188 = scalar_select %p2187, 0, %s2186
                  %s2189 = smul.u32 %s2188, 128
                  %s2190 = smul.u32 %s2188, 128
                  %s2191 = scalar_lea.vmem %s2069, %s2189 [#allocation3]
                  %s2192 = scalar_lea.vmem %s2080, %s2190
                $region130: #{fstn_forward.4} parent=124 // loop_footer
                  %s2116 = sadd.s32 %s2114, 1
                $region131: #{fstn_forward.4} parent=124 // loop_footer_branch
                  %2113 = sbr.rel target = $region127
                $region132: #{fstn_forward.4} parent=124 // loop_exit
                  _
                %s2193 = sshrl.u32 %s2111, 4
                %s2194 = sand.u32 %s2111, 15
                %s2195 = smul.u32 %s2193, 16
                %s2196 = smul.u32 8, %s2195
                %s2197 = scalar_lea.vmem %s2069, %s2196 [#allocation3]
                %s2198 = smul.u32 8, %s2195
                %s2199 = scalar_lea.vmem %s2080, %s2198
                // While loop
                $region133: #{fstn_forward.4} parent=124 // loop_pre_header
                  _
                $region134: #{fstn_forward.4} parent=124 // loop_header
                  %s2201 = sphi 0, %s2203
                  %p2202 = scmp.ge.s32.totalorder %s2201, %s2194
                  %s2206 = sphi 0, %s2215
                  %s2207 = sphi %s2197, %s2218
                  %s2208 = sphi %s2199, %s2219
                $region135: #{fstn_forward.4} parent=124 // loop_header_branch
                  %2205 = sbr.rel (%p2202) target = $region139
                $region136: #{fstn_forward.4} parent=124 // loop_body
                  %v2209 = vld [vmem:[%s2207] sm:$0xff]
                  %2210 = vst [vmem:[%s2208] sm:$0xff] %v2209
                  %v2211 = vld [vmem:[%s2207 + $0x40] sm:$0xff]
                  %2212 = vst [vmem:[%s2208 + $0x74] sm:$0xff] %v2211
                  %s2213 = sadd.s32 1, %s2206
                  %p2214 = scmp.ge.s32.totalorder %s2213, %s2194
                  %s2215 = scalar_select %p2214, 0, %s2213
                  %s2216 = smul.u32 %s2215, 8
                  %s2217 = smul.u32 %s2215, 8
                  %s2218 = scalar_lea.vmem %s2197, %s2216 [#allocation3]
                  %s2219 = scalar_lea.vmem %s2199, %s2217
                $region137: #{fstn_forward.4} parent=124 // loop_footer
                  %s2203 = sadd.s32 %s2201, 1
                $region138: #{fstn_forward.4} parent=124 // loop_footer_branch
                  %2200 = sbr.rel target = $region134
                $region139: #{fstn_forward.4} parent=124 // loop_exit
                  _
              $region125: #{fstn_forward.4} parent=109 // pred_fallthru
                _
              %p2220 = pneg %p2107
              // Predicated region
              $region140: #{fstn_forward.4} parent=109 // pred_check
                _
              $region141: #{fstn_forward.4} parent=109 // pred_check_branch
                %2222 = sbr.rel (%p2107) target = $region143
              $region142: #{fstn_forward.4} parent=109 // pred_region
                %s2223 = sand.u32 %s2081, 7
                %s2224 = ssub.s32 %s2081, %s2223
                %s2225 = scalar_lea.vmem %s2069, %s2224 [#allocation3]
                %s2226 = ssub.s32 %s2081, %s2223
                %s2227 = scalar_lea.vmem %s2080, %s2226
                %s2228 = sshrl.u32 %s2081, 3
                %s2229 = sshrl.u32 %s2228, 4
                // While loop
                $region144: #{fstn_forward.4} parent=142 // loop_pre_header
                  _
                $region145: #{fstn_forward.4} parent=142 // loop_header
                  %s2231 = sphi 0, %s2233
                  %p2232 = scmp.ge.s32.totalorder %s2231, %s2229
                  %s2236 = sphi 0, %s2305
                  %s2237 = sphi %s2069, %s2308
                  %s2238 = sphi %s2080, %s2309
                $region146: #{fstn_forward.4} parent=142 // loop_header_branch
                  %2235 = sbr.rel (%p2232) target = $region150
                $region147: #{fstn_forward.4} parent=142 // loop_body
                  %v2239 = vld [vmem:[%s2237] sm:$0xff]
                  %2240 = vst [vmem:[%s2238] sm:$0xff] %v2239
                  %v2241 = vld [vmem:[%s2237 + $0x8] sm:$0xff]
                  %2242 = vst [vmem:[%s2238 + $0x8] sm:$0xff] %v2241
                  %v2243 = vld [vmem:[%s2237 + $0x10] sm:$0xff]
                  %2244 = vst [vmem:[%s2238 + $0x10] sm:$0xff] %v2243
                  %v2245 = vld [vmem:[%s2237 + $0x18] sm:$0xff]
                  %2246 = vst [vmem:[%s2238 + $0x18] sm:$0xff] %v2245
                  %v2247 = vld [vmem:[%s2237 + $0x20] sm:$0xff]
                  %2248 = vst [vmem:[%s2238 + $0x20] sm:$0xff] %v2247
                  %v2249 = vld [vmem:[%s2237 + $0x28] sm:$0xff]
                  %2250 = vst [vmem:[%s2238 + $0x28] sm:$0xff] %v2249
                  %v2251 = vld [vmem:[%s2237 + $0x30] sm:$0xff]
                  %2252 = vst [vmem:[%s2238 + $0x30] sm:$0xff] %v2251
                  %v2253 = vld [vmem:[%s2237 + $0x38] sm:$0xff]
                  %2254 = vst [vmem:[%s2238 + $0x38] sm:$0xff] %v2253
                  %v2255 = vld [vmem:[%s2237 + $0x40] sm:$0xff]
                  %2256 = vst [vmem:[%s2238 + $0x40] sm:$0xff] %v2255
                  %v2257 = vld [vmem:[%s2237 + $0x48] sm:$0xff]
                  %2258 = vst [vmem:[%s2238 + $0x48] sm:$0xff] %v2257
                  %v2259 = vld [vmem:[%s2237 + $0x50] sm:$0xff]
                  %2260 = vst [vmem:[%s2238 + $0x50] sm:$0xff] %v2259
                  %v2261 = vld [vmem:[%s2237 + $0x58] sm:$0xff]
                  %2262 = vst [vmem:[%s2238 + $0x58] sm:$0xff] %v2261
                  %v2263 = vld [vmem:[%s2237 + $0x60] sm:$0xff]
                  %2264 = vst [vmem:[%s2238 + $0x60] sm:$0xff] %v2263
                  %v2265 = vld [vmem:[%s2237 + $0x68] sm:$0xff]
                  %2266 = vst [vmem:[%s2238 + $0x68] sm:$0xff] %v2265
                  %v2267 = vld [vmem:[%s2237 + $0x70] sm:$0xff]
                  %2268 = vst [vmem:[%s2238 + $0x70] sm:$0xff] %v2267
                  %v2269 = vld [vmem:[%s2237 + $0x78] sm:$0xff]
                  %2270 = vst [vmem:[%s2238 + $0x78] sm:$0xff] %v2269
                  %v2271 = vld [vmem:[%s2237 + $0x40] sm:$0xff]
                  %2272 = vst [vmem:[%s2238 + $0x74] sm:$0xff] %v2271
                  %v2273 = vld [vmem:[%s2237 + $0x48] sm:$0xff]
                  %2274 = vst [vmem:[%s2238 + $0x7c] sm:$0xff] %v2273
                  %v2275 = vld [vmem:[%s2237 + $0x50] sm:$0xff]
                  %2276 = vst [vmem:[%s2238 + $0x84] sm:$0xff] %v2275
                  %v2277 = vld [vmem:[%s2237 + $0x58] sm:$0xff]
                  %2278 = vst [vmem:[%s2238 + $0x8c] sm:$0xff] %v2277
                  %v2279 = vld [vmem:[%s2237 + $0x60] sm:$0xff]
                  %2280 = vst [vmem:[%s2238 + $0x94] sm:$0xff] %v2279
                  %v2281 = vld [vmem:[%s2237 + $0x68] sm:$0xff]
                  %2282 = vst [vmem:[%s2238 + $0x9c] sm:$0xff] %v2281
                  %v2283 = vld [vmem:[%s2237 + $0x70] sm:$0xff]
                  %2284 = vst [vmem:[%s2238 + $0xa4] sm:$0xff] %v2283
                  %v2285 = vld [vmem:[%s2237 + $0x78] sm:$0xff]
                  %2286 = vst [vmem:[%s2238 + $0xac] sm:$0xff] %v2285
                  %v2287 = vld [vmem:[%s2237 + $0x80] sm:$0xff]
                  %2288 = vst [vmem:[%s2238 + $0xb4] sm:$0xff] %v2287
                  %v2289 = vld [vmem:[%s2237 + $0x88] sm:$0xff]
                  %2290 = vst [vmem:[%s2238 + $0xbc] sm:$0xff] %v2289
                  %v2291 = vld [vmem:[%s2237 + $0x90] sm:$0xff]
                  %2292 = vst [vmem:[%s2238 + $0xc4] sm:$0xff] %v2291
                  %v2293 = vld [vmem:[%s2237 + $0x98] sm:$0xff]
                  %2294 = vst [vmem:[%s2238 + $0xcc] sm:$0xff] %v2293
                  %v2295 = vld [vmem:[%s2237 + $0xa0] sm:$0xff]
                  %2296 = vst [vmem:[%s2238 + $0xd4] sm:$0xff] %v2295
                  %v2297 = vld [vmem:[%s2237 + $0xa8] sm:$0xff]
                  %2298 = vst [vmem:[%s2238 + $0xdc] sm:$0xff] %v2297
                  %v2299 = vld [vmem:[%s2237 + $0xb0] sm:$0xff]
                  %2300 = vst [vmem:[%s2238 + $0xe4] sm:$0xff] %v2299
                  %v2301 = vld [vmem:[%s2237 + $0xb8] sm:$0xff]
                  %2302 = vst [vmem:[%s2238 + $0xec] sm:$0xff] %v2301
                  %s2303 = sadd.s32 1, %s2236
                  %p2304 = scmp.ge.s32.totalorder %s2303, %s2229
                  %s2305 = scalar_select %p2304, 0, %s2303
                  %s2306 = smul.u32 %s2305, 128
                  %s2307 = smul.u32 %s2305, 128
                  %s2308 = scalar_lea.vmem %s2069, %s2306 [#allocation3]
                  %s2309 = scalar_lea.vmem %s2080, %s2307
                $region148: #{fstn_forward.4} parent=142 // loop_footer
                  %s2233 = sadd.s32 %s2231, 1
                $region149: #{fstn_forward.4} parent=142 // loop_footer_branch
                  %2230 = sbr.rel target = $region145
                $region150: #{fstn_forward.4} parent=142 // loop_exit
                  _
                %s2310 = sshrl.u32 %s2228, 4
                %s2311 = sand.u32 %s2228, 15
                %s2312 = smul.u32 %s2310, 16
                %s2313 = smul.u32 8, %s2312
                %s2314 = scalar_lea.vmem %s2069, %s2313 [#allocation3]
                %s2315 = smul.u32 8, %s2312
                %s2316 = scalar_lea.vmem %s2080, %s2315
                // While loop
                $region151: #{fstn_forward.4} parent=142 // loop_pre_header
                  _
                $region152: #{fstn_forward.4} parent=142 // loop_header
                  %s2318 = sphi 0, %s2320
                  %p2319 = scmp.ge.s32.totalorder %s2318, %s2311
                  %s2323 = sphi 0, %s2332
                  %s2324 = sphi %s2314, %s2335
                  %s2325 = sphi %s2316, %s2336
                $region153: #{fstn_forward.4} parent=142 // loop_header_branch
                  %2322 = sbr.rel (%p2319) target = $region157
                $region154: #{fstn_forward.4} parent=142 // loop_body
                  %v2326 = vld [vmem:[%s2324] sm:$0xff]
                  %2327 = vst [vmem:[%s2325] sm:$0xff] %v2326
                  %v2328 = vld [vmem:[%s2324 + $0x40] sm:$0xff]
                  %2329 = vst [vmem:[%s2325 + $0x74] sm:$0xff] %v2328
                  %s2330 = sadd.s32 1, %s2323
                  %p2331 = scmp.ge.s32.totalorder %s2330, %s2311
                  %s2332 = scalar_select %p2331, 0, %s2330
                  %s2333 = smul.u32 %s2332, 8
                  %s2334 = smul.u32 %s2332, 8
                  %s2335 = scalar_lea.vmem %s2314, %s2333 [#allocation3]
                  %s2336 = scalar_lea.vmem %s2316, %s2334
                $region155: #{fstn_forward.4} parent=142 // loop_footer
                  %s2320 = sadd.s32 %s2318, 1
                $region156: #{fstn_forward.4} parent=142 // loop_footer_branch
                  %2317 = sbr.rel target = $region152
                $region157: #{fstn_forward.4} parent=142 // loop_exit
                  _
                %s2337 = sshll.u32 1, %s2223
                %s2338 = ssub.s32 %s2337, 1
                loop: start=0, step=1, limit=1
                $region158: #{fstn_forward.4} parent=142 // loop_pre_header
                  _
                $region159: #{fstn_forward.4} parent=142 // loop_header
                  %s2340 = sphi 0, %s2344
                  %p2341 = scmp.ge.s32.totalorder %s2340, 1
                  %s2345 = sphi %s2225, %s2225
                  %s2346 = sphi %s2227, %s2227
                $region160: #{fstn_forward.4} parent=142 // loop_header_branch
                  %2343 = sbr.rel (%p2341) target = $region164
                $region161: #{fstn_forward.4} parent=142 // loop_body
                  %v2347 = vld [vmem:[%s2345] sm:%s2338]
                  %2348 = vst [vmem:[%s2346] sm:%s2338] %v2347
                  %v2349 = vld [vmem:[%s2345 + $0x40] sm:%s2338]
                  %2350 = vst [vmem:[%s2346 + $0x74] sm:%s2338] %v2349
                $region162: #{fstn_forward.4} parent=142 // loop_footer
                  %s2344 = sadd.s32 1, %s2340
                $region163: #{fstn_forward.4} parent=142 // loop_footer_branch
                  %2339 = sbr.rel target = $region159
                $region164: #{fstn_forward.4} parent=142 // loop_exit
                  _
              $region143: #{fstn_forward.4} parent=109 // pred_fallthru
                _
            $region110: #{fstn_forward.4} parent=105 // pred_fallthru
              _
            // Predicated region
            $region111: #{fstn_forward.4} parent=105 // pred_check
              %p2089 = pneg %p2085
            $region112: #{fstn_forward.4} parent=105 // pred_check_branch
              %2091 = sbr.rel (%p2089) target = $region114
            $region113: #{fstn_forward.4} parent=105 // pred_region
              %s2092 = sshll.u32 1, %s2081
              %s2093 = ssub.s32 %s2092, 1
              loop: start=0, step=1, limit=1
              $region115: #{fstn_forward.4} parent=113 // loop_pre_header
                _
              $region116: #{fstn_forward.4} parent=113 // loop_header
                %s2095 = sphi 0, %s2099
                %p2096 = scmp.ge.s32.totalorder %s2095, 1
                %s2100 = sphi %s2069, %s2069
                %s2101 = sphi %s2080, %s2080
              $region117: #{fstn_forward.4} parent=113 // loop_header_branch
                %2098 = sbr.rel (%p2096) target = $region121
              $region118: #{fstn_forward.4} parent=113 // loop_body
                %v2102 = vld [vmem:[%s2100] sm:%s2093]
                %2103 = vst [vmem:[%s2101] sm:%s2093] %v2102
                %v2104 = vld [vmem:[%s2100 + $0x40] sm:%s2093]
                %2105 = vst [vmem:[%s2101 + $0x74] sm:%s2093] %v2104
              $region119: #{fstn_forward.4} parent=113 // loop_footer
                %s2099 = sadd.s32 1, %s2095
              $region120: #{fstn_forward.4} parent=113 // loop_footer_branch
                %2094 = sbr.rel target = $region116
              $region121: #{fstn_forward.4} parent=113 // loop_exit
                _
            $region114: #{fstn_forward.4} parent=105 // pred_fallthru
              _
          $region106: #{fstn_forward.4} parent=101 // pred_fallthru
            _
          %2351 = vnop
        $region102: #{fstn_forward.4} parent=93 // pred_fallthru
          _
      $region94: #{fstn_forward.4} parent=5 // pred_fallthru
        _
      %p2352 = scmp.le.s32.totalorder 2, %s9
      // Predicated region
      $region165: #{fstn_forward.4} parent=5 // pred_check
        %p2353 = pneg %p2352
      $region166: #{fstn_forward.4} parent=5 // pred_check_branch
        %2355 = sbr.rel (%p2353) target = $region168
      $region167: #{fstn_forward.4} parent=5 // pred_region
        %s2356 = ssub.s32 %s9, 2
        // Predicated region
        $region169: #{fstn_forward.4} parent=167 // pred_check
          %p2357 = pneg %p106
        $region170: #{fstn_forward.4} parent=167 // pred_check_branch
          %2359 = sbr.rel (%p2357) target = $region172
        $region171: #{fstn_forward.4} parent=167 // pred_region
          %s2360 = sand.u32 %s91, 1
          %s2361 = sand.u32 %s91, 1
          %s2362 = smul.addr %s2361, 128
          %s2363 = scalar_lea.vmem [#allocation3], %s2362
        $region172: #{fstn_forward.4} parent=167 // pred_fallthru
          _
      $region168: #{fstn_forward.4} parent=5 // pred_fallthru
        _
    $region6: #{fstn_forward.4} parent=1 // loop_footer
      %s13 = sadd.s32 1, %s9
    $region7: #{fstn_forward.4} parent=1 // loop_footer_branch
      %8 = sbr.rel target = $region3
    $region8: #{fstn_forward.4} parent=1 // loop_exit
      _

// kernel: fstn_forward.5
$region0: #{fstn_forward.5}
  #allocation0 [shape = 'u32[]', space=smem, size = 0x4, offset = 0x4, fixed_abs, tag = 'smem constant byte address 0x4 - core index']
  #allocation1 [shape = 'u32[72,128]{1,0:T(1,128)}', space=vmem, size = 0x9000, scoped, tag = 'internal scratch']
  %s0 = inlined_call_operand.vmem [shape: bf16[400,450], index: 0, kind: input, shape index: {}]
  %s1 = inlined_call_operand.vmem [shape: bf16[16,400], index: 1, kind: input, shape index: {}]
  %s2 = inlined_call_operand.vmem [shape: f32[16,1], index: 2, kind: input, shape index: {}]
  %s3 = inlined_call_operand.vmem [shape: bf16[450,1152], index: 3, kind: input, shape index: {}]
  %s4 = inlined_call_operand.vmem [shape: f32[16,144], index: 4, kind: input, shape index: {}]
  %s5 = inlined_call_operand.vmem [shape: f32[16,1], index: 5, kind: input, shape index: {}]
  %s6 = inlined_call_operand.vmem [shape: bf16[128,288], index: 6, kind: input, shape index: {}]
  %s7 = inlined_call_operand.vmem [shape: f32[16,144], index: 7, kind: input, shape index: {}]
  %s8 = inlined_call_operand.vmem [shape: f32[16,1], index: 8, kind: input, shape index: {}]
  %s9 = inlined_call_operand.vmem [shape: f32[32,32], index: 9, kind: input, shape index: {}]
  %s10 = inlined_call_operand.vmem [shape: f32[2,32], index: 10, kind: output, shape index: {}]
  %s11 = sld [smem:[#allocation0]]
  $region50: #{fstn_forward.5} parent=0
    _
  %s13 = ssub.s32 1, %s11
  %s14 = scalar_select 0, %s13, %s11
  // Predicated region
  $region2: #{fstn_forward.5} parent=0 // pred_check
    _
  $region3: #{fstn_forward.5} parent=0 // pred_check_branch
    %16 = sbr.rel (0) target = $region5
  $region4: #{fstn_forward.5} parent=0 // pred_region
    _
  $region5: #{fstn_forward.5} parent=0 // pred_fallthru
    _
  // Predicated region
  $region6: #{fstn_forward.5} parent=0 // pred_check
    _
  $region7: #{fstn_forward.5} parent=0 // pred_check_branch
    %18 = sbr.rel (0) target = $region9
  $region8: #{fstn_forward.5} parent=0 // pred_region
    _
  $region9: #{fstn_forward.5} parent=0 // pred_fallthru
    _
  // Predicated region
  $region10: #{fstn_forward.5} parent=0 // pred_check
    _
  $region11: #{fstn_forward.5} parent=0 // pred_check_branch
    %20 = sbr.rel (0) target = $region13
  $region12: #{fstn_forward.5} parent=0 // pred_region
    _
  $region13: #{fstn_forward.5} parent=0 // pred_fallthru
    _
  // Predicated region
  $region14: #{fstn_forward.5} parent=0 // pred_check
    _
  $region15: #{fstn_forward.5} parent=0 // pred_check_branch
    %22 = sbr.rel (0) target = $region17
  $region16: #{fstn_forward.5} parent=0 // pred_region
    _
  $region17: #{fstn_forward.5} parent=0 // pred_fallthru
    _
  // Predicated region
  $region18: #{fstn_forward.5} parent=0 // pred_check
    _
  $region19: #{fstn_forward.5} parent=0 // pred_check_branch
    %24 = sbr.rel (0) target = $region21
  $region20: #{fstn_forward.5} parent=0 // pred_region
    _
  $region21: #{fstn_forward.5} parent=0 // pred_fallthru
    _
  // Predicated region
  $region22: #{fstn_forward.5} parent=0 // pred_check
    _
  $region23: #{fstn_forward.5} parent=0 // pred_check_branch
    %26 = sbr.rel (0) target = $region25
  $region24: #{fstn_forward.5} parent=0 // pred_region
    _
  $region25: #{fstn_forward.5} parent=0 // pred_fallthru
    _
  // Predicated region
  $region26: #{fstn_forward.5} parent=0 // pred_check
    _
  $region27: #{fstn_forward.5} parent=0 // pred_check_branch
    %28 = sbr.rel (0) target = $region29
  $region28: #{fstn_forward.5} parent=0 // pred_region
    _
  $region29: #{fstn_forward.5} parent=0 // pred_fallthru
    _
  // Predicated region
  $region30: #{fstn_forward.5} parent=0 // pred_check
    _
  $region31: #{fstn_forward.5} parent=0 // pred_check_branch
    %30 = sbr.rel (0) target = $region33
  $region32: #{fstn_forward.5} parent=0 // pred_region
    _
  $region33: #{fstn_forward.5} parent=0 // pred_fallthru
    _
  // Predicated region
  $region34: #{fstn_forward.5} parent=0 // pred_check
    _
  $region35: #{fstn_forward.5} parent=0 // pred_check_branch
    %32 = sbr.rel (0) target = $region37
  $region36: #{fstn_forward.5} parent=0 // pred_region
    _
  $region37: #{fstn_forward.5} parent=0 // pred_fallthru
    _
  // Predicated region
  $region38: #{fstn_forward.5} parent=0 // pred_check
    _
  $region39: #{fstn_forward.5} parent=0 // pred_check_branch
    %34 = sbr.rel (0) target = $region41
  $region40: #{fstn_forward.5} parent=0 // pred_region
    _
  $region41: #{fstn_forward.5} parent=0 // pred_fallthru
    _
  %v36 = vld [vmem:[%s1] sm:$0xff]
  %v37 = vld [vmem:[%s1 + $0x8] sm:$0xff]
  %v38 = vld [vmem:[%s1 + $0x10] sm:$0xff]
  %v39 = vld [vmem:[%s1 + $0x18] sm:$0xff]
  %v40 = vld [vmem:[%s0] sm:$0xff]
  %v41 = vld [vmem:[%s0 + $0x8] sm:$0xff]
  %v42 = vld [vmem:[%s0 + $0x10] sm:$0xff]
  %v43 = vld [vmem:[%s0 + $0x18] sm:$0xff]
  %v44 = vld [vmem:[%s0 + $0x20] sm:$0xff]
  %v45 = vld [vmem:[%s0 + $0x28] sm:$0xff]
  %v46 = vld [vmem:[%s0 + $0x30] sm:$0xff]
  %v47 = vld [vmem:[%s0 + $0x38] sm:$0xff]
  %v48 = vld [vmem:[%s0 + $0x40] sm:$0xff]
  %v49 = vld [vmem:[%s0 + $0x48] sm:$0xff]
  %v50 = vld [vmem:[%s0 + $0x50] sm:$0xff]
  %v51 = vld [vmem:[%s0 + $0x58] sm:$0xff]
  %v52 = vld [vmem:[%s0 + $0x60] sm:$0xff]
  %v53 = vld [vmem:[%s0 + $0x68] sm:$0xff]
  %v54 = vld [vmem:[%s0 + $0x70] sm:$0xff]
  %v55 = vld [vmem:[%s0 + $0x78] sm:$0xff]
  %v56 = vld [vmem:[%s0 + $0x80] sm:$0xff]
  %v57 = vld [vmem:[%s0 + $0x88] sm:$0xff]
  %v58 = vld [vmem:[%s0 + $0x90] sm:$0xff]
  %v59 = vld [vmem:[%s0 + $0x98] sm:$0xff]
  %v60 = vld [vmem:[%s0 + $0xa0] sm:$0xff]
  %v61 = vld [vmem:[%s0 + $0xa8] sm:$0xff]
  %v62 = vld [vmem:[%s0 + $0xb0] sm:$0xff]
  %v63 = vld [vmem:[%s0 + $0xb8] sm:$0xff]
  %v64 = vld [vmem:[%s0 + $0xc0] sm:$0xff]
  %v65 = vld [vmem:[%s0 + $0xc8] sm:$0xff]
  %v66 = vld [vmem:[%s0 + $0xd0] sm:$0xff]
  %v67 = vld [vmem:[%s0 + $0xd8] sm:$0xff]
  %v68 = vld [vmem:[%s0 + $0xe0] sm:$0xff]
  %v69 = vld [vmem:[%s0 + $0xe8] sm:$0xff]
  %v70 = vld [vmem:[%s0 + $0xf0] sm:$0xff]
  %v71 = vld [vmem:[%s0 + $0xf8] sm:$0xff]
  %v72 = vld [vmem:[%s0 + $0x100] sm:$0xff]
  %v73 = vld [vmem:[%s0 + $0x108] sm:$0xff]
  %v74 = vld [vmem:[%s0 + $0x110] sm:$0xff]
  %v75 = vld [vmem:[%s0 + $0x118] sm:$0xff]
  %v76 = vld [vmem:[%s0 + $0x120] sm:$0xff]
  %v77 = vld [vmem:[%s0 + $0x128] sm:$0xff]
  %v78 = vld [vmem:[%s0 + $0x130] sm:$0xff]
  %v79 = vld [vmem:[%s0 + $0x138] sm:$0xff]
  %v80 = vld [vmem:[%s0 + $0x140] sm:$0xff]
  %v81 = vld [vmem:[%s0 + $0x148] sm:$0xff]
  %v82 = vld [vmem:[%s0 + $0x150] sm:$0xff]
  %v83 = vld [vmem:[%s0 + $0x158] sm:$0xff]
  %v84 = vld [vmem:[%s0 + $0x160] sm:$0xff]
  %v85 = vld [vmem:[%s0 + $0x168] sm:$0xff]
  %v86 = vld [vmem:[%s0 + $0x170] sm:$0xff]
  %v87 = vld [vmem:[%s0 + $0x178] sm:$0xff]
  %v88 = vld [vmem:[%s0 + $0x180] sm:$0xff]
  %v89 = vld [vmem:[%s0 + $0x188] sm:$0xff]
  %v90 = vld [vmem:[%s0 + $0x190] sm:$0xff]
  %v91 = vld [vmem:[%s0 + $0x198] sm:$0xff]
  %v92 = vld [vmem:[%s0 + $0x1a0] sm:$0xff]
  %v93 = vld [vmem:[%s0 + $0x1a8] sm:$0xff]
  %v94 = vld [vmem:[%s0 + $0x1b0] sm:$0xff]
  %v95 = vld [vmem:[%s0 + $0x1b8] sm:$0xff]
  %v96 = vld [vmem:[%s0 + $0x1c0] sm:$0xff]
  %v97 = vld [vmem:[%s0 + $0x1c8] sm:$0xff]
  %v98 = vld [vmem:[%s0 + $0x1d0] sm:$0xff]
  %v99 = vld [vmem:[%s0 + $0x1d8] sm:$0xff]
  %v100 = vld [vmem:[%s0 + $0x1e0] sm:$0xff]
  %v101 = vld [vmem:[%s0 + $0x1e8] sm:$0xff]
  %v102 = vld [vmem:[%s0 + $0x1f0] sm:$0xff]
  %v103 = vld [vmem:[%s0 + $0x1f8] sm:$0xff]
  %v104 = vld [vmem:[%s0 + $0x200] sm:$0xff]
  %v105 = vld [vmem:[%s0 + $0x208] sm:$0xff]
  %v106 = vld [vmem:[%s0 + $0x210] sm:$0xff]
  %v107 = vld [vmem:[%s0 + $0x218] sm:$0xff]
  %v108 = vld [vmem:[%s0 + $0x220] sm:$0xff]
  %v109 = vld [vmem:[%s0 + $0x228] sm:$0xff]
  %v110 = vld [vmem:[%s0 + $0x230] sm:$0xff]
  %v111 = vld [vmem:[%s0 + $0x238] sm:$0xff]
  %v112 = vld [vmem:[%s0 + $0x240] sm:$0xff]
  %v113 = vld [vmem:[%s0 + $0x248] sm:$0xff]
  %v114 = vld [vmem:[%s0 + $0x250] sm:$0xff]
  %v115 = vld [vmem:[%s0 + $0x258] sm:$0xff]
  %v116 = vld [vmem:[%s0 + $0x260] sm:$0xff]
  %v117 = vld [vmem:[%s0 + $0x268] sm:$0xff]
  %v118 = vld [vmem:[%s0 + $0x270] sm:$0xff]
  %v119 = vld [vmem:[%s0 + $0x278] sm:$0xff]
  %v120 = vld [vmem:[%s0 + $0x280] sm:$0xff]
  %v121 = vld [vmem:[%s0 + $0x288] sm:$0xff]
  %v122 = vld [vmem:[%s0 + $0x290] sm:$0xff]
  %v123 = vld [vmem:[%s0 + $0x298] sm:$0xff]
  %v124 = vld [vmem:[%s0 + $0x2a0] sm:$0xff]
  %v125 = vld [vmem:[%s0 + $0x2a8] sm:$0xff]
  %v126 = vld [vmem:[%s0 + $0x2b0] sm:$0xff]
  %v127 = vld [vmem:[%s0 + $0x2b8] sm:$0xff]
  %v128 = vld [vmem:[%s0 + $0x2c0] sm:$0xff]
  %v129 = vld [vmem:[%s0 + $0x2c8] sm:$0xff]
  %v130 = vld [vmem:[%s0 + $0x2d0] sm:$0xff]
  %v131 = vld [vmem:[%s0 + $0x2d8] sm:$0xff]
  %v132 = vld [vmem:[%s0 + $0x2e0] sm:$0xff]
  %v133 = vld [vmem:[%s0 + $0x2e8] sm:$0xff]
  %v134 = vld [vmem:[%s0 + $0x2f0] sm:$0xff]
  %v135 = vld [vmem:[%s0 + $0x2f8] sm:$0xff]
  %v136 = vld [vmem:[%s0 + $0x300] sm:$0xff]
  %v137 = vld [vmem:[%s0 + $0x308] sm:$0xff]
  %v138 = vld [vmem:[%s0 + $0x310] sm:$0xff]
  %v139 = vld [vmem:[%s0 + $0x318] sm:$0xff]
  %v140 = vld [vmem:[%s2] sm:$0xff]
  %v141 = vld [vmem:[%s2 + $0x8] sm:$0xff]
  %143 = vset.pattern.permute.xlu0 0
  %144 = vperm.xlu0 %143, %v140
  %v145 = vpop.permute.xlu0 %144
  %148 = vset.pattern.permute.xlu0 0
  %149 = vperm.xlu0 %148, %v141
  %v150 = vpop.permute.xlu0 %149
  %v156 = vunpack.c.l.b16 %v36
  %v157 = vunpack.c.h.b16 %v36
  %v158 = vunpack.c.l.b16 %v37
  %v159 = vunpack.c.h.b16 %v37
  %v160 = vunpack.c.l.b16 %v38
  %v161 = vunpack.c.h.b16 %v38
  %v162 = vunpack.c.l.b16 %v39
  %v163 = vunpack.c.h.b16 %v39
  %v164 = vpack.c.b16 %v160, %v156
  %v165 = vpack.c.b16 %v161, %v157
  %v166 = vpack.c.b16 %v162, %v158
  %v167 = vpack.c.b16 %v163, %v159
  %v271 = vunpack.c.l.b16 %v40
  %v272 = vunpack.c.h.b16 %v40
  %v273 = vunpack.c.l.b16 %v41
  %v274 = vunpack.c.h.b16 %v41
  %v275 = vunpack.c.l.b16 %v42
  %v276 = vunpack.c.h.b16 %v42
  %v277 = vunpack.c.l.b16 %v43
  %v278 = vunpack.c.h.b16 %v43
  %v279 = vunpack.c.l.b16 %v44
  %v280 = vunpack.c.h.b16 %v44
  %v281 = vunpack.c.l.b16 %v45
  %v282 = vunpack.c.h.b16 %v45
  %v283 = vunpack.c.l.b16 %v46
  %v284 = vunpack.c.h.b16 %v46
  %v285 = vunpack.c.l.b16 %v47
  %v286 = vunpack.c.h.b16 %v47
  %v287 = vunpack.c.l.b16 %v48
  %v288 = vunpack.c.h.b16 %v48
  %v289 = vunpack.c.l.b16 %v49
  %v290 = vunpack.c.h.b16 %v49
  %v291 = vunpack.c.l.b16 %v50
  %v292 = vunpack.c.h.b16 %v50
  %v293 = vunpack.c.l.b16 %v51
  %v294 = vunpack.c.h.b16 %v51
  %v295 = vunpack.c.l.b16 %v52
  %v296 = vunpack.c.h.b16 %v52
  %v297 = vunpack.c.l.b16 %v53
  %v298 = vunpack.c.h.b16 %v53
  %v299 = vunpack.c.l.b16 %v54
  %v300 = vunpack.c.h.b16 %v54
  %v301 = vunpack.c.l.b16 %v55
  %v302 = vunpack.c.h.b16 %v55
  %v303 = vunpack.c.l.b16 %v56
  %v304 = vunpack.c.h.b16 %v56
  %v305 = vunpack.c.l.b16 %v57
  %v306 = vunpack.c.h.b16 %v57
  %v307 = vunpack.c.l.b16 %v58
  %v308 = vunpack.c.h.b16 %v58
  %v309 = vunpack.c.l.b16 %v59
  %v310 = vunpack.c.h.b16 %v59
  %v311 = vunpack.c.l.b16 %v60
  %v312 = vunpack.c.h.b16 %v60
  %v313 = vunpack.c.l.b16 %v61
  %v314 = vunpack.c.h.b16 %v61
  %v315 = vunpack.c.l.b16 %v62
  %v316 = vunpack.c.h.b16 %v62
  %v317 = vunpack.c.l.b16 %v63
  %v318 = vunpack.c.h.b16 %v63
  %v319 = vunpack.c.l.b16 %v64
  %v320 = vunpack.c.h.b16 %v64
  %v321 = vunpack.c.l.b16 %v65
  %v322 = vunpack.c.h.b16 %v65
  %v323 = vunpack.c.l.b16 %v66
  %v324 = vunpack.c.h.b16 %v66
  %v325 = vunpack.c.l.b16 %v67
  %v326 = vunpack.c.h.b16 %v67
  %v327 = vunpack.c.l.b16 %v68
  %v328 = vunpack.c.h.b16 %v68
  %v329 = vunpack.c.l.b16 %v69
  %v330 = vunpack.c.h.b16 %v69
  %v331 = vunpack.c.l.b16 %v70
  %v332 = vunpack.c.h.b16 %v70
  %v333 = vunpack.c.l.b16 %v71
  %v334 = vunpack.c.h.b16 %v71
  %v335 = vunpack.c.l.b16 %v72
  %v336 = vunpack.c.h.b16 %v72
  %v337 = vunpack.c.l.b16 %v73
  %v338 = vunpack.c.h.b16 %v73
  %v339 = vunpack.c.l.b16 %v74
  %v340 = vunpack.c.h.b16 %v74
  %v341 = vunpack.c.l.b16 %v75
  %v342 = vunpack.c.h.b16 %v75
  %v343 = vunpack.c.l.b16 %v76
  %v344 = vunpack.c.h.b16 %v76
  %v345 = vunpack.c.l.b16 %v77
  %v346 = vunpack.c.h.b16 %v77
  %v347 = vunpack.c.l.b16 %v78
  %v348 = vunpack.c.h.b16 %v78
  %v349 = vunpack.c.l.b16 %v79
  %v350 = vunpack.c.h.b16 %v79
  %v351 = vunpack.c.l.b16 %v80
  %v352 = vunpack.c.h.b16 %v80
  %v353 = vunpack.c.l.b16 %v81
  %v354 = vunpack.c.h.b16 %v81
  %v355 = vunpack.c.l.b16 %v82
  %v356 = vunpack.c.h.b16 %v82
  %v357 = vunpack.c.l.b16 %v83
  %v358 = vunpack.c.h.b16 %v83
  %v359 = vunpack.c.l.b16 %v84
  %v360 = vunpack.c.h.b16 %v84
  %v361 = vunpack.c.l.b16 %v85
  %v362 = vunpack.c.h.b16 %v85
  %v363 = vunpack.c.l.b16 %v86
  %v364 = vunpack.c.h.b16 %v86
  %v365 = vunpack.c.l.b16 %v87
  %v366 = vunpack.c.h.b16 %v87
  %v367 = vunpack.c.l.b16 %v88
  %v368 = vunpack.c.h.b16 %v88
  %v369 = vunpack.c.l.b16 %v89
  %v370 = vunpack.c.h.b16 %v89
  %v371 = vunpack.c.l.b16 %v90
  %v372 = vunpack.c.h.b16 %v90
  %v373 = vunpack.c.l.b16 %v91
  %v374 = vunpack.c.h.b16 %v91
  %v375 = vunpack.c.l.b16 %v92
  %v376 = vunpack.c.h.b16 %v92
  %v377 = vunpack.c.l.b16 %v93
  %v378 = vunpack.c.h.b16 %v93
  %v379 = vunpack.c.l.b16 %v94
  %v380 = vunpack.c.h.b16 %v94
  %v381 = vunpack.c.l.b16 %v95
  %v382 = vunpack.c.h.b16 %v95
  %v383 = vunpack.c.l.b16 %v96
  %v384 = vunpack.c.h.b16 %v96
  %v385 = vunpack.c.l.b16 %v97
  %v386 = vunpack.c.h.b16 %v97
  %v387 = vunpack.c.l.b16 %v98
  %v388 = vunpack.c.h.b16 %v98
  %v389 = vunpack.c.l.b16 %v99
  %v390 = vunpack.c.h.b16 %v99
  %v391 = vunpack.c.l.b16 %v100
  %v392 = vunpack.c.h.b16 %v100
  %v393 = vunpack.c.l.b16 %v101
  %v394 = vunpack.c.h.b16 %v101
  %v395 = vunpack.c.l.b16 %v102
  %v396 = vunpack.c.h.b16 %v102
  %v397 = vunpack.c.l.b16 %v103
  %v398 = vunpack.c.h.b16 %v103
  %v399 = vunpack.c.l.b16 %v104
  %v400 = vunpack.c.h.b16 %v104
  %v401 = vunpack.c.l.b16 %v105
  %v402 = vunpack.c.h.b16 %v105
  %v403 = vunpack.c.l.b16 %v106
  %v404 = vunpack.c.h.b16 %v106
  %v405 = vunpack.c.l.b16 %v107
  %v406 = vunpack.c.h.b16 %v107
  %v407 = vunpack.c.l.b16 %v108
  %v408 = vunpack.c.h.b16 %v108
  %v409 = vunpack.c.l.b16 %v109
  %v410 = vunpack.c.h.b16 %v109
  %v411 = vunpack.c.l.b16 %v110
  %v412 = vunpack.c.h.b16 %v110
  %v413 = vunpack.c.l.b16 %v111
  %v414 = vunpack.c.h.b16 %v111
  %v415 = vunpack.c.l.b16 %v112
  %v416 = vunpack.c.h.b16 %v112
  %v417 = vunpack.c.l.b16 %v113
  %v418 = vunpack.c.h.b16 %v113
  %v419 = vunpack.c.l.b16 %v114
  %v420 = vunpack.c.h.b16 %v114
  %v421 = vunpack.c.l.b16 %v115
  %v422 = vunpack.c.h.b16 %v115
  %v423 = vunpack.c.l.b16 %v116
  %v424 = vunpack.c.h.b16 %v116
  %v425 = vunpack.c.l.b16 %v117
  %v426 = vunpack.c.h.b16 %v117
  %v427 = vunpack.c.l.b16 %v118
  %v428 = vunpack.c.h.b16 %v118
  %v429 = vunpack.c.l.b16 %v119
  %v430 = vunpack.c.h.b16 %v119
  %v431 = vunpack.c.l.b16 %v120
  %v432 = vunpack.c.h.b16 %v120
  %v433 = vunpack.c.l.b16 %v121
  %v434 = vunpack.c.h.b16 %v121
  %v435 = vunpack.c.l.b16 %v122
  %v436 = vunpack.c.h.b16 %v122
  %v437 = vunpack.c.l.b16 %v123
  %v438 = vunpack.c.h.b16 %v123
  %v439 = vunpack.c.l.b16 %v124
  %v440 = vunpack.c.h.b16 %v124
  %v441 = vunpack.c.l.b16 %v125
  %v442 = vunpack.c.h.b16 %v125
  %v443 = vunpack.c.l.b16 %v126
  %v444 = vunpack.c.h.b16 %v126
  %v445 = vunpack.c.l.b16 %v127
  %v446 = vunpack.c.h.b16 %v127
  %v447 = vunpack.c.l.b16 %v128
  %v448 = vunpack.c.h.b16 %v128
  %v449 = vunpack.c.l.b16 %v129
  %v450 = vunpack.c.h.b16 %v129
  %v451 = vunpack.c.l.b16 %v130
  %v452 = vunpack.c.h.b16 %v130
  %v453 = vunpack.c.l.b16 %v131
  %v454 = vunpack.c.h.b16 %v131
  %v455 = vunpack.c.l.b16 %v132
  %v456 = vunpack.c.h.b16 %v132
  %v457 = vunpack.c.l.b16 %v133
  %v458 = vunpack.c.h.b16 %v133
  %v459 = vunpack.c.l.b16 %v134
  %v460 = vunpack.c.h.b16 %v134
  %v461 = vunpack.c.l.b16 %v135
  %v462 = vunpack.c.h.b16 %v135
  %v463 = vunpack.c.l.b16 %v136
  %v464 = vunpack.c.h.b16 %v136
  %v465 = vunpack.c.l.b16 %v137
  %v466 = vunpack.c.h.b16 %v137
  %v467 = vunpack.c.l.b16 %v138
  %v468 = vunpack.c.h.b16 %v138
  %v469 = vunpack.c.l.b16 %v139
  %v470 = vunpack.c.h.b16 %v139
  %v471 = vpack.c.b16 %v275, %v271
  %v472 = vpack.c.b16 %v276, %v272
  %v473 = vpack.c.b16 %v277, %v273
  %v474 = vpack.c.b16 %v278, %v274
  %v475 = vpack.c.b16 %v283, %v279
  %v476 = vpack.c.b16 %v284, %v280
  %v477 = vpack.c.b16 %v285, %v281
  %v478 = vpack.c.b16 %v286, %v282
  %v479 = vpack.c.b16 %v291, %v287
  %v480 = vpack.c.b16 %v292, %v288
  %v481 = vpack.c.b16 %v293, %v289
  %v482 = vpack.c.b16 %v294, %v290
  %v483 = vpack.c.b16 %v299, %v295
  %v484 = vpack.c.b16 %v300, %v296
  %v485 = vpack.c.b16 %v301, %v297
  %v486 = vpack.c.b16 %v302, %v298
  %v487 = vpack.c.b16 %v307, %v303
  %v488 = vpack.c.b16 %v308, %v304
  %v489 = vpack.c.b16 %v309, %v305
  %v490 = vpack.c.b16 %v310, %v306
  %v491 = vpack.c.b16 %v315, %v311
  %v492 = vpack.c.b16 %v316, %v312
  %v493 = vpack.c.b16 %v317, %v313
  %v494 = vpack.c.b16 %v318, %v314
  %v495 = vpack.c.b16 %v323, %v319
  %v496 = vpack.c.b16 %v324, %v320
  %v497 = vpack.c.b16 %v325, %v321
  %v498 = vpack.c.b16 %v326, %v322
  %v499 = vpack.c.b16 %v331, %v327
  %v500 = vpack.c.b16 %v332, %v328
  %v501 = vpack.c.b16 %v333, %v329
  %v502 = vpack.c.b16 %v334, %v330
  %v503 = vpack.c.b16 %v339, %v335
  %v504 = vpack.c.b16 %v340, %v336
  %v505 = vpack.c.b16 %v341, %v337
  %v506 = vpack.c.b16 %v342, %v338
  %v507 = vpack.c.b16 %v347, %v343
  %v508 = vpack.c.b16 %v348, %v344
  %v509 = vpack.c.b16 %v349, %v345
  %v510 = vpack.c.b16 %v350, %v346
  %v511 = vpack.c.b16 %v355, %v351
  %v512 = vpack.c.b16 %v356, %v352
  %v513 = vpack.c.b16 %v357, %v353
  %v514 = vpack.c.b16 %v358, %v354
  %v515 = vpack.c.b16 %v363, %v359
  %v516 = vpack.c.b16 %v364, %v360
  %v517 = vpack.c.b16 %v365, %v361
  %v518 = vpack.c.b16 %v366, %v362
  %v519 = vpack.c.b16 %v371, %v367
  %v520 = vpack.c.b16 %v372, %v368
  %v521 = vpack.c.b16 %v373, %v369
  %v522 = vpack.c.b16 %v374, %v370
  %v523 = vpack.c.b16 %v379, %v375
  %v524 = vpack.c.b16 %v380, %v376
  %v525 = vpack.c.b16 %v381, %v377
  %v526 = vpack.c.b16 %v382, %v378
  %v527 = vpack.c.b16 %v387, %v383
  %v528 = vpack.c.b16 %v388, %v384
  %v529 = vpack.c.b16 %v389, %v385
  %v530 = vpack.c.b16 %v390, %v386
  %v531 = vpack.c.b16 %v395, %v391
  %v532 = vpack.c.b16 %v396, %v392
  %v533 = vpack.c.b16 %v397, %v393
  %v534 = vpack.c.b16 %v398, %v394
  %v535 = vpack.c.b16 %v403, %v399
  %v536 = vpack.c.b16 %v404, %v400
  %v537 = vpack.c.b16 %v405, %v401
  %v538 = vpack.c.b16 %v406, %v402
  %v539 = vpack.c.b16 %v411, %v407
  %v540 = vpack.c.b16 %v412, %v408
  %v541 = vpack.c.b16 %v413, %v409
  %v542 = vpack.c.b16 %v414, %v410
  %v543 = vpack.c.b16 %v419, %v415
  %v544 = vpack.c.b16 %v420, %v416
  %v545 = vpack.c.b16 %v421, %v417
  %v546 = vpack.c.b16 %v422, %v418
  %v547 = vpack.c.b16 %v427, %v423
  %v548 = vpack.c.b16 %v428, %v424
  %v549 = vpack.c.b16 %v429, %v425
  %v550 = vpack.c.b16 %v430, %v426
  %v551 = vpack.c.b16 %v435, %v431
  %v552 = vpack.c.b16 %v436, %v432
  %v553 = vpack.c.b16 %v437, %v433
  %v554 = vpack.c.b16 %v438, %v434
  %v555 = vpack.c.b16 %v443, %v439
  %v556 = vpack.c.b16 %v444, %v440
  %v557 = vpack.c.b16 %v445, %v441
  %v558 = vpack.c.b16 %v446, %v442
  %v559 = vpack.c.b16 %v451, %v447
  %v560 = vpack.c.b16 %v452, %v448
  %v561 = vpack.c.b16 %v453, %v449
  %v562 = vpack.c.b16 %v454, %v450
  %v563 = vpack.c.b16 %v459, %v455
  %v564 = vpack.c.b16 %v460, %v456
  %v565 = vpack.c.b16 %v461, %v457
  %v566 = vpack.c.b16 %v462, %v458
  %v567 = vpack.c.b16 %v467, %v463
  %v568 = vpack.c.b16 %v468, %v464
  %v569 = vpack.c.b16 %v469, %v465
  %v570 = vpack.c.b16 %v470, %v466
  %vm671 = vcmask 130048
  %v673 = vsel %vm671, %v167, 0
  %675 = vmatpush.bf16.msra.mxu0 %v499
  %676 = vmatpush.bf16.msra.mxu0 %v495
  %677 = vmatpush.bf16.msra.mxu0 %v491
  %678 = vmatpush.bf16.msra.mxu0 %v487
  %679 = vmatpush.bf16.msra.mxu0 %v483
  %680 = vmatpush.bf16.msra.mxu0 %v479
  %681 = vmatpush.bf16.msra.mxu0 %v475
  %682 = vmatpush.bf16.msra.mxu0 %v471
  %683 = vmatmul.bf16.gmra.mxu0 %v164
  %v684 = vpop.f32.mrf.mxu0
  %v685 = vadd.f32 %v145, %v684
  %v686 = vpop.f32.mrf.mxu0
  %v687 = vadd.f32 %v150, %v686
  %688 = vdwg.mxu0
  %689 = vmatpush.bf16.msra.mxu0 %v531
  %690 = vmatpush.bf16.msra.mxu0 %v527
  %691 = vmatpush.bf16.msra.mxu0 %v523
  %692 = vmatpush.bf16.msra.mxu0 %v519
  %693 = vmatpush.bf16.msra.mxu0 %v515
  %694 = vmatpush.bf16.msra.mxu0 %v511
  %695 = vmatpush.bf16.msra.mxu0 %v507
  %696 = vmatpush.bf16.msra.mxu0 %v503
  %697 = vmatmul.bf16.gmra.mxu0 %v165
  %v698 = vpop.f32.mrf.mxu0
  %v699 = vadd.f32 %v685, %v698
  %v700 = vpop.f32.mrf.mxu0
  %v701 = vadd.f32 %v687, %v700
  %702 = vdwg.mxu0
  %703 = vmatpush.bf16.msra.mxu0 %v563
  %704 = vmatpush.bf16.msra.mxu0 %v559
  %705 = vmatpush.bf16.msra.mxu0 %v555
  %706 = vmatpush.bf16.msra.mxu0 %v551
  %707 = vmatpush.bf16.msra.mxu0 %v547
  %708 = vmatpush.bf16.msra.mxu0 %v543
  %709 = vmatpush.bf16.msra.mxu0 %v539
  %710 = vmatpush.bf16.msra.mxu0 %v535
  %711 = vmatmul.bf16.gmra.mxu0 %v166
  %v712 = vpop.f32.mrf.mxu0
  %v713 = vadd.f32 %v699, %v712
  %v714 = vpop.f32.mrf.mxu0
  %v715 = vadd.f32 %v701, %v714
  %716 = vdwg.mxu0
  %717 = vmatpush.bf16.msra.mxu0 0
  %718 = vmatpush.bf16.msra.mxu0 0
  %719 = vmatpush.bf16.msra.mxu0 0
  %720 = vmatpush.bf16.msra.mxu0 0
  %721 = vmatpush.bf16.msra.mxu0 0
  %722 = vmatpush.bf16.msra.mxu0 0
  %723 = vmatpush.bf16.msra.mxu0 0
  %724 = vmatpush.bf16.msra.mxu0 %v567
  %725 = vmatmul.bf16.gmra.mxu0 %v673
  %v726 = vpop.f32.mrf.mxu0
  %v727 = vadd.f32 %v713, %v726
  %v728 = vpop.f32.mrf.mxu0
  %v729 = vadd.f32 %v715, %v728
  %730 = vdwg.mxu0
  %731 = vmatpush.bf16.msra.mxu0 %v500
  %732 = vmatpush.bf16.msra.mxu0 %v496
  %733 = vmatpush.bf16.msra.mxu0 %v492
  %734 = vmatpush.bf16.msra.mxu0 %v488
  %735 = vmatpush.bf16.msra.mxu0 %v484
  %736 = vmatpush.bf16.msra.mxu0 %v480
  %737 = vmatpush.bf16.msra.mxu0 %v476
  %738 = vmatpush.bf16.msra.mxu0 %v472
  %739 = vmatmul.bf16.gmra.mxu0 %v164
  %v740 = vpop.f32.mrf.mxu0
  %v741 = vadd.f32 %v145, %v740
  %v742 = vpop.f32.mrf.mxu0
  %v743 = vadd.f32 %v150, %v742
  %744 = vdwg.mxu0
  %745 = vmatpush.bf16.msra.mxu0 %v532
  %746 = vmatpush.bf16.msra.mxu0 %v528
  %747 = vmatpush.bf16.msra.mxu0 %v524
  %748 = vmatpush.bf16.msra.mxu0 %v520
  %749 = vmatpush.bf16.msra.mxu0 %v516
  %750 = vmatpush.bf16.msra.mxu0 %v512
  %751 = vmatpush.bf16.msra.mxu0 %v508
  %752 = vmatpush.bf16.msra.mxu0 %v504
  %753 = vmatmul.bf16.gmra.mxu0 %v165
  %v754 = vpop.f32.mrf.mxu0
  %v755 = vadd.f32 %v741, %v754
  %v756 = vpop.f32.mrf.mxu0
  %v757 = vadd.f32 %v743, %v756
  %758 = vdwg.mxu0
  %759 = vmatpush.bf16.msra.mxu0 %v564
  %760 = vmatpush.bf16.msra.mxu0 %v560
  %761 = vmatpush.bf16.msra.mxu0 %v556
  %762 = vmatpush.bf16.msra.mxu0 %v552
  %763 = vmatpush.bf16.msra.mxu0 %v548
  %764 = vmatpush.bf16.msra.mxu0 %v544
  %765 = vmatpush.bf16.msra.mxu0 %v540
  %766 = vmatpush.bf16.msra.mxu0 %v536
  %767 = vmatmul.bf16.gmra.mxu0 %v166
  %v768 = vpop.f32.mrf.mxu0
  %v769 = vadd.f32 %v755, %v768
  %v770 = vpop.f32.mrf.mxu0
  %v771 = vadd.f32 %v757, %v770
  %772 = vdwg.mxu0
  %773 = vmatpush.bf16.msra.mxu0 0
  %774 = vmatpush.bf16.msra.mxu0 0
  %775 = vmatpush.bf16.msra.mxu0 0
  %776 = vmatpush.bf16.msra.mxu0 0
  %777 = vmatpush.bf16.msra.mxu0 0
  %778 = vmatpush.bf16.msra.mxu0 0
  %779 = vmatpush.bf16.msra.mxu0 0
  %780 = vmatpush.bf16.msra.mxu0 %v568
  %781 = vmatmul.bf16.gmra.mxu0 %v673
  %v782 = vpop.f32.mrf.mxu0
  %v783 = vadd.f32 %v769, %v782
  %v784 = vpop.f32.mrf.mxu0
  %v785 = vadd.f32 %v771, %v784
  %786 = vdwg.mxu0
  %787 = vmatpush.bf16.msra.mxu0 %v501
  %788 = vmatpush.bf16.msra.mxu0 %v497
  %789 = vmatpush.bf16.msra.mxu0 %v493
  %790 = vmatpush.bf16.msra.mxu0 %v489
  %791 = vmatpush.bf16.msra.mxu0 %v485
  %792 = vmatpush.bf16.msra.mxu0 %v481
  %793 = vmatpush.bf16.msra.mxu0 %v477
  %794 = vmatpush.bf16.msra.mxu0 %v473
  %795 = vmatmul.bf16.gmra.mxu0 %v164
  %v796 = vpop.f32.mrf.mxu0
  %v797 = vadd.f32 %v145, %v796
  %v798 = vpop.f32.mrf.mxu0
  %v799 = vadd.f32 %v150, %v798
  %800 = vdwg.mxu0
  %801 = vmatpush.bf16.msra.mxu0 %v533
  %802 = vmatpush.bf16.msra.mxu0 %v529
  %803 = vmatpush.bf16.msra.mxu0 %v525
  %804 = vmatpush.bf16.msra.mxu0 %v521
  %805 = vmatpush.bf16.msra.mxu0 %v517
  %806 = vmatpush.bf16.msra.mxu0 %v513
  %807 = vmatpush.bf16.msra.mxu0 %v509
  %808 = vmatpush.bf16.msra.mxu0 %v505
  %809 = vmatmul.bf16.gmra.mxu0 %v165
  %v810 = vpop.f32.mrf.mxu0
  %v811 = vadd.f32 %v797, %v810
  %v812 = vpop.f32.mrf.mxu0
  %v813 = vadd.f32 %v799, %v812
  %814 = vdwg.mxu0
  %815 = vmatpush.bf16.msra.mxu0 %v565
  %816 = vmatpush.bf16.msra.mxu0 %v561
  %817 = vmatpush.bf16.msra.mxu0 %v557
  %818 = vmatpush.bf16.msra.mxu0 %v553
  %819 = vmatpush.bf16.msra.mxu0 %v549
  %820 = vmatpush.bf16.msra.mxu0 %v545
  %821 = vmatpush.bf16.msra.mxu0 %v541
  %822 = vmatpush.bf16.msra.mxu0 %v537
  %823 = vmatmul.bf16.gmra.mxu0 %v166
  %v824 = vpop.f32.mrf.mxu0
  %v825 = vadd.f32 %v811, %v824
  %v826 = vpop.f32.mrf.mxu0
  %v827 = vadd.f32 %v813, %v826
  %828 = vdwg.mxu0
  %829 = vmatpush.bf16.msra.mxu0 0
  %830 = vmatpush.bf16.msra.mxu0 0
  %831 = vmatpush.bf16.msra.mxu0 0
  %832 = vmatpush.bf16.msra.mxu0 0
  %833 = vmatpush.bf16.msra.mxu0 0
  %834 = vmatpush.bf16.msra.mxu0 0
  %835 = vmatpush.bf16.msra.mxu0 0
  %836 = vmatpush.bf16.msra.mxu0 %v569
  %837 = vmatmul.bf16.gmra.mxu0 %v673
  %v838 = vpop.f32.mrf.mxu0
  %v839 = vadd.f32 %v825, %v838
  %v840 = vpop.f32.mrf.mxu0
  %v841 = vadd.f32 %v827, %v840
  %842 = vdwg.mxu0
  %843 = vmatpush.bf16.msra.mxu0 %v502
  %844 = vmatpush.bf16.msra.mxu0 %v498
  %845 = vmatpush.bf16.msra.mxu0 %v494
  %846 = vmatpush.bf16.msra.mxu0 %v490
  %847 = vmatpush.bf16.msra.mxu0 %v486
  %848 = vmatpush.bf16.msra.mxu0 %v482
  %849 = vmatpush.bf16.msra.mxu0 %v478
  %850 = vmatpush.bf16.msra.mxu0 %v474
  %851 = vmatmul.bf16.gmra.mxu0 %v164
  %v852 = vpop.f32.mrf.mxu0
  %v853 = vadd.f32 %v145, %v852
  %v854 = vpop.f32.mrf.mxu0
  %v855 = vadd.f32 %v150, %v854
  %856 = vdwg.mxu0
  %857 = vmatpush.bf16.msra.mxu0 %v534
  %858 = vmatpush.bf16.msra.mxu0 %v530
  %859 = vmatpush.bf16.msra.mxu0 %v526
  %860 = vmatpush.bf16.msra.mxu0 %v522
  %861 = vmatpush.bf16.msra.mxu0 %v518
  %862 = vmatpush.bf16.msra.mxu0 %v514
  %863 = vmatpush.bf16.msra.mxu0 %v510
  %864 = vmatpush.bf16.msra.mxu0 %v506
  %865 = vmatmul.bf16.gmra.mxu0 %v165
  %v866 = vpop.f32.mrf.mxu0
  %v867 = vadd.f32 %v853, %v866
  %v868 = vpop.f32.mrf.mxu0
  %v869 = vadd.f32 %v855, %v868
  %870 = vdwg.mxu0
  %871 = vmatpush.bf16.msra.mxu0 %v566
  %872 = vmatpush.bf16.msra.mxu0 %v562
  %873 = vmatpush.bf16.msra.mxu0 %v558
  %874 = vmatpush.bf16.msra.mxu0 %v554
  %875 = vmatpush.bf16.msra.mxu0 %v550
  %876 = vmatpush.bf16.msra.mxu0 %v546
  %877 = vmatpush.bf16.msra.mxu0 %v542
  %878 = vmatpush.bf16.msra.mxu0 %v538
  %879 = vmatmul.bf16.gmra.mxu0 %v166
  %v880 = vpop.f32.mrf.mxu0
  %v881 = vadd.f32 %v867, %v880
  %v882 = vpop.f32.mrf.mxu0
  %v883 = vadd.f32 %v869, %v882
  %884 = vdwg.mxu0
  %885 = vmatpush.bf16.msra.mxu0 0
  %886 = vmatpush.bf16.msra.mxu0 0
  %887 = vmatpush.bf16.msra.mxu0 0
  %888 = vmatpush.bf16.msra.mxu0 0
  %889 = vmatpush.bf16.msra.mxu0 0
  %890 = vmatpush.bf16.msra.mxu0 0
  %891 = vmatpush.bf16.msra.mxu0 0
  %892 = vmatpush.bf16.msra.mxu0 %v570
  %893 = vmatmul.bf16.gmra.mxu0 %v673
  %v894 = vpop.f32.mrf.mxu0
  %v895 = vadd.f32 %v881, %v894
  %v896 = vpop.f32.mrf.mxu0
  %v897 = vadd.f32 %v883, %v896
  %898 = vdwg.mxu0
  %vm899 = vcmp.ge.f32.partialorder %v727, 0.0
  %vm900 = vcmp.ge.f32.partialorder %v783, 0.0
  %vm901 = vcmp.ge.f32.partialorder %v839, 0.0
  %vm902 = vcmp.ge.f32.partialorder %v895, 0.0
  %vm903 = vcmp.ge.f32.partialorder %v729, 0.0
  %vm904 = vcmp.ge.f32.partialorder %v785, 0.0
  %vm905 = vcmp.ge.f32.partialorder %v841, 0.0
  %vm906 = vcmp.ge.f32.partialorder %v897, 0.0
  %v907 = vmul.f32 %v727, 0.2
  %v908 = vmul.f32 %v783, 0.2
  %v909 = vmul.f32 %v839, 0.2
  %v910 = vmul.f32 %v895, 0.2
  %v911 = vmul.f32 %v729, 0.2
  %v912 = vmul.f32 %v785, 0.2
  %v913 = vmul.f32 %v841, 0.2
  %v914 = vmul.f32 %v897, 0.2
  %v915 = vsel %vm899, %v727, %v907
  %v916 = vsel %vm900, %v783, %v908
  %v917 = vsel %vm901, %v839, %v909
  %v918 = vsel %vm902, %v895, %v910
  %v919 = vsel %vm903, %v729, %v911
  %v920 = vsel %vm904, %v785, %v912
  %v921 = vsel %vm905, %v841, %v913
  %v922 = vsel %vm906, %v897, %v914
  %v923 = vpack.c.bf16 %v919, %v915
  %v924 = vpack.c.bf16 %v920, %v916
  %v925 = vpack.c.bf16 %v921, %v917
  %v926 = vpack.c.bf16 %v922, %v918
  %v927 = vld [vmem:[%s3] sm:$0xff]
  %v928 = vld [vmem:[%s3 + $0x8] sm:$0xff]
  %v929 = vld [vmem:[%s3 + $0x10] sm:$0xff]
  %v930 = vld [vmem:[%s3 + $0x18] sm:$0xff]
  %v931 = vld [vmem:[%s3 + $0x20] sm:$0xf]
  %v932 = vld [vmem:[%s3 + $0x24] sm:$0xff]
  %v933 = vld [vmem:[%s3 + $0x2c] sm:$0xff]
  %v934 = vld [vmem:[%s3 + $0x34] sm:$0xff]
  %v935 = vld [vmem:[%s3 + $0x3c] sm:$0xff]
  %v936 = vld [vmem:[%s3 + $0x44] sm:$0xf]
  %v937 = vld [vmem:[%s3 + $0x48] sm:$0xff]
  %v938 = vld [vmem:[%s3 + $0x50] sm:$0xff]
  %v939 = vld [vmem:[%s3 + $0x58] sm:$0xff]
  %v940 = vld [vmem:[%s3 + $0x60] sm:$0xff]
  %v941 = vld [vmem:[%s3 + $0x68] sm:$0xf]
  %v942 = vld [vmem:[%s3 + $0x6c] sm:$0xff]
  %v943 = vld [vmem:[%s3 + $0x74] sm:$0xff]
  %v944 = vld [vmem:[%s3 + $0x7c] sm:$0xff]
  %v945 = vld [vmem:[%s3 + $0x84] sm:$0xff]
  %v946 = vld [vmem:[%s3 + $0x8c] sm:$0xf]
  %v947 = vld [vmem:[%s3 + $0x90] sm:$0xff]
  %v948 = vld [vmem:[%s3 + $0x98] sm:$0xff]
  %v949 = vld [vmem:[%s3 + $0xa0] sm:$0xff]
  %v950 = vld [vmem:[%s3 + $0xa8] sm:$0xff]
  %v951 = vld [vmem:[%s3 + $0xb0] sm:$0xf]
  %v952 = vld [vmem:[%s3 + $0xb4] sm:$0xff]
  %v953 = vld [vmem:[%s3 + $0xbc] sm:$0xff]
  %v954 = vld [vmem:[%s3 + $0xc4] sm:$0xff]
  %v955 = vld [vmem:[%s3 + $0xcc] sm:$0xff]
  %v956 = vld [vmem:[%s3 + $0xd4] sm:$0xf]
  %v957 = vld [vmem:[%s3 + $0xd8] sm:$0xff]
  %v958 = vld [vmem:[%s3 + $0xe0] sm:$0xff]
  %v959 = vld [vmem:[%s3 + $0xe8] sm:$0xff]
  %v960 = vld [vmem:[%s3 + $0xf0] sm:$0xff]
  %v961 = vld [vmem:[%s3 + $0xf8] sm:$0xf]
  %v962 = vld [vmem:[%s3 + $0xfc] sm:$0xff]
  %v963 = vld [vmem:[%s3 + $0x104] sm:$0xff]
  %v964 = vld [vmem:[%s3 + $0x10c] sm:$0xff]
  %v965 = vld [vmem:[%s3 + $0x114] sm:$0xff]
  %v966 = vld [vmem:[%s3 + $0x11c] sm:$0xf]
  %v967 = vld [vmem:[%s3 + $0x120] sm:$0xff]
  %v968 = vld [vmem:[%s3 + $0x128] sm:$0xff]
  %v969 = vld [vmem:[%s3 + $0x130] sm:$0xff]
  %v970 = vld [vmem:[%s3 + $0x138] sm:$0xff]
  %v971 = vld [vmem:[%s3 + $0x140] sm:$0xf]
  %v972 = vld [vmem:[%s3 + $0x144] sm:$0xff]
  %v973 = vld [vmem:[%s3 + $0x14c] sm:$0xff]
  %v974 = vld [vmem:[%s3 + $0x154] sm:$0xff]
  %v975 = vld [vmem:[%s3 + $0x15c] sm:$0xff]
  %v976 = vld [vmem:[%s3 + $0x164] sm:$0xf]
  %v977 = vld [vmem:[%s3 + $0x168] sm:$0xff]
  %v978 = vld [vmem:[%s3 + $0x170] sm:$0xff]
  %v979 = vld [vmem:[%s3 + $0x178] sm:$0xff]
  %v980 = vld [vmem:[%s3 + $0x180] sm:$0xff]
  %v981 = vld [vmem:[%s3 + $0x188] sm:$0xf]
  %v982 = vld [vmem:[%s3 + $0x18c] sm:$0xff]
  %v983 = vld [vmem:[%s3 + $0x194] sm:$0xff]
  %v984 = vld [vmem:[%s3 + $0x19c] sm:$0xff]
  %v985 = vld [vmem:[%s3 + $0x1a4] sm:$0xff]
  %v986 = vld [vmem:[%s3 + $0x1ac] sm:$0xf]
  %v987 = vld [vmem:[%s3 + $0x1b0] sm:$0xff]
  %v988 = vld [vmem:[%s3 + $0x1b8] sm:$0xff]
  %v989 = vld [vmem:[%s3 + $0x1c0] sm:$0xff]
  %v990 = vld [vmem:[%s3 + $0x1c8] sm:$0xff]
  %v991 = vld [vmem:[%s3 + $0x1d0] sm:$0xf]
  %v992 = vld [vmem:[%s3 + $0x1d4] sm:$0xff]
  %v993 = vld [vmem:[%s3 + $0x1dc] sm:$0xff]
  %v994 = vld [vmem:[%s3 + $0x1e4] sm:$0xff]
  %v995 = vld [vmem:[%s3 + $0x1ec] sm:$0xff]
  %v996 = vld [vmem:[%s3 + $0x1f4] sm:$0xf]
  %v997 = vld [vmem:[%s3 + $0x1f8] sm:$0xff]
  %v998 = vld [vmem:[%s3 + $0x200] sm:$0xff]
  %v999 = vld [vmem:[%s3 + $0x208] sm:$0xff]
  %v1000 = vld [vmem:[%s3 + $0x210] sm:$0xff]
  %v1001 = vld [vmem:[%s3 + $0x218] sm:$0xf]
  %v1002 = vld [vmem:[%s3 + $0x21c] sm:$0xff]
  %v1003 = vld [vmem:[%s3 + $0x224] sm:$0xff]
  %v1004 = vld [vmem:[%s3 + $0x22c] sm:$0xff]
  %v1005 = vld [vmem:[%s3 + $0x234] sm:$0xff]
  %v1006 = vld [vmem:[%s3 + $0x23c] sm:$0xf]
  %v1007 = vld [vmem:[%s3 + $0x240] sm:$0xff]
  %v1008 = vld [vmem:[%s3 + $0x248] sm:$0xff]
  %v1009 = vld [vmem:[%s3 + $0x250] sm:$0xff]
  %v1010 = vld [vmem:[%s3 + $0x258] sm:$0xff]
  %v1011 = vld [vmem:[%s3 + $0x260] sm:$0xf]
  %v1012 = vld [vmem:[%s3 + $0x264] sm:$0xff]
  %v1013 = vld [vmem:[%s3 + $0x26c] sm:$0xff]
  %v1014 = vld [vmem:[%s3 + $0x274] sm:$0xff]
  %v1015 = vld [vmem:[%s3 + $0x27c] sm:$0xff]
  %v1016 = vld [vmem:[%s3 + $0x284] sm:$0xf]
  %v1017 = vld [vmem:[%s3 + $0x288] sm:$0xff]
  %v1018 = vld [vmem:[%s3 + $0x290] sm:$0xff]
  %v1019 = vld [vmem:[%s3 + $0x298] sm:$0xff]
  %v1020 = vld [vmem:[%s3 + $0x2a0] sm:$0xff]
  %v1021 = vld [vmem:[%s3 + $0x2a8] sm:$0xf]
  %v1022 = vld [vmem:[%s3 + $0x2ac] sm:$0xff]
  %v1023 = vld [vmem:[%s3 + $0x2b4] sm:$0xff]
  %v1024 = vld [vmem:[%s3 + $0x2bc] sm:$0xff]
  %v1025 = vld [vmem:[%s3 + $0x2c4] sm:$0xff]
  %v1026 = vld [vmem:[%s3 + $0x2cc] sm:$0xf]
  %v1027 = vld [vmem:[%s3 + $0x2d0] sm:$0xff]
  %v1028 = vld [vmem:[%s3 + $0x2d8] sm:$0xff]
  %v1029 = vld [vmem:[%s3 + $0x2e0] sm:$0xff]
  %v1030 = vld [vmem:[%s3 + $0x2e8] sm:$0xff]
  %v1031 = vld [vmem:[%s3 + $0x2f0] sm:$0xf]
  %v1032 = vld [vmem:[%s3 + $0x2f4] sm:$0xff]
  %v1033 = vld [vmem:[%s3 + $0x2fc] sm:$0xff]
  %v1034 = vld [vmem:[%s3 + $0x304] sm:$0xff]
  %v1035 = vld [vmem:[%s3 + $0x30c] sm:$0xff]
  %v1036 = vld [vmem:[%s3 + $0x314] sm:$0xf]
  %v1037 = vld [vmem:[%s3 + $0x318] sm:$0xff]
  %v1038 = vld [vmem:[%s3 + $0x320] sm:$0xff]
  %v1039 = vld [vmem:[%s3 + $0x328] sm:$0xff]
  %v1040 = vld [vmem:[%s3 + $0x330] sm:$0xff]
  %v1041 = vld [vmem:[%s3 + $0x338] sm:$0xf]
  %v1042 = vld [vmem:[%s3 + $0x33c] sm:$0xff]
  %v1043 = vld [vmem:[%s3 + $0x344] sm:$0xff]
  %v1044 = vld [vmem:[%s3 + $0x34c] sm:$0xff]
  %v1045 = vld [vmem:[%s3 + $0x354] sm:$0xff]
  %v1046 = vld [vmem:[%s3 + $0x35c] sm:$0xf]
  %v1047 = vld [vmem:[%s3 + $0x360] sm:$0xff]
  %v1048 = vld [vmem:[%s3 + $0x368] sm:$0xff]
  %v1049 = vld [vmem:[%s3 + $0x370] sm:$0xff]
  %v1050 = vld [vmem:[%s3 + $0x378] sm:$0xff]
  %v1051 = vld [vmem:[%s3 + $0x380] sm:$0xf]
  %v1052 = vld [vmem:[%s3 + $0x384] sm:$0xff]
  %v1053 = vld [vmem:[%s3 + $0x38c] sm:$0xff]
  %v1054 = vld [vmem:[%s3 + $0x394] sm:$0xff]
  %v1055 = vld [vmem:[%s3 + $0x39c] sm:$0xff]
  %v1056 = vld [vmem:[%s3 + $0x3a4] sm:$0xf]
  %v1057 = vld [vmem:[%s3 + $0x3a8] sm:$0xff]
  %v1058 = vld [vmem:[%s3 + $0x3b0] sm:$0xff]
  %v1059 = vld [vmem:[%s3 + $0x3b8] sm:$0xff]
  %v1060 = vld [vmem:[%s3 + $0x3c0] sm:$0xff]
  %v1061 = vld [vmem:[%s3 + $0x3c8] sm:$0xf]
  %v1062 = vld [vmem:[%s3 + $0x3cc] sm:$0xff]
  %v1063 = vld [vmem:[%s3 + $0x3d4] sm:$0xff]
  %v1064 = vld [vmem:[%s3 + $0x3dc] sm:$0xff]
  %v1065 = vld [vmem:[%s3 + $0x3e4] sm:$0xff]
  %v1066 = vld [vmem:[%s3 + $0x3ec] sm:$0xf]
  %v1067 = vld [vmem:[%s3 + $0x3f0] sm:$0xff]
  %v1068 = vld [vmem:[%s3 + $0x3f8] sm:$0xff]
  %v1069 = vld [vmem:[%s3 + $0x400] sm:$0xff]
  %v1070 = vld [vmem:[%s3 + $0x408] sm:$0xff]
  %v1071 = vld [vmem:[%s3 + $0x410] sm:$0xf]
  %v1072 = vld [vmem:[%s3 + $0x414] sm:$0xff]
  %v1073 = vld [vmem:[%s3 + $0x41c] sm:$0xff]
  %v1074 = vld [vmem:[%s3 + $0x424] sm:$0xff]
  %v1075 = vld [vmem:[%s3 + $0x42c] sm:$0xff]
  %v1076 = vld [vmem:[%s3 + $0x434] sm:$0xf]
  %v1077 = vld [vmem:[%s3 + $0x438] sm:$0xff]
  %v1078 = vld [vmem:[%s3 + $0x440] sm:$0xff]
  %v1079 = vld [vmem:[%s3 + $0x448] sm:$0xff]
  %v1080 = vld [vmem:[%s3 + $0x450] sm:$0xff]
  %v1081 = vld [vmem:[%s3 + $0x458] sm:$0xf]
  %v1082 = vld [vmem:[%s3 + $0x45c] sm:$0xff]
  %v1083 = vld [vmem:[%s3 + $0x464] sm:$0xff]
  %v1084 = vld [vmem:[%s3 + $0x46c] sm:$0xff]
  %v1085 = vld [vmem:[%s3 + $0x474] sm:$0xff]
  %v1086 = vld [vmem:[%s3 + $0x47c] sm:$0xf]
  %v1087 = vld [vmem:[%s3 + $0x480] sm:$0xff]
  %v1088 = vld [vmem:[%s3 + $0x488] sm:$0xff]
  %v1089 = vld [vmem:[%s3 + $0x490] sm:$0xff]
  %v1090 = vld [vmem:[%s3 + $0x498] sm:$0xff]
  %v1091 = vld [vmem:[%s3 + $0x4a0] sm:$0xf]
  %v1092 = vld [vmem:[%s3 + $0x4a4] sm:$0xff]
  %v1093 = vld [vmem:[%s3 + $0x4ac] sm:$0xff]
  %v1094 = vld [vmem:[%s3 + $0x4b4] sm:$0xff]
  %v1095 = vld [vmem:[%s3 + $0x4bc] sm:$0xff]
  %v1096 = vld [vmem:[%s3 + $0x4c4] sm:$0xf]
  %v1097 = vld [vmem:[%s3 + $0x4c8] sm:$0xff]
  %v1098 = vld [vmem:[%s3 + $0x4d0] sm:$0xff]
  %v1099 = vld [vmem:[%s3 + $0x4d8] sm:$0xff]
  %v1100 = vld [vmem:[%s3 + $0x4e0] sm:$0xff]
  %v1101 = vld [vmem:[%s3 + $0x4e8] sm:$0xf]
  %v1102 = vld [vmem:[%s3 + $0x4ec] sm:$0xff]
  %v1103 = vld [vmem:[%s3 + $0x4f4] sm:$0xff]
  %v1104 = vld [vmem:[%s3 + $0x4fc] sm:$0xff]
  %v1105 = vld [vmem:[%s3 + $0x504] sm:$0xff]
  %v1106 = vld [vmem:[%s3 + $0x50c] sm:$0xf]
  %v1107 = vld [vmem:[%s3 + $0x510] sm:$0xff]
  %v1108 = vld [vmem:[%s3 + $0x518] sm:$0xff]
  %v1109 = vld [vmem:[%s3 + $0x520] sm:$0xff]
  %v1110 = vld [vmem:[%s3 + $0x528] sm:$0xff]
  %v1111 = vld [vmem:[%s3 + $0x530] sm:$0xf]
  %v1112 = vld [vmem:[%s3 + $0x534] sm:$0xff]
  %v1113 = vld [vmem:[%s3 + $0x53c] sm:$0xff]
  %v1114 = vld [vmem:[%s3 + $0x544] sm:$0xff]
  %v1115 = vld [vmem:[%s3 + $0x54c] sm:$0xff]
  %v1116 = vld [vmem:[%s3 + $0x554] sm:$0xf]
  %v1117 = vld [vmem:[%s3 + $0x558] sm:$0xff]
  %v1118 = vld [vmem:[%s3 + $0x560] sm:$0xff]
  %v1119 = vld [vmem:[%s3 + $0x568] sm:$0xff]
  %v1120 = vld [vmem:[%s3 + $0x570] sm:$0xff]
  %v1121 = vld [vmem:[%s3 + $0x578] sm:$0xf]
  %v1122 = vld [vmem:[%s3 + $0x57c] sm:$0xff]
  %v1123 = vld [vmem:[%s3 + $0x584] sm:$0xff]
  %v1124 = vld [vmem:[%s3 + $0x58c] sm:$0xff]
  %v1125 = vld [vmem:[%s3 + $0x594] sm:$0xff]
  %v1126 = vld [vmem:[%s3 + $0x59c] sm:$0xf]
  %v1127 = vld [vmem:[%s3 + $0x5a0] sm:$0xff]
  %v1128 = vld [vmem:[%s3 + $0x5a8] sm:$0xff]
  %v1129 = vld [vmem:[%s3 + $0x5b0] sm:$0xff]
  %v1130 = vld [vmem:[%s3 + $0x5b8] sm:$0xff]
  %v1131 = vld [vmem:[%s3 + $0x5c0] sm:$0xf]
  %v1132 = vld [vmem:[%s3 + $0x5c4] sm:$0xff]
  %v1133 = vld [vmem:[%s3 + $0x5cc] sm:$0xff]
  %v1134 = vld [vmem:[%s3 + $0x5d4] sm:$0xff]
  %v1135 = vld [vmem:[%s3 + $0x5dc] sm:$0xff]
  %v1136 = vld [vmem:[%s3 + $0x5e4] sm:$0xf]
  %v1137 = vld [vmem:[%s3 + $0x5e8] sm:$0xff]
  %v1138 = vld [vmem:[%s3 + $0x5f0] sm:$0xff]
  %v1139 = vld [vmem:[%s3 + $0x5f8] sm:$0xff]
  %v1140 = vld [vmem:[%s3 + $0x600] sm:$0xff]
  %v1141 = vld [vmem:[%s3 + $0x608] sm:$0xf]
  %v1142 = vld [vmem:[%s3 + $0x60c] sm:$0xff]
  %v1143 = vld [vmem:[%s3 + $0x614] sm:$0xff]
  %v1144 = vld [vmem:[%s3 + $0x61c] sm:$0xff]
  %v1145 = vld [vmem:[%s3 + $0x624] sm:$0xff]
  %v1146 = vld [vmem:[%s3 + $0x62c] sm:$0xf]
  %v1147 = vld [vmem:[%s3 + $0x630] sm:$0xff]
  %v1148 = vld [vmem:[%s3 + $0x638] sm:$0xff]
  %v1149 = vld [vmem:[%s3 + $0x640] sm:$0xff]
  %v1150 = vld [vmem:[%s3 + $0x648] sm:$0xff]
  %v1151 = vld [vmem:[%s3 + $0x650] sm:$0xf]
  %v1152 = vld [vmem:[%s3 + $0x654] sm:$0xff]
  %v1153 = vld [vmem:[%s3 + $0x65c] sm:$0xff]
  %v1154 = vld [vmem:[%s3 + $0x664] sm:$0xff]
  %v1155 = vld [vmem:[%s3 + $0x66c] sm:$0xff]
  %v1156 = vld [vmem:[%s3 + $0x674] sm:$0xf]
  %v1157 = vld [vmem:[%s3 + $0x678] sm:$0xff]
  %v1158 = vld [vmem:[%s3 + $0x680] sm:$0xff]
  %v1159 = vld [vmem:[%s3 + $0x688] sm:$0xff]
  %v1160 = vld [vmem:[%s3 + $0x690] sm:$0xff]
  %v1161 = vld [vmem:[%s3 + $0x698] sm:$0xf]
  %v1162 = vld [vmem:[%s3 + $0x69c] sm:$0xff]
  %v1163 = vld [vmem:[%s3 + $0x6a4] sm:$0xff]
  %v1164 = vld [vmem:[%s3 + $0x6ac] sm:$0xff]
  %v1165 = vld [vmem:[%s3 + $0x6b4] sm:$0xff]
  %v1166 = vld [vmem:[%s3 + $0x6bc] sm:$0xf]
  %v1167 = vld [vmem:[%s3 + $0x6c0] sm:$0xff]
  %v1168 = vld [vmem:[%s3 + $0x6c8] sm:$0xff]
  %v1169 = vld [vmem:[%s3 + $0x6d0] sm:$0xff]
  %v1170 = vld [vmem:[%s3 + $0x6d8] sm:$0xff]
  %v1171 = vld [vmem:[%s3 + $0x6e0] sm:$0xf]
  %v1172 = vld [vmem:[%s3 + $0x6e4] sm:$0xff]
  %v1173 = vld [vmem:[%s3 + $0x6ec] sm:$0xff]
  %v1174 = vld [vmem:[%s3 + $0x6f4] sm:$0xff]
  %v1175 = vld [vmem:[%s3 + $0x6fc] sm:$0xff]
  %v1176 = vld [vmem:[%s3 + $0x704] sm:$0xf]
  %v1177 = vld [vmem:[%s3 + $0x708] sm:$0xff]
  %v1178 = vld [vmem:[%s3 + $0x710] sm:$0xff]
  %v1179 = vld [vmem:[%s3 + $0x718] sm:$0xff]
  %v1180 = vld [vmem:[%s3 + $0x720] sm:$0xff]
  %v1181 = vld [vmem:[%s3 + $0x728] sm:$0xf]
  %v1182 = vld [vmem:[%s3 + $0x72c] sm:$0xff]
  %v1183 = vld [vmem:[%s3 + $0x734] sm:$0xff]
  %v1184 = vld [vmem:[%s3 + $0x73c] sm:$0xff]
  %v1185 = vld [vmem:[%s3 + $0x744] sm:$0xff]
  %v1186 = vld [vmem:[%s3 + $0x74c] sm:$0xf]
  %v1187 = vld [vmem:[%s3 + $0x750] sm:$0xff]
  %v1188 = vld [vmem:[%s3 + $0x758] sm:$0xff]
  %v1189 = vld [vmem:[%s3 + $0x760] sm:$0xff]
  %v1190 = vld [vmem:[%s3 + $0x768] sm:$0xff]
  %v1191 = vld [vmem:[%s3 + $0x770] sm:$0xf]
  %v1192 = vld [vmem:[%s3 + $0x774] sm:$0xff]
  %v1193 = vld [vmem:[%s3 + $0x77c] sm:$0xff]
  %v1194 = vld [vmem:[%s3 + $0x784] sm:$0xff]
  %v1195 = vld [vmem:[%s3 + $0x78c] sm:$0xff]
  %v1196 = vld [vmem:[%s3 + $0x794] sm:$0xf]
  %v1197 = vld [vmem:[%s3 + $0x798] sm:$0xff]
  %v1198 = vld [vmem:[%s3 + $0x7a0] sm:$0xff]
  %v1199 = vld [vmem:[%s3 + $0x7a8] sm:$0xff]
  %v1200 = vld [vmem:[%s3 + $0x7b0] sm:$0xff]
  %v1201 = vld [vmem:[%s3 + $0x7b8] sm:$0xf]
  %v1202 = vld [vmem:[%s3 + $0x7bc] sm:$0xff]
  %v1203 = vld [vmem:[%s3 + $0x7c4] sm:$0xff]
  %v1204 = vld [vmem:[%s3 + $0x7cc] sm:$0xff]
  %v1205 = vld [vmem:[%s3 + $0x7d4] sm:$0xff]
  %v1206 = vld [vmem:[%s3 + $0x7dc] sm:$0xf]
  %v1207 = vld [vmem:[%s3 + $0x7e0] sm:$0x11]
  %v1208 = vld [vmem:[%s3 + $0x7e8] sm:$0x11]
  %v1209 = vld [vmem:[%s3 + $0x7f0] sm:$0x11]
  %v1210 = vld [vmem:[%s3 + $0x7f8] sm:$0x11]
  %v1211 = vld [vmem:[%s3 + $0x800] sm:$0x1]
  %v1497 = vunpack.c.l.b16 %v927
  %v1498 = vunpack.c.h.b16 %v927
  %v1499 = vunpack.c.l.b16 %v928
  %v1500 = vunpack.c.h.b16 %v928
  %v1501 = vunpack.c.l.b16 %v929
  %v1502 = vunpack.c.h.b16 %v929
  %v1503 = vunpack.c.l.b16 %v930
  %v1504 = vunpack.c.h.b16 %v930
  %v1505 = vunpack.c.l.b16 %v931
  %v1506 = vunpack.c.l.b16 %v932
  %v1507 = vunpack.c.h.b16 %v932
  %v1508 = vunpack.c.l.b16 %v933
  %v1509 = vunpack.c.h.b16 %v933
  %v1510 = vunpack.c.l.b16 %v934
  %v1511 = vunpack.c.h.b16 %v934
  %v1512 = vunpack.c.l.b16 %v935
  %v1513 = vunpack.c.h.b16 %v935
  %v1514 = vunpack.c.l.b16 %v936
  %v1515 = vunpack.c.l.b16 %v937
  %v1516 = vunpack.c.h.b16 %v937
  %v1517 = vunpack.c.l.b16 %v938
  %v1518 = vunpack.c.h.b16 %v938
  %v1519 = vunpack.c.l.b16 %v939
  %v1520 = vunpack.c.h.b16 %v939
  %v1521 = vunpack.c.l.b16 %v940
  %v1522 = vunpack.c.h.b16 %v940
  %v1523 = vunpack.c.l.b16 %v941
  %v1524 = vunpack.c.l.b16 %v942
  %v1525 = vunpack.c.h.b16 %v942
  %v1526 = vunpack.c.l.b16 %v943
  %v1527 = vunpack.c.h.b16 %v943
  %v1528 = vunpack.c.l.b16 %v944
  %v1529 = vunpack.c.h.b16 %v944
  %v1530 = vunpack.c.l.b16 %v945
  %v1531 = vunpack.c.h.b16 %v945
  %v1532 = vunpack.c.l.b16 %v946
  %v1533 = vunpack.c.l.b16 %v947
  %v1534 = vunpack.c.h.b16 %v947
  %v1535 = vunpack.c.l.b16 %v948
  %v1536 = vunpack.c.h.b16 %v948
  %v1537 = vunpack.c.l.b16 %v949
  %v1538 = vunpack.c.h.b16 %v949
  %v1539 = vunpack.c.l.b16 %v950
  %v1540 = vunpack.c.h.b16 %v950
  %v1541 = vunpack.c.l.b16 %v951
  %v1542 = vunpack.c.l.b16 %v952
  %v1543 = vunpack.c.h.b16 %v952
  %v1544 = vunpack.c.l.b16 %v953
  %v1545 = vunpack.c.h.b16 %v953
  %v1546 = vunpack.c.l.b16 %v954
  %v1547 = vunpack.c.h.b16 %v954
  %v1548 = vunpack.c.l.b16 %v955
  %v1549 = vunpack.c.h.b16 %v955
  %v1550 = vunpack.c.l.b16 %v956
  %v1551 = vunpack.c.l.b16 %v957
  %v1552 = vunpack.c.h.b16 %v957
  %v1553 = vunpack.c.l.b16 %v958
  %v1554 = vunpack.c.h.b16 %v958
  %v1555 = vunpack.c.l.b16 %v959
  %v1556 = vunpack.c.h.b16 %v959
  %v1557 = vunpack.c.l.b16 %v960
  %v1558 = vunpack.c.h.b16 %v960
  %v1559 = vunpack.c.l.b16 %v961
  %v1560 = vunpack.c.l.b16 %v962
  %v1561 = vunpack.c.h.b16 %v962
  %v1562 = vunpack.c.l.b16 %v963
  %v1563 = vunpack.c.h.b16 %v963
  %v1564 = vunpack.c.l.b16 %v964
  %v1565 = vunpack.c.h.b16 %v964
  %v1566 = vunpack.c.l.b16 %v965
  %v1567 = vunpack.c.h.b16 %v965
  %v1568 = vunpack.c.l.b16 %v966
  %v1569 = vunpack.c.l.b16 %v967
  %v1570 = vunpack.c.h.b16 %v967
  %v1571 = vunpack.c.l.b16 %v968
  %v1572 = vunpack.c.h.b16 %v968
  %v1573 = vunpack.c.l.b16 %v969
  %v1574 = vunpack.c.h.b16 %v969
  %v1575 = vunpack.c.l.b16 %v970
  %v1576 = vunpack.c.h.b16 %v970
  %v1577 = vunpack.c.l.b16 %v971
  %v1578 = vunpack.c.l.b16 %v972
  %v1579 = vunpack.c.h.b16 %v972
  %v1580 = vunpack.c.l.b16 %v973
  %v1581 = vunpack.c.h.b16 %v973
  %v1582 = vunpack.c.l.b16 %v974
  %v1583 = vunpack.c.h.b16 %v974
  %v1584 = vunpack.c.l.b16 %v975
  %v1585 = vunpack.c.h.b16 %v975
  %v1586 = vunpack.c.l.b16 %v976
  %v1587 = vunpack.c.l.b16 %v977
  %v1588 = vunpack.c.h.b16 %v977
  %v1589 = vunpack.c.l.b16 %v978
  %v1590 = vunpack.c.h.b16 %v978
  %v1591 = vunpack.c.l.b16 %v979
  %v1592 = vunpack.c.h.b16 %v979
  %v1593 = vunpack.c.l.b16 %v980
  %v1594 = vunpack.c.h.b16 %v980
  %v1595 = vunpack.c.l.b16 %v981
  %v1596 = vunpack.c.l.b16 %v982
  %v1597 = vunpack.c.h.b16 %v982
  %v1598 = vunpack.c.l.b16 %v983
  %v1599 = vunpack.c.h.b16 %v983
  %v1600 = vunpack.c.l.b16 %v984
  %v1601 = vunpack.c.h.b16 %v984
  %v1602 = vunpack.c.l.b16 %v985
  %v1603 = vunpack.c.h.b16 %v985
  %v1604 = vunpack.c.l.b16 %v986
  %v1605 = vunpack.c.l.b16 %v987
  %v1606 = vunpack.c.h.b16 %v987
  %v1607 = vunpack.c.l.b16 %v988
  %v1608 = vunpack.c.h.b16 %v988
  %v1609 = vunpack.c.l.b16 %v989
  %v1610 = vunpack.c.h.b16 %v989
  %v1611 = vunpack.c.l.b16 %v990
  %v1612 = vunpack.c.h.b16 %v990
  %v1613 = vunpack.c.l.b16 %v991
  %v1614 = vunpack.c.l.b16 %v992
  %v1615 = vunpack.c.h.b16 %v992
  %v1616 = vunpack.c.l.b16 %v993
  %v1617 = vunpack.c.h.b16 %v993
  %v1618 = vunpack.c.l.b16 %v994
  %v1619 = vunpack.c.h.b16 %v994
  %v1620 = vunpack.c.l.b16 %v995
  %v1621 = vunpack.c.h.b16 %v995
  %v1622 = vunpack.c.l.b16 %v996
  %v1623 = vunpack.c.l.b16 %v997
  %v1624 = vunpack.c.h.b16 %v997
  %v1625 = vunpack.c.l.b16 %v998
  %v1626 = vunpack.c.h.b16 %v998
  %v1627 = vunpack.c.l.b16 %v999
  %v1628 = vunpack.c.h.b16 %v999
  %v1629 = vunpack.c.l.b16 %v1000
  %v1630 = vunpack.c.h.b16 %v1000
  %v1631 = vunpack.c.l.b16 %v1001
  %v1632 = vunpack.c.l.b16 %v1002
  %v1633 = vunpack.c.h.b16 %v1002
  %v1634 = vunpack.c.l.b16 %v1003
  %v1635 = vunpack.c.h.b16 %v1003
  %v1636 = vunpack.c.l.b16 %v1004
  %v1637 = vunpack.c.h.b16 %v1004
  %v1638 = vunpack.c.l.b16 %v1005
  %v1639 = vunpack.c.h.b16 %v1005
  %v1640 = vunpack.c.l.b16 %v1006
  %v1641 = vunpack.c.l.b16 %v1007
  %v1642 = vunpack.c.h.b16 %v1007
  %v1643 = vunpack.c.l.b16 %v1008
  %v1644 = vunpack.c.h.b16 %v1008
  %v1645 = vunpack.c.l.b16 %v1009
  %v1646 = vunpack.c.h.b16 %v1009
  %v1647 = vunpack.c.l.b16 %v1010
  %v1648 = vunpack.c.h.b16 %v1010
  %v1649 = vunpack.c.l.b16 %v1011
  %v1650 = vunpack.c.l.b16 %v1012
  %v1651 = vunpack.c.h.b16 %v1012
  %v1652 = vunpack.c.l.b16 %v1013
  %v1653 = vunpack.c.h.b16 %v1013
  %v1654 = vunpack.c.l.b16 %v1014
  %v1655 = vunpack.c.h.b16 %v1014
  %v1656 = vunpack.c.l.b16 %v1015
  %v1657 = vunpack.c.h.b16 %v1015
  %v1658 = vunpack.c.l.b16 %v1016
  %v1659 = vunpack.c.l.b16 %v1017
  %v1660 = vunpack.c.h.b16 %v1017
  %v1661 = vunpack.c.l.b16 %v1018
  %v1662 = vunpack.c.h.b16 %v1018
  %v1663 = vunpack.c.l.b16 %v1019
  %v1664 = vunpack.c.h.b16 %v1019
  %v1665 = vunpack.c.l.b16 %v1020
  %v1666 = vunpack.c.h.b16 %v1020
  %v1667 = vunpack.c.l.b16 %v1021
  %v1668 = vunpack.c.l.b16 %v1022
  %v1669 = vunpack.c.h.b16 %v1022
  %v1670 = vunpack.c.l.b16 %v1023
  %v1671 = vunpack.c.h.b16 %v1023
  %v1672 = vunpack.c.l.b16 %v1024
  %v1673 = vunpack.c.h.b16 %v1024
  %v1674 = vunpack.c.l.b16 %v1025
  %v1675 = vunpack.c.h.b16 %v1025
  %v1676 = vunpack.c.l.b16 %v1026
  %v1677 = vunpack.c.l.b16 %v1027
  %v1678 = vunpack.c.h.b16 %v1027
  %v1679 = vunpack.c.l.b16 %v1028
  %v1680 = vunpack.c.h.b16 %v1028
  %v1681 = vunpack.c.l.b16 %v1029
  %v1682 = vunpack.c.h.b16 %v1029
  %v1683 = vunpack.c.l.b16 %v1030
  %v1684 = vunpack.c.h.b16 %v1030
  %v1685 = vunpack.c.l.b16 %v1031
  %v1686 = vunpack.c.l.b16 %v1032
  %v1687 = vunpack.c.h.b16 %v1032
  %v1688 = vunpack.c.l.b16 %v1033
  %v1689 = vunpack.c.h.b16 %v1033
  %v1690 = vunpack.c.l.b16 %v1034
  %v1691 = vunpack.c.h.b16 %v1034
  %v1692 = vunpack.c.l.b16 %v1035
  %v1693 = vunpack.c.h.b16 %v1035
  %v1694 = vunpack.c.l.b16 %v1036
  %v1695 = vunpack.c.l.b16 %v1037
  %v1696 = vunpack.c.h.b16 %v1037
  %v1697 = vunpack.c.l.b16 %v1038
  %v1698 = vunpack.c.h.b16 %v1038
  %v1699 = vunpack.c.l.b16 %v1039
  %v1700 = vunpack.c.h.b16 %v1039
  %v1701 = vunpack.c.l.b16 %v1040
  %v1702 = vunpack.c.h.b16 %v1040
  %v1703 = vunpack.c.l.b16 %v1041
  %v1704 = vunpack.c.l.b16 %v1042
  %v1705 = vunpack.c.h.b16 %v1042
  %v1706 = vunpack.c.l.b16 %v1043
  %v1707 = vunpack.c.h.b16 %v1043
  %v1708 = vunpack.c.l.b16 %v1044
  %v1709 = vunpack.c.h.b16 %v1044
  %v1710 = vunpack.c.l.b16 %v1045
  %v1711 = vunpack.c.h.b16 %v1045
  %v1712 = vunpack.c.l.b16 %v1046
  %v1713 = vunpack.c.l.b16 %v1047
  %v1714 = vunpack.c.h.b16 %v1047
  %v1715 = vunpack.c.l.b16 %v1048
  %v1716 = vunpack.c.h.b16 %v1048
  %v1717 = vunpack.c.l.b16 %v1049
  %v1718 = vunpack.c.h.b16 %v1049
  %v1719 = vunpack.c.l.b16 %v1050
  %v1720 = vunpack.c.h.b16 %v1050
  %v1721 = vunpack.c.l.b16 %v1051
  %v1722 = vunpack.c.l.b16 %v1052
  %v1723 = vunpack.c.h.b16 %v1052
  %v1724 = vunpack.c.l.b16 %v1053
  %v1725 = vunpack.c.h.b16 %v1053
  %v1726 = vunpack.c.l.b16 %v1054
  %v1727 = vunpack.c.h.b16 %v1054
  %v1728 = vunpack.c.l.b16 %v1055
  %v1729 = vunpack.c.h.b16 %v1055
  %v1730 = vunpack.c.l.b16 %v1056
  %v1731 = vunpack.c.l.b16 %v1057
  %v1732 = vunpack.c.h.b16 %v1057
  %v1733 = vunpack.c.l.b16 %v1058
  %v1734 = vunpack.c.h.b16 %v1058
  %v1735 = vunpack.c.l.b16 %v1059
  %v1736 = vunpack.c.h.b16 %v1059
  %v1737 = vunpack.c.l.b16 %v1060
  %v1738 = vunpack.c.h.b16 %v1060
  %v1739 = vunpack.c.l.b16 %v1061
  %v1740 = vunpack.c.l.b16 %v1062
  %v1741 = vunpack.c.h.b16 %v1062
  %v1742 = vunpack.c.l.b16 %v1063
  %v1743 = vunpack.c.h.b16 %v1063
  %v1744 = vunpack.c.l.b16 %v1064
  %v1745 = vunpack.c.h.b16 %v1064
  %v1746 = vunpack.c.l.b16 %v1065
  %v1747 = vunpack.c.h.b16 %v1065
  %v1748 = vunpack.c.l.b16 %v1066
  %v1749 = vunpack.c.l.b16 %v1067
  %v1750 = vunpack.c.h.b16 %v1067
  %v1751 = vunpack.c.l.b16 %v1068
  %v1752 = vunpack.c.h.b16 %v1068
  %v1753 = vunpack.c.l.b16 %v1069
  %v1754 = vunpack.c.h.b16 %v1069
  %v1755 = vunpack.c.l.b16 %v1070
  %v1756 = vunpack.c.h.b16 %v1070
  %v1757 = vunpack.c.l.b16 %v1071
  %v1758 = vunpack.c.l.b16 %v1072
  %v1759 = vunpack.c.h.b16 %v1072
  %v1760 = vunpack.c.l.b16 %v1073
  %v1761 = vunpack.c.h.b16 %v1073
  %v1762 = vunpack.c.l.b16 %v1074
  %v1763 = vunpack.c.h.b16 %v1074
  %v1764 = vunpack.c.l.b16 %v1075
  %v1765 = vunpack.c.h.b16 %v1075
  %v1766 = vunpack.c.l.b16 %v1076
  %v1767 = vunpack.c.l.b16 %v1077
  %v1768 = vunpack.c.h.b16 %v1077
  %v1769 = vunpack.c.l.b16 %v1078
  %v1770 = vunpack.c.h.b16 %v1078
  %v1771 = vunpack.c.l.b16 %v1079
  %v1772 = vunpack.c.h.b16 %v1079
  %v1773 = vunpack.c.l.b16 %v1080
  %v1774 = vunpack.c.h.b16 %v1080
  %v1775 = vunpack.c.l.b16 %v1081
  %v1776 = vunpack.c.l.b16 %v1082
  %v1777 = vunpack.c.h.b16 %v1082
  %v1778 = vunpack.c.l.b16 %v1083
  %v1779 = vunpack.c.h.b16 %v1083
  %v1780 = vunpack.c.l.b16 %v1084
  %v1781 = vunpack.c.h.b16 %v1084
  %v1782 = vunpack.c.l.b16 %v1085
  %v1783 = vunpack.c.h.b16 %v1085
  %v1784 = vunpack.c.l.b16 %v1086
  %v1785 = vunpack.c.l.b16 %v1087
  %v1786 = vunpack.c.h.b16 %v1087
  %v1787 = vunpack.c.l.b16 %v1088
  %v1788 = vunpack.c.h.b16 %v1088
  %v1789 = vunpack.c.l.b16 %v1089
  %v1790 = vunpack.c.h.b16 %v1089
  %v1791 = vunpack.c.l.b16 %v1090
  %v1792 = vunpack.c.h.b16 %v1090
  %v1793 = vunpack.c.l.b16 %v1091
  %v1794 = vunpack.c.l.b16 %v1092
  %v1795 = vunpack.c.h.b16 %v1092
  %v1796 = vunpack.c.l.b16 %v1093
  %v1797 = vunpack.c.h.b16 %v1093
  %v1798 = vunpack.c.l.b16 %v1094
  %v1799 = vunpack.c.h.b16 %v1094
  %v1800 = vunpack.c.l.b16 %v1095
  %v1801 = vunpack.c.h.b16 %v1095
  %v1802 = vunpack.c.l.b16 %v1096
  %v1803 = vunpack.c.l.b16 %v1097
  %v1804 = vunpack.c.h.b16 %v1097
  %v1805 = vunpack.c.l.b16 %v1098
  %v1806 = vunpack.c.h.b16 %v1098
  %v1807 = vunpack.c.l.b16 %v1099
  %v1808 = vunpack.c.h.b16 %v1099
  %v1809 = vunpack.c.l.b16 %v1100
  %v1810 = vunpack.c.h.b16 %v1100
  %v1811 = vunpack.c.l.b16 %v1101
  %v1812 = vunpack.c.l.b16 %v1102
  %v1813 = vunpack.c.h.b16 %v1102
  %v1814 = vunpack.c.l.b16 %v1103
  %v1815 = vunpack.c.h.b16 %v1103
  %v1816 = vunpack.c.l.b16 %v1104
  %v1817 = vunpack.c.h.b16 %v1104
  %v1818 = vunpack.c.l.b16 %v1105
  %v1819 = vunpack.c.h.b16 %v1105
  %v1820 = vunpack.c.l.b16 %v1106
  %v1821 = vunpack.c.l.b16 %v1107
  %v1822 = vunpack.c.h.b16 %v1107
  %v1823 = vunpack.c.l.b16 %v1108
  %v1824 = vunpack.c.h.b16 %v1108
  %v1825 = vunpack.c.l.b16 %v1109
  %v1826 = vunpack.c.h.b16 %v1109
  %v1827 = vunpack.c.l.b16 %v1110
  %v1828 = vunpack.c.h.b16 %v1110
  %v1829 = vunpack.c.l.b16 %v1111
  %v1830 = vunpack.c.l.b16 %v1112
  %v1831 = vunpack.c.h.b16 %v1112
  %v1832 = vunpack.c.l.b16 %v1113
  %v1833 = vunpack.c.h.b16 %v1113
  %v1834 = vunpack.c.l.b16 %v1114
  %v1835 = vunpack.c.h.b16 %v1114
  %v1836 = vunpack.c.l.b16 %v1115
  %v1837 = vunpack.c.h.b16 %v1115
  %v1838 = vunpack.c.l.b16 %v1116
  %v1839 = vunpack.c.l.b16 %v1117
  %v1840 = vunpack.c.h.b16 %v1117
  %v1841 = vunpack.c.l.b16 %v1118
  %v1842 = vunpack.c.h.b16 %v1118
  %v1843 = vunpack.c.l.b16 %v1119
  %v1844 = vunpack.c.h.b16 %v1119
  %v1845 = vunpack.c.l.b16 %v1120
  %v1846 = vunpack.c.h.b16 %v1120
  %v1847 = vunpack.c.l.b16 %v1121
  %v1848 = vunpack.c.l.b16 %v1122
  %v1849 = vunpack.c.h.b16 %v1122
  %v1850 = vunpack.c.l.b16 %v1123
  %v1851 = vunpack.c.h.b16 %v1123
  %v1852 = vunpack.c.l.b16 %v1124
  %v1853 = vunpack.c.h.b16 %v1124
  %v1854 = vunpack.c.l.b16 %v1125
  %v1855 = vunpack.c.h.b16 %v1125
  %v1856 = vunpack.c.l.b16 %v1126
  %v1857 = vunpack.c.l.b16 %v1127
  %v1858 = vunpack.c.h.b16 %v1127
  %v1859 = vunpack.c.l.b16 %v1128
  %v1860 = vunpack.c.h.b16 %v1128
  %v1861 = vunpack.c.l.b16 %v1129
  %v1862 = vunpack.c.h.b16 %v1129
  %v1863 = vunpack.c.l.b16 %v1130
  %v1864 = vunpack.c.h.b16 %v1130
  %v1865 = vunpack.c.l.b16 %v1131
  %v1866 = vunpack.c.l.b16 %v1132
  %v1867 = vunpack.c.h.b16 %v1132
  %v1868 = vunpack.c.l.b16 %v1133
  %v1869 = vunpack.c.h.b16 %v1133
  %v1870 = vunpack.c.l.b16 %v1134
  %v1871 = vunpack.c.h.b16 %v1134
  %v1872 = vunpack.c.l.b16 %v1135
  %v1873 = vunpack.c.h.b16 %v1135
  %v1874 = vunpack.c.l.b16 %v1136
  %v1875 = vunpack.c.l.b16 %v1137
  %v1876 = vunpack.c.h.b16 %v1137
  %v1877 = vunpack.c.l.b16 %v1138
  %v1878 = vunpack.c.h.b16 %v1138
  %v1879 = vunpack.c.l.b16 %v1139
  %v1880 = vunpack.c.h.b16 %v1139
  %v1881 = vunpack.c.l.b16 %v1140
  %v1882 = vunpack.c.h.b16 %v1140
  %v1883 = vunpack.c.l.b16 %v1141
  %v1884 = vunpack.c.l.b16 %v1142
  %v1885 = vunpack.c.h.b16 %v1142
  %v1886 = vunpack.c.l.b16 %v1143
  %v1887 = vunpack.c.h.b16 %v1143
  %v1888 = vunpack.c.l.b16 %v1144
  %v1889 = vunpack.c.h.b16 %v1144
  %v1890 = vunpack.c.l.b16 %v1145
  %v1891 = vunpack.c.h.b16 %v1145
  %v1892 = vunpack.c.l.b16 %v1146
  %v1893 = vunpack.c.l.b16 %v1147
  %v1894 = vunpack.c.h.b16 %v1147
  %v1895 = vunpack.c.l.b16 %v1148
  %v1896 = vunpack.c.h.b16 %v1148
  %v1897 = vunpack.c.l.b16 %v1149
  %v1898 = vunpack.c.h.b16 %v1149
  %v1899 = vunpack.c.l.b16 %v1150
  %v1900 = vunpack.c.h.b16 %v1150
  %v1901 = vunpack.c.l.b16 %v1151
  %v1902 = vunpack.c.l.b16 %v1152
  %v1903 = vunpack.c.h.b16 %v1152
  %v1904 = vunpack.c.l.b16 %v1153
  %v1905 = vunpack.c.h.b16 %v1153
  %v1906 = vunpack.c.l.b16 %v1154
  %v1907 = vunpack.c.h.b16 %v1154
  %v1908 = vunpack.c.l.b16 %v1155
  %v1909 = vunpack.c.h.b16 %v1155
  %v1910 = vunpack.c.l.b16 %v1156
  %v1911 = vunpack.c.l.b16 %v1157
  %v1912 = vunpack.c.h.b16 %v1157
  %v1913 = vunpack.c.l.b16 %v1158
  %v1914 = vunpack.c.h.b16 %v1158
  %v1915 = vunpack.c.l.b16 %v1159
  %v1916 = vunpack.c.h.b16 %v1159
  %v1917 = vunpack.c.l.b16 %v1160
  %v1918 = vunpack.c.h.b16 %v1160
  %v1919 = vunpack.c.l.b16 %v1161
  %v1920 = vunpack.c.l.b16 %v1162
  %v1921 = vunpack.c.h.b16 %v1162
  %v1922 = vunpack.c.l.b16 %v1163
  %v1923 = vunpack.c.h.b16 %v1163
  %v1924 = vunpack.c.l.b16 %v1164
  %v1925 = vunpack.c.h.b16 %v1164
  %v1926 = vunpack.c.l.b16 %v1165
  %v1927 = vunpack.c.h.b16 %v1165
  %v1928 = vunpack.c.l.b16 %v1166
  %v1929 = vunpack.c.l.b16 %v1167
  %v1930 = vunpack.c.h.b16 %v1167
  %v1931 = vunpack.c.l.b16 %v1168
  %v1932 = vunpack.c.h.b16 %v1168
  %v1933 = vunpack.c.l.b16 %v1169
  %v1934 = vunpack.c.h.b16 %v1169
  %v1935 = vunpack.c.l.b16 %v1170
  %v1936 = vunpack.c.h.b16 %v1170
  %v1937 = vunpack.c.l.b16 %v1171
  %v1938 = vunpack.c.l.b16 %v1172
  %v1939 = vunpack.c.h.b16 %v1172
  %v1940 = vunpack.c.l.b16 %v1173
  %v1941 = vunpack.c.h.b16 %v1173
  %v1942 = vunpack.c.l.b16 %v1174
  %v1943 = vunpack.c.h.b16 %v1174
  %v1944 = vunpack.c.l.b16 %v1175
  %v1945 = vunpack.c.h.b16 %v1175
  %v1946 = vunpack.c.l.b16 %v1176
  %v1947 = vunpack.c.l.b16 %v1177
  %v1948 = vunpack.c.h.b16 %v1177
  %v1949 = vunpack.c.l.b16 %v1178
  %v1950 = vunpack.c.h.b16 %v1178
  %v1951 = vunpack.c.l.b16 %v1179
  %v1952 = vunpack.c.h.b16 %v1179
  %v1953 = vunpack.c.l.b16 %v1180
  %v1954 = vunpack.c.h.b16 %v1180
  %v1955 = vunpack.c.l.b16 %v1181
  %v1956 = vunpack.c.l.b16 %v1182
  %v1957 = vunpack.c.h.b16 %v1182
  %v1958 = vunpack.c.l.b16 %v1183
  %v1959 = vunpack.c.h.b16 %v1183
  %v1960 = vunpack.c.l.b16 %v1184
  %v1961 = vunpack.c.h.b16 %v1184
  %v1962 = vunpack.c.l.b16 %v1185
  %v1963 = vunpack.c.h.b16 %v1185
  %v1964 = vunpack.c.l.b16 %v1186
  %v1965 = vunpack.c.l.b16 %v1187
  %v1966 = vunpack.c.h.b16 %v1187
  %v1967 = vunpack.c.l.b16 %v1188
  %v1968 = vunpack.c.h.b16 %v1188
  %v1969 = vunpack.c.l.b16 %v1189
  %v1970 = vunpack.c.h.b16 %v1189
  %v1971 = vunpack.c.l.b16 %v1190
  %v1972 = vunpack.c.h.b16 %v1190
  %v1973 = vunpack.c.l.b16 %v1191
  %v1974 = vunpack.c.l.b16 %v1192
  %v1975 = vunpack.c.h.b16 %v1192
  %v1976 = vunpack.c.l.b16 %v1193
  %v1977 = vunpack.c.h.b16 %v1193
  %v1978 = vunpack.c.l.b16 %v1194
  %v1979 = vunpack.c.h.b16 %v1194
  %v1980 = vunpack.c.l.b16 %v1195
  %v1981 = vunpack.c.h.b16 %v1195
  %v1982 = vunpack.c.l.b16 %v1196
  %v1983 = vunpack.c.l.b16 %v1197
  %v1984 = vunpack.c.h.b16 %v1197
  %v1985 = vunpack.c.l.b16 %v1198
  %v1986 = vunpack.c.h.b16 %v1198
  %v1987 = vunpack.c.l.b16 %v1199
  %v1988 = vunpack.c.h.b16 %v1199
  %v1989 = vunpack.c.l.b16 %v1200
  %v1990 = vunpack.c.h.b16 %v1200
  %v1991 = vunpack.c.l.b16 %v1201
  %v1992 = vunpack.c.l.b16 %v1202
  %v1993 = vunpack.c.h.b16 %v1202
  %v1994 = vunpack.c.l.b16 %v1203
  %v1995 = vunpack.c.h.b16 %v1203
  %v1996 = vunpack.c.l.b16 %v1204
  %v1997 = vunpack.c.h.b16 %v1204
  %v1998 = vunpack.c.l.b16 %v1205
  %v1999 = vunpack.c.h.b16 %v1205
  %v2000 = vunpack.c.l.b16 %v1206
  %v2001 = vunpack.c.l.b16 %v1207
  %v2002 = vunpack.c.h.b16 %v1207
  %v2003 = vunpack.c.l.b16 %v1208
  %v2004 = vunpack.c.h.b16 %v1208
  %v2005 = vunpack.c.l.b16 %v1209
  %v2006 = vunpack.c.h.b16 %v1209
  %v2007 = vunpack.c.l.b16 %v1210
  %v2008 = vunpack.c.h.b16 %v1210
  %v2009 = vunpack.c.l.b16 %v1211
  %v2010 = vpack.c.b16 %v1506, %v1497
  %v2011 = vpack.c.b16 %v1507, %v1498
  %v2012 = vpack.c.b16 %v1508, %v1499
  %v2013 = vpack.c.b16 %v1509, %v1500
  %v2014 = vpack.c.b16 %v1510, %v1501
  %v2015 = vpack.c.b16 %v1511, %v1502
  %v2016 = vpack.c.b16 %v1512, %v1503
  %v2017 = vpack.c.b16 %v1513, %v1504
  %v2018 = vpack.c.b16 %v1514, %v1505
  %v2019 = vpack.c.b16 %v1524, %v1515
  %v2020 = vpack.c.b16 %v1525, %v1516
  %v2021 = vpack.c.b16 %v1526, %v1517
  %v2022 = vpack.c.b16 %v1527, %v1518
  %v2023 = vpack.c.b16 %v1528, %v1519
  %v2024 = vpack.c.b16 %v1529, %v1520
  %v2025 = vpack.c.b16 %v1530, %v1521
  %v2026 = vpack.c.b16 %v1531, %v1522
  %v2027 = vpack.c.b16 %v1532, %v1523
  %v2028 = vpack.c.b16 %v1542, %v1533
  %v2029 = vpack.c.b16 %v1543, %v1534
  %v2030 = vpack.c.b16 %v1544, %v1535
  %v2031 = vpack.c.b16 %v1545, %v1536
  %v2032 = vpack.c.b16 %v1546, %v1537
  %v2033 = vpack.c.b16 %v1547, %v1538
  %v2034 = vpack.c.b16 %v1548, %v1539
  %v2035 = vpack.c.b16 %v1549, %v1540
  %v2036 = vpack.c.b16 %v1550, %v1541
  %v2037 = vpack.c.b16 %v1560, %v1551
  %v2038 = vpack.c.b16 %v1561, %v1552
  %v2039 = vpack.c.b16 %v1562, %v1553
  %v2040 = vpack.c.b16 %v1563, %v1554
  %v2041 = vpack.c.b16 %v1564, %v1555
  %v2042 = vpack.c.b16 %v1565, %v1556
  %v2043 = vpack.c.b16 %v1566, %v1557
  %v2044 = vpack.c.b16 %v1567, %v1558
  %v2045 = vpack.c.b16 %v1568, %v1559
  %v2046 = vpack.c.b16 %v1578, %v1569
  %v2047 = vpack.c.b16 %v1579, %v1570
  %v2048 = vpack.c.b16 %v1580, %v1571
  %v2049 = vpack.c.b16 %v1581, %v1572
  %v2050 = vpack.c.b16 %v1582, %v1573
  %v2051 = vpack.c.b16 %v1583, %v1574
  %v2052 = vpack.c.b16 %v1584, %v1575
  %v2053 = vpack.c.b16 %v1585, %v1576
  %v2054 = vpack.c.b16 %v1586, %v1577
  %v2055 = vpack.c.b16 %v1596, %v1587
  %v2056 = vpack.c.b16 %v1597, %v1588
  %v2057 = vpack.c.b16 %v1598, %v1589
  %v2058 = vpack.c.b16 %v1599, %v1590
  %v2059 = vpack.c.b16 %v1600, %v1591
  %v2060 = vpack.c.b16 %v1601, %v1592
  %v2061 = vpack.c.b16 %v1602, %v1593
  %v2062 = vpack.c.b16 %v1603, %v1594
  %v2063 = vpack.c.b16 %v1604, %v1595
  %v2064 = vpack.c.b16 %v1614, %v1605
  %v2065 = vpack.c.b16 %v1615, %v1606
  %v2066 = vpack.c.b16 %v1616, %v1607
  %v2067 = vpack.c.b16 %v1617, %v1608
  %v2068 = vpack.c.b16 %v1618, %v1609
  %v2069 = vpack.c.b16 %v1619, %v1610
  %v2070 = vpack.c.b16 %v1620, %v1611
  %v2071 = vpack.c.b16 %v1621, %v1612
  %v2072 = vpack.c.b16 %v1622, %v1613
  %v2073 = vpack.c.b16 %v1632, %v1623
  %v2074 = vpack.c.b16 %v1633, %v1624
  %v2075 = vpack.c.b16 %v1634, %v1625
  %v2076 = vpack.c.b16 %v1635, %v1626
  %v2077 = vpack.c.b16 %v1636, %v1627
  %v2078 = vpack.c.b16 %v1637, %v1628
  %v2079 = vpack.c.b16 %v1638, %v1629
  %v2080 = vpack.c.b16 %v1639, %v1630
  %v2081 = vpack.c.b16 %v1640, %v1631
  %v2082 = vpack.c.b16 %v1650, %v1641
  %v2083 = vpack.c.b16 %v1651, %v1642
  %v2084 = vpack.c.b16 %v1652, %v1643
  %v2085 = vpack.c.b16 %v1653, %v1644
  %v2086 = vpack.c.b16 %v1654, %v1645
  %v2087 = vpack.c.b16 %v1655, %v1646
  %v2088 = vpack.c.b16 %v1656, %v1647
  %v2089 = vpack.c.b16 %v1657, %v1648
  %v2090 = vpack.c.b16 %v1658, %v1649
  %v2091 = vpack.c.b16 %v1668, %v1659
  %v2092 = vpack.c.b16 %v1669, %v1660
  %v2093 = vpack.c.b16 %v1670, %v1661
  %v2094 = vpack.c.b16 %v1671, %v1662
  %v2095 = vpack.c.b16 %v1672, %v1663
  %v2096 = vpack.c.b16 %v1673, %v1664
  %v2097 = vpack.c.b16 %v1674, %v1665
  %v2098 = vpack.c.b16 %v1675, %v1666
  %v2099 = vpack.c.b16 %v1676, %v1667
  %v2100 = vpack.c.b16 %v1686, %v1677
  %v2101 = vpack.c.b16 %v1687, %v1678
  %v2102 = vpack.c.b16 %v1688, %v1679
  %v2103 = vpack.c.b16 %v1689, %v1680
  %v2104 = vpack.c.b16 %v1690, %v1681
  %v2105 = vpack.c.b16 %v1691, %v1682
  %v2106 = vpack.c.b16 %v1692, %v1683
  %v2107 = vpack.c.b16 %v1693, %v1684
  %v2108 = vpack.c.b16 %v1694, %v1685
  %v2109 = vpack.c.b16 %v1704, %v1695
  %v2110 = vpack.c.b16 %v1705, %v1696
  %v2111 = vpack.c.b16 %v1706, %v1697
  %v2112 = vpack.c.b16 %v1707, %v1698
  %v2113 = vpack.c.b16 %v1708, %v1699
  %v2114 = vpack.c.b16 %v1709, %v1700
  %v2115 = vpack.c.b16 %v1710, %v1701
  %v2116 = vpack.c.b16 %v1711, %v1702
  %v2117 = vpack.c.b16 %v1712, %v1703
  %v2118 = vpack.c.b16 %v1722, %v1713
  %v2119 = vpack.c.b16 %v1723, %v1714
  %v2120 = vpack.c.b16 %v1724, %v1715
  %v2121 = vpack.c.b16 %v1725, %v1716
  %v2122 = vpack.c.b16 %v1726, %v1717
  %v2123 = vpack.c.b16 %v1727, %v1718
  %v2124 = vpack.c.b16 %v1728, %v1719
  %v2125 = vpack.c.b16 %v1729, %v1720
  %v2126 = vpack.c.b16 %v1730, %v1721
  %v2127 = vpack.c.b16 %v1740, %v1731
  %v2128 = vpack.c.b16 %v1741, %v1732
  %v2129 = vpack.c.b16 %v1742, %v1733
  %v2130 = vpack.c.b16 %v1743, %v1734
  %v2131 = vpack.c.b16 %v1744, %v1735
  %v2132 = vpack.c.b16 %v1745, %v1736
  %v2133 = vpack.c.b16 %v1746, %v1737
  %v2134 = vpack.c.b16 %v1747, %v1738
  %v2135 = vpack.c.b16 %v1748, %v1739
  %v2136 = vpack.c.b16 %v1758, %v1749
  %v2137 = vpack.c.b16 %v1759, %v1750
  %v2138 = vpack.c.b16 %v1760, %v1751
  %v2139 = vpack.c.b16 %v1761, %v1752
  %v2140 = vpack.c.b16 %v1762, %v1753
  %v2141 = vpack.c.b16 %v1763, %v1754
  %v2142 = vpack.c.b16 %v1764, %v1755
  %v2143 = vpack.c.b16 %v1765, %v1756
  %v2144 = vpack.c.b16 %v1766, %v1757
  %v2145 = vpack.c.b16 %v1776, %v1767
  %v2146 = vpack.c.b16 %v1777, %v1768
  %v2147 = vpack.c.b16 %v1778, %v1769
  %v2148 = vpack.c.b16 %v1779, %v1770
  %v2149 = vpack.c.b16 %v1780, %v1771
  %v2150 = vpack.c.b16 %v1781, %v1772
  %v2151 = vpack.c.b16 %v1782, %v1773
  %v2152 = vpack.c.b16 %v1783, %v1774
  %v2153 = vpack.c.b16 %v1784, %v1775
  %v2154 = vpack.c.b16 %v1794, %v1785
  %v2155 = vpack.c.b16 %v1795, %v1786
  %v2156 = vpack.c.b16 %v1796, %v1787
  %v2157 = vpack.c.b16 %v1797, %v1788
  %v2158 = vpack.c.b16 %v1798, %v1789
  %v2159 = vpack.c.b16 %v1799, %v1790
  %v2160 = vpack.c.b16 %v1800, %v1791
  %v2161 = vpack.c.b16 %v1801, %v1792
  %v2162 = vpack.c.b16 %v1802, %v1793
  %v2163 = vpack.c.b16 %v1812, %v1803
  %v2164 = vpack.c.b16 %v1813, %v1804
  %v2165 = vpack.c.b16 %v1814, %v1805
  %v2166 = vpack.c.b16 %v1815, %v1806
  %v2167 = vpack.c.b16 %v1816, %v1807
  %v2168 = vpack.c.b16 %v1817, %v1808
  %v2169 = vpack.c.b16 %v1818, %v1809
  %v2170 = vpack.c.b16 %v1819, %v1810
  %v2171 = vpack.c.b16 %v1820, %v1811
  %v2172 = vpack.c.b16 %v1830, %v1821
  %v2173 = vpack.c.b16 %v1831, %v1822
  %v2174 = vpack.c.b16 %v1832, %v1823
  %v2175 = vpack.c.b16 %v1833, %v1824
  %v2176 = vpack.c.b16 %v1834, %v1825
  %v2177 = vpack.c.b16 %v1835, %v1826
  %v2178 = vpack.c.b16 %v1836, %v1827
  %v2179 = vpack.c.b16 %v1837, %v1828
  %v2180 = vpack.c.b16 %v1838, %v1829
  %v2181 = vpack.c.b16 %v1848, %v1839
  %v2182 = vpack.c.b16 %v1849, %v1840
  %v2183 = vpack.c.b16 %v1850, %v1841
  %v2184 = vpack.c.b16 %v1851, %v1842
  %v2185 = vpack.c.b16 %v1852, %v1843
  %v2186 = vpack.c.b16 %v1853, %v1844
  %v2187 = vpack.c.b16 %v1854, %v1845
  %v2188 = vpack.c.b16 %v1855, %v1846
  %v2189 = vpack.c.b16 %v1856, %v1847
  %v2190 = vpack.c.b16 %v1866, %v1857
  %v2191 = vpack.c.b16 %v1867, %v1858
  %v2192 = vpack.c.b16 %v1868, %v1859
  %v2193 = vpack.c.b16 %v1869, %v1860
  %v2194 = vpack.c.b16 %v1870, %v1861
  %v2195 = vpack.c.b16 %v1871, %v1862
  %v2196 = vpack.c.b16 %v1872, %v1863
  %v2197 = vpack.c.b16 %v1873, %v1864
  %v2198 = vpack.c.b16 %v1874, %v1865
  %v2199 = vpack.c.b16 %v1884, %v1875
  %v2200 = vpack.c.b16 %v1885, %v1876
  %v2201 = vpack.c.b16 %v1886, %v1877
  %v2202 = vpack.c.b16 %v1887, %v1878
  %v2203 = vpack.c.b16 %v1888, %v1879
  %v2204 = vpack.c.b16 %v1889, %v1880
  %v2205 = vpack.c.b16 %v1890, %v1881
  %v2206 = vpack.c.b16 %v1891, %v1882
  %v2207 = vpack.c.b16 %v1892, %v1883
  %v2208 = vpack.c.b16 %v1902, %v1893
  %v2209 = vpack.c.b16 %v1903, %v1894
  %v2210 = vpack.c.b16 %v1904, %v1895
  %v2211 = vpack.c.b16 %v1905, %v1896
  %v2212 = vpack.c.b16 %v1906, %v1897
  %v2213 = vpack.c.b16 %v1907, %v1898
  %v2214 = vpack.c.b16 %v1908, %v1899
  %v2215 = vpack.c.b16 %v1909, %v1900
  %v2216 = vpack.c.b16 %v1910, %v1901
  %v2217 = vpack.c.b16 %v1920, %v1911
  %v2218 = vpack.c.b16 %v1921, %v1912
  %v2219 = vpack.c.b16 %v1922, %v1913
  %v2220 = vpack.c.b16 %v1923, %v1914
  %v2221 = vpack.c.b16 %v1924, %v1915
  %v2222 = vpack.c.b16 %v1925, %v1916
  %v2223 = vpack.c.b16 %v1926, %v1917
  %v2224 = vpack.c.b16 %v1927, %v1918
  %v2225 = vpack.c.b16 %v1928, %v1919
  %v2226 = vpack.c.b16 %v1938, %v1929
  %v2227 = vpack.c.b16 %v1939, %v1930
  %v2228 = vpack.c.b16 %v1940, %v1931
  %v2229 = vpack.c.b16 %v1941, %v1932
  %v2230 = vpack.c.b16 %v1942, %v1933
  %v2231 = vpack.c.b16 %v1943, %v1934
  %v2232 = vpack.c.b16 %v1944, %v1935
  %v2233 = vpack.c.b16 %v1945, %v1936
  %v2234 = vpack.c.b16 %v1946, %v1937
  %v2235 = vpack.c.b16 %v1956, %v1947
  %v2236 = vpack.c.b16 %v1957, %v1948
  %v2237 = vpack.c.b16 %v1958, %v1949
  %v2238 = vpack.c.b16 %v1959, %v1950
  %v2239 = vpack.c.b16 %v1960, %v1951
  %v2240 = vpack.c.b16 %v1961, %v1952
  %v2241 = vpack.c.b16 %v1962, %v1953
  %v2242 = vpack.c.b16 %v1963, %v1954
  %v2243 = vpack.c.b16 %v1964, %v1955
  %v2244 = vpack.c.b16 %v1974, %v1965
  %v2245 = vpack.c.b16 %v1975, %v1966
  %v2246 = vpack.c.b16 %v1976, %v1967
  %v2247 = vpack.c.b16 %v1977, %v1968
  %v2248 = vpack.c.b16 %v1978, %v1969
  %v2249 = vpack.c.b16 %v1979, %v1970
  %v2250 = vpack.c.b16 %v1980, %v1971
  %v2251 = vpack.c.b16 %v1981, %v1972
  %v2252 = vpack.c.b16 %v1982, %v1973
  %v2253 = vpack.c.b16 %v1992, %v1983
  %v2254 = vpack.c.b16 %v1993, %v1984
  %v2255 = vpack.c.b16 %v1994, %v1985
  %v2256 = vpack.c.b16 %v1995, %v1986
  %v2257 = vpack.c.b16 %v1996, %v1987
  %v2258 = vpack.c.b16 %v1997, %v1988
  %v2259 = vpack.c.b16 %v1998, %v1989
  %v2260 = vpack.c.b16 %v1999, %v1990
  %v2261 = vpack.c.b16 %v2000, %v1991
  %v2262 = vpack.c.b16 %v2001, %v2001
  %v2263 = vpack.c.b16 %v2002, %v2002
  %v2264 = vpack.c.b16 %v2003, %v2003
  %v2265 = vpack.c.b16 %v2004, %v2004
  %v2266 = vpack.c.b16 %v2005, %v2005
  %v2267 = vpack.c.b16 %v2006, %v2006
  %v2268 = vpack.c.b16 %v2007, %v2007
  %v2269 = vpack.c.b16 %v2008, %v2008
  %v2270 = vpack.c.b16 %v2009, %v2009
  %vm2523 = vcmask 539648
  %v2525 = vsel %vm2523, %v926, 0
  %vm2527 = vcmask 1040384
  %v2529 = vsel %vm2527, %v2262, 0
  %v2532 = vsel %vm2527, %v2263, 0
  %v2535 = vsel %vm2527, %v2264, 0
  %v2538 = vsel %vm2527, %v2265, 0
  %v2541 = vsel %vm2527, %v2266, 0
  %v2544 = vsel %vm2527, %v2267, 0
  %v2547 = vsel %vm2527, %v2268, 0
  %v2550 = vsel %vm2527, %v2269, 0
  %v2553 = vsel %vm2527, %v2270, 0
  %2555 = vmatpush.bf16.msra.mxu0 %v2073
  %2556 = vmatpush.bf16.msra.mxu0 %v2064
  %2557 = vmatpush.bf16.msra.mxu0 %v2055
  %2558 = vmatpush.bf16.msra.mxu0 %v2046
  %2559 = vmatpush.bf16.msra.mxu0 %v2037
  %2560 = vmatpush.bf16.msra.mxu0 %v2028
  %2561 = vmatpush.bf16.msra.mxu0 %v2019
  %2562 = vmatpush.bf16.msra.mxu0 %v2010
  %2563 = vmatmul.bf16.gmra.mxu0 %v923
  %v2564 = vpop.f32.mrf.mxu0
  %v2565 = vadd.f32 0.0, %v2564
  %v2566 = vpop.f32.mrf.mxu0
  %v2567 = vadd.f32 0.0, %v2566
  %2568 = vdwg.mxu0
  %2569 = vmatpush.bf16.msra.mxu0 %v2145
  %2570 = vmatpush.bf16.msra.mxu0 %v2136
  %2571 = vmatpush.bf16.msra.mxu0 %v2127
  %2572 = vmatpush.bf16.msra.mxu0 %v2118
  %2573 = vmatpush.bf16.msra.mxu0 %v2109
  %2574 = vmatpush.bf16.msra.mxu0 %v2100
  %2575 = vmatpush.bf16.msra.mxu0 %v2091
  %2576 = vmatpush.bf16.msra.mxu0 %v2082
  %2577 = vmatmul.bf16.gmra.mxu0 %v924
  %v2578 = vpop.f32.mrf.mxu0
  %v2579 = vadd.f32 %v2565, %v2578
  %v2580 = vpop.f32.mrf.mxu0
  %v2581 = vadd.f32 %v2567, %v2580
  %2582 = vdwg.mxu0
  %2583 = vmatpush.bf16.msra.mxu0 %v2217
  %2584 = vmatpush.bf16.msra.mxu0 %v2208
  %2585 = vmatpush.bf16.msra.mxu0 %v2199
  %2586 = vmatpush.bf16.msra.mxu0 %v2190
  %2587 = vmatpush.bf16.msra.mxu0 %v2181
  %2588 = vmatpush.bf16.msra.mxu0 %v2172
  %2589 = vmatpush.bf16.msra.mxu0 %v2163
  %2590 = vmatpush.bf16.msra.mxu0 %v2154
  %2591 = vmatmul.bf16.gmra.mxu0 %v925
  %v2592 = vpop.f32.mrf.mxu0
  %v2593 = vadd.f32 %v2579, %v2592
  %v2594 = vpop.f32.mrf.mxu0
  %v2595 = vadd.f32 %v2581, %v2594
  %2596 = vdwg.mxu0
  %2597 = vmatpush.bf16.msra.mxu0 0
  %2598 = vmatpush.bf16.msra.mxu0 0
  %2599 = vmatpush.bf16.msra.mxu0 0
  %2600 = vmatpush.bf16.msra.mxu0 %v2529
  %2601 = vmatpush.bf16.msra.mxu0 %v2253
  %2602 = vmatpush.bf16.msra.mxu0 %v2244
  %2603 = vmatpush.bf16.msra.mxu0 %v2235
  %2604 = vmatpush.bf16.msra.mxu0 %v2226
  %2605 = vmatmul.bf16.gmra.mxu0 %v2525
  %v2606 = vpop.f32.mrf.mxu0
  %v2607 = vadd.f32 %v2593, %v2606
  %v2608 = vpop.f32.mrf.mxu0
  %v2609 = vadd.f32 %v2595, %v2608
  %2610 = vdwg.mxu0
  %2611 = vmatpush.bf16.msra.mxu0 %v2074
  %2612 = vmatpush.bf16.msra.mxu0 %v2065
  %2613 = vmatpush.bf16.msra.mxu0 %v2056
  %2614 = vmatpush.bf16.msra.mxu0 %v2047
  %2615 = vmatpush.bf16.msra.mxu0 %v2038
  %2616 = vmatpush.bf16.msra.mxu0 %v2029
  %2617 = vmatpush.bf16.msra.mxu0 %v2020
  %2618 = vmatpush.bf16.msra.mxu0 %v2011
  %2619 = vmatmul.bf16.gmra.mxu0 %v923
  %v2620 = vpop.f32.mrf.mxu0
  %v2621 = vadd.f32 0.0, %v2620
  %v2622 = vpop.f32.mrf.mxu0
  %v2623 = vadd.f32 0.0, %v2622
  %2624 = vdwg.mxu0
  %2625 = vmatpush.bf16.msra.mxu0 %v2146
  %2626 = vmatpush.bf16.msra.mxu0 %v2137
  %2627 = vmatpush.bf16.msra.mxu0 %v2128
  %2628 = vmatpush.bf16.msra.mxu0 %v2119
  %2629 = vmatpush.bf16.msra.mxu0 %v2110
  %2630 = vmatpush.bf16.msra.mxu0 %v2101
  %2631 = vmatpush.bf16.msra.mxu0 %v2092
  %2632 = vmatpush.bf16.msra.mxu0 %v2083
  %2633 = vmatmul.bf16.gmra.mxu0 %v924
  %v2634 = vpop.f32.mrf.mxu0
  %v2635 = vadd.f32 %v2621, %v2634
  %v2636 = vpop.f32.mrf.mxu0
  %v2637 = vadd.f32 %v2623, %v2636
  %2638 = vdwg.mxu0
  %2639 = vmatpush.bf16.msra.mxu0 %v2218
  %2640 = vmatpush.bf16.msra.mxu0 %v2209
  %2641 = vmatpush.bf16.msra.mxu0 %v2200
  %2642 = vmatpush.bf16.msra.mxu0 %v2191
  %2643 = vmatpush.bf16.msra.mxu0 %v2182
  %2644 = vmatpush.bf16.msra.mxu0 %v2173
  %2645 = vmatpush.bf16.msra.mxu0 %v2164
  %2646 = vmatpush.bf16.msra.mxu0 %v2155
  %2647 = vmatmul.bf16.gmra.mxu0 %v925
  %v2648 = vpop.f32.mrf.mxu0
  %v2649 = vadd.f32 %v2635, %v2648
  %v2650 = vpop.f32.mrf.mxu0
  %v2651 = vadd.f32 %v2637, %v2650
  %2652 = vdwg.mxu0
  %2653 = vmatpush.bf16.msra.mxu0 0
  %2654 = vmatpush.bf16.msra.mxu0 0
  %2655 = vmatpush.bf16.msra.mxu0 0
  %2656 = vmatpush.bf16.msra.mxu0 %v2532
  %2657 = vmatpush.bf16.msra.mxu0 %v2254
  %2658 = vmatpush.bf16.msra.mxu0 %v2245
  %2659 = vmatpush.bf16.msra.mxu0 %v2236
  %2660 = vmatpush.bf16.msra.mxu0 %v2227
  %2661 = vmatmul.bf16.gmra.mxu0 %v2525
  %v2662 = vpop.f32.mrf.mxu0
  %v2663 = vadd.f32 %v2649, %v2662
  %v2664 = vpop.f32.mrf.mxu0
  %v2665 = vadd.f32 %v2651, %v2664
  %2666 = vdwg.mxu0
  %2667 = vmatpush.bf16.msra.mxu0 %v2075
  %2668 = vmatpush.bf16.msra.mxu0 %v2066
  %2669 = vmatpush.bf16.msra.mxu0 %v2057
  %2670 = vmatpush.bf16.msra.mxu0 %v2048
  %2671 = vmatpush.bf16.msra.mxu0 %v2039
  %2672 = vmatpush.bf16.msra.mxu0 %v2030
  %2673 = vmatpush.bf16.msra.mxu0 %v2021
  %2674 = vmatpush.bf16.msra.mxu0 %v2012
  %2675 = vmatmul.bf16.gmra.mxu0 %v923
  %v2676 = vpop.f32.mrf.mxu0
  %v2677 = vadd.f32 0.0, %v2676
  %v2678 = vpop.f32.mrf.mxu0
  %v2679 = vadd.f32 0.0, %v2678
  %2680 = vdwg.mxu0
  %2681 = vmatpush.bf16.msra.mxu0 %v2147
  %2682 = vmatpush.bf16.msra.mxu0 %v2138
  %2683 = vmatpush.bf16.msra.mxu0 %v2129
  %2684 = vmatpush.bf16.msra.mxu0 %v2120
  %2685 = vmatpush.bf16.msra.mxu0 %v2111
  %2686 = vmatpush.bf16.msra.mxu0 %v2102
  %2687 = vmatpush.bf16.msra.mxu0 %v2093
  %2688 = vmatpush.bf16.msra.mxu0 %v2084
  %2689 = vmatmul.bf16.gmra.mxu0 %v924
  %v2690 = vpop.f32.mrf.mxu0
  %v2691 = vadd.f32 %v2677, %v2690
  %v2692 = vpop.f32.mrf.mxu0
  %v2693 = vadd.f32 %v2679, %v2692
  %2694 = vdwg.mxu0
  %2695 = vmatpush.bf16.msra.mxu0 %v2219
  %2696 = vmatpush.bf16.msra.mxu0 %v2210
  %2697 = vmatpush.bf16.msra.mxu0 %v2201
  %2698 = vmatpush.bf16.msra.mxu0 %v2192
  %2699 = vmatpush.bf16.msra.mxu0 %v2183
  %2700 = vmatpush.bf16.msra.mxu0 %v2174
  %2701 = vmatpush.bf16.msra.mxu0 %v2165
  %2702 = vmatpush.bf16.msra.mxu0 %v2156
  %2703 = vmatmul.bf16.gmra.mxu0 %v925
  %v2704 = vpop.f32.mrf.mxu0
  %v2705 = vadd.f32 %v2691, %v2704
  %v2706 = vpop.f32.mrf.mxu0
  %v2707 = vadd.f32 %v2693, %v2706
  %2708 = vdwg.mxu0
  %2709 = vmatpush.bf16.msra.mxu0 0
  %2710 = vmatpush.bf16.msra.mxu0 0
  %2711 = vmatpush.bf16.msra.mxu0 0
  %2712 = vmatpush.bf16.msra.mxu0 %v2535
  %2713 = vmatpush.bf16.msra.mxu0 %v2255
  %2714 = vmatpush.bf16.msra.mxu0 %v2246
  %2715 = vmatpush.bf16.msra.mxu0 %v2237
  %2716 = vmatpush.bf16.msra.mxu0 %v2228
  %2717 = vmatmul.bf16.gmra.mxu0 %v2525
  %v2718 = vpop.f32.mrf.mxu0
  %v2719 = vadd.f32 %v2705, %v2718
  %v2720 = vpop.f32.mrf.mxu0
  %v2721 = vadd.f32 %v2707, %v2720
  %2722 = vdwg.mxu0
  %2723 = vmatpush.bf16.msra.mxu0 %v2076
  %2724 = vmatpush.bf16.msra.mxu0 %v2067
  %2725 = vmatpush.bf16.msra.mxu0 %v2058
  %2726 = vmatpush.bf16.msra.mxu0 %v2049
  %2727 = vmatpush.bf16.msra.mxu0 %v2040
  %2728 = vmatpush.bf16.msra.mxu0 %v2031
  %2729 = vmatpush.bf16.msra.mxu0 %v2022
  %2730 = vmatpush.bf16.msra.mxu0 %v2013
  %2731 = vmatmul.bf16.gmra.mxu0 %v923
  %v2732 = vpop.f32.mrf.mxu0
  %v2733 = vadd.f32 0.0, %v2732
  %v2734 = vpop.f32.mrf.mxu0
  %v2735 = vadd.f32 0.0, %v2734
  %2736 = vdwg.mxu0
  %2737 = vmatpush.bf16.msra.mxu0 %v2148
  %2738 = vmatpush.bf16.msra.mxu0 %v2139
  %2739 = vmatpush.bf16.msra.mxu0 %v2130
  %2740 = vmatpush.bf16.msra.mxu0 %v2121
  %2741 = vmatpush.bf16.msra.mxu0 %v2112
  %2742 = vmatpush.bf16.msra.mxu0 %v2103
  %2743 = vmatpush.bf16.msra.mxu0 %v2094
  %2744 = vmatpush.bf16.msra.mxu0 %v2085
  %2745 = vmatmul.bf16.gmra.mxu0 %v924
  %v2746 = vpop.f32.mrf.mxu0
  %v2747 = vadd.f32 %v2733, %v2746
  %v2748 = vpop.f32.mrf.mxu0
  %v2749 = vadd.f32 %v2735, %v2748
  %2750 = vdwg.mxu0
  %2751 = vmatpush.bf16.msra.mxu0 %v2220
  %2752 = vmatpush.bf16.msra.mxu0 %v2211
  %2753 = vmatpush.bf16.msra.mxu0 %v2202
  %2754 = vmatpush.bf16.msra.mxu0 %v2193
  %2755 = vmatpush.bf16.msra.mxu0 %v2184
  %2756 = vmatpush.bf16.msra.mxu0 %v2175
  %2757 = vmatpush.bf16.msra.mxu0 %v2166
  %2758 = vmatpush.bf16.msra.mxu0 %v2157
  %2759 = vmatmul.bf16.gmra.mxu0 %v925
  %v2760 = vpop.f32.mrf.mxu0
  %v2761 = vadd.f32 %v2747, %v2760
  %v2762 = vpop.f32.mrf.mxu0
  %v2763 = vadd.f32 %v2749, %v2762
  %2764 = vdwg.mxu0
  %2765 = vmatpush.bf16.msra.mxu0 0
  %2766 = vmatpush.bf16.msra.mxu0 0
  %2767 = vmatpush.bf16.msra.mxu0 0
  %2768 = vmatpush.bf16.msra.mxu0 %v2538
  %2769 = vmatpush.bf16.msra.mxu0 %v2256
  %2770 = vmatpush.bf16.msra.mxu0 %v2247
  %2771 = vmatpush.bf16.msra.mxu0 %v2238
  %2772 = vmatpush.bf16.msra.mxu0 %v2229
  %2773 = vmatmul.bf16.gmra.mxu0 %v2525
  %v2774 = vpop.f32.mrf.mxu0
  %v2775 = vadd.f32 %v2761, %v2774
  %v2776 = vpop.f32.mrf.mxu0
  %v2777 = vadd.f32 %v2763, %v2776
  %2778 = vdwg.mxu0
  %2779 = vmatpush.bf16.msra.mxu0 %v2077
  %2780 = vmatpush.bf16.msra.mxu0 %v2068
  %2781 = vmatpush.bf16.msra.mxu0 %v2059
  %2782 = vmatpush.bf16.msra.mxu0 %v2050
  %2783 = vmatpush.bf16.msra.mxu0 %v2041
  %2784 = vmatpush.bf16.msra.mxu0 %v2032
  %2785 = vmatpush.bf16.msra.mxu0 %v2023
  %2786 = vmatpush.bf16.msra.mxu0 %v2014
  %2787 = vmatmul.bf16.gmra.mxu0 %v923
  %v2788 = vpop.f32.mrf.mxu0
  %v2789 = vadd.f32 0.0, %v2788
  %v2790 = vpop.f32.mrf.mxu0
  %v2791 = vadd.f32 0.0, %v2790
  %2792 = vdwg.mxu0
  %2793 = vmatpush.bf16.msra.mxu0 %v2149
  %2794 = vmatpush.bf16.msra.mxu0 %v2140
  %2795 = vmatpush.bf16.msra.mxu0 %v2131
  %2796 = vmatpush.bf16.msra.mxu0 %v2122
  %2797 = vmatpush.bf16.msra.mxu0 %v2113
  %2798 = vmatpush.bf16.msra.mxu0 %v2104
  %2799 = vmatpush.bf16.msra.mxu0 %v2095
  %2800 = vmatpush.bf16.msra.mxu0 %v2086
  %2801 = vmatmul.bf16.gmra.mxu0 %v924
  %v2802 = vpop.f32.mrf.mxu0
  %v2803 = vadd.f32 %v2789, %v2802
  %v2804 = vpop.f32.mrf.mxu0
  %v2805 = vadd.f32 %v2791, %v2804
  %2806 = vdwg.mxu0
  %2807 = vmatpush.bf16.msra.mxu0 %v2221
  %2808 = vmatpush.bf16.msra.mxu0 %v2212
  %2809 = vmatpush.bf16.msra.mxu0 %v2203
  %2810 = vmatpush.bf16.msra.mxu0 %v2194
  %2811 = vmatpush.bf16.msra.mxu0 %v2185
  %2812 = vmatpush.bf16.msra.mxu0 %v2176
  %2813 = vmatpush.bf16.msra.mxu0 %v2167
  %2814 = vmatpush.bf16.msra.mxu0 %v2158
  %2815 = vmatmul.bf16.gmra.mxu0 %v925
  %v2816 = vpop.f32.mrf.mxu0
  %v2817 = vadd.f32 %v2803, %v2816
  %v2818 = vpop.f32.mrf.mxu0
  %v2819 = vadd.f32 %v2805, %v2818
  %2820 = vdwg.mxu0
  %2821 = vmatpush.bf16.msra.mxu0 0
  %2822 = vmatpush.bf16.msra.mxu0 0
  %2823 = vmatpush.bf16.msra.mxu0 0
  %2824 = vmatpush.bf16.msra.mxu0 %v2541
  %2825 = vmatpush.bf16.msra.mxu0 %v2257
  %2826 = vmatpush.bf16.msra.mxu0 %v2248
  %2827 = vmatpush.bf16.msra.mxu0 %v2239
  %2828 = vmatpush.bf16.msra.mxu0 %v2230
  %2829 = vmatmul.bf16.gmra.mxu0 %v2525
  %v2830 = vpop.f32.mrf.mxu0
  %v2831 = vadd.f32 %v2817, %v2830
  %v2832 = vpop.f32.mrf.mxu0
  %v2833 = vadd.f32 %v2819, %v2832
  %2834 = vdwg.mxu0
  %2835 = vmatpush.bf16.msra.mxu0 %v2078
  %2836 = vmatpush.bf16.msra.mxu0 %v2069
  %2837 = vmatpush.bf16.msra.mxu0 %v2060
  %2838 = vmatpush.bf16.msra.mxu0 %v2051
  %2839 = vmatpush.bf16.msra.mxu0 %v2042
  %2840 = vmatpush.bf16.msra.mxu0 %v2033
  %2841 = vmatpush.bf16.msra.mxu0 %v2024
  %2842 = vmatpush.bf16.msra.mxu0 %v2015
  %2843 = vmatmul.bf16.gmra.mxu0 %v923
  %v2844 = vpop.f32.mrf.mxu0
  %v2845 = vadd.f32 0.0, %v2844
  %v2846 = vpop.f32.mrf.mxu0
  %v2847 = vadd.f32 0.0, %v2846
  %2848 = vdwg.mxu0
  %2849 = vmatpush.bf16.msra.mxu0 %v2150
  %2850 = vmatpush.bf16.msra.mxu0 %v2141
  %2851 = vmatpush.bf16.msra.mxu0 %v2132
  %2852 = vmatpush.bf16.msra.mxu0 %v2123
  %2853 = vmatpush.bf16.msra.mxu0 %v2114
  %2854 = vmatpush.bf16.msra.mxu0 %v2105
  %2855 = vmatpush.bf16.msra.mxu0 %v2096
  %2856 = vmatpush.bf16.msra.mxu0 %v2087
  %2857 = vmatmul.bf16.gmra.mxu0 %v924
  %v2858 = vpop.f32.mrf.mxu0
  %v2859 = vadd.f32 %v2845, %v2858
  %v2860 = vpop.f32.mrf.mxu0
  %v2861 = vadd.f32 %v2847, %v2860
  %2862 = vdwg.mxu0
  %2863 = vmatpush.bf16.msra.mxu0 %v2222
  %2864 = vmatpush.bf16.msra.mxu0 %v2213
  %2865 = vmatpush.bf16.msra.mxu0 %v2204
  %2866 = vmatpush.bf16.msra.mxu0 %v2195
  %2867 = vmatpush.bf16.msra.mxu0 %v2186
  %2868 = vmatpush.bf16.msra.mxu0 %v2177
  %2869 = vmatpush.bf16.msra.mxu0 %v2168
  %2870 = vmatpush.bf16.msra.mxu0 %v2159
  %2871 = vmatmul.bf16.gmra.mxu0 %v925
  %v2872 = vpop.f32.mrf.mxu0
  %v2873 = vadd.f32 %v2859, %v2872
  %v2874 = vpop.f32.mrf.mxu0
  %v2875 = vadd.f32 %v2861, %v2874
  %2876 = vdwg.mxu0
  %2877 = vmatpush.bf16.msra.mxu0 0
  %2878 = vmatpush.bf16.msra.mxu0 0
  %2879 = vmatpush.bf16.msra.mxu0 0
  %2880 = vmatpush.bf16.msra.mxu0 %v2544
  %2881 = vmatpush.bf16.msra.mxu0 %v2258
  %2882 = vmatpush.bf16.msra.mxu0 %v2249
  %2883 = vmatpush.bf16.msra.mxu0 %v2240
  %2884 = vmatpush.bf16.msra.mxu0 %v2231
  %2885 = vmatmul.bf16.gmra.mxu0 %v2525
  %v2886 = vpop.f32.mrf.mxu0
  %v2887 = vadd.f32 %v2873, %v2886
  %v2888 = vpop.f32.mrf.mxu0
  %v2889 = vadd.f32 %v2875, %v2888
  %2890 = vdwg.mxu0
  %2891 = vmatpush.bf16.msra.mxu0 %v2079
  %2892 = vmatpush.bf16.msra.mxu0 %v2070
  %2893 = vmatpush.bf16.msra.mxu0 %v2061
  %2894 = vmatpush.bf16.msra.mxu0 %v2052
  %2895 = vmatpush.bf16.msra.mxu0 %v2043
  %2896 = vmatpush.bf16.msra.mxu0 %v2034
  %2897 = vmatpush.bf16.msra.mxu0 %v2025
  %2898 = vmatpush.bf16.msra.mxu0 %v2016
  %2899 = vmatmul.bf16.gmra.mxu0 %v923
  %v2900 = vpop.f32.mrf.mxu0
  %v2901 = vadd.f32 0.0, %v2900
  %v2902 = vpop.f32.mrf.mxu0
  %v2903 = vadd.f32 0.0, %v2902
  %2904 = vdwg.mxu0
  %2905 = vmatpush.bf16.msra.mxu0 %v2151
  %2906 = vmatpush.bf16.msra.mxu0 %v2142
  %2907 = vmatpush.bf16.msra.mxu0 %v2133
  %2908 = vmatpush.bf16.msra.mxu0 %v2124
  %2909 = vmatpush.bf16.msra.mxu0 %v2115
  %2910 = vmatpush.bf16.msra.mxu0 %v2106
  %2911 = vmatpush.bf16.msra.mxu0 %v2097
  %2912 = vmatpush.bf16.msra.mxu0 %v2088
  %2913 = vmatmul.bf16.gmra.mxu0 %v924
  %v2914 = vpop.f32.mrf.mxu0
  %v2915 = vadd.f32 %v2901, %v2914
  %v2916 = vpop.f32.mrf.mxu0
  %v2917 = vadd.f32 %v2903, %v2916
  %2918 = vdwg.mxu0
  %2919 = vmatpush.bf16.msra.mxu0 %v2223
  %2920 = vmatpush.bf16.msra.mxu0 %v2214
  %2921 = vmatpush.bf16.msra.mxu0 %v2205
  %2922 = vmatpush.bf16.msra.mxu0 %v2196
  %2923 = vmatpush.bf16.msra.mxu0 %v2187
  %2924 = vmatpush.bf16.msra.mxu0 %v2178
  %2925 = vmatpush.bf16.msra.mxu0 %v2169
  %2926 = vmatpush.bf16.msra.mxu0 %v2160
  %2927 = vmatmul.bf16.gmra.mxu0 %v925
  %v2928 = vpop.f32.mrf.mxu0
  %v2929 = vadd.f32 %v2915, %v2928
  %v2930 = vpop.f32.mrf.mxu0
  %v2931 = vadd.f32 %v2917, %v2930
  %2932 = vdwg.mxu0
  %2933 = vmatpush.bf16.msra.mxu0 0
  %2934 = vmatpush.bf16.msra.mxu0 0
  %2935 = vmatpush.bf16.msra.mxu0 0
  %2936 = vmatpush.bf16.msra.mxu0 %v2547
  %2937 = vmatpush.bf16.msra.mxu0 %v2259
  %2938 = vmatpush.bf16.msra.mxu0 %v2250
  %2939 = vmatpush.bf16.msra.mxu0 %v2241
  %2940 = vmatpush.bf16.msra.mxu0 %v2232
  %2941 = vmatmul.bf16.gmra.mxu0 %v2525
  %v2942 = vpop.f32.mrf.mxu0
  %v2943 = vadd.f32 %v2929, %v2942
  %v2944 = vpop.f32.mrf.mxu0
  %v2945 = vadd.f32 %v2931, %v2944
  %2946 = vdwg.mxu0
  %2947 = vmatpush.bf16.msra.mxu0 %v2080
  %2948 = vmatpush.bf16.msra.mxu0 %v2071
  %2949 = vmatpush.bf16.msra.mxu0 %v2062
  %2950 = vmatpush.bf16.msra.mxu0 %v2053
  %2951 = vmatpush.bf16.msra.mxu0 %v2044
  %2952 = vmatpush.bf16.msra.mxu0 %v2035
  %2953 = vmatpush.bf16.msra.mxu0 %v2026
  %2954 = vmatpush.bf16.msra.mxu0 %v2017
  %2955 = vmatmul.bf16.gmra.mxu0 %v923
  %v2956 = vpop.f32.mrf.mxu0
  %v2957 = vadd.f32 0.0, %v2956
  %v2958 = vpop.f32.mrf.mxu0
  %v2959 = vadd.f32 0.0, %v2958
  %2960 = vdwg.mxu0
  %2961 = vmatpush.bf16.msra.mxu0 %v2152
  %2962 = vmatpush.bf16.msra.mxu0 %v2143
  %2963 = vmatpush.bf16.msra.mxu0 %v2134
  %2964 = vmatpush.bf16.msra.mxu0 %v2125
  %2965 = vmatpush.bf16.msra.mxu0 %v2116
  %2966 = vmatpush.bf16.msra.mxu0 %v2107
  %2967 = vmatpush.bf16.msra.mxu0 %v2098
  %2968 = vmatpush.bf16.msra.mxu0 %v2089
  %2969 = vmatmul.bf16.gmra.mxu0 %v924
  %v2970 = vpop.f32.mrf.mxu0
  %v2971 = vadd.f32 %v2957, %v2970
  %v2972 = vpop.f32.mrf.mxu0
  %v2973 = vadd.f32 %v2959, %v2972
  %2974 = vdwg.mxu0
  %2975 = vmatpush.bf16.msra.mxu0 %v2224
  %2976 = vmatpush.bf16.msra.mxu0 %v2215
  %2977 = vmatpush.bf16.msra.mxu0 %v2206
  %2978 = vmatpush.bf16.msra.mxu0 %v2197
  %2979 = vmatpush.bf16.msra.mxu0 %v2188
  %2980 = vmatpush.bf16.msra.mxu0 %v2179
  %2981 = vmatpush.bf16.msra.mxu0 %v2170
  %2982 = vmatpush.bf16.msra.mxu0 %v2161
  %2983 = vmatmul.bf16.gmra.mxu0 %v925
  %v2984 = vpop.f32.mrf.mxu0
  %v2985 = vadd.f32 %v2971, %v2984
  %v2986 = vpop.f32.mrf.mxu0
  %v2987 = vadd.f32 %v2973, %v2986
  %2988 = vdwg.mxu0
  %2989 = vmatpush.bf16.msra.mxu0 0
  %2990 = vmatpush.bf16.msra.mxu0 0
  %2991 = vmatpush.bf16.msra.mxu0 0
  %2992 = vmatpush.bf16.msra.mxu0 %v2550
  %2993 = vmatpush.bf16.msra.mxu0 %v2260
  %2994 = vmatpush.bf16.msra.mxu0 %v2251
  %2995 = vmatpush.bf16.msra.mxu0 %v2242
  %2996 = vmatpush.bf16.msra.mxu0 %v2233
  %2997 = vmatmul.bf16.gmra.mxu0 %v2525
  %v2998 = vpop.f32.mrf.mxu0
  %v2999 = vadd.f32 %v2985, %v2998
  %v3000 = vpop.f32.mrf.mxu0
  %v3001 = vadd.f32 %v2987, %v3000
  %3002 = vdwg.mxu0
  %3003 = vmatpush.bf16.msra.mxu0 %v2081
  %3004 = vmatpush.bf16.msra.mxu0 %v2072
  %3005 = vmatpush.bf16.msra.mxu0 %v2063
  %3006 = vmatpush.bf16.msra.mxu0 %v2054
  %3007 = vmatpush.bf16.msra.mxu0 %v2045
  %3008 = vmatpush.bf16.msra.mxu0 %v2036
  %3009 = vmatpush.bf16.msra.mxu0 %v2027
  %3010 = vmatpush.bf16.msra.mxu0 %v2018
  %3011 = vmatmul.bf16.gmra.mxu0 %v923
  %v3012 = vpop.f32.mrf.mxu0
  %v3013 = vadd.f32 0.0, %v3012
  %v3014 = vpop.f32.mrf.mxu0
  %v3015 = vadd.f32 0.0, %v3014
  %3016 = vdwg.mxu0
  %3017 = vmatpush.bf16.msra.mxu0 %v2153
  %3018 = vmatpush.bf16.msra.mxu0 %v2144
  %3019 = vmatpush.bf16.msra.mxu0 %v2135
  %3020 = vmatpush.bf16.msra.mxu0 %v2126
  %3021 = vmatpush.bf16.msra.mxu0 %v2117
  %3022 = vmatpush.bf16.msra.mxu0 %v2108
  %3023 = vmatpush.bf16.msra.mxu0 %v2099
  %3024 = vmatpush.bf16.msra.mxu0 %v2090
  %3025 = vmatmul.bf16.gmra.mxu0 %v924
  %v3026 = vpop.f32.mrf.mxu0
  %v3027 = vadd.f32 %v3013, %v3026
  %v3028 = vpop.f32.mrf.mxu0
  %v3029 = vadd.f32 %v3015, %v3028
  %3030 = vdwg.mxu0
  %3031 = vmatpush.bf16.msra.mxu0 %v2225
  %3032 = vmatpush.bf16.msra.mxu0 %v2216
  %3033 = vmatpush.bf16.msra.mxu0 %v2207
  %3034 = vmatpush.bf16.msra.mxu0 %v2198
  %3035 = vmatpush.bf16.msra.mxu0 %v2189
  %3036 = vmatpush.bf16.msra.mxu0 %v2180
  %3037 = vmatpush.bf16.msra.mxu0 %v2171
  %3038 = vmatpush.bf16.msra.mxu0 %v2162
  %3039 = vmatmul.bf16.gmra.mxu0 %v925
  %v3040 = vpop.f32.mrf.mxu0
  %v3041 = vadd.f32 %v3027, %v3040
  %v3042 = vpop.f32.mrf.mxu0
  %v3043 = vadd.f32 %v3029, %v3042
  %3044 = vdwg.mxu0
  %3045 = vmatpush.bf16.msra.mxu0 0
  %3046 = vmatpush.bf16.msra.mxu0 0
  %3047 = vmatpush.bf16.msra.mxu0 0
  %3048 = vmatpush.bf16.msra.mxu0 %v2553
  %3049 = vmatpush.bf16.msra.mxu0 %v2261
  %3050 = vmatpush.bf16.msra.mxu0 %v2252
  %3051 = vmatpush.bf16.msra.mxu0 %v2243
  %3052 = vmatpush.bf16.msra.mxu0 %v2234
  %3053 = vmatmul.bf16.gmra.mxu0 %v2525
  %v3054 = vpop.f32.mrf.mxu0
  %v3055 = vadd.f32 %v3041, %v3054
  %v3056 = vpop.f32.mrf.mxu0
  %v3057 = vadd.f32 %v3043, %v3056
  %3058 = vdwg.mxu0
  %v3059 = vld [vmem:[%s4] sm:$0xff]
  %v3060 = vld [vmem:[%s4 + $0x10] sm:$0xff]
  %3063 = vrot.lane.b32.xlu0 %v3059, 112
  %v3064 = vpop.permute.xlu0 %3063
  %3065 = vrot.lane.b32.xlu0 %v3060, 112
  %v3066 = vpop.permute.xlu0 %3065
  %v3067 = vsel %vm671, %v3064, 0
  %v3069 = vsel %vm671, %v3066, 0
  %3071 = vmatpush.msra.mxu0 0.0
  %3072 = vmatpush.msra.mxu0 0.0
  %3073 = vmatpush.msra.mxu0 0.0
  %3074 = vmatpush.msra.mxu0 0.0
  %3075 = vmatpush.msra.mxu0 0.0
  %3076 = vmatpush.msra.mxu0 0.0
  %3077 = vmatpush.msra.mxu0 0.0
  %3078 = vmatpush.msra.mxu0 0.0
  %3079 = vmatpush.msra.mxu0 0.0
  %3080 = vmatpush.msra.mxu0 0.0
  %3081 = vmatpush.msra.mxu0 0.0
  %3082 = vmatpush.msra.mxu0 0.0
  %3083 = vmatpush.msra.mxu0 0.0
  %3084 = vmatpush.msra.mxu0 0.0
  %3085 = vmatpush.msra.mxu0 %v2665
  %3086 = vmatpush.msra.mxu0 %v2663
  %3087 = vmatmul.f32.gmra.mxu0 %v3067
  %v3088 = vpop.f32.mrf.mxu0
  %v3089 = vadd.f32 0.0, %v3088
  %3090 = vmatmul.f32.gmra.mxu0 %v3069
  %v3091 = vpop.f32.mrf.mxu0
  %v3092 = vadd.f32 0.0, %v3091
  %3093 = vdwg.mxu0
  %v3094 = vsel %vm671, %v3059, 0
  %v3096 = vsel %vm671, %v3060, 0
  %3098 = vmatpush.msra.mxu0 0.0
  %3099 = vmatpush.msra.mxu0 0.0
  %3100 = vmatpush.msra.mxu0 0.0
  %3101 = vmatpush.msra.mxu0 0.0
  %3102 = vmatpush.msra.mxu0 0.0
  %3103 = vmatpush.msra.mxu0 0.0
  %3104 = vmatpush.msra.mxu0 0.0
  %3105 = vmatpush.msra.mxu0 0.0
  %3106 = vmatpush.msra.mxu0 0.0
  %3107 = vmatpush.msra.mxu0 0.0
  %3108 = vmatpush.msra.mxu0 0.0
  %3109 = vmatpush.msra.mxu0 0.0
  %3110 = vmatpush.msra.mxu0 0.0
  %3111 = vmatpush.msra.mxu0 0.0
  %3112 = vmatpush.msra.mxu0 %v2609
  %3113 = vmatpush.msra.mxu0 %v2607
  %3114 = vmatmul.f32.gmra.mxu0 %v3094
  %v3115 = vpop.f32.mrf.mxu0
  %v3116 = vadd.f32 %v3089, %v3115
  %3117 = vmatmul.f32.gmra.mxu0 %v3096
  %v3118 = vpop.f32.mrf.mxu0
  %v3119 = vadd.f32 %v3092, %v3118
  %3120 = vdwg.mxu0
  %3121 = vrot.lane.b32.xlu0 %v3059, 96
  %v3122 = vpop.permute.xlu0 %3121
  %3123 = vrot.lane.b32.xlu0 %v3060, 96
  %v3124 = vpop.permute.xlu0 %3123
  %v3125 = vsel %vm671, %v3122, 0
  %v3127 = vsel %vm671, %v3124, 0
  %3129 = vmatpush.msra.mxu0 0.0
  %3130 = vmatpush.msra.mxu0 0.0
  %3131 = vmatpush.msra.mxu0 0.0
  %3132 = vmatpush.msra.mxu0 0.0
  %3133 = vmatpush.msra.mxu0 0.0
  %3134 = vmatpush.msra.mxu0 0.0
  %3135 = vmatpush.msra.mxu0 0.0
  %3136 = vmatpush.msra.mxu0 0.0
  %3137 = vmatpush.msra.mxu0 0.0
  %3138 = vmatpush.msra.mxu0 0.0
  %3139 = vmatpush.msra.mxu0 0.0
  %3140 = vmatpush.msra.mxu0 0.0
  %3141 = vmatpush.msra.mxu0 0.0
  %3142 = vmatpush.msra.mxu0 0.0
  %3143 = vmatpush.msra.mxu0 %v2721
  %3144 = vmatpush.msra.mxu0 %v2719
  %3145 = vmatmul.f32.gmra.mxu0 %v3125
  %v3146 = vpop.f32.mrf.mxu0
  %v3147 = vadd.f32 0.0, %v3146
  %3148 = vmatmul.f32.gmra.mxu0 %v3127
  %v3149 = vpop.f32.mrf.mxu0
  %v3150 = vadd.f32 0.0, %v3149
  %3151 = vdwg.mxu0
  %v3152 = vadd.f32 %v3116, %v3147
  %v3153 = vadd.f32 %v3119, %v3150
  %3154 = vrot.lane.b32.xlu0 %v3059, 80
  %v3155 = vpop.permute.xlu0 %3154
  %3156 = vrot.lane.b32.xlu0 %v3060, 80
  %v3157 = vpop.permute.xlu0 %3156
  %v3158 = vsel %vm671, %v3155, 0
  %v3160 = vsel %vm671, %v3157, 0
  %3162 = vmatpush.msra.mxu0 0.0
  %3163 = vmatpush.msra.mxu0 0.0
  %3164 = vmatpush.msra.mxu0 0.0
  %3165 = vmatpush.msra.mxu0 0.0
  %3166 = vmatpush.msra.mxu0 0.0
  %3167 = vmatpush.msra.mxu0 0.0
  %3168 = vmatpush.msra.mxu0 0.0
  %3169 = vmatpush.msra.mxu0 0.0
  %3170 = vmatpush.msra.mxu0 0.0
  %3171 = vmatpush.msra.mxu0 0.0
  %3172 = vmatpush.msra.mxu0 0.0
  %3173 = vmatpush.msra.mxu0 0.0
  %3174 = vmatpush.msra.mxu0 0.0
  %3175 = vmatpush.msra.mxu0 0.0
  %3176 = vmatpush.msra.mxu0 %v2777
  %3177 = vmatpush.msra.mxu0 %v2775
  %3178 = vmatmul.f32.gmra.mxu0 %v3158
  %v3179 = vpop.f32.mrf.mxu0
  %v3180 = vadd.f32 0.0, %v3179
  %3181 = vmatmul.f32.gmra.mxu0 %v3160
  %v3182 = vpop.f32.mrf.mxu0
  %v3183 = vadd.f32 0.0, %v3182
  %3184 = vdwg.mxu0
  %v3185 = vadd.f32 %v3152, %v3180
  %v3186 = vadd.f32 %v3153, %v3183
  %3187 = vrot.lane.b32.xlu0 %v3059, 64
  %v3188 = vpop.permute.xlu0 %3187
  %3189 = vrot.lane.b32.xlu0 %v3060, 64
  %v3190 = vpop.permute.xlu0 %3189
  %v3191 = vsel %vm671, %v3188, 0
  %v3193 = vsel %vm671, %v3190, 0
  %3195 = vmatpush.msra.mxu0 0.0
  %3196 = vmatpush.msra.mxu0 0.0
  %3197 = vmatpush.msra.mxu0 0.0
  %3198 = vmatpush.msra.mxu0 0.0
  %3199 = vmatpush.msra.mxu0 0.0
  %3200 = vmatpush.msra.mxu0 0.0
  %3201 = vmatpush.msra.mxu0 0.0
  %3202 = vmatpush.msra.mxu0 0.0
  %3203 = vmatpush.msra.mxu0 0.0
  %3204 = vmatpush.msra.mxu0 0.0
  %3205 = vmatpush.msra.mxu0 0.0
  %3206 = vmatpush.msra.mxu0 0.0
  %3207 = vmatpush.msra.mxu0 0.0
  %3208 = vmatpush.msra.mxu0 0.0
  %3209 = vmatpush.msra.mxu0 %v2833
  %3210 = vmatpush.msra.mxu0 %v2831
  %3211 = vmatmul.f32.gmra.mxu0 %v3191
  %v3212 = vpop.f32.mrf.mxu0
  %v3213 = vadd.f32 0.0, %v3212
  %3214 = vmatmul.f32.gmra.mxu0 %v3193
  %v3215 = vpop.f32.mrf.mxu0
  %v3216 = vadd.f32 0.0, %v3215
  %3217 = vdwg.mxu0
  %v3218 = vadd.f32 %v3185, %v3213
  %v3219 = vadd.f32 %v3186, %v3216
  %3220 = vrot.lane.b32.xlu0 %v3059, 48
  %v3221 = vpop.permute.xlu0 %3220
  %3222 = vrot.lane.b32.xlu0 %v3060, 48
  %v3223 = vpop.permute.xlu0 %3222
  %v3224 = vsel %vm671, %v3221, 0
  %v3226 = vsel %vm671, %v3223, 0
  %3228 = vmatpush.msra.mxu0 0.0
  %3229 = vmatpush.msra.mxu0 0.0
  %3230 = vmatpush.msra.mxu0 0.0
  %3231 = vmatpush.msra.mxu0 0.0
  %3232 = vmatpush.msra.mxu0 0.0
  %3233 = vmatpush.msra.mxu0 0.0
  %3234 = vmatpush.msra.mxu0 0.0
  %3235 = vmatpush.msra.mxu0 0.0
  %3236 = vmatpush.msra.mxu0 0.0
  %3237 = vmatpush.msra.mxu0 0.0
  %3238 = vmatpush.msra.mxu0 0.0
  %3239 = vmatpush.msra.mxu0 0.0
  %3240 = vmatpush.msra.mxu0 0.0
  %3241 = vmatpush.msra.mxu0 0.0
  %3242 = vmatpush.msra.mxu0 %v2889
  %3243 = vmatpush.msra.mxu0 %v2887
  %3244 = vmatmul.f32.gmra.mxu0 %v3224
  %v3245 = vpop.f32.mrf.mxu0
  %v3246 = vadd.f32 0.0, %v3245
  %3247 = vmatmul.f32.gmra.mxu0 %v3226
  %v3248 = vpop.f32.mrf.mxu0
  %v3249 = vadd.f32 0.0, %v3248
  %3250 = vdwg.mxu0
  %v3251 = vadd.f32 %v3218, %v3246
  %v3252 = vadd.f32 %v3219, %v3249
  %3253 = vrot.lane.b32.xlu0 %v3059, 32
  %v3254 = vpop.permute.xlu0 %3253
  %3255 = vrot.lane.b32.xlu0 %v3060, 32
  %v3256 = vpop.permute.xlu0 %3255
  %v3257 = vsel %vm671, %v3254, 0
  %v3259 = vsel %vm671, %v3256, 0
  %3261 = vmatpush.msra.mxu0 0.0
  %3262 = vmatpush.msra.mxu0 0.0
  %3263 = vmatpush.msra.mxu0 0.0
  %3264 = vmatpush.msra.mxu0 0.0
  %3265 = vmatpush.msra.mxu0 0.0
  %3266 = vmatpush.msra.mxu0 0.0
  %3267 = vmatpush.msra.mxu0 0.0
  %3268 = vmatpush.msra.mxu0 0.0
  %3269 = vmatpush.msra.mxu0 0.0
  %3270 = vmatpush.msra.mxu0 0.0
  %3271 = vmatpush.msra.mxu0 0.0
  %3272 = vmatpush.msra.mxu0 0.0
  %3273 = vmatpush.msra.mxu0 0.0
  %3274 = vmatpush.msra.mxu0 0.0
  %3275 = vmatpush.msra.mxu0 %v2945
  %3276 = vmatpush.msra.mxu0 %v2943
  %3277 = vmatmul.f32.gmra.mxu0 %v3257
  %v3278 = vpop.f32.mrf.mxu0
  %v3279 = vadd.f32 0.0, %v3278
  %3280 = vmatmul.f32.gmra.mxu0 %v3259
  %v3281 = vpop.f32.mrf.mxu0
  %v3282 = vadd.f32 0.0, %v3281
  %3283 = vdwg.mxu0
  %v3284 = vadd.f32 %v3251, %v3279
  %v3285 = vadd.f32 %v3252, %v3282
  %3286 = vrot.lane.b32.xlu0 %v3059, 16
  %v3287 = vpop.permute.xlu0 %3286
  %3288 = vrot.lane.b32.xlu0 %v3060, 16
  %v3289 = vpop.permute.xlu0 %3288
  %v3290 = vsel %vm671, %v3287, 0
  %v3292 = vsel %vm671, %v3289, 0
  %3294 = vmatpush.msra.mxu0 0.0
  %3295 = vmatpush.msra.mxu0 0.0
  %3296 = vmatpush.msra.mxu0 0.0
  %3297 = vmatpush.msra.mxu0 0.0
  %3298 = vmatpush.msra.mxu0 0.0
  %3299 = vmatpush.msra.mxu0 0.0
  %3300 = vmatpush.msra.mxu0 0.0
  %3301 = vmatpush.msra.mxu0 0.0
  %3302 = vmatpush.msra.mxu0 0.0
  %3303 = vmatpush.msra.mxu0 0.0
  %3304 = vmatpush.msra.mxu0 0.0
  %3305 = vmatpush.msra.mxu0 0.0
  %3306 = vmatpush.msra.mxu0 0.0
  %3307 = vmatpush.msra.mxu0 0.0
  %3308 = vmatpush.msra.mxu0 %v3001
  %3309 = vmatpush.msra.mxu0 %v2999
  %3310 = vmatmul.f32.gmra.mxu0 %v3290
  %v3311 = vpop.f32.mrf.mxu0
  %v3312 = vadd.f32 0.0, %v3311
  %3313 = vmatmul.f32.gmra.mxu0 %v3292
  %v3314 = vpop.f32.mrf.mxu0
  %v3315 = vadd.f32 0.0, %v3314
  %3316 = vdwg.mxu0
  %v3317 = vadd.f32 %v3284, %v3312
  %v3318 = vadd.f32 %v3285, %v3315
  %v3319 = vld [vmem:[%s4 + $0x8] sm:$0xff]
  %v3320 = vld [vmem:[%s4 + $0x18] sm:$0xff]
  %v3322 = vsel %vm671, %v3319, 0
  %v3325 = vsel %vm671, %v3320, 0
  %3327 = vmatpush.msra.mxu0 0.0
  %3328 = vmatpush.msra.mxu0 0.0
  %3329 = vmatpush.msra.mxu0 0.0
  %3330 = vmatpush.msra.mxu0 0.0
  %3331 = vmatpush.msra.mxu0 0.0
  %3332 = vmatpush.msra.mxu0 0.0
  %3333 = vmatpush.msra.mxu0 0.0
  %3334 = vmatpush.msra.mxu0 0.0
  %3335 = vmatpush.msra.mxu0 0.0
  %3336 = vmatpush.msra.mxu0 0.0
  %3337 = vmatpush.msra.mxu0 0.0
  %3338 = vmatpush.msra.mxu0 0.0
  %3339 = vmatpush.msra.mxu0 0.0
  %3340 = vmatpush.msra.mxu0 0.0
  %3341 = vmatpush.msra.mxu0 %v3057
  %3342 = vmatpush.msra.mxu0 %v3055
  %3343 = vmatmul.f32.gmra.mxu0 %v3322
  %v3344 = vpop.f32.mrf.mxu0
  %v3345 = vadd.f32 0.0, %v3344
  %3346 = vmatmul.f32.gmra.mxu0 %v3325
  %v3347 = vpop.f32.mrf.mxu0
  %v3348 = vadd.f32 0.0, %v3347
  %3349 = vdwg.mxu0
  %v3350 = vadd.f32 %v3317, %v3345
  %v3351 = vadd.f32 %v3318, %v3348
  %v3352 = vld [vmem:[%s5] sm:$0xff]
  %v3353 = vld [vmem:[%s5 + $0x8] sm:$0xff]
  %3355 = vset.pattern.permute.xlu0 0
  %3356 = vperm.xlu0 %3355, %v3352
  %v3357 = vpop.permute.xlu0 %3356
  %3360 = vset.pattern.permute.xlu0 0
  %3361 = vperm.xlu0 %3360, %v3353
  %v3362 = vpop.permute.xlu0 %3361
  %v3364 = vadd.f32 %v3350, %v3357
  %v3365 = vadd.f32 %v3351, %v3362
  %vm3366 = vcmp.ge.f32.partialorder %v3364, 0.0
  %vm3367 = vcmp.ge.f32.partialorder %v3365, 0.0
  %v3368 = vmul.f32 %v3364, 0.2
  %v3369 = vmul.f32 %v3365, 0.2
  %v3370 = vsel %vm3366, %v3364, %v3368
  %v3371 = vsel %vm3367, %v3365, %v3369
  %v3372 = vpack.c.bf16 %v3371, %v3370
  %v3373 = vld [vmem:[%s6] sm:$0xff]
  %v3374 = vld [vmem:[%s6 + $0x8] sm:$0xf]
  %v3375 = vld [vmem:[%s6 + $0xc] sm:$0xff]
  %v3376 = vld [vmem:[%s6 + $0x14] sm:$0xf]
  %v3377 = vld [vmem:[%s6 + $0x18] sm:$0xff]
  %v3378 = vld [vmem:[%s6 + $0x20] sm:$0xf]
  %v3379 = vld [vmem:[%s6 + $0x24] sm:$0xff]
  %v3380 = vld [vmem:[%s6 + $0x2c] sm:$0xf]
  %v3381 = vld [vmem:[%s6 + $0x30] sm:$0xff]
  %v3382 = vld [vmem:[%s6 + $0x38] sm:$0xf]
  %v3383 = vld [vmem:[%s6 + $0x3c] sm:$0xff]
  %v3384 = vld [vmem:[%s6 + $0x44] sm:$0xf]
  %v3385 = vld [vmem:[%s6 + $0x48] sm:$0xff]
  %v3386 = vld [vmem:[%s6 + $0x50] sm:$0xf]
  %v3387 = vld [vmem:[%s6 + $0x54] sm:$0xff]
  %v3388 = vld [vmem:[%s6 + $0x5c] sm:$0xf]
  %v3389 = vld [vmem:[%s6 + $0x60] sm:$0xff]
  %v3390 = vld [vmem:[%s6 + $0x68] sm:$0xf]
  %v3391 = vld [vmem:[%s6 + $0x6c] sm:$0xff]
  %v3392 = vld [vmem:[%s6 + $0x74] sm:$0xf]
  %v3393 = vld [vmem:[%s6 + $0x78] sm:$0xff]
  %v3394 = vld [vmem:[%s6 + $0x80] sm:$0xf]
  %v3395 = vld [vmem:[%s6 + $0x84] sm:$0xff]
  %v3396 = vld [vmem:[%s6 + $0x8c] sm:$0xf]
  %v3397 = vld [vmem:[%s6 + $0x90] sm:$0xff]
  %v3398 = vld [vmem:[%s6 + $0x98] sm:$0xf]
  %v3399 = vld [vmem:[%s6 + $0x9c] sm:$0xff]
  %v3400 = vld [vmem:[%s6 + $0xa4] sm:$0xf]
  %v3401 = vld [vmem:[%s6 + $0xa8] sm:$0xff]
  %v3402 = vld [vmem:[%s6 + $0xb0] sm:$0xf]
  %v3403 = vld [vmem:[%s6 + $0xb4] sm:$0xff]
  %v3404 = vld [vmem:[%s6 + $0xbc] sm:$0xf]
  %v3437 = vunpack.c.l.b16 %v3373
  %v3438 = vunpack.c.h.b16 %v3373
  %v3439 = vunpack.c.l.b16 %v3374
  %v3440 = vunpack.c.l.b16 %v3375
  %v3441 = vunpack.c.h.b16 %v3375
  %v3442 = vunpack.c.l.b16 %v3376
  %v3443 = vunpack.c.l.b16 %v3377
  %v3444 = vunpack.c.h.b16 %v3377
  %v3445 = vunpack.c.l.b16 %v3378
  %v3446 = vunpack.c.l.b16 %v3379
  %v3447 = vunpack.c.h.b16 %v3379
  %v3448 = vunpack.c.l.b16 %v3380
  %v3449 = vunpack.c.l.b16 %v3381
  %v3450 = vunpack.c.h.b16 %v3381
  %v3451 = vunpack.c.l.b16 %v3382
  %v3452 = vunpack.c.l.b16 %v3383
  %v3453 = vunpack.c.h.b16 %v3383
  %v3454 = vunpack.c.l.b16 %v3384
  %v3455 = vunpack.c.l.b16 %v3385
  %v3456 = vunpack.c.h.b16 %v3385
  %v3457 = vunpack.c.l.b16 %v3386
  %v3458 = vunpack.c.l.b16 %v3387
  %v3459 = vunpack.c.h.b16 %v3387
  %v3460 = vunpack.c.l.b16 %v3388
  %v3461 = vunpack.c.l.b16 %v3389
  %v3462 = vunpack.c.h.b16 %v3389
  %v3463 = vunpack.c.l.b16 %v3390
  %v3464 = vunpack.c.l.b16 %v3391
  %v3465 = vunpack.c.h.b16 %v3391
  %v3466 = vunpack.c.l.b16 %v3392
  %v3467 = vunpack.c.l.b16 %v3393
  %v3468 = vunpack.c.h.b16 %v3393
  %v3469 = vunpack.c.l.b16 %v3394
  %v3470 = vunpack.c.l.b16 %v3395
  %v3471 = vunpack.c.h.b16 %v3395
  %v3472 = vunpack.c.l.b16 %v3396
  %v3473 = vunpack.c.l.b16 %v3397
  %v3474 = vunpack.c.h.b16 %v3397
  %v3475 = vunpack.c.l.b16 %v3398
  %v3476 = vunpack.c.l.b16 %v3399
  %v3477 = vunpack.c.h.b16 %v3399
  %v3478 = vunpack.c.l.b16 %v3400
  %v3479 = vunpack.c.l.b16 %v3401
  %v3480 = vunpack.c.h.b16 %v3401
  %v3481 = vunpack.c.l.b16 %v3402
  %v3482 = vunpack.c.l.b16 %v3403
  %v3483 = vunpack.c.h.b16 %v3403
  %v3484 = vunpack.c.l.b16 %v3404
  %v3485 = vpack.c.b16 %v3440, %v3437
  %v3486 = vpack.c.b16 %v3441, %v3438
  %v3487 = vpack.c.b16 %v3442, %v3439
  %v3488 = vpack.c.b16 %v3446, %v3443
  %v3489 = vpack.c.b16 %v3447, %v3444
  %v3490 = vpack.c.b16 %v3448, %v3445
  %v3491 = vpack.c.b16 %v3452, %v3449
  %v3492 = vpack.c.b16 %v3453, %v3450
  %v3493 = vpack.c.b16 %v3454, %v3451
  %v3494 = vpack.c.b16 %v3458, %v3455
  %v3495 = vpack.c.b16 %v3459, %v3456
  %v3496 = vpack.c.b16 %v3460, %v3457
  %v3497 = vpack.c.b16 %v3464, %v3461
  %v3498 = vpack.c.b16 %v3465, %v3462
  %v3499 = vpack.c.b16 %v3466, %v3463
  %v3500 = vpack.c.b16 %v3470, %v3467
  %v3501 = vpack.c.b16 %v3471, %v3468
  %v3502 = vpack.c.b16 %v3472, %v3469
  %v3503 = vpack.c.b16 %v3476, %v3473
  %v3504 = vpack.c.b16 %v3477, %v3474
  %v3505 = vpack.c.b16 %v3478, %v3475
  %v3506 = vpack.c.b16 %v3482, %v3479
  %v3507 = vpack.c.b16 %v3483, %v3480
  %v3508 = vpack.c.b16 %v3484, %v3481
  %3533 = vmatpush.bf16.msra.mxu0 %v3506
  %3534 = vmatpush.bf16.msra.mxu0 %v3503
  %3535 = vmatpush.bf16.msra.mxu0 %v3500
  %3536 = vmatpush.bf16.msra.mxu0 %v3497
  %3537 = vmatpush.bf16.msra.mxu0 %v3494
  %3538 = vmatpush.bf16.msra.mxu0 %v3491
  %3539 = vmatpush.bf16.msra.mxu0 %v3488
  %3540 = vmatpush.bf16.msra.mxu0 %v3485
  %3541 = vmatmul.bf16.gmra.mxu0 %v3372
  %v3542 = vpop.f32.mrf.mxu0
  %v3543 = vadd.f32 0.0, %v3542
  %v3544 = vpop.f32.mrf.mxu0
  %v3545 = vadd.f32 0.0, %v3544
  %3546 = vdwg.mxu0
  %3547 = vmatpush.bf16.msra.mxu0 %v3507
  %3548 = vmatpush.bf16.msra.mxu0 %v3504
  %3549 = vmatpush.bf16.msra.mxu0 %v3501
  %3550 = vmatpush.bf16.msra.mxu0 %v3498
  %3551 = vmatpush.bf16.msra.mxu0 %v3495
  %3552 = vmatpush.bf16.msra.mxu0 %v3492
  %3553 = vmatpush.bf16.msra.mxu0 %v3489
  %3554 = vmatpush.bf16.msra.mxu0 %v3486
  %3555 = vmatmul.bf16.gmra.mxu0 %v3372
  %v3556 = vpop.f32.mrf.mxu0
  %v3557 = vadd.f32 0.0, %v3556
  %v3558 = vpop.f32.mrf.mxu0
  %v3559 = vadd.f32 0.0, %v3558
  %3560 = vdwg.mxu0
  %3561 = vmatpush.bf16.msra.mxu0 %v3508
  %3562 = vmatpush.bf16.msra.mxu0 %v3505
  %3563 = vmatpush.bf16.msra.mxu0 %v3502
  %3564 = vmatpush.bf16.msra.mxu0 %v3499
  %3565 = vmatpush.bf16.msra.mxu0 %v3496
  %3566 = vmatpush.bf16.msra.mxu0 %v3493
  %3567 = vmatpush.bf16.msra.mxu0 %v3490
  %3568 = vmatpush.bf16.msra.mxu0 %v3487
  %3569 = vmatmul.bf16.gmra.mxu0 %v3372
  %v3570 = vpop.f32.mrf.mxu0
  %v3571 = vadd.f32 0.0, %v3570
  %v3572 = vpop.f32.mrf.mxu0
  %v3573 = vadd.f32 0.0, %v3572
  %3574 = vdwg.mxu0
  %v3575 = vld [vmem:[%s7] sm:$0xff]
  %v3576 = vld [vmem:[%s7 + $0x10] sm:$0xff]
  %3579 = vrot.lane.b32.xlu0 %v3575, 112
  %v3580 = vpop.permute.xlu0 %3579
  %3581 = vrot.lane.b32.xlu0 %v3576, 112
  %v3582 = vpop.permute.xlu0 %3581
  %3585 = vrot.lane.b32.xlu0 %v3543, 96
  %v3586 = vpop.permute.xlu0 %3585
  %3587 = vrot.lane.b32.xlu0 %v3545, 96
  %v3588 = vpop.permute.xlu0 %3587
  %v3591 = vsel %vm671, %v3580, 0
  %v3593 = vsel %vm671, %v3582, 0
  %3595 = vmatpush.msra.mxu0 0.0
  %3596 = vmatpush.msra.mxu0 0.0
  %3597 = vmatpush.msra.mxu0 0.0
  %3598 = vmatpush.msra.mxu0 0.0
  %3599 = vmatpush.msra.mxu0 0.0
  %3600 = vmatpush.msra.mxu0 0.0
  %3601 = vmatpush.msra.mxu0 0.0
  %3602 = vmatpush.msra.mxu0 0.0
  %3603 = vmatpush.msra.mxu0 0.0
  %3604 = vmatpush.msra.mxu0 0.0
  %3605 = vmatpush.msra.mxu0 0.0
  %3606 = vmatpush.msra.mxu0 0.0
  %3607 = vmatpush.msra.mxu0 0.0
  %3608 = vmatpush.msra.mxu0 0.0
  %3609 = vmatpush.msra.mxu0 %v3588
  %3610 = vmatpush.msra.mxu0 %v3586
  %3611 = vmatmul.f32.gmra.mxu0 %v3591
  %v3612 = vpop.f32.mrf.mxu0
  %v3613 = vadd.f32 0.0, %v3612
  %3614 = vmatmul.f32.gmra.mxu0 %v3593
  %v3615 = vpop.f32.mrf.mxu0
  %v3616 = vadd.f32 0.0, %v3615
  %3617 = vdwg.mxu0
  %v3618 = vsel %vm671, %v3575, 0
  %v3620 = vsel %vm671, %v3576, 0
  %3622 = vmatpush.msra.mxu0 0.0
  %3623 = vmatpush.msra.mxu0 0.0
  %3624 = vmatpush.msra.mxu0 0.0
  %3625 = vmatpush.msra.mxu0 0.0
  %3626 = vmatpush.msra.mxu0 0.0
  %3627 = vmatpush.msra.mxu0 0.0
  %3628 = vmatpush.msra.mxu0 0.0
  %3629 = vmatpush.msra.mxu0 0.0
  %3630 = vmatpush.msra.mxu0 0.0
  %3631 = vmatpush.msra.mxu0 0.0
  %3632 = vmatpush.msra.mxu0 0.0
  %3633 = vmatpush.msra.mxu0 0.0
  %3634 = vmatpush.msra.mxu0 0.0
  %3635 = vmatpush.msra.mxu0 0.0
  %3636 = vmatpush.msra.mxu0 %v3545
  %3637 = vmatpush.msra.mxu0 %v3543
  %3638 = vmatmul.f32.gmra.mxu0 %v3618
  %v3639 = vpop.f32.mrf.mxu0
  %v3640 = vadd.f32 %v3613, %v3639
  %3641 = vmatmul.f32.gmra.mxu0 %v3620
  %v3642 = vpop.f32.mrf.mxu0
  %v3643 = vadd.f32 %v3616, %v3642
  %3644 = vdwg.mxu0
  %3645 = vrot.lane.b32.xlu0 %v3575, 96
  %v3646 = vpop.permute.xlu0 %3645
  %3647 = vrot.lane.b32.xlu0 %v3576, 96
  %v3648 = vpop.permute.xlu0 %3647
  %3649 = vrot.lane.b32.xlu0 %v3543, 64
  %v3650 = vpop.permute.xlu0 %3649
  %3651 = vrot.lane.b32.xlu0 %v3545, 64
  %v3652 = vpop.permute.xlu0 %3651
  %v3655 = vsel %vm671, %v3646, 0
  %v3657 = vsel %vm671, %v3648, 0
  %3659 = vmatpush.msra.mxu0 0.0
  %3660 = vmatpush.msra.mxu0 0.0
  %3661 = vmatpush.msra.mxu0 0.0
  %3662 = vmatpush.msra.mxu0 0.0
  %3663 = vmatpush.msra.mxu0 0.0
  %3664 = vmatpush.msra.mxu0 0.0
  %3665 = vmatpush.msra.mxu0 0.0
  %3666 = vmatpush.msra.mxu0 0.0
  %3667 = vmatpush.msra.mxu0 0.0
  %3668 = vmatpush.msra.mxu0 0.0
  %3669 = vmatpush.msra.mxu0 0.0
  %3670 = vmatpush.msra.mxu0 0.0
  %3671 = vmatpush.msra.mxu0 0.0
  %3672 = vmatpush.msra.mxu0 0.0
  %3673 = vmatpush.msra.mxu0 %v3652
  %3674 = vmatpush.msra.mxu0 %v3650
  %3675 = vmatmul.f32.gmra.mxu0 %v3655
  %v3676 = vpop.f32.mrf.mxu0
  %v3677 = vadd.f32 0.0, %v3676
  %3678 = vmatmul.f32.gmra.mxu0 %v3657
  %v3679 = vpop.f32.mrf.mxu0
  %v3680 = vadd.f32 0.0, %v3679
  %3681 = vdwg.mxu0
  %v3682 = vadd.f32 %v3640, %v3677
  %v3683 = vadd.f32 %v3643, %v3680
  %3684 = vrot.lane.b32.xlu0 %v3575, 80
  %v3685 = vpop.permute.xlu0 %3684
  %3686 = vrot.lane.b32.xlu0 %v3576, 80
  %v3687 = vpop.permute.xlu0 %3686
  %3688 = vrot.lane.b32.xlu0 %v3543, 32
  %v3689 = vpop.permute.xlu0 %3688
  %3690 = vrot.lane.b32.xlu0 %v3545, 32
  %v3691 = vpop.permute.xlu0 %3690
  %v3694 = vsel %vm671, %v3685, 0
  %v3696 = vsel %vm671, %v3687, 0
  %3698 = vmatpush.msra.mxu0 0.0
  %3699 = vmatpush.msra.mxu0 0.0
  %3700 = vmatpush.msra.mxu0 0.0
  %3701 = vmatpush.msra.mxu0 0.0
  %3702 = vmatpush.msra.mxu0 0.0
  %3703 = vmatpush.msra.mxu0 0.0
  %3704 = vmatpush.msra.mxu0 0.0
  %3705 = vmatpush.msra.mxu0 0.0
  %3706 = vmatpush.msra.mxu0 0.0
  %3707 = vmatpush.msra.mxu0 0.0
  %3708 = vmatpush.msra.mxu0 0.0
  %3709 = vmatpush.msra.mxu0 0.0
  %3710 = vmatpush.msra.mxu0 0.0
  %3711 = vmatpush.msra.mxu0 0.0
  %3712 = vmatpush.msra.mxu0 %v3691
  %3713 = vmatpush.msra.mxu0 %v3689
  %3714 = vmatmul.f32.gmra.mxu0 %v3694
  %v3715 = vpop.f32.mrf.mxu0
  %v3716 = vadd.f32 0.0, %v3715
  %3717 = vmatmul.f32.gmra.mxu0 %v3696
  %v3718 = vpop.f32.mrf.mxu0
  %v3719 = vadd.f32 0.0, %v3718
  %3720 = vdwg.mxu0
  %v3721 = vadd.f32 %v3682, %v3716
  %v3722 = vadd.f32 %v3683, %v3719
  %3723 = vrot.lane.b32.xlu0 %v3575, 64
  %v3724 = vpop.permute.xlu0 %3723
  %3725 = vrot.lane.b32.xlu0 %v3576, 64
  %v3726 = vpop.permute.xlu0 %3725
  %v3727 = vsel %vm671, %v3724, 0
  %v3729 = vsel %vm671, %v3726, 0
  %3731 = vmatpush.msra.mxu0 0.0
  %3732 = vmatpush.msra.mxu0 0.0
  %3733 = vmatpush.msra.mxu0 0.0
  %3734 = vmatpush.msra.mxu0 0.0
  %3735 = vmatpush.msra.mxu0 0.0
  %3736 = vmatpush.msra.mxu0 0.0
  %3737 = vmatpush.msra.mxu0 0.0
  %3738 = vmatpush.msra.mxu0 0.0
  %3739 = vmatpush.msra.mxu0 0.0
  %3740 = vmatpush.msra.mxu0 0.0
  %3741 = vmatpush.msra.mxu0 0.0
  %3742 = vmatpush.msra.mxu0 0.0
  %3743 = vmatpush.msra.mxu0 0.0
  %3744 = vmatpush.msra.mxu0 0.0
  %3745 = vmatpush.msra.mxu0 %v3559
  %3746 = vmatpush.msra.mxu0 %v3557
  %3747 = vmatmul.f32.gmra.mxu0 %v3727
  %v3748 = vpop.f32.mrf.mxu0
  %v3749 = vadd.f32 0.0, %v3748
  %3750 = vmatmul.f32.gmra.mxu0 %v3729
  %v3751 = vpop.f32.mrf.mxu0
  %v3752 = vadd.f32 0.0, %v3751
  %3753 = vdwg.mxu0
  %v3754 = vadd.f32 %v3721, %v3749
  %v3755 = vadd.f32 %v3722, %v3752
  %3756 = vrot.lane.b32.xlu0 %v3575, 48
  %v3757 = vpop.permute.xlu0 %3756
  %3758 = vrot.lane.b32.xlu0 %v3576, 48
  %v3759 = vpop.permute.xlu0 %3758
  %3762 = vrot.lane.b32.xlu0 %v3557, 96
  %v3763 = vpop.permute.xlu0 %3762
  %3764 = vrot.lane.b32.xlu0 %v3559, 96
  %v3765 = vpop.permute.xlu0 %3764
  %v3768 = vsel %vm671, %v3757, 0
  %v3770 = vsel %vm671, %v3759, 0
  %3772 = vmatpush.msra.mxu0 0.0
  %3773 = vmatpush.msra.mxu0 0.0
  %3774 = vmatpush.msra.mxu0 0.0
  %3775 = vmatpush.msra.mxu0 0.0
  %3776 = vmatpush.msra.mxu0 0.0
  %3777 = vmatpush.msra.mxu0 0.0
  %3778 = vmatpush.msra.mxu0 0.0
  %3779 = vmatpush.msra.mxu0 0.0
  %3780 = vmatpush.msra.mxu0 0.0
  %3781 = vmatpush.msra.mxu0 0.0
  %3782 = vmatpush.msra.mxu0 0.0
  %3783 = vmatpush.msra.mxu0 0.0
  %3784 = vmatpush.msra.mxu0 0.0
  %3785 = vmatpush.msra.mxu0 0.0
  %3786 = vmatpush.msra.mxu0 %v3765
  %3787 = vmatpush.msra.mxu0 %v3763
  %3788 = vmatmul.f32.gmra.mxu0 %v3768
  %v3789 = vpop.f32.mrf.mxu0
  %v3790 = vadd.f32 0.0, %v3789
  %3791 = vmatmul.f32.gmra.mxu0 %v3770
  %v3792 = vpop.f32.mrf.mxu0
  %v3793 = vadd.f32 0.0, %v3792
  %3794 = vdwg.mxu0
  %v3795 = vadd.f32 %v3754, %v3790
  %v3796 = vadd.f32 %v3755, %v3793
  %3797 = vrot.lane.b32.xlu0 %v3575, 32
  %v3798 = vpop.permute.xlu0 %3797
  %3799 = vrot.lane.b32.xlu0 %v3576, 32
  %v3800 = vpop.permute.xlu0 %3799
  %3801 = vrot.lane.b32.xlu0 %v3557, 64
  %v3802 = vpop.permute.xlu0 %3801
  %3803 = vrot.lane.b32.xlu0 %v3559, 64
  %v3804 = vpop.permute.xlu0 %3803
  %v3807 = vsel %vm671, %v3798, 0
  %v3809 = vsel %vm671, %v3800, 0
  %3811 = vmatpush.msra.mxu0 0.0
  %3812 = vmatpush.msra.mxu0 0.0
  %3813 = vmatpush.msra.mxu0 0.0
  %3814 = vmatpush.msra.mxu0 0.0
  %3815 = vmatpush.msra.mxu0 0.0
  %3816 = vmatpush.msra.mxu0 0.0
  %3817 = vmatpush.msra.mxu0 0.0
  %3818 = vmatpush.msra.mxu0 0.0
  %3819 = vmatpush.msra.mxu0 0.0
  %3820 = vmatpush.msra.mxu0 0.0
  %3821 = vmatpush.msra.mxu0 0.0
  %3822 = vmatpush.msra.mxu0 0.0
  %3823 = vmatpush.msra.mxu0 0.0
  %3824 = vmatpush.msra.mxu0 0.0
  %3825 = vmatpush.msra.mxu0 %v3804
  %3826 = vmatpush.msra.mxu0 %v3802
  %3827 = vmatmul.f32.gmra.mxu0 %v3807
  %v3828 = vpop.f32.mrf.mxu0
  %v3829 = vadd.f32 0.0, %v3828
  %3830 = vmatmul.f32.gmra.mxu0 %v3809
  %v3831 = vpop.f32.mrf.mxu0
  %v3832 = vadd.f32 0.0, %v3831
  %3833 = vdwg.mxu0
  %v3834 = vadd.f32 %v3795, %v3829
  %v3835 = vadd.f32 %v3796, %v3832
  %3836 = vrot.lane.b32.xlu0 %v3575, 16
  %v3837 = vpop.permute.xlu0 %3836
  %3838 = vrot.lane.b32.xlu0 %v3576, 16
  %v3839 = vpop.permute.xlu0 %3838
  %3840 = vrot.lane.b32.xlu0 %v3557, 32
  %v3841 = vpop.permute.xlu0 %3840
  %3842 = vrot.lane.b32.xlu0 %v3559, 32
  %v3843 = vpop.permute.xlu0 %3842
  %v3846 = vsel %vm671, %v3837, 0
  %v3848 = vsel %vm671, %v3839, 0
  %3850 = vmatpush.msra.mxu0 0.0
  %3851 = vmatpush.msra.mxu0 0.0
  %3852 = vmatpush.msra.mxu0 0.0
  %3853 = vmatpush.msra.mxu0 0.0
  %3854 = vmatpush.msra.mxu0 0.0
  %3855 = vmatpush.msra.mxu0 0.0
  %3856 = vmatpush.msra.mxu0 0.0
  %3857 = vmatpush.msra.mxu0 0.0
  %3858 = vmatpush.msra.mxu0 0.0
  %3859 = vmatpush.msra.mxu0 0.0
  %3860 = vmatpush.msra.mxu0 0.0
  %3861 = vmatpush.msra.mxu0 0.0
  %3862 = vmatpush.msra.mxu0 0.0
  %3863 = vmatpush.msra.mxu0 0.0
  %3864 = vmatpush.msra.mxu0 %v3843
  %3865 = vmatpush.msra.mxu0 %v3841
  %3866 = vmatmul.f32.gmra.mxu0 %v3846
  %v3867 = vpop.f32.mrf.mxu0
  %v3868 = vadd.f32 0.0, %v3867
  %3869 = vmatmul.f32.gmra.mxu0 %v3848
  %v3870 = vpop.f32.mrf.mxu0
  %v3871 = vadd.f32 0.0, %v3870
  %3872 = vdwg.mxu0
  %v3873 = vadd.f32 %v3834, %v3868
  %v3874 = vadd.f32 %v3835, %v3871
  %v3875 = vld [vmem:[%s7 + $0x8] sm:$0xff]
  %v3876 = vld [vmem:[%s7 + $0x18] sm:$0xff]
  %v3878 = vsel %vm671, %v3875, 0
  %v3881 = vsel %vm671, %v3876, 0
  %3883 = vmatpush.msra.mxu0 0.0
  %3884 = vmatpush.msra.mxu0 0.0
  %3885 = vmatpush.msra.mxu0 0.0
  %3886 = vmatpush.msra.mxu0 0.0
  %3887 = vmatpush.msra.mxu0 0.0
  %3888 = vmatpush.msra.mxu0 0.0
  %3889 = vmatpush.msra.mxu0 0.0
  %3890 = vmatpush.msra.mxu0 0.0
  %3891 = vmatpush.msra.mxu0 0.0
  %3892 = vmatpush.msra.mxu0 0.0
  %3893 = vmatpush.msra.mxu0 0.0
  %3894 = vmatpush.msra.mxu0 0.0
  %3895 = vmatpush.msra.mxu0 0.0
  %3896 = vmatpush.msra.mxu0 0.0
  %3897 = vmatpush.msra.mxu0 %v3573
  %3898 = vmatpush.msra.mxu0 %v3571
  %3899 = vmatmul.f32.gmra.mxu0 %v3878
  %v3900 = vpop.f32.mrf.mxu0
  %v3901 = vadd.f32 0.0, %v3900
  %3902 = vmatmul.f32.gmra.mxu0 %v3881
  %v3903 = vpop.f32.mrf.mxu0
  %v3904 = vadd.f32 0.0, %v3903
  %3905 = vdwg.mxu0
  %v3906 = vadd.f32 %v3873, %v3901
  %v3907 = vadd.f32 %v3874, %v3904
  %v3908 = vld [vmem:[%s8] sm:$0xff]
  %v3909 = vld [vmem:[%s8 + $0x8] sm:$0xff]
  %3911 = vset.pattern.permute.xlu0 0
  %3912 = vperm.xlu0 %3911, %v3908
  %v3913 = vpop.permute.xlu0 %3912
  %3916 = vset.pattern.permute.xlu0 0
  %3917 = vperm.xlu0 %3916, %v3909
  %v3918 = vpop.permute.xlu0 %3917
  %v3920 = vadd.f32 %v3906, %v3913
  %v3921 = vadd.f32 %v3907, %v3918
  %vm3922 = vcmp.ge.f32.partialorder %v3920, 0.0
  %vm3923 = vcmp.ge.f32.partialorder %v3921, 0.0
  %v3924 = vmul.f32 %v3920, 0.2
  %v3925 = vmul.f32 %v3921, 0.2
  %v3926 = vsel %vm3922, %v3920, %v3924
  %v3927 = vsel %vm3923, %v3921, %v3925
  %v3928 = vld [vmem:[%s9] sm:$0xff]
  %v3929 = vld [vmem:[%s9 + $0x8] sm:$0xff]
  %v3930 = vld [vmem:[%s9 + $0x10] sm:$0xff]
  %v3931 = vld [vmem:[%s9 + $0x18] sm:$0xff]
  %v3932 = vmul.f32 %v3928, %v3926
  %v3933 = vmul.f32 %v3929, %v3927
  %vm3934 = vcmask 261120
  %v3935 = vsel %vm3934, %v3932, 0.0
  %v3936 = vsel %vm3934, %v3933, 0.0
  %v3937 = vadd.f32 %v3935, %v3936
  %v3938 = vrot.slane %v3937, 4
  %v3939 = vadd.f32 %v3937, %v3938
  %v3940 = vrot.slane %v3939, 2
  %v3941 = vadd.f32 %v3939, %v3940
  %v3942 = vrot.slane %v3941, 1
  %v3943 = vadd.f32 %v3941, %v3942
  %vm3944 = vcmask 253952
  %3945 = vst.msk [vmem:[%s10] sm:$0x1] %vm3944, %v3943
  %v3946 = vmul.f32 %v3930, %v3926
  %v3947 = vmul.f32 %v3931, %v3927
  %v3948 = vsel %vm3934, %v3946, 0.0
  %v3949 = vsel %vm3934, %v3947, 0.0
  %v3950 = vadd.f32 %v3948, %v3949
  %v3951 = vrot.slane %v3950, 4
  %v3952 = vadd.f32 %v3950, %v3951
  %v3953 = vrot.slane %v3952, 2
  %v3954 = vadd.f32 %v3952, %v3953
  %v3955 = vrot.slane %v3954, 1
  %v3956 = vadd.f32 %v3954, %v3955
  %3957 = vst.msk [vmem:[%s10 + $0x1] sm:$0x1] %vm3944, %v3956
  // Predicated region
  $region42: #{fstn_forward.5} parent=0 // pred_check
    _
  $region43: #{fstn_forward.5} parent=0 // pred_check_branch
    %3959 = sbr.rel (0) target = $region45
  $region44: #{fstn_forward.5} parent=0 // pred_region
    _
  $region45: #{fstn_forward.5} parent=0 // pred_fallthru
    _
  // Predicated region
  $region46: #{fstn_forward.5} parent=0 // pred_check
    _
  $region47: #{fstn_forward.5} parent=0 // pred_check_branch
    %3961 = sbr.rel (0) target = $region49
  $region48: #{fstn_forward.5} parent=0 // pred_region
    _
  $region49: #{fstn_forward.5} parent=0 // pred_fallthru
    _

</llo_original>
